<compile_context>
chip_gen: v7x
topology: tpu7x:2x2x1
jax: 0.10.0
libtpu: 0.0.40
codegen_flags: <defaults>
</compile_context>

<pallas_src>
import math

import jax
import jax.numpy as jnp
from jax.experimental import pallas as pl
from jax.experimental.pallas import tpu as pltpu

# ---- problem configuration (embed_dims must be divisible by sum(channel_split)=8)
N, C, H, W = 2, 8, 16, 16
FFN_RATIO = 4.0
CH = int(C * FFN_RATIO)                    # 32
CH_SPLIT = (1, 3, 4)                       # attn_channel_split
D1 = int(CH_SPLIT[1] / sum(CH_SPLIT) * C)  # 3
D2 = int(CH_SPLIT[2] / sum(CH_SPLIT) * C)  # 4
D0 = C - D1 - D2                           # 1
EPS = 1e-5
INIT_VALUE = 1e-5

WC = W * C                                 # 128 folded lane width (attn side)
WCH = W * CH                               # 512 folded lane width (FFN side)
PA = 16                                    # H halo of attn pad scratch (needs >= 9; 16 keeps stores 8-aligned)
PM = 8                                     # H halo of FFN pad scratch (needs >= 1)
PH_A = H + 2 * PA                          # 48
PH_M = H + 2 * PM                          # 32

# ---- packed parameter row indices -----------------------------------------
# wmat (4, WC, WC) bf16: 0 = proj_1, 1 = gate, 2 = PW_conv, 3 = proj_2
IV_SN_G, IV_SN_B, IV_P1_B, IV_SIGMA_A = 0, 1, 2, 3
IV_GATE_B, IV_DW0_B, IV_DW1_B, IV_DW2_B = 4, 5, 6, 7
IV_M0, IV_PWC_B, IV_P2_B, IV_SLS = 8, 9, 10, 11
IV_CN_G, IV_CN_B, IV_FC2_B, IV_CLS, IV_DEC_B = 12, 13, 14, 15, 16
IV_DW0_W, IV_DW1_W, IV_DW2_W = 17, 42, 67      # 25 + 25 + 49 tap rows
NV128 = 116
IW_FC1_B, IW_MDW_B, IW_SIGMA_M = 0, 1, 2
IW_MDW_W = 3                                   # 9 tap rows
NV512 = 12

BF16 = jnp.bfloat16


# ---- in-kernel math helpers -------------------------------------------------
def _silu(x):
    # SiLU: x * sigmoid(x), with sigmoid(x) = 0.5*(1 + tanh(x/2)) -> one EUP tanh.
    return x * (0.5 * (1.0 + jnp.tanh(0.5 * x)))


_GELU_C = math.sqrt(2.0 / math.pi)


def _gelu(x):
    # tanh-approximate GELU (tanh on EUP).
    return 0.5 * x * (1.0 + jnp.tanh(_GELU_C * (x + 0.044715 * x * x * x)))


def _wsum_bcast(v):
    """Sum over the W groups of C lanes and broadcast the per-channel result back to
    every (w, c) lane: 4-step cyclic lane log-reduction (XLU rolls by 8/16/32/64)."""
    for s in (C, 2 * C, 4 * C, 8 * C):
        v = v + pltpu.roll(v, shift=s, axis=v.ndim - 1)
    return v


def _bn(x, g_row, b_row):
    """BatchNorm2d (batch statistics) on a (N, H, W*C) folded tensor.

    Single pass: E[x], E[x^2] via one sublane reduction each; W-group summation and
    per-channel broadcast via the lane log-reduction (no matmul)."""
    xr = x.reshape(N * H, WC)
    s1 = jnp.sum(xr, axis=0, keepdims=True)                 # (1, WC)
    s2 = jnp.sum(xr * xr, axis=0, keepdims=True)            # (1, WC)
    sb = _wsum_bcast(jnp.concatenate([s1, s2], axis=0))     # (2, WC)
    inv_n = 1.0 / float(N * H * W)
    mean = sb[0:1, :] * inv_n
    var = jnp.maximum(sb[1:2, :] * inv_n - mean * mean, 0.0)
    scale = jax.lax.rsqrt(var + EPS) * g_row
    return x * scale + (b_row - mean * scale)


def _avg_pool(y):
    """adaptive_avg_pool2d(., 1) under the fold: per (n, c) mean over (H, W),
    broadcast back over all (w, c) lanes.  Returns (N, 1, WC)."""
    t = jnp.sum(y, axis=1)                                   # (N, WC) sum over H
    tb = _wsum_bcast(t)                                      # sum over W + broadcast
    return tb.reshape(N, 1, WC) * (1.0 / float(H * W))


def _pw(x, w_fold, b_row):
    """1x1 conv == block-diagonal bf16 MXU matmul under the folded layout."""
    n, h, kin = x.shape
    y = jnp.dot(x.reshape(n * h, kin).astype(BF16), w_fold,
                preferred_element_type=jnp.float32)
    return y.reshape(n, h, -1) + b_row


def _dw_from_pad(pad_ref, halo, taps_ref, base, bias_row, k, dil, conv_pad, cpg,
                 n_acc, h_tile):
    """Depth-wise 'same' conv reading its input from the zero-halo pad scratch.

    pad_ref: (N, H + 2*halo, W*cpg); rows [halo, halo+H) hold the conv input and the
    halo rows are zero.  Per W-offset j the whole needed row span is rolled ONCE
    (k-1 lane rolls per conv, XLU); H shifts are sublane slices of the rolled span.
    W-boundary masks are already folded into the per-tap weight rows in taps_ref.
    Multiple accumulators (n_acc) keep the VALU chains short; the conv is processed
    in H tiles of h_tile rows to bound live vregs on the 512-lane FFN conv."""
    lanes = W * cpg
    start = halo - conv_pad
    span_h = (k - 1) * dil
    parts = []
    for h0 in range(0, H, h_tile):
        span = pad_ref[:, start + h0:start + h0 + span_h + h_tile, :]
        accs = [jnp.zeros((N, h_tile, lanes), jnp.float32) for _ in range(n_acc)]
        accs[0] = accs[0] + bias_row
        t = 0
        for j in range(k):
            dj = (j - k // 2) * dil
            shift = (-dj * cpg) % lanes
            rolled = span if shift == 0 else pltpu.roll(span, shift=shift, axis=2)
            for i in range(k):
                r = base + i * k + j
                tap = rolled[:, i * dil:i * dil + h_tile, :]
                accs[t % n_acc] = accs[t % n_acc] + tap * taps_ref[r:r + 1, :]
                t += 1
        part = accs[0]
        for a in accs[1:]:
            part = part + a
        parts.append(part)
    return parts[0] if len(parts) == 1 else jnp.concatenate(parts, axis=1)


# ---- the kernel --------------------------------------------------------------
def moga_kernel(x_ref, wm_ref, fc1_ref, fc2_ref, decd_ref, decb_ref,
                v128_ref, v512_ref, out_ref, pad_a, pad_m):
    def r128(i):
        return v128_ref[i:i + 1, :]          # (1, WC)

    def r512(i):
        return v512_ref[i:i + 1, :]          # (1, WCH)

    x = x_ref[...]                            # (N, H, WC)

    # zero only the halo bands of the pad scratches; interiors are always overwritten.
    zero_a = jnp.zeros((N, PA, WC), jnp.float32)
    pad_a[:, 0:PA, :] = zero_a
    pad_a[:, PA + H:PH_A, :] = zero_a
    zero_m = jnp.zeros((N, PM, WCH), jnp.float32)
    pad_m[:, 0:PM, :] = zero_m
    pad_m[:, PM + H:PH_M, :] = zero_m

    # ===================== spatial (gated aggregation) block =====================
    identity = x
    y = _bn(x, r128(IV_SN_G), r128(IV_SN_B))                      # spatial_norm
    shortcut = y
    # MultiOrderGatedAggregation.feat_decompose
    y = _pw(y, wm_ref[0], r128(IV_P1_B))                          # proj_1 (1x1)
    y = y + r128(IV_SIGMA_A) * (y - _avg_pool(y))                 # ElementScale sigma
    y = _silu(y)                                                  # act_value (SiLU)
    g = _pw(y, wm_ref[1], r128(IV_GATE_B))                        # gate (1x1)

    # MultiOrderDWConv: pad once, park x0 in the same interior for DW_conv1/2.
    pad_a[:, PA:PA + H, :] = y
    x0 = _dw_from_pad(pad_a, PA, v128_ref, IV_DW0_W, r128(IV_DW0_B), 5, 1, 2, C,
                      n_acc=4, h_tile=H)
    pad_a[:, PA:PA + H, :] = x0                                   # reused for DW_conv1/2
    x1 = _dw_from_pad(pad_a, PA, v128_ref, IV_DW1_W, r128(IV_DW1_B), 5, 2, 4, C,
                      n_acc=4, h_tile=H)
    x2 = _dw_from_pad(pad_a, PA, v128_ref, IV_DW2_W, r128(IV_DW2_B), 7, 3, 9, C,
                      n_acc=4, h_tile=H)
    # channel-split concat: re-read x0 from the pad interior (keeps it off vregs above)
    cat = pad_a[:, PA:PA + H, :] * r128(IV_M0) + x1 + x2
    v = _pw(cat, wm_ref[2], r128(IV_PWC_B))                       # PW_conv (1x1)

    attn = _pw(_silu(g) * _silu(v), wm_ref[3], r128(IV_P2_B))     # proj_2(act(g)*act(v))
    attn = attn + shortcut
    x = identity + r128(IV_SLS) * attn                            # spatial_layer_scale

    # ===================== channel (FFN) block =====================
    identity = x
    z = _bn(x, r128(IV_CN_G), r128(IV_CN_B))                      # channel_norm
    z = _pw(z, fc1_ref[...], r512(IW_FC1_B))                      # fc1 (C -> 4C)
    pad_m[:, PM:PM + H, :] = z
    z = _dw_from_pad(pad_m, PM, v512_ref, IW_MDW_W, r512(IW_MDW_B), 3, 1, 1, CH,
                     n_acc=2, h_tile=8)
    z = _gelu(z)                                                  # act (GELU)
    # feat_decompose: decompose = 1x1 conv 4C -> 1; folded as two small bf16 matmuls
    zf = z.reshape(N * H, WCH)
    d = jnp.dot(zf.astype(BF16), decd_ref[...],
                preferred_element_type=jnp.float32)               # (N*H, W)
    d = d + v128_ref[IV_DEC_B:IV_DEC_B + 1, 0:1]                  # + decompose bias
    gd = _gelu(d)
    gdb = jnp.dot(gd.astype(BF16), decb_ref[...],
                  preferred_element_type=jnp.float32).reshape(N, H, WCH)
    z = z + r512(IW_SIGMA_M) * (z - gdb)
    z = _pw(z, fc2_ref[...], r128(IV_FC2_B))                      # fc2 (4C -> C)
    x = identity + r128(IV_CLS) * z                               # channel_layer_scale

    out_ref[...] = x


# ---- deterministic synthetic parameters + host-side folding -------------------
def _fold_dw_taps(wt, k, dil, cpg):
    """wt: (k*k, cpg) depthwise weights -> (k*k, W*cpg) folded rows with each
    tap's W-boundary validity mask baked in."""
    f32 = jnp.float32
    w_idx = jnp.arange(W)
    rows = []
    for i in range(k):
        for j in range(k):
            dj = (j - k // 2) * dil
            valid = ((w_idx + dj >= 0) & (w_idx + dj < W)).astype(f32)   # (W,)
            rows.append(jnp.repeat(valid, cpg) * jnp.tile(wt[i * k + j], W))
    return jnp.stack(rows, axis=0)


def init_params(key):
    f32 = jnp.float32
    keys = iter(jax.random.split(key, 32))
    rnd = lambda shape, s=0.1: s * jax.random.normal(next(keys), shape, dtype=f32)

    # raw module parameters (synthetic, deterministic)
    sn_g, sn_b = jnp.ones((C,), f32), jnp.zeros((C,), f32)        # spatial_norm (BN)
    p1_w, p1_b = rnd((C, C)), rnd((C,))                           # proj_1  (cin, cout)
    gate_w, gate_b = rnd((C, C)), rnd((C,))
    dw0_w, dw0_b = rnd((25, C)), rnd((C,))                        # 5x5 dil 1 (all C)
    dw1_w = jnp.zeros((25, C), f32).at[:, D0:D0 + D1].set(rnd((25, D1)))   # zero-embedded
    dw1_b = jnp.zeros((C,), f32).at[D0:D0 + D1].set(rnd((D1,)))
    dw2_w = jnp.zeros((49, C), f32).at[:, C - D2:].set(rnd((49, D2)))
    dw2_b = jnp.zeros((C,), f32).at[C - D2:].set(rnd((D2,)))
    pwc_w, pwc_b = rnd((C, C)), rnd((C,))
    p2_w, p2_b = rnd((C, C)), rnd((C,))
    attn_sigma = INIT_VALUE * jnp.ones((C,), f32)
    sls = INIT_VALUE * jnp.ones((C,), f32)
    cn_g, cn_b = jnp.ones((C,), f32), jnp.zeros((C,), f32)        # channel_norm (BN)
    fc1_w, fc1_b = rnd((C, CH)), rnd((CH,))
    mdw_w, mdw_b = rnd((9, CH)), rnd((CH,))                       # 3x3 depthwise
    dec_w, dec_b = rnd((CH,)), rnd(())
    mlp_sigma = INIT_VALUE * jnp.ones((CH,), f32)
    fc2_w, fc2_b = rnd((CH, C)), rnd((C,))
    cls = INIT_VALUE * jnp.ones((C,), f32)
    m0 = (jnp.arange(C) < D0).astype(f32)

    # fold into the (N, H, W*C) lane-dense layout; matmul weights stored bf16
    eye_w = jnp.eye(W, dtype=f32)
    wmat = jnp.stack([jnp.kron(eye_w, p1_w),
                      jnp.kron(eye_w, gate_w),
                      jnp.kron(eye_w, pwc_w),
                      jnp.kron(eye_w, p2_w)], axis=0).astype(BF16)     # (4, WC, WC)
    fc1_f = jnp.kron(eye_w, fc1_w).astype(BF16)                        # (WC, WCH)
    fc2_f = jnp.kron(eye_w, fc2_w).astype(BF16)                        # (WCH, WC)
    dec_d = jnp.kron(eye_w, dec_w.reshape(CH, 1)).astype(BF16)         # (WCH, W)
    dec_bmat = jnp.kron(eye_w, jnp.ones((1, CH), f32)).astype(BF16)    # (W, WCH)

    tc = lambda vv: jnp.tile(vv, W)                                    # (C,)  -> (WC,)
    th = lambda vv: jnp.tile(vv, W)                                    # (CH,) -> (WCH,)

    v128 = jnp.concatenate([
        jnp.stack([tc(sn_g), tc(sn_b), tc(p1_b), tc(attn_sigma),
                   tc(gate_b), tc(dw0_b), tc(dw1_b), tc(dw2_b),
                   tc(m0), tc(pwc_b), tc(p2_b), tc(sls),
                   tc(cn_g), tc(cn_b), tc(fc2_b), tc(cls),
                   jnp.full((WC,), dec_b, f32)], axis=0),
        _fold_dw_taps(dw0_w, 5, 1, C),
        _fold_dw_taps(dw1_w, 5, 2, C),
        _fold_dw_taps(dw2_w, 7, 3, C),
    ], axis=0)
    assert v128.shape == (NV128, WC)

    v512 = jnp.concatenate([
        jnp.stack([th(fc1_b), th(mdw_b), th(mlp_sigma)], axis=0),
        _fold_dw_taps(mdw_w, 3, 1, CH),
    ], axis=0)
    assert v512.shape == (NV512, WCH)

    return [wmat, fc1_f, fc2_f, dec_d, dec_bmat, v128, v512]


# ---- wrapper -------------------------------------------------------------------
@jax.jit
def moga_block(x_nchw, wmat, fc1_f, fc2_f, dec_d, dec_bmat, v128, v512):
    # NCHW -> folded lane-dense (N, H, W*C) layout (boundary layout plumbing only).
    x = jnp.transpose(x_nchw, (0, 2, 3, 1)).reshape(N, H, WC).astype(jnp.float32)
    out = pl.pallas_call(
        moga_kernel,
        out_shape=jax.ShapeDtypeStruct((N, H, WC), jnp.float32),
        in_specs=[pl.BlockSpec(memory_space=pltpu.MemorySpace.VMEM)] * 8,
        out_specs=pl.BlockSpec(memory_space=pltpu.MemorySpace.VMEM),
        scratch_shapes=[
            pltpu.VMEM((N, PH_A, WC), jnp.float32),    # zero-halo pad: attn DW convs
            pltpu.VMEM((N, PH_M, WCH), jnp.float32),   # zero-halo pad: FFN DW conv
        ],
    )(x, wmat, fc1_f, fc2_f, dec_d, dec_bmat, v128, v512)
    return jnp.transpose(out.reshape(N, H, W, C), (0, 3, 1, 2))        # back to NCHW


if __name__ == "__main__":
    key = jax.random.PRNGKey(0)
    kx, kp = jax.random.split(key)
    x = jax.random.normal(kx, (N, C, H, W), dtype=jnp.float32)         # NCHW like PyTorch
    params = init_params(kp)
    y = moga_block(x, *params)
    jax.block_until_ready(y)
    assert y.shape == (N, C, H, W)
    assert bool(jnp.all(jnp.isfinite(y)))
    print("KERNEL_OK")
</pallas_src>

<mosaic_0001>
module attributes {stable_mosaic.version = 11 : i64} {
  func.func @moga_kernel(%arg0: memref<2x16x128xf32, #tpu.memory_space<vmem>>, %arg1: memref<4x128x128xbf16, #tpu.memory_space<vmem>>, %arg2: memref<128x512xbf16, #tpu.memory_space<vmem>>, %arg3: memref<512x128xbf16, #tpu.memory_space<vmem>>, %arg4: memref<512x16xbf16, #tpu.memory_space<vmem>>, %arg5: memref<16x512xbf16, #tpu.memory_space<vmem>>, %arg6: memref<116x128xf32, #tpu.memory_space<vmem>>, %arg7: memref<12x512xf32, #tpu.memory_space<vmem>>, %arg8: memref<2x16x128xf32, #tpu.memory_space<vmem>>, %arg9: memref<2x48x128xf32, #tpu.memory_space<vmem>>, %arg10: memref<2x32x512xf32, #tpu.memory_space<vmem>>) attributes {dimension_semantics = [], scalar_prefetch = 0 : i64, scratch_operands = 2 : i64, tpu.core_type = #tpu.core_type<tc>} {
    %c0 = arith.constant 0 : index
    %c0_0 = arith.constant 0 : index
    %c0_1 = arith.constant 0 : index
    %0 = vector.load %arg0[%c0, %c0_0, %c0_1] : memref<2x16x128xf32, #tpu.memory_space<vmem>>, vector<2x16x128xf32>
    %cst = arith.constant 0.000000e+00 : f32
    %1 = vector.broadcast %cst : f32 to vector<2x16x128xf32>
    %c0_2 = arith.constant 0 : index
    %c0_3 = arith.constant 0 : index
    %c0_4 = arith.constant 0 : index
    %2 = vector.load %arg9[%c0_2, %c0_3, %c0_4] : memref<2x48x128xf32, #tpu.memory_space<vmem>>, vector<2x16x128xf32>
    tpu.vector_store %arg9[%c0_2, %c0_3, %c0_4], %1 {strides = array<i32>} : memref<2x48x128xf32, #tpu.memory_space<vmem>>, vector<2x16x128xf32>,
    %c0_5 = arith.constant 0 : index
    %c32 = arith.constant 32 : index
    %c0_6 = arith.constant 0 : index
    %3 = vector.load %arg9[%c0_5, %c32, %c0_6] : memref<2x48x128xf32, #tpu.memory_space<vmem>>, vector<2x16x128xf32>
    tpu.vector_store %arg9[%c0_5, %c32, %c0_6], %1 {strides = array<i32>} : memref<2x48x128xf32, #tpu.memory_space<vmem>>, vector<2x16x128xf32>,
    %cst_7 = arith.constant 0.000000e+00 : f32
    %4 = vector.broadcast %cst_7 : f32 to vector<2x8x512xf32>
    %c0_8 = arith.constant 0 : index
    %c0_9 = arith.constant 0 : index
    %c0_10 = arith.constant 0 : index
    %5 = vector.load %arg10[%c0_8, %c0_9, %c0_10] : memref<2x32x512xf32, #tpu.memory_space<vmem>>, vector<2x8x512xf32>
    tpu.vector_store %arg10[%c0_8, %c0_9, %c0_10], %4 {strides = array<i32>} : memref<2x32x512xf32, #tpu.memory_space<vmem>>, vector<2x8x512xf32>,
    %c0_11 = arith.constant 0 : index
    %c24 = arith.constant 24 : index
    %c0_12 = arith.constant 0 : index
    %6 = vector.load %arg10[%c0_11, %c24, %c0_12] : memref<2x32x512xf32, #tpu.memory_space<vmem>>, vector<2x8x512xf32>
    tpu.vector_store %arg10[%c0_11, %c24, %c0_12], %4 {strides = array<i32>} : memref<2x32x512xf32, #tpu.memory_space<vmem>>, vector<2x8x512xf32>,
    %c0_13 = arith.constant 0 : index
    %c0_14 = arith.constant 0 : index
    %7 = vector.load %arg6[%c0_13, %c0_14] : memref<116x128xf32, #tpu.memory_space<vmem>>, vector<1x128xf32>
    %c1 = arith.constant 1 : index
    %c0_15 = arith.constant 0 : index
    %8 = vector.load %arg6[%c1, %c0_15] : memref<116x128xf32, #tpu.memory_space<vmem>>, vector<1x128xf32>
    %9 = vector.shape_cast %0 : vector<2x16x128xf32> to vector<32x128xf32>
    %cst_16 = arith.constant dense<0.000000e+00> : vector<128xf32>
    %10 = vector.multi_reduction <add>, %9, %cst_16 [0] : vector<32x128xf32> to vector<128xf32>
    %11 = vector.shape_cast %10 : vector<128xf32> to vector<1x128xf32>
    %12 = arith.mulf %9, %9 : vector<32x128xf32>
    %cst_17 = arith.constant dense<0.000000e+00> : vector<128xf32>
    %13 = vector.multi_reduction <add>, %12, %cst_17 [0] : vector<32x128xf32> to vector<128xf32>
    %14 = vector.shape_cast %13 : vector<128xf32> to vector<1x128xf32>
    %15 = tpu.concatenate %11, %14 in 0 : vector<1x128xf32>, vector<1x128xf32> -> vector<2x128xf32>
    %c8_i32 = arith.constant 8 : i32
    %16 = tpu.dynamic_rotate %15 by %c8_i32 dim 1 : vector<2x128xf32>, i32 -> vector<2x128xf32>
    %17 = arith.addf %15, %16 : vector<2x128xf32>
    %c16_i32 = arith.constant 16 : i32
    %18 = tpu.dynamic_rotate %17 by %c16_i32 dim 1 : vector<2x128xf32>, i32 -> vector<2x128xf32>
    %19 = arith.addf %17, %18 : vector<2x128xf32>
    %c32_i32 = arith.constant 32 : i32
    %20 = tpu.dynamic_rotate %19 by %c32_i32 dim 1 : vector<2x128xf32>, i32 -> vector<2x128xf32>
    %21 = arith.addf %19, %20 : vector<2x128xf32>
    %c64_i32 = arith.constant 64 : i32
    %22 = tpu.dynamic_rotate %21 by %c64_i32 dim 1 : vector<2x128xf32>, i32 -> vector<2x128xf32>
    %23 = arith.addf %21, %22 : vector<2x128xf32>
    %24 = vector.extract_strided_slice %23 {offsets = [0, 0], sizes = [1, 128], strides = [1, 1]} : vector<2x128xf32> to vector<1x128xf32>
    %cst_18 = arith.constant 0.001953125 : f32
    %25 = vector.broadcast %cst_18 : f32 to vector<1x128xf32>
    %26 = arith.mulf %24, %25 : vector<1x128xf32>
    %27 = vector.extract_strided_slice %23 {offsets = [1, 0], sizes = [1, 128], strides = [1, 1]} : vector<2x128xf32> to vector<1x128xf32>
    %cst_19 = arith.constant 0.001953125 : f32
    %28 = vector.broadcast %cst_19 : f32 to vector<1x128xf32>
    %29 = arith.mulf %27, %28 : vector<1x128xf32>
    %30 = arith.mulf %26, %26 : vector<1x128xf32>
    %31 = arith.subf %29, %30 : vector<1x128xf32>
    %cst_20 = arith.constant 0.000000e+00 : f32
    %32 = vector.broadcast %cst_20 : f32 to vector<1x128xf32>
    %33 = arith.maximumf %31, %32 : vector<1x128xf32>
    %cst_21 = arith.constant 9.99999974E-6 : f32
    %34 = vector.broadcast %cst_21 : f32 to vector<1x128xf32>
    %35 = arith.addf %33, %34 : vector<1x128xf32>
    %36 = math.rsqrt %35 : vector<1x128xf32>
    %37 = arith.mulf %36, %7 : vector<1x128xf32>
    %38 = vector.shape_cast %37 : vector<1x128xf32> to vector<1x1x128xf32>
    %39 = vector.broadcast %38 : vector<1x1x128xf32> to vector<2x16x128xf32>
    %40 = arith.mulf %0, %39 : vector<2x16x128xf32>
    %41 = arith.mulf %26, %37 : vector<1x128xf32>
    %42 = arith.subf %8, %41 : vector<1x128xf32>
    %43 = vector.shape_cast %42 : vector<1x128xf32> to vector<1x1x128xf32>
    %44 = vector.broadcast %43 : vector<1x1x128xf32> to vector<2x16x128xf32>
    %45 = arith.addf %40, %44 : vector<2x16x128xf32>
    %c0_22 = arith.constant 0 : index
    %c0_23 = arith.constant 0 : index
    %c0_24 = arith.constant 0 : index
    %46 = vector.load %arg1[%c0_22, %c0_23, %c0_24] : memref<4x128x128xbf16, #tpu.memory_space<vmem>>, vector<1x128x128xbf16>
    %47 = vector.shape_cast %46 : vector<1x128x128xbf16> to vector<128x128xbf16>
    %c2 = arith.constant 2 : index
    %c0_25 = arith.constant 0 : index
    %48 = vector.load %arg6[%c2, %c0_25] : memref<116x128xf32, #tpu.memory_space<vmem>>, vector<1x128xf32>
    %49 = vector.shape_cast %45 : vector<2x16x128xf32> to vector<32x128xf32>
    %50 = arith.truncf %49 : vector<32x128xf32> to vector<32x128xbf16>
    %cst_26 = arith.constant dense<0.000000e+00> : vector<32x128xf32>
    %51 = tpu.matmul %50, %47, %cst_26 {dimension_numbers = #tpu.dot_dimension_numbers<[1], [0], [0], [1], [0, 0, 1, 1], [], []>} : vector<32x128xbf16>, vector<128x128xbf16>, vector<32x128xf32> -> vector<32x128xf32>
    %52 = vector.shape_cast %51 : vector<32x128xf32> to vector<2x16x128xf32>
    %53 = vector.shape_cast %48 : vector<1x128xf32> to vector<1x1x128xf32>
    %54 = vector.broadcast %53 : vector<1x1x128xf32> to vector<2x16x128xf32>
    %55 = arith.addf %52, %54 : vector<2x16x128xf32>
    %c3 = arith.constant 3 : index
    %c0_27 = arith.constant 0 : index
    %56 = vector.load %arg6[%c3, %c0_27] : memref<116x128xf32, #tpu.memory_space<vmem>>, vector<1x128xf32>
    %cst_28 = arith.constant dense<0.000000e+00> : vector<2x128xf32>
    %57 = vector.multi_reduction <add>, %55, %cst_28 [1] : vector<2x16x128xf32> to vector<2x128xf32>
    %c8_i32_29 = arith.constant 8 : i32
    %58 = tpu.dynamic_rotate %57 by %c8_i32_29 dim 1 : vector<2x128xf32>, i32 -> vector<2x128xf32>
    %59 = arith.addf %57, %58 : vector<2x128xf32>
    %c16_i32_30 = arith.constant 16 : i32
    %60 = tpu.dynamic_rotate %59 by %c16_i32_30 dim 1 : vector<2x128xf32>, i32 -> vector<2x128xf32>
    %61 = arith.addf %59, %60 : vector<2x128xf32>
    %c32_i32_31 = arith.constant 32 : i32
    %62 = tpu.dynamic_rotate %61 by %c32_i32_31 dim 1 : vector<2x128xf32>, i32 -> vector<2x128xf32>
    %63 = arith.addf %61, %62 : vector<2x128xf32>
    %c64_i32_32 = arith.constant 64 : i32
    %64 = tpu.dynamic_rotate %63 by %c64_i32_32 dim 1 : vector<2x128xf32>, i32 -> vector<2x128xf32>
    %65 = arith.addf %63, %64 : vector<2x128xf32>
    %66 = vector.shape_cast %65 : vector<2x128xf32> to vector<2x1x128xf32>
    %cst_33 = arith.constant 3.906250e-03 : f32
    %67 = vector.broadcast %cst_33 : f32 to vector<2x1x128xf32>
    %68 = arith.mulf %66, %67 : vector<2x1x128xf32>
    %69 = vector.broadcast %68 : vector<2x1x128xf32> to vector<2x16x128xf32>
    %70 = arith.subf %55, %69 : vector<2x16x128xf32>
    %71 = vector.shape_cast %56 : vector<1x128xf32> to vector<1x1x128xf32>
    %72 = vector.broadcast %71 : vector<1x1x128xf32> to vector<2x16x128xf32>
    %73 = arith.mulf %72, %70 : vector<2x16x128xf32>
    %74 = arith.addf %55, %73 : vector<2x16x128xf32>
    %cst_34 = arith.constant 5.000000e-01 : f32
    %75 = vector.broadcast %cst_34 : f32 to vector<2x16x128xf32>
    %76 = arith.mulf %75, %74 : vector<2x16x128xf32>
    %77 = math.tanh %76 : vector<2x16x128xf32>
    %cst_35 = arith.constant 1.000000e+00 : f32
    %78 = vector.broadcast %cst_35 : f32 to vector<2x16x128xf32>
    %79 = arith.addf %78, %77 : vector<2x16x128xf32>
    %cst_36 = arith.constant 5.000000e-01 : f32
    %80 = vector.broadcast %cst_36 : f32 to vector<2x16x128xf32>
    %81 = arith.mulf %80, %79 : vector<2x16x128xf32>
    %82 = arith.mulf %74, %81 : vector<2x16x128xf32>
    %c1_37 = arith.constant 1 : index
    %c0_38 = arith.constant 0 : index
    %c0_39 = arith.constant 0 : index
    %83 = vector.load %arg1[%c1_37, %c0_38, %c0_39] : memref<4x128x128xbf16, #tpu.memory_space<vmem>>, vector<1x128x128xbf16>
    %84 = vector.shape_cast %83 : vector<1x128x128xbf16> to vector<128x128xbf16>
    %c4 = arith.constant 4 : index
    %c0_40 = arith.constant 0 : index
    %85 = vector.load %arg6[%c4, %c0_40] : memref<116x128xf32, #tpu.memory_space<vmem>>, vector<1x128xf32>
    %86 = vector.shape_cast %82 : vector<2x16x128xf32> to vector<32x128xf32>
    %87 = arith.truncf %86 : vector<32x128xf32> to vector<32x128xbf16>
    %cst_41 = arith.constant dense<0.000000e+00> : vector<32x128xf32>
    %88 = tpu.matmul %87, %84, %cst_41 {dimension_numbers = #tpu.dot_dimension_numbers<[1], [0], [0], [1], [0, 0, 1, 1], [], []>} : vector<32x128xbf16>, vector<128x128xbf16>, vector<32x128xf32> -> vector<32x128xf32>
    %89 = vector.shape_cast %88 : vector<32x128xf32> to vector<2x16x128xf32>
    %90 = vector.shape_cast %85 : vector<1x128xf32> to vector<1x1x128xf32>
    %91 = vector.broadcast %90 : vector<1x1x128xf32> to vector<2x16x128xf32>
    %92 = arith.addf %89, %91 : vector<2x16x128xf32>
    %c0_42 = arith.constant 0 : index
    %c16 = arith.constant 16 : index
    %c0_43 = arith.constant 0 : index
    %93 = vector.load %arg9[%c0_42, %c16, %c0_43] : memref<2x48x128xf32, #tpu.memory_space<vmem>>, vector<2x16x128xf32>
    tpu.vector_store %arg9[%c0_42, %c16, %c0_43], %82 {strides = array<i32>} : memref<2x48x128xf32, #tpu.memory_space<vmem>>, vector<2x16x128xf32>,
    %c5 = arith.constant 5 : index
    %c0_44 = arith.constant 0 : index
    %94 = vector.load %arg6[%c5, %c0_44] : memref<116x128xf32, #tpu.memory_space<vmem>>, vector<1x128xf32>
    %c0_45 = arith.constant 0 : index
    %c14 = arith.constant 14 : index
    %c0_46 = arith.constant 0 : index
    %95 = vector.load %arg9[%c0_45, %c14, %c0_46] : memref<2x48x128xf32, #tpu.memory_space<vmem>>, vector<2x20x128xf32>
    %cst_47 = arith.constant 0.000000e+00 : f32
    %96 = vector.broadcast %cst_47 : f32 to vector<2x16x128xf32>
    %cst_48 = arith.constant 0.000000e+00 : f32
    %97 = vector.broadcast %cst_48 : f32 to vector<2x16x128xf32>
    %cst_49 = arith.constant 0.000000e+00 : f32
    %98 = vector.broadcast %cst_49 : f32 to vector<2x16x128xf32>
    %cst_50 = arith.constant 0.000000e+00 : f32
    %99 = vector.broadcast %cst_50 : f32 to vector<2x16x128xf32>
    %100 = vector.shape_cast %94 : vector<1x128xf32> to vector<1x1x128xf32>
    %101 = vector.broadcast %100 : vector<1x1x128xf32> to vector<2x16x128xf32>
    %102 = arith.addf %96, %101 : vector<2x16x128xf32>
    %c16_i32_51 = arith.constant 16 : i32
    %103 = tpu.dynamic_rotate %95 by %c16_i32_51 dim 2 : vector<2x20x128xf32>, i32 -> vector<2x20x128xf32>
    %104 = vector.extract_strided_slice %103 {offsets = [0, 0, 0], sizes = [2, 16, 128], strides = [1, 1, 1]} : vector<2x20x128xf32> to vector<2x16x128xf32>
    %c17 = arith.constant 17 : index
    %c0_52 = arith.constant 0 : index
    %105 = vector.load %arg6[%c17, %c0_52] : memref<116x128xf32, #tpu.memory_space<vmem>>, vector<1x128xf32>
    %106 = vector.shape_cast %105 : vector<1x128xf32> to vector<1x1x128xf32>
    %107 = vector.broadcast %106 : vector<1x1x128xf32> to vector<2x16x128xf32>
    %108 = arith.mulf %104, %107 : vector<2x16x128xf32>
    %109 = arith.addf %102, %108 : vector<2x16x128xf32>
    %110 = vector.extract_strided_slice %103 {offsets = [0, 1, 0], sizes = [2, 16, 128], strides = [1, 1, 1]} : vector<2x20x128xf32> to vector<2x16x128xf32>
    %c22 = arith.constant 22 : index
    %c0_53 = arith.constant 0 : index
    %111 = vector.load %arg6[%c22, %c0_53] : memref<116x128xf32, #tpu.memory_space<vmem>>, vector<1x128xf32>
    %112 = vector.shape_cast %111 : vector<1x128xf32> to vector<1x1x128xf32>
    %113 = vector.broadcast %112 : vector<1x1x128xf32> to vector<2x16x128xf32>
    %114 = arith.mulf %110, %113 : vector<2x16x128xf32>
    %115 = arith.addf %97, %114 : vector<2x16x128xf32>
    %116 = vector.extract_strided_slice %103 {offsets = [0, 2, 0], sizes = [2, 16, 128], strides = [1, 1, 1]} : vector<2x20x128xf32> to vector<2x16x128xf32>
    %c27 = arith.constant 27 : index
    %c0_54 = arith.constant 0 : index
    %117 = vector.load %arg6[%c27, %c0_54] : memref<116x128xf32, #tpu.memory_space<vmem>>, vector<1x128xf32>
    %118 = vector.shape_cast %117 : vector<1x128xf32> to vector<1x1x128xf32>
    %119 = vector.broadcast %118 : vector<1x1x128xf32> to vector<2x16x128xf32>
    %120 = arith.mulf %116, %119 : vector<2x16x128xf32>
    %121 = arith.addf %98, %120 : vector<2x16x128xf32>
    %122 = vector.extract_strided_slice %103 {offsets = [0, 3, 0], sizes = [2, 16, 128], strides = [1, 1, 1]} : vector<2x20x128xf32> to vector<2x16x128xf32>
    %c32_55 = arith.constant 32 : index
    %c0_56 = arith.constant 0 : index
    %123 = vector.load %arg6[%c32_55, %c0_56] : memref<116x128xf32, #tpu.memory_space<vmem>>, vector<1x128xf32>
    %124 = vector.shape_cast %123 : vector<1x128xf32> to vector<1x1x128xf32>
    %125 = vector.broadcast %124 : vector<1x1x128xf32> to vector<2x16x128xf32>
    %126 = arith.mulf %122, %125 : vector<2x16x128xf32>
    %127 = arith.addf %99, %126 : vector<2x16x128xf32>
    %128 = vector.extract_strided_slice %103 {offsets = [0, 4, 0], sizes = [2, 16, 128], strides = [1, 1, 1]} : vector<2x20x128xf32> to vector<2x16x128xf32>
    %c37 = arith.constant 37 : index
    %c0_57 = arith.constant 0 : index
    %129 = vector.load %arg6[%c37, %c0_57] : memref<116x128xf32, #tpu.memory_space<vmem>>, vector<1x128xf32>
    %130 = vector.shape_cast %129 : vector<1x128xf32> to vector<1x1x128xf32>
    %131 = vector.broadcast %130 : vector<1x1x128xf32> to vector<2x16x128xf32>
    %132 = arith.mulf %128, %131 : vector<2x16x128xf32>
    %133 = arith.addf %109, %132 : vector<2x16x128xf32>
    %c8_i32_58 = arith.constant 8 : i32
    %134 = tpu.dynamic_rotate %95 by %c8_i32_58 dim 2 : vector<2x20x128xf32>, i32 -> vector<2x20x128xf32>
    %135 = vector.extract_strided_slice %134 {offsets = [0, 0, 0], sizes = [2, 16, 128], strides = [1, 1, 1]} : vector<2x20x128xf32> to vector<2x16x128xf32>
    %c18 = arith.constant 18 : index
    %c0_59 = arith.constant 0 : index
    %136 = vector.load %arg6[%c18, %c0_59] : memref<116x128xf32, #tpu.memory_space<vmem>>, vector<1x128xf32>
    %137 = vector.shape_cast %136 : vector<1x128xf32> to vector<1x1x128xf32>
    %138 = vector.broadcast %137 : vector<1x1x128xf32> to vector<2x16x128xf32>
    %139 = arith.mulf %135, %138 : vector<2x16x128xf32>
    %140 = arith.addf %115, %139 : vector<2x16x128xf32>
    %141 = vector.extract_strided_slice %134 {offsets = [0, 1, 0], sizes = [2, 16, 128], strides = [1, 1, 1]} : vector<2x20x128xf32> to vector<2x16x128xf32>
    %c23 = arith.constant 23 : index
    %c0_60 = arith.constant 0 : index
    %142 = vector.load %arg6[%c23, %c0_60] : memref<116x128xf32, #tpu.memory_space<vmem>>, vector<1x128xf32>
    %143 = vector.shape_cast %142 : vector<1x128xf32> to vector<1x1x128xf32>
    %144 = vector.broadcast %143 : vector<1x1x128xf32> to vector<2x16x128xf32>
    %145 = arith.mulf %141, %144 : vector<2x16x128xf32>
    %146 = arith.addf %121, %145 : vector<2x16x128xf32>
    %147 = vector.extract_strided_slice %134 {offsets = [0, 2, 0], sizes = [2, 16, 128], strides = [1, 1, 1]} : vector<2x20x128xf32> to vector<2x16x128xf32>
    %c28 = arith.constant 28 : index
    %c0_61 = arith.constant 0 : index
    %148 = vector.load %arg6[%c28, %c0_61] : memref<116x128xf32, #tpu.memory_space<vmem>>, vector<1x128xf32>
    %149 = vector.shape_cast %148 : vector<1x128xf32> to vector<1x1x128xf32>
    %150 = vector.broadcast %149 : vector<1x1x128xf32> to vector<2x16x128xf32>
    %151 = arith.mulf %147, %150 : vector<2x16x128xf32>
    %152 = arith.addf %127, %151 : vector<2x16x128xf32>
    %153 = vector.extract_strided_slice %134 {offsets = [0, 3, 0], sizes = [2, 16, 128], strides = [1, 1, 1]} : vector<2x20x128xf32> to vector<2x16x128xf32>
    %c33 = arith.constant 33 : index
    %c0_62 = arith.constant 0 : index
    %154 = vector.load %arg6[%c33, %c0_62] : memref<116x128xf32, #tpu.memory_space<vmem>>, vector<1x128xf32>
    %155 = vector.shape_cast %154 : vector<1x128xf32> to vector<1x1x128xf32>
    %156 = vector.broadcast %155 : vector<1x1x128xf32> to vector<2x16x128xf32>
    %157 = arith.mulf %153, %156 : vector<2x16x128xf32>
    %158 = arith.addf %133, %157 : vector<2x16x128xf32>
    %159 = vector.extract_strided_slice %134 {offsets = [0, 4, 0], sizes = [2, 16, 128], strides = [1, 1, 1]} : vector<2x20x128xf32> to vector<2x16x128xf32>
    %c38 = arith.constant 38 : index
    %c0_63 = arith.constant 0 : index
    %160 = vector.load %arg6[%c38, %c0_63] : memref<116x128xf32, #tpu.memory_space<vmem>>, vector<1x128xf32>
    %161 = vector.shape_cast %160 : vector<1x128xf32> to vector<1x1x128xf32>
    %162 = vector.broadcast %161 : vector<1x1x128xf32> to vector<2x16x128xf32>
    %163 = arith.mulf %159, %162 : vector<2x16x128xf32>
    %164 = arith.addf %140, %163 : vector<2x16x128xf32>
    %165 = vector.extract_strided_slice %95 {offsets = [0, 0, 0], sizes = [2, 16, 128], strides = [1, 1, 1]} : vector<2x20x128xf32> to vector<2x16x128xf32>
    %c19 = arith.constant 19 : index
    %c0_64 = arith.constant 0 : index
    %166 = vector.load %arg6[%c19, %c0_64] : memref<116x128xf32, #tpu.memory_space<vmem>>, vector<1x128xf32>
    %167 = vector.shape_cast %166 : vector<1x128xf32> to vector<1x1x128xf32>
    %168 = vector.broadcast %167 : vector<1x1x128xf32> to vector<2x16x128xf32>
    %169 = arith.mulf %165, %168 : vector<2x16x128xf32>
    %170 = arith.addf %146, %169 : vector<2x16x128xf32>
    %171 = vector.extract_strided_slice %95 {offsets = [0, 1, 0], sizes = [2, 16, 128], strides = [1, 1, 1]} : vector<2x20x128xf32> to vector<2x16x128xf32>
    %c24_65 = arith.constant 24 : index
    %c0_66 = arith.constant 0 : index
    %172 = vector.load %arg6[%c24_65, %c0_66] : memref<116x128xf32, #tpu.memory_space<vmem>>, vector<1x128xf32>
    %173 = vector.shape_cast %172 : vector<1x128xf32> to vector<1x1x128xf32>
    %174 = vector.broadcast %173 : vector<1x1x128xf32> to vector<2x16x128xf32>
    %175 = arith.mulf %171, %174 : vector<2x16x128xf32>
    %176 = arith.addf %152, %175 : vector<2x16x128xf32>
    %177 = vector.extract_strided_slice %95 {offsets = [0, 2, 0], sizes = [2, 16, 128], strides = [1, 1, 1]} : vector<2x20x128xf32> to vector<2x16x128xf32>
    %c29 = arith.constant 29 : index
    %c0_67 = arith.constant 0 : index
    %178 = vector.load %arg6[%c29, %c0_67] : memref<116x128xf32, #tpu.memory_space<vmem>>, vector<1x128xf32>
    %179 = vector.shape_cast %178 : vector<1x128xf32> to vector<1x1x128xf32>
    %180 = vector.broadcast %179 : vector<1x1x128xf32> to vector<2x16x128xf32>
    %181 = arith.mulf %177, %180 : vector<2x16x128xf32>
    %182 = arith.addf %158, %181 : vector<2x16x128xf32>
    %183 = vector.extract_strided_slice %95 {offsets = [0, 3, 0], sizes = [2, 16, 128], strides = [1, 1, 1]} : vector<2x20x128xf32> to vector<2x16x128xf32>
    %c34 = arith.constant 34 : index
    %c0_68 = arith.constant 0 : index
    %184 = vector.load %arg6[%c34, %c0_68] : memref<116x128xf32, #tpu.memory_space<vmem>>, vector<1x128xf32>
    %185 = vector.shape_cast %184 : vector<1x128xf32> to vector<1x1x128xf32>
    %186 = vector.broadcast %185 : vector<1x1x128xf32> to vector<2x16x128xf32>
    %187 = arith.mulf %183, %186 : vector<2x16x128xf32>
    %188 = arith.addf %164, %187 : vector<2x16x128xf32>
    %189 = vector.extract_strided_slice %95 {offsets = [0, 4, 0], sizes = [2, 16, 128], strides = [1, 1, 1]} : vector<2x20x128xf32> to vector<2x16x128xf32>
    %c39 = arith.constant 39 : index
    %c0_69 = arith.constant 0 : index
    %190 = vector.load %arg6[%c39, %c0_69] : memref<116x128xf32, #tpu.memory_space<vmem>>, vector<1x128xf32>
    %191 = vector.shape_cast %190 : vector<1x128xf32> to vector<1x1x128xf32>
    %192 = vector.broadcast %191 : vector<1x1x128xf32> to vector<2x16x128xf32>
    %193 = arith.mulf %189, %192 : vector<2x16x128xf32>
    %194 = arith.addf %170, %193 : vector<2x16x128xf32>
    %c120_i32 = arith.constant 120 : i32
    %195 = tpu.dynamic_rotate %95 by %c120_i32 dim 2 : vector<2x20x128xf32>, i32 -> vector<2x20x128xf32>
    %196 = vector.extract_strided_slice %195 {offsets = [0, 0, 0], sizes = [2, 16, 128], strides = [1, 1, 1]} : vector<2x20x128xf32> to vector<2x16x128xf32>
    %c20 = arith.constant 20 : index
    %c0_70 = arith.constant 0 : index
    %197 = vector.load %arg6[%c20, %c0_70] : memref<116x128xf32, #tpu.memory_space<vmem>>, vector<1x128xf32>
    %198 = vector.shape_cast %197 : vector<1x128xf32> to vector<1x1x128xf32>
    %199 = vector.broadcast %198 : vector<1x1x128xf32> to vector<2x16x128xf32>
    %200 = arith.mulf %196, %199 : vector<2x16x128xf32>
    %201 = arith.addf %176, %200 : vector<2x16x128xf32>
    %202 = vector.extract_strided_slice %195 {offsets = [0, 1, 0], sizes = [2, 16, 128], strides = [1, 1, 1]} : vector<2x20x128xf32> to vector<2x16x128xf32>
    %c25 = arith.constant 25 : index
    %c0_71 = arith.constant 0 : index
    %203 = vector.load %arg6[%c25, %c0_71] : memref<116x128xf32, #tpu.memory_space<vmem>>, vector<1x128xf32>
    %204 = vector.shape_cast %203 : vector<1x128xf32> to vector<1x1x128xf32>
    %205 = vector.broadcast %204 : vector<1x1x128xf32> to vector<2x16x128xf32>
    %206 = arith.mulf %202, %205 : vector<2x16x128xf32>
    %207 = arith.addf %182, %206 : vector<2x16x128xf32>
    %208 = vector.extract_strided_slice %195 {offsets = [0, 2, 0], sizes = [2, 16, 128], strides = [1, 1, 1]} : vector<2x20x128xf32> to vector<2x16x128xf32>
    %c30 = arith.constant 30 : index
    %c0_72 = arith.constant 0 : index
    %209 = vector.load %arg6[%c30, %c0_72] : memref<116x128xf32, #tpu.memory_space<vmem>>, vector<1x128xf32>
    %210 = vector.shape_cast %209 : vector<1x128xf32> to vector<1x1x128xf32>
    %211 = vector.broadcast %210 : vector<1x1x128xf32> to vector<2x16x128xf32>
    %212 = arith.mulf %208, %211 : vector<2x16x128xf32>
    %213 = arith.addf %188, %212 : vector<2x16x128xf32>
    %214 = vector.extract_strided_slice %195 {offsets = [0, 3, 0], sizes = [2, 16, 128], strides = [1, 1, 1]} : vector<2x20x128xf32> to vector<2x16x128xf32>
    %c35 = arith.constant 35 : index
    %c0_73 = arith.constant 0 : index
    %215 = vector.load %arg6[%c35, %c0_73] : memref<116x128xf32, #tpu.memory_space<vmem>>, vector<1x128xf32>
    %216 = vector.shape_cast %215 : vector<1x128xf32> to vector<1x1x128xf32>
    %217 = vector.broadcast %216 : vector<1x1x128xf32> to vector<2x16x128xf32>
    %218 = arith.mulf %214, %217 : vector<2x16x128xf32>
    %219 = arith.addf %194, %218 : vector<2x16x128xf32>
    %220 = vector.extract_strided_slice %195 {offsets = [0, 4, 0], sizes = [2, 16, 128], strides = [1, 1, 1]} : vector<2x20x128xf32> to vector<2x16x128xf32>
    %c40 = arith.constant 40 : index
    %c0_74 = arith.constant 0 : index
    %221 = vector.load %arg6[%c40, %c0_74] : memref<116x128xf32, #tpu.memory_space<vmem>>, vector<1x128xf32>
    %222 = vector.shape_cast %221 : vector<1x128xf32> to vector<1x1x128xf32>
    %223 = vector.broadcast %222 : vector<1x1x128xf32> to vector<2x16x128xf32>
    %224 = arith.mulf %220, %223 : vector<2x16x128xf32>
    %225 = arith.addf %201, %224 : vector<2x16x128xf32>
    %c112_i32 = arith.constant 112 : i32
    %226 = tpu.dynamic_rotate %95 by %c112_i32 dim 2 : vector<2x20x128xf32>, i32 -> vector<2x20x128xf32>
    %227 = vector.extract_strided_slice %226 {offsets = [0, 0, 0], sizes = [2, 16, 128], strides = [1, 1, 1]} : vector<2x20x128xf32> to vector<2x16x128xf32>
    %c21 = arith.constant 21 : index
    %c0_75 = arith.constant 0 : index
    %228 = vector.load %arg6[%c21, %c0_75] : memref<116x128xf32, #tpu.memory_space<vmem>>, vector<1x128xf32>
    %229 = vector.shape_cast %228 : vector<1x128xf32> to vector<1x1x128xf32>
    %230 = vector.broadcast %229 : vector<1x1x128xf32> to vector<2x16x128xf32>
    %231 = arith.mulf %227, %230 : vector<2x16x128xf32>
    %232 = arith.addf %207, %231 : vector<2x16x128xf32>
    %233 = vector.extract_strided_slice %226 {offsets = [0, 1, 0], sizes = [2, 16, 128], strides = [1, 1, 1]} : vector<2x20x128xf32> to vector<2x16x128xf32>
    %c26 = arith.constant 26 : index
    %c0_76 = arith.constant 0 : index
    %234 = vector.load %arg6[%c26, %c0_76] : memref<116x128xf32, #tpu.memory_space<vmem>>, vector<1x128xf32>
    %235 = vector.shape_cast %234 : vector<1x128xf32> to vector<1x1x128xf32>
    %236 = vector.broadcast %235 : vector<1x1x128xf32> to vector<2x16x128xf32>
    %237 = arith.mulf %233, %236 : vector<2x16x128xf32>
    %238 = arith.addf %213, %237 : vector<2x16x128xf32>
    %239 = vector.extract_strided_slice %226 {offsets = [0, 2, 0], sizes = [2, 16, 128], strides = [1, 1, 1]} : vector<2x20x128xf32> to vector<2x16x128xf32>
    %c31 = arith.constant 31 : index
    %c0_77 = arith.constant 0 : index
    %240 = vector.load %arg6[%c31, %c0_77] : memref<116x128xf32, #tpu.memory_space<vmem>>, vector<1x128xf32>
    %241 = vector.shape_cast %240 : vector<1x128xf32> to vector<1x1x128xf32>
    %242 = vector.broadcast %241 : vector<1x1x128xf32> to vector<2x16x128xf32>
    %243 = arith.mulf %239, %242 : vector<2x16x128xf32>
    %244 = arith.addf %219, %243 : vector<2x16x128xf32>
    %245 = vector.extract_strided_slice %226 {offsets = [0, 3, 0], sizes = [2, 16, 128], strides = [1, 1, 1]} : vector<2x20x128xf32> to vector<2x16x128xf32>
    %c36 = arith.constant 36 : index
    %c0_78 = arith.constant 0 : index
    %246 = vector.load %arg6[%c36, %c0_78] : memref<116x128xf32, #tpu.memory_space<vmem>>, vector<1x128xf32>
    %247 = vector.shape_cast %246 : vector<1x128xf32> to vector<1x1x128xf32>
    %248 = vector.broadcast %247 : vector<1x1x128xf32> to vector<2x16x128xf32>
    %249 = arith.mulf %245, %248 : vector<2x16x128xf32>
    %250 = arith.addf %225, %249 : vector<2x16x128xf32>
    %251 = vector.extract_strided_slice %226 {offsets = [0, 4, 0], sizes = [2, 16, 128], strides = [1, 1, 1]} : vector<2x20x128xf32> to vector<2x16x128xf32>
    %c41 = arith.constant 41 : index
    %c0_79 = arith.constant 0 : index
    %252 = vector.load %arg6[%c41, %c0_79] : memref<116x128xf32, #tpu.memory_space<vmem>>, vector<1x128xf32>
    %253 = vector.shape_cast %252 : vector<1x128xf32> to vector<1x1x128xf32>
    %254 = vector.broadcast %253 : vector<1x1x128xf32> to vector<2x16x128xf32>
    %255 = arith.mulf %251, %254 : vector<2x16x128xf32>
    %256 = arith.addf %232, %255 : vector<2x16x128xf32>
    %257 = arith.addf %256, %238 : vector<2x16x128xf32>
    %258 = arith.addf %257, %244 : vector<2x16x128xf32>
    %259 = arith.addf %258, %250 : vector<2x16x128xf32>
    %c0_80 = arith.constant 0 : index
    %c16_81 = arith.constant 16 : index
    %c0_82 = arith.constant 0 : index
    %260 = vector.load %arg9[%c0_80, %c16_81, %c0_82] : memref<2x48x128xf32, #tpu.memory_space<vmem>>, vector<2x16x128xf32>
    tpu.vector_store %arg9[%c0_80, %c16_81, %c0_82], %259 {strides = array<i32>} : memref<2x48x128xf32, #tpu.memory_space<vmem>>, vector<2x16x128xf32>,
    %c6 = arith.constant 6 : index
    %c0_83 = arith.constant 0 : index
    %261 = vector.load %arg6[%c6, %c0_83] : memref<116x128xf32, #tpu.memory_space<vmem>>, vector<1x128xf32>
    %c0_84 = arith.constant 0 : index
    %c12 = arith.constant 12 : index
    %c0_85 = arith.constant 0 : index
    %262 = vector.load %arg9[%c0_84, %c12, %c0_85] : memref<2x48x128xf32, #tpu.memory_space<vmem>>, vector<2x24x128xf32>
    %cst_86 = arith.constant 0.000000e+00 : f32
    %263 = vector.broadcast %cst_86 : f32 to vector<2x16x128xf32>
    %cst_87 = arith.constant 0.000000e+00 : f32
    %264 = vector.broadcast %cst_87 : f32 to vector<2x16x128xf32>
    %cst_88 = arith.constant 0.000000e+00 : f32
    %265 = vector.broadcast %cst_88 : f32 to vector<2x16x128xf32>
    %cst_89 = arith.constant 0.000000e+00 : f32
    %266 = vector.broadcast %cst_89 : f32 to vector<2x16x128xf32>
    %267 = vector.shape_cast %261 : vector<1x128xf32> to vector<1x1x128xf32>
    %268 = vector.broadcast %267 : vector<1x1x128xf32> to vector<2x16x128xf32>
    %269 = arith.addf %263, %268 : vector<2x16x128xf32>
    %c32_i32_90 = arith.constant 32 : i32
    %270 = tpu.dynamic_rotate %262 by %c32_i32_90 dim 2 : vector<2x24x128xf32>, i32 -> vector<2x24x128xf32>
    %271 = vector.extract_strided_slice %270 {offsets = [0, 0, 0], sizes = [2, 16, 128], strides = [1, 1, 1]} : vector<2x24x128xf32> to vector<2x16x128xf32>
    %c42 = arith.constant 42 : index
    %c0_91 = arith.constant 0 : index
    %272 = vector.load %arg6[%c42, %c0_91] : memref<116x128xf32, #tpu.memory_space<vmem>>, vector<1x128xf32>
    %273 = vector.shape_cast %272 : vector<1x128xf32> to vector<1x1x128xf32>
    %274 = vector.broadcast %273 : vector<1x1x128xf32> to vector<2x16x128xf32>
    %275 = arith.mulf %271, %274 : vector<2x16x128xf32>
    %276 = arith.addf %269, %275 : vector<2x16x128xf32>
    %277 = vector.extract_strided_slice %270 {offsets = [0, 2, 0], sizes = [2, 16, 128], strides = [1, 1, 1]} : vector<2x24x128xf32> to vector<2x16x128xf32>
    %c47 = arith.constant 47 : index
    %c0_92 = arith.constant 0 : index
    %278 = vector.load %arg6[%c47, %c0_92] : memref<116x128xf32, #tpu.memory_space<vmem>>, vector<1x128xf32>
    %279 = vector.shape_cast %278 : vector<1x128xf32> to vector<1x1x128xf32>
    %280 = vector.broadcast %279 : vector<1x1x128xf32> to vector<2x16x128xf32>
    %281 = arith.mulf %277, %280 : vector<2x16x128xf32>
    %282 = arith.addf %264, %281 : vector<2x16x128xf32>
    %283 = vector.extract_strided_slice %270 {offsets = [0, 4, 0], sizes = [2, 16, 128], strides = [1, 1, 1]} : vector<2x24x128xf32> to vector<2x16x128xf32>
    %c52 = arith.constant 52 : index
    %c0_93 = arith.constant 0 : index
    %284 = vector.load %arg6[%c52, %c0_93] : memref<116x128xf32, #tpu.memory_space<vmem>>, vector<1x128xf32>
    %285 = vector.shape_cast %284 : vector<1x128xf32> to vector<1x1x128xf32>
    %286 = vector.broadcast %285 : vector<1x1x128xf32> to vector<2x16x128xf32>
    %287 = arith.mulf %283, %286 : vector<2x16x128xf32>
    %288 = arith.addf %265, %287 : vector<2x16x128xf32>
    %289 = vector.extract_strided_slice %270 {offsets = [0, 6, 0], sizes = [2, 16, 128], strides = [1, 1, 1]} : vector<2x24x128xf32> to vector<2x16x128xf32>
    %c57 = arith.constant 57 : index
    %c0_94 = arith.constant 0 : index
    %290 = vector.load %arg6[%c57, %c0_94] : memref<116x128xf32, #tpu.memory_space<vmem>>, vector<1x128xf32>
    %291 = vector.shape_cast %290 : vector<1x128xf32> to vector<1x1x128xf32>
    %292 = vector.broadcast %291 : vector<1x1x128xf32> to vector<2x16x128xf32>
    %293 = arith.mulf %289, %292 : vector<2x16x128xf32>
    %294 = arith.addf %266, %293 : vector<2x16x128xf32>
    %295 = vector.extract_strided_slice %270 {offsets = [0, 8, 0], sizes = [2, 16, 128], strides = [1, 1, 1]} : vector<2x24x128xf32> to vector<2x16x128xf32>
    %c62 = arith.constant 62 : index
    %c0_95 = arith.constant 0 : index
    %296 = vector.load %arg6[%c62, %c0_95] : memref<116x128xf32, #tpu.memory_space<vmem>>, vector<1x128xf32>
    %297 = vector.shape_cast %296 : vector<1x128xf32> to vector<1x1x128xf32>
    %298 = vector.broadcast %297 : vector<1x1x128xf32> to vector<2x16x128xf32>
    %299 = arith.mulf %295, %298 : vector<2x16x128xf32>
    %300 = arith.addf %276, %299 : vector<2x16x128xf32>
    %c16_i32_96 = arith.constant 16 : i32
    %301 = tpu.dynamic_rotate %262 by %c16_i32_96 dim 2 : vector<2x24x128xf32>, i32 -> vector<2x24x128xf32>
    %302 = vector.extract_strided_slice %301 {offsets = [0, 0, 0], sizes = [2, 16, 128], strides = [1, 1, 1]} : vector<2x24x128xf32> to vector<2x16x128xf32>
    %c43 = arith.constant 43 : index
    %c0_97 = arith.constant 0 : index
    %303 = vector.load %arg6[%c43, %c0_97] : memref<116x128xf32, #tpu.memory_space<vmem>>, vector<1x128xf32>
    %304 = vector.shape_cast %303 : vector<1x128xf32> to vector<1x1x128xf32>
    %305 = vector.broadcast %304 : vector<1x1x128xf32> to vector<2x16x128xf32>
    %306 = arith.mulf %302, %305 : vector<2x16x128xf32>
    %307 = arith.addf %282, %306 : vector<2x16x128xf32>
    %308 = vector.extract_strided_slice %301 {offsets = [0, 2, 0], sizes = [2, 16, 128], strides = [1, 1, 1]} : vector<2x24x128xf32> to vector<2x16x128xf32>
    %c48 = arith.constant 48 : index
    %c0_98 = arith.constant 0 : index
    %309 = vector.load %arg6[%c48, %c0_98] : memref<116x128xf32, #tpu.memory_space<vmem>>, vector<1x128xf32>
    %310 = vector.shape_cast %309 : vector<1x128xf32> to vector<1x1x128xf32>
    %311 = vector.broadcast %310 : vector<1x1x128xf32> to vector<2x16x128xf32>
    %312 = arith.mulf %308, %311 : vector<2x16x128xf32>
    %313 = arith.addf %288, %312 : vector<2x16x128xf32>
    %314 = vector.extract_strided_slice %301 {offsets = [0, 4, 0], sizes = [2, 16, 128], strides = [1, 1, 1]} : vector<2x24x128xf32> to vector<2x16x128xf32>
    %c53 = arith.constant 53 : index
    %c0_99 = arith.constant 0 : index
    %315 = vector.load %arg6[%c53, %c0_99] : memref<116x128xf32, #tpu.memory_space<vmem>>, vector<1x128xf32>
    %316 = vector.shape_cast %315 : vector<1x128xf32> to vector<1x1x128xf32>
    %317 = vector.broadcast %316 : vector<1x1x128xf32> to vector<2x16x128xf32>
    %318 = arith.mulf %314, %317 : vector<2x16x128xf32>
    %319 = arith.addf %294, %318 : vector<2x16x128xf32>
    %320 = vector.extract_strided_slice %301 {offsets = [0, 6, 0], sizes = [2, 16, 128], strides = [1, 1, 1]} : vector<2x24x128xf32> to vector<2x16x128xf32>
    %c58 = arith.constant 58 : index
    %c0_100 = arith.constant 0 : index
    %321 = vector.load %arg6[%c58, %c0_100] : memref<116x128xf32, #tpu.memory_space<vmem>>, vector<1x128xf32>
    %322 = vector.shape_cast %321 : vector<1x128xf32> to vector<1x1x128xf32>
    %323 = vector.broadcast %322 : vector<1x1x128xf32> to vector<2x16x128xf32>
    %324 = arith.mulf %320, %323 : vector<2x16x128xf32>
    %325 = arith.addf %300, %324 : vector<2x16x128xf32>
    %326 = vector.extract_strided_slice %301 {offsets = [0, 8, 0], sizes = [2, 16, 128], strides = [1, 1, 1]} : vector<2x24x128xf32> to vector<2x16x128xf32>
    %c63 = arith.constant 63 : index
    %c0_101 = arith.constant 0 : index
    %327 = vector.load %arg6[%c63, %c0_101] : memref<116x128xf32, #tpu.memory_space<vmem>>, vector<1x128xf32>
    %328 = vector.shape_cast %327 : vector<1x128xf32> to vector<1x1x128xf32>
    %329 = vector.broadcast %328 : vector<1x1x128xf32> to vector<2x16x128xf32>
    %330 = arith.mulf %326, %329 : vector<2x16x128xf32>
    %331 = arith.addf %307, %330 : vector<2x16x128xf32>
    %332 = vector.extract_strided_slice %262 {offsets = [0, 0, 0], sizes = [2, 16, 128], strides = [1, 1, 1]} : vector<2x24x128xf32> to vector<2x16x128xf32>
    %c44 = arith.constant 44 : index
    %c0_102 = arith.constant 0 : index
    %333 = vector.load %arg6[%c44, %c0_102] : memref<116x128xf32, #tpu.memory_space<vmem>>, vector<1x128xf32>
    %334 = vector.shape_cast %333 : vector<1x128xf32> to vector<1x1x128xf32>
    %335 = vector.broadcast %334 : vector<1x1x128xf32> to vector<2x16x128xf32>
    %336 = arith.mulf %332, %335 : vector<2x16x128xf32>
    %337 = arith.addf %313, %336 : vector<2x16x128xf32>
    %338 = vector.extract_strided_slice %262 {offsets = [0, 2, 0], sizes = [2, 16, 128], strides = [1, 1, 1]} : vector<2x24x128xf32> to vector<2x16x128xf32>
    %c49 = arith.constant 49 : index
    %c0_103 = arith.constant 0 : index
    %339 = vector.load %arg6[%c49, %c0_103] : memref<116x128xf32, #tpu.memory_space<vmem>>, vector<1x128xf32>
    %340 = vector.shape_cast %339 : vector<1x128xf32> to vector<1x1x128xf32>
    %341 = vector.broadcast %340 : vector<1x1x128xf32> to vector<2x16x128xf32>
    %342 = arith.mulf %338, %341 : vector<2x16x128xf32>
    %343 = arith.addf %319, %342 : vector<2x16x128xf32>
    %344 = vector.extract_strided_slice %262 {offsets = [0, 4, 0], sizes = [2, 16, 128], strides = [1, 1, 1]} : vector<2x24x128xf32> to vector<2x16x128xf32>
    %c54 = arith.constant 54 : index
    %c0_104 = arith.constant 0 : index
    %345 = vector.load %arg6[%c54, %c0_104] : memref<116x128xf32, #tpu.memory_space<vmem>>, vector<1x128xf32>
    %346 = vector.shape_cast %345 : vector<1x128xf32> to vector<1x1x128xf32>
    %347 = vector.broadcast %346 : vector<1x1x128xf32> to vector<2x16x128xf32>
    %348 = arith.mulf %344, %347 : vector<2x16x128xf32>
    %349 = arith.addf %325, %348 : vector<2x16x128xf32>
    %350 = vector.extract_strided_slice %262 {offsets = [0, 6, 0], sizes = [2, 16, 128], strides = [1, 1, 1]} : vector<2x24x128xf32> to vector<2x16x128xf32>
    %c59 = arith.constant 59 : index
    %c0_105 = arith.constant 0 : index
    %351 = vector.load %arg6[%c59, %c0_105] : memref<116x128xf32, #tpu.memory_space<vmem>>, vector<1x128xf32>
    %352 = vector.shape_cast %351 : vector<1x128xf32> to vector<1x1x128xf32>
    %353 = vector.broadcast %352 : vector<1x1x128xf32> to vector<2x16x128xf32>
    %354 = arith.mulf %350, %353 : vector<2x16x128xf32>
    %355 = arith.addf %331, %354 : vector<2x16x128xf32>
    %356 = vector.extract_strided_slice %262 {offsets = [0, 8, 0], sizes = [2, 16, 128], strides = [1, 1, 1]} : vector<2x24x128xf32> to vector<2x16x128xf32>
    %c64 = arith.constant 64 : index
    %c0_106 = arith.constant 0 : index
    %357 = vector.load %arg6[%c64, %c0_106] : memref<116x128xf32, #tpu.memory_space<vmem>>, vector<1x128xf32>
    %358 = vector.shape_cast %357 : vector<1x128xf32> to vector<1x1x128xf32>
    %359 = vector.broadcast %358 : vector<1x1x128xf32> to vector<2x16x128xf32>
    %360 = arith.mulf %356, %359 : vector<2x16x128xf32>
    %361 = arith.addf %337, %360 : vector<2x16x128xf32>
    %c112_i32_107 = arith.constant 112 : i32
    %362 = tpu.dynamic_rotate %262 by %c112_i32_107 dim 2 : vector<2x24x128xf32>, i32 -> vector<2x24x128xf32>
    %363 = vector.extract_strided_slice %362 {offsets = [0, 0, 0], sizes = [2, 16, 128], strides = [1, 1, 1]} : vector<2x24x128xf32> to vector<2x16x128xf32>
    %c45 = arith.constant 45 : index
    %c0_108 = arith.constant 0 : index
    %364 = vector.load %arg6[%c45, %c0_108] : memref<116x128xf32, #tpu.memory_space<vmem>>, vector<1x128xf32>
    %365 = vector.shape_cast %364 : vector<1x128xf32> to vector<1x1x128xf32>
    %366 = vector.broadcast %365 : vector<1x1x128xf32> to vector<2x16x128xf32>
    %367 = arith.mulf %363, %366 : vector<2x16x128xf32>
    %368 = arith.addf %343, %367 : vector<2x16x128xf32>
    %369 = vector.extract_strided_slice %362 {offsets = [0, 2, 0], sizes = [2, 16, 128], strides = [1, 1, 1]} : vector<2x24x128xf32> to vector<2x16x128xf32>
    %c50 = arith.constant 50 : index
    %c0_109 = arith.constant 0 : index
    %370 = vector.load %arg6[%c50, %c0_109] : memref<116x128xf32, #tpu.memory_space<vmem>>, vector<1x128xf32>
    %371 = vector.shape_cast %370 : vector<1x128xf32> to vector<1x1x128xf32>
    %372 = vector.broadcast %371 : vector<1x1x128xf32> to vector<2x16x128xf32>
    %373 = arith.mulf %369, %372 : vector<2x16x128xf32>
    %374 = arith.addf %349, %373 : vector<2x16x128xf32>
    %375 = vector.extract_strided_slice %362 {offsets = [0, 4, 0], sizes = [2, 16, 128], strides = [1, 1, 1]} : vector<2x24x128xf32> to vector<2x16x128xf32>
    %c55 = arith.constant 55 : index
    %c0_110 = arith.constant 0 : index
    %376 = vector.load %arg6[%c55, %c0_110] : memref<116x128xf32, #tpu.memory_space<vmem>>, vector<1x128xf32>
    %377 = vector.shape_cast %376 : vector<1x128xf32> to vector<1x1x128xf32>
    %378 = vector.broadcast %377 : vector<1x1x128xf32> to vector<2x16x128xf32>
    %379 = arith.mulf %375, %378 : vector<2x16x128xf32>
    %380 = arith.addf %355, %379 : vector<2x16x128xf32>
    %381 = vector.extract_strided_slice %362 {offsets = [0, 6, 0], sizes = [2, 16, 128], strides = [1, 1, 1]} : vector<2x24x128xf32> to vector<2x16x128xf32>
    %c60 = arith.constant 60 : index
    %c0_111 = arith.constant 0 : index
    %382 = vector.load %arg6[%c60, %c0_111] : memref<116x128xf32, #tpu.memory_space<vmem>>, vector<1x128xf32>
    %383 = vector.shape_cast %382 : vector<1x128xf32> to vector<1x1x128xf32>
    %384 = vector.broadcast %383 : vector<1x1x128xf32> to vector<2x16x128xf32>
    %385 = arith.mulf %381, %384 : vector<2x16x128xf32>
    %386 = arith.addf %361, %385 : vector<2x16x128xf32>
    %387 = vector.extract_strided_slice %362 {offsets = [0, 8, 0], sizes = [2, 16, 128], strides = [1, 1, 1]} : vector<2x24x128xf32> to vector<2x16x128xf32>
    %c65 = arith.constant 65 : index
    %c0_112 = arith.constant 0 : index
    %388 = vector.load %arg6[%c65, %c0_112] : memref<116x128xf32, #tpu.memory_space<vmem>>, vector<1x128xf32>
    %389 = vector.shape_cast %388 : vector<1x128xf32> to vector<1x1x128xf32>
    %390 = vector.broadcast %389 : vector<1x1x128xf32> to vector<2x16x128xf32>
    %391 = arith.mulf %387, %390 : vector<2x16x128xf32>
    %392 = arith.addf %368, %391 : vector<2x16x128xf32>
    %c96_i32 = arith.constant 96 : i32
    %393 = tpu.dynamic_rotate %262 by %c96_i32 dim 2 : vector<2x24x128xf32>, i32 -> vector<2x24x128xf32>
    %394 = vector.extract_strided_slice %393 {offsets = [0, 0, 0], sizes = [2, 16, 128], strides = [1, 1, 1]} : vector<2x24x128xf32> to vector<2x16x128xf32>
    %c46 = arith.constant 46 : index
    %c0_113 = arith.constant 0 : index
    %395 = vector.load %arg6[%c46, %c0_113] : memref<116x128xf32, #tpu.memory_space<vmem>>, vector<1x128xf32>
    %396 = vector.shape_cast %395 : vector<1x128xf32> to vector<1x1x128xf32>
    %397 = vector.broadcast %396 : vector<1x1x128xf32> to vector<2x16x128xf32>
    %398 = arith.mulf %394, %397 : vector<2x16x128xf32>
    %399 = arith.addf %374, %398 : vector<2x16x128xf32>
    %400 = vector.extract_strided_slice %393 {offsets = [0, 2, 0], sizes = [2, 16, 128], strides = [1, 1, 1]} : vector<2x24x128xf32> to vector<2x16x128xf32>
    %c51 = arith.constant 51 : index
    %c0_114 = arith.constant 0 : index
    %401 = vector.load %arg6[%c51, %c0_114] : memref<116x128xf32, #tpu.memory_space<vmem>>, vector<1x128xf32>
    %402 = vector.shape_cast %401 : vector<1x128xf32> to vector<1x1x128xf32>
    %403 = vector.broadcast %402 : vector<1x1x128xf32> to vector<2x16x128xf32>
    %404 = arith.mulf %400, %403 : vector<2x16x128xf32>
    %405 = arith.addf %380, %404 : vector<2x16x128xf32>
    %406 = vector.extract_strided_slice %393 {offsets = [0, 4, 0], sizes = [2, 16, 128], strides = [1, 1, 1]} : vector<2x24x128xf32> to vector<2x16x128xf32>
    %c56 = arith.constant 56 : index
    %c0_115 = arith.constant 0 : index
    %407 = vector.load %arg6[%c56, %c0_115] : memref<116x128xf32, #tpu.memory_space<vmem>>, vector<1x128xf32>
    %408 = vector.shape_cast %407 : vector<1x128xf32> to vector<1x1x128xf32>
    %409 = vector.broadcast %408 : vector<1x1x128xf32> to vector<2x16x128xf32>
    %410 = arith.mulf %406, %409 : vector<2x16x128xf32>
    %411 = arith.addf %386, %410 : vector<2x16x128xf32>
    %412 = vector.extract_strided_slice %393 {offsets = [0, 6, 0], sizes = [2, 16, 128], strides = [1, 1, 1]} : vector<2x24x128xf32> to vector<2x16x128xf32>
    %c61 = arith.constant 61 : index
    %c0_116 = arith.constant 0 : index
    %413 = vector.load %arg6[%c61, %c0_116] : memref<116x128xf32, #tpu.memory_space<vmem>>, vector<1x128xf32>
    %414 = vector.shape_cast %413 : vector<1x128xf32> to vector<1x1x128xf32>
    %415 = vector.broadcast %414 : vector<1x1x128xf32> to vector<2x16x128xf32>
    %416 = arith.mulf %412, %415 : vector<2x16x128xf32>
    %417 = arith.addf %392, %416 : vector<2x16x128xf32>
    %418 = vector.extract_strided_slice %393 {offsets = [0, 8, 0], sizes = [2, 16, 128], strides = [1, 1, 1]} : vector<2x24x128xf32> to vector<2x16x128xf32>
    %c66 = arith.constant 66 : index
    %c0_117 = arith.constant 0 : index
    %419 = vector.load %arg6[%c66, %c0_117] : memref<116x128xf32, #tpu.memory_space<vmem>>, vector<1x128xf32>
    %420 = vector.shape_cast %419 : vector<1x128xf32> to vector<1x1x128xf32>
    %421 = vector.broadcast %420 : vector<1x1x128xf32> to vector<2x16x128xf32>
    %422 = arith.mulf %418, %421 : vector<2x16x128xf32>
    %423 = arith.addf %399, %422 : vector<2x16x128xf32>
    %424 = arith.addf %423, %405 : vector<2x16x128xf32>
    %425 = arith.addf %424, %411 : vector<2x16x128xf32>
    %426 = arith.addf %425, %417 : vector<2x16x128xf32>
    %c7 = arith.constant 7 : index
    %c0_118 = arith.constant 0 : index
    %427 = vector.load %arg6[%c7, %c0_118] : memref<116x128xf32, #tpu.memory_space<vmem>>, vector<1x128xf32>
    %c0_119 = arith.constant 0 : index
    %c7_120 = arith.constant 7 : index
    %c0_121 = arith.constant 0 : index
    %428 = vector.load %arg9[%c0_119, %c7_120, %c0_121] : memref<2x48x128xf32, #tpu.memory_space<vmem>>, vector<2x34x128xf32>
    %cst_122 = arith.constant 0.000000e+00 : f32
    %429 = vector.broadcast %cst_122 : f32 to vector<2x16x128xf32>
    %cst_123 = arith.constant 0.000000e+00 : f32
    %430 = vector.broadcast %cst_123 : f32 to vector<2x16x128xf32>
    %cst_124 = arith.constant 0.000000e+00 : f32
    %431 = vector.broadcast %cst_124 : f32 to vector<2x16x128xf32>
    %cst_125 = arith.constant 0.000000e+00 : f32
    %432 = vector.broadcast %cst_125 : f32 to vector<2x16x128xf32>
    %433 = vector.shape_cast %427 : vector<1x128xf32> to vector<1x1x128xf32>
    %434 = vector.broadcast %433 : vector<1x1x128xf32> to vector<2x16x128xf32>
    %435 = arith.addf %429, %434 : vector<2x16x128xf32>
    %c72_i32 = arith.constant 72 : i32
    %436 = tpu.dynamic_rotate %428 by %c72_i32 dim 2 : vector<2x34x128xf32>, i32 -> vector<2x34x128xf32>
    %437 = vector.extract_strided_slice %436 {offsets = [0, 0, 0], sizes = [2, 16, 128], strides = [1, 1, 1]} : vector<2x34x128xf32> to vector<2x16x128xf32>
    %c67 = arith.constant 67 : index
    %c0_126 = arith.constant 0 : index
    %438 = vector.load %arg6[%c67, %c0_126] : memref<116x128xf32, #tpu.memory_space<vmem>>, vector<1x128xf32>
    %439 = vector.shape_cast %438 : vector<1x128xf32> to vector<1x1x128xf32>
    %440 = vector.broadcast %439 : vector<1x1x128xf32> to vector<2x16x128xf32>
    %441 = arith.mulf %437, %440 : vector<2x16x128xf32>
    %442 = arith.addf %435, %441 : vector<2x16x128xf32>
    %443 = vector.extract_strided_slice %436 {offsets = [0, 3, 0], sizes = [2, 16, 128], strides = [1, 1, 1]} : vector<2x34x128xf32> to vector<2x16x128xf32>
    %c74 = arith.constant 74 : index
    %c0_127 = arith.constant 0 : index
    %444 = vector.load %arg6[%c74, %c0_127] : memref<116x128xf32, #tpu.memory_space<vmem>>, vector<1x128xf32>
    %445 = vector.shape_cast %444 : vector<1x128xf32> to vector<1x1x128xf32>
    %446 = vector.broadcast %445 : vector<1x1x128xf32> to vector<2x16x128xf32>
    %447 = arith.mulf %443, %446 : vector<2x16x128xf32>
    %448 = arith.addf %430, %447 : vector<2x16x128xf32>
    %449 = vector.extract_strided_slice %436 {offsets = [0, 6, 0], sizes = [2, 16, 128], strides = [1, 1, 1]} : vector<2x34x128xf32> to vector<2x16x128xf32>
    %c81 = arith.constant 81 : index
    %c0_128 = arith.constant 0 : index
    %450 = vector.load %arg6[%c81, %c0_128] : memref<116x128xf32, #tpu.memory_space<vmem>>, vector<1x128xf32>
    %451 = vector.shape_cast %450 : vector<1x128xf32> to vector<1x1x128xf32>
    %452 = vector.broadcast %451 : vector<1x1x128xf32> to vector<2x16x128xf32>
    %453 = arith.mulf %449, %452 : vector<2x16x128xf32>
    %454 = arith.addf %431, %453 : vector<2x16x128xf32>
    %455 = vector.extract_strided_slice %436 {offsets = [0, 9, 0], sizes = [2, 16, 128], strides = [1, 1, 1]} : vector<2x34x128xf32> to vector<2x16x128xf32>
    %c88 = arith.constant 88 : index
    %c0_129 = arith.constant 0 : index
    %456 = vector.load %arg6[%c88, %c0_129] : memref<116x128xf32, #tpu.memory_space<vmem>>, vector<1x128xf32>
    %457 = vector.shape_cast %456 : vector<1x128xf32> to vector<1x1x128xf32>
    %458 = vector.broadcast %457 : vector<1x1x128xf32> to vector<2x16x128xf32>
    %459 = arith.mulf %455, %458 : vector<2x16x128xf32>
    %460 = arith.addf %432, %459 : vector<2x16x128xf32>
    %461 = vector.extract_strided_slice %436 {offsets = [0, 12, 0], sizes = [2, 16, 128], strides = [1, 1, 1]} : vector<2x34x128xf32> to vector<2x16x128xf32>
    %c95 = arith.constant 95 : index
    %c0_130 = arith.constant 0 : index
    %462 = vector.load %arg6[%c95, %c0_130] : memref<116x128xf32, #tpu.memory_space<vmem>>, vector<1x128xf32>
    %463 = vector.shape_cast %462 : vector<1x128xf32> to vector<1x1x128xf32>
    %464 = vector.broadcast %463 : vector<1x1x128xf32> to vector<2x16x128xf32>
    %465 = arith.mulf %461, %464 : vector<2x16x128xf32>
    %466 = arith.addf %442, %465 : vector<2x16x128xf32>
    %467 = vector.extract_strided_slice %436 {offsets = [0, 15, 0], sizes = [2, 16, 128], strides = [1, 1, 1]} : vector<2x34x128xf32> to vector<2x16x128xf32>
    %c102 = arith.constant 102 : index
    %c0_131 = arith.constant 0 : index
    %468 = vector.load %arg6[%c102, %c0_131] : memref<116x128xf32, #tpu.memory_space<vmem>>, vector<1x128xf32>
    %469 = vector.shape_cast %468 : vector<1x128xf32> to vector<1x1x128xf32>
    %470 = vector.broadcast %469 : vector<1x1x128xf32> to vector<2x16x128xf32>
    %471 = arith.mulf %467, %470 : vector<2x16x128xf32>
    %472 = arith.addf %448, %471 : vector<2x16x128xf32>
    %473 = vector.extract_strided_slice %436 {offsets = [0, 18, 0], sizes = [2, 16, 128], strides = [1, 1, 1]} : vector<2x34x128xf32> to vector<2x16x128xf32>
    %c109 = arith.constant 109 : index
    %c0_132 = arith.constant 0 : index
    %474 = vector.load %arg6[%c109, %c0_132] : memref<116x128xf32, #tpu.memory_space<vmem>>, vector<1x128xf32>
    %475 = vector.shape_cast %474 : vector<1x128xf32> to vector<1x1x128xf32>
    %476 = vector.broadcast %475 : vector<1x1x128xf32> to vector<2x16x128xf32>
    %477 = arith.mulf %473, %476 : vector<2x16x128xf32>
    %478 = arith.addf %454, %477 : vector<2x16x128xf32>
    %c48_i32 = arith.constant 48 : i32
    %479 = tpu.dynamic_rotate %428 by %c48_i32 dim 2 : vector<2x34x128xf32>, i32 -> vector<2x34x128xf32>
    %480 = vector.extract_strided_slice %479 {offsets = [0, 0, 0], sizes = [2, 16, 128], strides = [1, 1, 1]} : vector<2x34x128xf32> to vector<2x16x128xf32>
    %c68 = arith.constant 68 : index
    %c0_133 = arith.constant 0 : index
    %481 = vector.load %arg6[%c68, %c0_133] : memref<116x128xf32, #tpu.memory_space<vmem>>, vector<1x128xf32>
    %482 = vector.shape_cast %481 : vector<1x128xf32> to vector<1x1x128xf32>
    %483 = vector.broadcast %482 : vector<1x1x128xf32> to vector<2x16x128xf32>
    %484 = arith.mulf %480, %483 : vector<2x16x128xf32>
    %485 = arith.addf %460, %484 : vector<2x16x128xf32>
    %486 = vector.extract_strided_slice %479 {offsets = [0, 3, 0], sizes = [2, 16, 128], strides = [1, 1, 1]} : vector<2x34x128xf32> to vector<2x16x128xf32>
    %c75 = arith.constant 75 : index
    %c0_134 = arith.constant 0 : index
    %487 = vector.load %arg6[%c75, %c0_134] : memref<116x128xf32, #tpu.memory_space<vmem>>, vector<1x128xf32>
    %488 = vector.shape_cast %487 : vector<1x128xf32> to vector<1x1x128xf32>
    %489 = vector.broadcast %488 : vector<1x1x128xf32> to vector<2x16x128xf32>
    %490 = arith.mulf %486, %489 : vector<2x16x128xf32>
    %491 = arith.addf %466, %490 : vector<2x16x128xf32>
    %492 = vector.extract_strided_slice %479 {offsets = [0, 6, 0], sizes = [2, 16, 128], strides = [1, 1, 1]} : vector<2x34x128xf32> to vector<2x16x128xf32>
    %c82 = arith.constant 82 : index
    %c0_135 = arith.constant 0 : index
    %493 = vector.load %arg6[%c82, %c0_135] : memref<116x128xf32, #tpu.memory_space<vmem>>, vector<1x128xf32>
    %494 = vector.shape_cast %493 : vector<1x128xf32> to vector<1x1x128xf32>
    %495 = vector.broadcast %494 : vector<1x1x128xf32> to vector<2x16x128xf32>
    %496 = arith.mulf %492, %495 : vector<2x16x128xf32>
    %497 = arith.addf %472, %496 : vector<2x16x128xf32>
    %498 = vector.extract_strided_slice %479 {offsets = [0, 9, 0], sizes = [2, 16, 128], strides = [1, 1, 1]} : vector<2x34x128xf32> to vector<2x16x128xf32>
    %c89 = arith.constant 89 : index
    %c0_136 = arith.constant 0 : index
    %499 = vector.load %arg6[%c89, %c0_136] : memref<116x128xf32, #tpu.memory_space<vmem>>, vector<1x128xf32>
    %500 = vector.shape_cast %499 : vector<1x128xf32> to vector<1x1x128xf32>
    %501 = vector.broadcast %500 : vector<1x1x128xf32> to vector<2x16x128xf32>
    %502 = arith.mulf %498, %501 : vector<2x16x128xf32>
    %503 = arith.addf %478, %502 : vector<2x16x128xf32>
    %504 = vector.extract_strided_slice %479 {offsets = [0, 12, 0], sizes = [2, 16, 128], strides = [1, 1, 1]} : vector<2x34x128xf32> to vector<2x16x128xf32>
    %c96 = arith.constant 96 : index
    %c0_137 = arith.constant 0 : index
    %505 = vector.load %arg6[%c96, %c0_137] : memref<116x128xf32, #tpu.memory_space<vmem>>, vector<1x128xf32>
    %506 = vector.shape_cast %505 : vector<1x128xf32> to vector<1x1x128xf32>
    %507 = vector.broadcast %506 : vector<1x1x128xf32> to vector<2x16x128xf32>
    %508 = arith.mulf %504, %507 : vector<2x16x128xf32>
    %509 = arith.addf %485, %508 : vector<2x16x128xf32>
    %510 = vector.extract_strided_slice %479 {offsets = [0, 15, 0], sizes = [2, 16, 128], strides = [1, 1, 1]} : vector<2x34x128xf32> to vector<2x16x128xf32>
    %c103 = arith.constant 103 : index
    %c0_138 = arith.constant 0 : index
    %511 = vector.load %arg6[%c103, %c0_138] : memref<116x128xf32, #tpu.memory_space<vmem>>, vector<1x128xf32>
    %512 = vector.shape_cast %511 : vector<1x128xf32> to vector<1x1x128xf32>
    %513 = vector.broadcast %512 : vector<1x1x128xf32> to vector<2x16x128xf32>
    %514 = arith.mulf %510, %513 : vector<2x16x128xf32>
    %515 = arith.addf %491, %514 : vector<2x16x128xf32>
    %516 = vector.extract_strided_slice %479 {offsets = [0, 18, 0], sizes = [2, 16, 128], strides = [1, 1, 1]} : vector<2x34x128xf32> to vector<2x16x128xf32>
    %c110 = arith.constant 110 : index
    %c0_139 = arith.constant 0 : index
    %517 = vector.load %arg6[%c110, %c0_139] : memref<116x128xf32, #tpu.memory_space<vmem>>, vector<1x128xf32>
    %518 = vector.shape_cast %517 : vector<1x128xf32> to vector<1x1x128xf32>
    %519 = vector.broadcast %518 : vector<1x1x128xf32> to vector<2x16x128xf32>
    %520 = arith.mulf %516, %519 : vector<2x16x128xf32>
    %521 = arith.addf %497, %520 : vector<2x16x128xf32>
    %c24_i32 = arith.constant 24 : i32
    %522 = tpu.dynamic_rotate %428 by %c24_i32 dim 2 : vector<2x34x128xf32>, i32 -> vector<2x34x128xf32>
    %523 = vector.extract_strided_slice %522 {offsets = [0, 0, 0], sizes = [2, 16, 128], strides = [1, 1, 1]} : vector<2x34x128xf32> to vector<2x16x128xf32>
    %c69 = arith.constant 69 : index
    %c0_140 = arith.constant 0 : index
    %524 = vector.load %arg6[%c69, %c0_140] : memref<116x128xf32, #tpu.memory_space<vmem>>, vector<1x128xf32>
    %525 = vector.shape_cast %524 : vector<1x128xf32> to vector<1x1x128xf32>
    %526 = vector.broadcast %525 : vector<1x1x128xf32> to vector<2x16x128xf32>
    %527 = arith.mulf %523, %526 : vector<2x16x128xf32>
    %528 = arith.addf %503, %527 : vector<2x16x128xf32>
    %529 = vector.extract_strided_slice %522 {offsets = [0, 3, 0], sizes = [2, 16, 128], strides = [1, 1, 1]} : vector<2x34x128xf32> to vector<2x16x128xf32>
    %c76 = arith.constant 76 : index
    %c0_141 = arith.constant 0 : index
    %530 = vector.load %arg6[%c76, %c0_141] : memref<116x128xf32, #tpu.memory_space<vmem>>, vector<1x128xf32>
    %531 = vector.shape_cast %530 : vector<1x128xf32> to vector<1x1x128xf32>
    %532 = vector.broadcast %531 : vector<1x1x128xf32> to vector<2x16x128xf32>
    %533 = arith.mulf %529, %532 : vector<2x16x128xf32>
    %534 = arith.addf %509, %533 : vector<2x16x128xf32>
    %535 = vector.extract_strided_slice %522 {offsets = [0, 6, 0], sizes = [2, 16, 128], strides = [1, 1, 1]} : vector<2x34x128xf32> to vector<2x16x128xf32>
    %c83 = arith.constant 83 : index
    %c0_142 = arith.constant 0 : index
    %536 = vector.load %arg6[%c83, %c0_142] : memref<116x128xf32, #tpu.memory_space<vmem>>, vector<1x128xf32>
    %537 = vector.shape_cast %536 : vector<1x128xf32> to vector<1x1x128xf32>
    %538 = vector.broadcast %537 : vector<1x1x128xf32> to vector<2x16x128xf32>
    %539 = arith.mulf %535, %538 : vector<2x16x128xf32>
    %540 = arith.addf %515, %539 : vector<2x16x128xf32>
    %541 = vector.extract_strided_slice %522 {offsets = [0, 9, 0], sizes = [2, 16, 128], strides = [1, 1, 1]} : vector<2x34x128xf32> to vector<2x16x128xf32>
    %c90 = arith.constant 90 : index
    %c0_143 = arith.constant 0 : index
    %542 = vector.load %arg6[%c90, %c0_143] : memref<116x128xf32, #tpu.memory_space<vmem>>, vector<1x128xf32>
    %543 = vector.shape_cast %542 : vector<1x128xf32> to vector<1x1x128xf32>
    %544 = vector.broadcast %543 : vector<1x1x128xf32> to vector<2x16x128xf32>
    %545 = arith.mulf %541, %544 : vector<2x16x128xf32>
    %546 = arith.addf %521, %545 : vector<2x16x128xf32>
    %547 = vector.extract_strided_slice %522 {offsets = [0, 12, 0], sizes = [2, 16, 128], strides = [1, 1, 1]} : vector<2x34x128xf32> to vector<2x16x128xf32>
    %c97 = arith.constant 97 : index
    %c0_144 = arith.constant 0 : index
    %548 = vector.load %arg6[%c97, %c0_144] : memref<116x128xf32, #tpu.memory_space<vmem>>, vector<1x128xf32>
    %549 = vector.shape_cast %548 : vector<1x128xf32> to vector<1x1x128xf32>
    %550 = vector.broadcast %549 : vector<1x1x128xf32> to vector<2x16x128xf32>
    %551 = arith.mulf %547, %550 : vector<2x16x128xf32>
    %552 = arith.addf %528, %551 : vector<2x16x128xf32>
    %553 = vector.extract_strided_slice %522 {offsets = [0, 15, 0], sizes = [2, 16, 128], strides = [1, 1, 1]} : vector<2x34x128xf32> to vector<2x16x128xf32>
    %c104 = arith.constant 104 : index
    %c0_145 = arith.constant 0 : index
    %554 = vector.load %arg6[%c104, %c0_145] : memref<116x128xf32, #tpu.memory_space<vmem>>, vector<1x128xf32>
    %555 = vector.shape_cast %554 : vector<1x128xf32> to vector<1x1x128xf32>
    %556 = vector.broadcast %555 : vector<1x1x128xf32> to vector<2x16x128xf32>
    %557 = arith.mulf %553, %556 : vector<2x16x128xf32>
    %558 = arith.addf %534, %557 : vector<2x16x128xf32>
    %559 = vector.extract_strided_slice %522 {offsets = [0, 18, 0], sizes = [2, 16, 128], strides = [1, 1, 1]} : vector<2x34x128xf32> to vector<2x16x128xf32>
    %c111 = arith.constant 111 : index
    %c0_146 = arith.constant 0 : index
    %560 = vector.load %arg6[%c111, %c0_146] : memref<116x128xf32, #tpu.memory_space<vmem>>, vector<1x128xf32>
    %561 = vector.shape_cast %560 : vector<1x128xf32> to vector<1x1x128xf32>
    %562 = vector.broadcast %561 : vector<1x1x128xf32> to vector<2x16x128xf32>
    %563 = arith.mulf %559, %562 : vector<2x16x128xf32>
    %564 = arith.addf %540, %563 : vector<2x16x128xf32>
    %565 = vector.extract_strided_slice %428 {offsets = [0, 0, 0], sizes = [2, 16, 128], strides = [1, 1, 1]} : vector<2x34x128xf32> to vector<2x16x128xf32>
    %c70 = arith.constant 70 : index
    %c0_147 = arith.constant 0 : index
    %566 = vector.load %arg6[%c70, %c0_147] : memref<116x128xf32, #tpu.memory_space<vmem>>, vector<1x128xf32>
    %567 = vector.shape_cast %566 : vector<1x128xf32> to vector<1x1x128xf32>
    %568 = vector.broadcast %567 : vector<1x1x128xf32> to vector<2x16x128xf32>
    %569 = arith.mulf %565, %568 : vector<2x16x128xf32>
    %570 = arith.addf %546, %569 : vector<2x16x128xf32>
    %571 = vector.extract_strided_slice %428 {offsets = [0, 3, 0], sizes = [2, 16, 128], strides = [1, 1, 1]} : vector<2x34x128xf32> to vector<2x16x128xf32>
    %c77 = arith.constant 77 : index
    %c0_148 = arith.constant 0 : index
    %572 = vector.load %arg6[%c77, %c0_148] : memref<116x128xf32, #tpu.memory_space<vmem>>, vector<1x128xf32>
    %573 = vector.shape_cast %572 : vector<1x128xf32> to vector<1x1x128xf32>
    %574 = vector.broadcast %573 : vector<1x1x128xf32> to vector<2x16x128xf32>
    %575 = arith.mulf %571, %574 : vector<2x16x128xf32>
    %576 = arith.addf %552, %575 : vector<2x16x128xf32>
    %577 = vector.extract_strided_slice %428 {offsets = [0, 6, 0], sizes = [2, 16, 128], strides = [1, 1, 1]} : vector<2x34x128xf32> to vector<2x16x128xf32>
    %c84 = arith.constant 84 : index
    %c0_149 = arith.constant 0 : index
    %578 = vector.load %arg6[%c84, %c0_149] : memref<116x128xf32, #tpu.memory_space<vmem>>, vector<1x128xf32>
    %579 = vector.shape_cast %578 : vector<1x128xf32> to vector<1x1x128xf32>
    %580 = vector.broadcast %579 : vector<1x1x128xf32> to vector<2x16x128xf32>
    %581 = arith.mulf %577, %580 : vector<2x16x128xf32>
    %582 = arith.addf %558, %581 : vector<2x16x128xf32>
    %583 = vector.extract_strided_slice %428 {offsets = [0, 9, 0], sizes = [2, 16, 128], strides = [1, 1, 1]} : vector<2x34x128xf32> to vector<2x16x128xf32>
    %c91 = arith.constant 91 : index
    %c0_150 = arith.constant 0 : index
    %584 = vector.load %arg6[%c91, %c0_150] : memref<116x128xf32, #tpu.memory_space<vmem>>, vector<1x128xf32>
    %585 = vector.shape_cast %584 : vector<1x128xf32> to vector<1x1x128xf32>
    %586 = vector.broadcast %585 : vector<1x1x128xf32> to vector<2x16x128xf32>
    %587 = arith.mulf %583, %586 : vector<2x16x128xf32>
    %588 = arith.addf %564, %587 : vector<2x16x128xf32>
    %589 = vector.extract_strided_slice %428 {offsets = [0, 12, 0], sizes = [2, 16, 128], strides = [1, 1, 1]} : vector<2x34x128xf32> to vector<2x16x128xf32>
    %c98 = arith.constant 98 : index
    %c0_151 = arith.constant 0 : index
    %590 = vector.load %arg6[%c98, %c0_151] : memref<116x128xf32, #tpu.memory_space<vmem>>, vector<1x128xf32>
    %591 = vector.shape_cast %590 : vector<1x128xf32> to vector<1x1x128xf32>
    %592 = vector.broadcast %591 : vector<1x1x128xf32> to vector<2x16x128xf32>
    %593 = arith.mulf %589, %592 : vector<2x16x128xf32>
    %594 = arith.addf %570, %593 : vector<2x16x128xf32>
    %595 = vector.extract_strided_slice %428 {offsets = [0, 15, 0], sizes = [2, 16, 128], strides = [1, 1, 1]} : vector<2x34x128xf32> to vector<2x16x128xf32>
    %c105 = arith.constant 105 : index
    %c0_152 = arith.constant 0 : index
    %596 = vector.load %arg6[%c105, %c0_152] : memref<116x128xf32, #tpu.memory_space<vmem>>, vector<1x128xf32>
    %597 = vector.shape_cast %596 : vector<1x128xf32> to vector<1x1x128xf32>
    %598 = vector.broadcast %597 : vector<1x1x128xf32> to vector<2x16x128xf32>
    %599 = arith.mulf %595, %598 : vector<2x16x128xf32>
    %600 = arith.addf %576, %599 : vector<2x16x128xf32>
    %601 = vector.extract_strided_slice %428 {offsets = [0, 18, 0], sizes = [2, 16, 128], strides = [1, 1, 1]} : vector<2x34x128xf32> to vector<2x16x128xf32>
    %c112 = arith.constant 112 : index
    %c0_153 = arith.constant 0 : index
    %602 = vector.load %arg6[%c112, %c0_153] : memref<116x128xf32, #tpu.memory_space<vmem>>, vector<1x128xf32>
    %603 = vector.shape_cast %602 : vector<1x128xf32> to vector<1x1x128xf32>
    %604 = vector.broadcast %603 : vector<1x1x128xf32> to vector<2x16x128xf32>
    %605 = arith.mulf %601, %604 : vector<2x16x128xf32>
    %606 = arith.addf %582, %605 : vector<2x16x128xf32>
    %c104_i32 = arith.constant 104 : i32
    %607 = tpu.dynamic_rotate %428 by %c104_i32 dim 2 : vector<2x34x128xf32>, i32 -> vector<2x34x128xf32>
    %608 = vector.extract_strided_slice %607 {offsets = [0, 0, 0], sizes = [2, 16, 128], strides = [1, 1, 1]} : vector<2x34x128xf32> to vector<2x16x128xf32>
    %c71 = arith.constant 71 : index
    %c0_154 = arith.constant 0 : index
    %609 = vector.load %arg6[%c71, %c0_154] : memref<116x128xf32, #tpu.memory_space<vmem>>, vector<1x128xf32>
    %610 = vector.shape_cast %609 : vector<1x128xf32> to vector<1x1x128xf32>
    %611 = vector.broadcast %610 : vector<1x1x128xf32> to vector<2x16x128xf32>
    %612 = arith.mulf %608, %611 : vector<2x16x128xf32>
    %613 = arith.addf %588, %612 : vector<2x16x128xf32>
    %614 = vector.extract_strided_slice %607 {offsets = [0, 3, 0], sizes = [2, 16, 128], strides = [1, 1, 1]} : vector<2x34x128xf32> to vector<2x16x128xf32>
    %c78 = arith.constant 78 : index
    %c0_155 = arith.constant 0 : index
    %615 = vector.load %arg6[%c78, %c0_155] : memref<116x128xf32, #tpu.memory_space<vmem>>, vector<1x128xf32>
    %616 = vector.shape_cast %615 : vector<1x128xf32> to vector<1x1x128xf32>
    %617 = vector.broadcast %616 : vector<1x1x128xf32> to vector<2x16x128xf32>
    %618 = arith.mulf %614, %617 : vector<2x16x128xf32>
    %619 = arith.addf %594, %618 : vector<2x16x128xf32>
    %620 = vector.extract_strided_slice %607 {offsets = [0, 6, 0], sizes = [2, 16, 128], strides = [1, 1, 1]} : vector<2x34x128xf32> to vector<2x16x128xf32>
    %c85 = arith.constant 85 : index
    %c0_156 = arith.constant 0 : index
    %621 = vector.load %arg6[%c85, %c0_156] : memref<116x128xf32, #tpu.memory_space<vmem>>, vector<1x128xf32>
    %622 = vector.shape_cast %621 : vector<1x128xf32> to vector<1x1x128xf32>
    %623 = vector.broadcast %622 : vector<1x1x128xf32> to vector<2x16x128xf32>
    %624 = arith.mulf %620, %623 : vector<2x16x128xf32>
    %625 = arith.addf %600, %624 : vector<2x16x128xf32>
    %626 = vector.extract_strided_slice %607 {offsets = [0, 9, 0], sizes = [2, 16, 128], strides = [1, 1, 1]} : vector<2x34x128xf32> to vector<2x16x128xf32>
    %c92 = arith.constant 92 : index
    %c0_157 = arith.constant 0 : index
    %627 = vector.load %arg6[%c92, %c0_157] : memref<116x128xf32, #tpu.memory_space<vmem>>, vector<1x128xf32>
    %628 = vector.shape_cast %627 : vector<1x128xf32> to vector<1x1x128xf32>
    %629 = vector.broadcast %628 : vector<1x1x128xf32> to vector<2x16x128xf32>
    %630 = arith.mulf %626, %629 : vector<2x16x128xf32>
    %631 = arith.addf %606, %630 : vector<2x16x128xf32>
    %632 = vector.extract_strided_slice %607 {offsets = [0, 12, 0], sizes = [2, 16, 128], strides = [1, 1, 1]} : vector<2x34x128xf32> to vector<2x16x128xf32>
    %c99 = arith.constant 99 : index
    %c0_158 = arith.constant 0 : index
    %633 = vector.load %arg6[%c99, %c0_158] : memref<116x128xf32, #tpu.memory_space<vmem>>, vector<1x128xf32>
    %634 = vector.shape_cast %633 : vector<1x128xf32> to vector<1x1x128xf32>
    %635 = vector.broadcast %634 : vector<1x1x128xf32> to vector<2x16x128xf32>
    %636 = arith.mulf %632, %635 : vector<2x16x128xf32>
    %637 = arith.addf %613, %636 : vector<2x16x128xf32>
    %638 = vector.extract_strided_slice %607 {offsets = [0, 15, 0], sizes = [2, 16, 128], strides = [1, 1, 1]} : vector<2x34x128xf32> to vector<2x16x128xf32>
    %c106 = arith.constant 106 : index
    %c0_159 = arith.constant 0 : index
    %639 = vector.load %arg6[%c106, %c0_159] : memref<116x128xf32, #tpu.memory_space<vmem>>, vector<1x128xf32>
    %640 = vector.shape_cast %639 : vector<1x128xf32> to vector<1x1x128xf32>
    %641 = vector.broadcast %640 : vector<1x1x128xf32> to vector<2x16x128xf32>
    %642 = arith.mulf %638, %641 : vector<2x16x128xf32>
    %643 = arith.addf %619, %642 : vector<2x16x128xf32>
    %644 = vector.extract_strided_slice %607 {offsets = [0, 18, 0], sizes = [2, 16, 128], strides = [1, 1, 1]} : vector<2x34x128xf32> to vector<2x16x128xf32>
    %c113 = arith.constant 113 : index
    %c0_160 = arith.constant 0 : index
    %645 = vector.load %arg6[%c113, %c0_160] : memref<116x128xf32, #tpu.memory_space<vmem>>, vector<1x128xf32>
    %646 = vector.shape_cast %645 : vector<1x128xf32> to vector<1x1x128xf32>
    %647 = vector.broadcast %646 : vector<1x1x128xf32> to vector<2x16x128xf32>
    %648 = arith.mulf %644, %647 : vector<2x16x128xf32>
    %649 = arith.addf %625, %648 : vector<2x16x128xf32>
    %c80_i32 = arith.constant 80 : i32
    %650 = tpu.dynamic_rotate %428 by %c80_i32 dim 2 : vector<2x34x128xf32>, i32 -> vector<2x34x128xf32>
    %651 = vector.extract_strided_slice %650 {offsets = [0, 0, 0], sizes = [2, 16, 128], strides = [1, 1, 1]} : vector<2x34x128xf32> to vector<2x16x128xf32>
    %c72 = arith.constant 72 : index
    %c0_161 = arith.constant 0 : index
    %652 = vector.load %arg6[%c72, %c0_161] : memref<116x128xf32, #tpu.memory_space<vmem>>, vector<1x128xf32>
    %653 = vector.shape_cast %652 : vector<1x128xf32> to vector<1x1x128xf32>
    %654 = vector.broadcast %653 : vector<1x1x128xf32> to vector<2x16x128xf32>
    %655 = arith.mulf %651, %654 : vector<2x16x128xf32>
    %656 = arith.addf %631, %655 : vector<2x16x128xf32>
    %657 = vector.extract_strided_slice %650 {offsets = [0, 3, 0], sizes = [2, 16, 128], strides = [1, 1, 1]} : vector<2x34x128xf32> to vector<2x16x128xf32>
    %c79 = arith.constant 79 : index
    %c0_162 = arith.constant 0 : index
    %658 = vector.load %arg6[%c79, %c0_162] : memref<116x128xf32, #tpu.memory_space<vmem>>, vector<1x128xf32>
    %659 = vector.shape_cast %658 : vector<1x128xf32> to vector<1x1x128xf32>
    %660 = vector.broadcast %659 : vector<1x1x128xf32> to vector<2x16x128xf32>
    %661 = arith.mulf %657, %660 : vector<2x16x128xf32>
    %662 = arith.addf %637, %661 : vector<2x16x128xf32>
    %663 = vector.extract_strided_slice %650 {offsets = [0, 6, 0], sizes = [2, 16, 128], strides = [1, 1, 1]} : vector<2x34x128xf32> to vector<2x16x128xf32>
    %c86 = arith.constant 86 : index
    %c0_163 = arith.constant 0 : index
    %664 = vector.load %arg6[%c86, %c0_163] : memref<116x128xf32, #tpu.memory_space<vmem>>, vector<1x128xf32>
    %665 = vector.shape_cast %664 : vector<1x128xf32> to vector<1x1x128xf32>
    %666 = vector.broadcast %665 : vector<1x1x128xf32> to vector<2x16x128xf32>
    %667 = arith.mulf %663, %666 : vector<2x16x128xf32>
    %668 = arith.addf %643, %667 : vector<2x16x128xf32>
    %669 = vector.extract_strided_slice %650 {offsets = [0, 9, 0], sizes = [2, 16, 128], strides = [1, 1, 1]} : vector<2x34x128xf32> to vector<2x16x128xf32>
    %c93 = arith.constant 93 : index
    %c0_164 = arith.constant 0 : index
    %670 = vector.load %arg6[%c93, %c0_164] : memref<116x128xf32, #tpu.memory_space<vmem>>, vector<1x128xf32>
    %671 = vector.shape_cast %670 : vector<1x128xf32> to vector<1x1x128xf32>
    %672 = vector.broadcast %671 : vector<1x1x128xf32> to vector<2x16x128xf32>
    %673 = arith.mulf %669, %672 : vector<2x16x128xf32>
    %674 = arith.addf %649, %673 : vector<2x16x128xf32>
    %675 = vector.extract_strided_slice %650 {offsets = [0, 12, 0], sizes = [2, 16, 128], strides = [1, 1, 1]} : vector<2x34x128xf32> to vector<2x16x128xf32>
    %c100 = arith.constant 100 : index
    %c0_165 = arith.constant 0 : index
    %676 = vector.load %arg6[%c100, %c0_165] : memref<116x128xf32, #tpu.memory_space<vmem>>, vector<1x128xf32>
    %677 = vector.shape_cast %676 : vector<1x128xf32> to vector<1x1x128xf32>
    %678 = vector.broadcast %677 : vector<1x1x128xf32> to vector<2x16x128xf32>
    %679 = arith.mulf %675, %678 : vector<2x16x128xf32>
    %680 = arith.addf %656, %679 : vector<2x16x128xf32>
    %681 = vector.extract_strided_slice %650 {offsets = [0, 15, 0], sizes = [2, 16, 128], strides = [1, 1, 1]} : vector<2x34x128xf32> to vector<2x16x128xf32>
    %c107 = arith.constant 107 : index
    %c0_166 = arith.constant 0 : index
    %682 = vector.load %arg6[%c107, %c0_166] : memref<116x128xf32, #tpu.memory_space<vmem>>, vector<1x128xf32>
    %683 = vector.shape_cast %682 : vector<1x128xf32> to vector<1x1x128xf32>
    %684 = vector.broadcast %683 : vector<1x1x128xf32> to vector<2x16x128xf32>
    %685 = arith.mulf %681, %684 : vector<2x16x128xf32>
    %686 = arith.addf %662, %685 : vector<2x16x128xf32>
    %687 = vector.extract_strided_slice %650 {offsets = [0, 18, 0], sizes = [2, 16, 128], strides = [1, 1, 1]} : vector<2x34x128xf32> to vector<2x16x128xf32>
    %c114 = arith.constant 114 : index
    %c0_167 = arith.constant 0 : index
    %688 = vector.load %arg6[%c114, %c0_167] : memref<116x128xf32, #tpu.memory_space<vmem>>, vector<1x128xf32>
    %689 = vector.shape_cast %688 : vector<1x128xf32> to vector<1x1x128xf32>
    %690 = vector.broadcast %689 : vector<1x1x128xf32> to vector<2x16x128xf32>
    %691 = arith.mulf %687, %690 : vector<2x16x128xf32>
    %692 = arith.addf %668, %691 : vector<2x16x128xf32>
    %c56_i32 = arith.constant 56 : i32
    %693 = tpu.dynamic_rotate %428 by %c56_i32 dim 2 : vector<2x34x128xf32>, i32 -> vector<2x34x128xf32>
    %694 = vector.extract_strided_slice %693 {offsets = [0, 0, 0], sizes = [2, 16, 128], strides = [1, 1, 1]} : vector<2x34x128xf32> to vector<2x16x128xf32>
    %c73 = arith.constant 73 : index
    %c0_168 = arith.constant 0 : index
    %695 = vector.load %arg6[%c73, %c0_168] : memref<116x128xf32, #tpu.memory_space<vmem>>, vector<1x128xf32>
    %696 = vector.shape_cast %695 : vector<1x128xf32> to vector<1x1x128xf32>
    %697 = vector.broadcast %696 : vector<1x1x128xf32> to vector<2x16x128xf32>
    %698 = arith.mulf %694, %697 : vector<2x16x128xf32>
    %699 = arith.addf %674, %698 : vector<2x16x128xf32>
    %700 = vector.extract_strided_slice %693 {offsets = [0, 3, 0], sizes = [2, 16, 128], strides = [1, 1, 1]} : vector<2x34x128xf32> to vector<2x16x128xf32>
    %c80 = arith.constant 80 : index
    %c0_169 = arith.constant 0 : index
    %701 = vector.load %arg6[%c80, %c0_169] : memref<116x128xf32, #tpu.memory_space<vmem>>, vector<1x128xf32>
    %702 = vector.shape_cast %701 : vector<1x128xf32> to vector<1x1x128xf32>
    %703 = vector.broadcast %702 : vector<1x1x128xf32> to vector<2x16x128xf32>
    %704 = arith.mulf %700, %703 : vector<2x16x128xf32>
    %705 = arith.addf %680, %704 : vector<2x16x128xf32>
    %706 = vector.extract_strided_slice %693 {offsets = [0, 6, 0], sizes = [2, 16, 128], strides = [1, 1, 1]} : vector<2x34x128xf32> to vector<2x16x128xf32>
    %c87 = arith.constant 87 : index
    %c0_170 = arith.constant 0 : index
    %707 = vector.load %arg6[%c87, %c0_170] : memref<116x128xf32, #tpu.memory_space<vmem>>, vector<1x128xf32>
    %708 = vector.shape_cast %707 : vector<1x128xf32> to vector<1x1x128xf32>
    %709 = vector.broadcast %708 : vector<1x1x128xf32> to vector<2x16x128xf32>
    %710 = arith.mulf %706, %709 : vector<2x16x128xf32>
    %711 = arith.addf %686, %710 : vector<2x16x128xf32>
    %712 = vector.extract_strided_slice %693 {offsets = [0, 9, 0], sizes = [2, 16, 128], strides = [1, 1, 1]} : vector<2x34x128xf32> to vector<2x16x128xf32>
    %c94 = arith.constant 94 : index
    %c0_171 = arith.constant 0 : index
    %713 = vector.load %arg6[%c94, %c0_171] : memref<116x128xf32, #tpu.memory_space<vmem>>, vector<1x128xf32>
    %714 = vector.shape_cast %713 : vector<1x128xf32> to vector<1x1x128xf32>
    %715 = vector.broadcast %714 : vector<1x1x128xf32> to vector<2x16x128xf32>
    %716 = arith.mulf %712, %715 : vector<2x16x128xf32>
    %717 = arith.addf %692, %716 : vector<2x16x128xf32>
    %718 = vector.extract_strided_slice %693 {offsets = [0, 12, 0], sizes = [2, 16, 128], strides = [1, 1, 1]} : vector<2x34x128xf32> to vector<2x16x128xf32>
    %c101 = arith.constant 101 : index
    %c0_172 = arith.constant 0 : index
    %719 = vector.load %arg6[%c101, %c0_172] : memref<116x128xf32, #tpu.memory_space<vmem>>, vector<1x128xf32>
    %720 = vector.shape_cast %719 : vector<1x128xf32> to vector<1x1x128xf32>
    %721 = vector.broadcast %720 : vector<1x1x128xf32> to vector<2x16x128xf32>
    %722 = arith.mulf %718, %721 : vector<2x16x128xf32>
    %723 = arith.addf %699, %722 : vector<2x16x128xf32>
    %724 = vector.extract_strided_slice %693 {offsets = [0, 15, 0], sizes = [2, 16, 128], strides = [1, 1, 1]} : vector<2x34x128xf32> to vector<2x16x128xf32>
    %c108 = arith.constant 108 : index
    %c0_173 = arith.constant 0 : index
    %725 = vector.load %arg6[%c108, %c0_173] : memref<116x128xf32, #tpu.memory_space<vmem>>, vector<1x128xf32>
    %726 = vector.shape_cast %725 : vector<1x128xf32> to vector<1x1x128xf32>
    %727 = vector.broadcast %726 : vector<1x1x128xf32> to vector<2x16x128xf32>
    %728 = arith.mulf %724, %727 : vector<2x16x128xf32>
    %729 = arith.addf %705, %728 : vector<2x16x128xf32>
    %730 = vector.extract_strided_slice %693 {offsets = [0, 18, 0], sizes = [2, 16, 128], strides = [1, 1, 1]} : vector<2x34x128xf32> to vector<2x16x128xf32>
    %c115 = arith.constant 115 : index
    %c0_174 = arith.constant 0 : index
    %731 = vector.load %arg6[%c115, %c0_174] : memref<116x128xf32, #tpu.memory_space<vmem>>, vector<1x128xf32>
    %732 = vector.shape_cast %731 : vector<1x128xf32> to vector<1x1x128xf32>
    %733 = vector.broadcast %732 : vector<1x1x128xf32> to vector<2x16x128xf32>
    %734 = arith.mulf %730, %733 : vector<2x16x128xf32>
    %735 = arith.addf %711, %734 : vector<2x16x128xf32>
    %736 = arith.addf %735, %717 : vector<2x16x128xf32>
    %737 = arith.addf %736, %723 : vector<2x16x128xf32>
    %738 = arith.addf %737, %729 : vector<2x16x128xf32>
    %c0_175 = arith.constant 0 : index
    %c16_176 = arith.constant 16 : index
    %c0_177 = arith.constant 0 : index
    %739 = vector.load %arg9[%c0_175, %c16_176, %c0_177] : memref<2x48x128xf32, #tpu.memory_space<vmem>>, vector<2x16x128xf32>
    %c8 = arith.constant 8 : index
    %c0_178 = arith.constant 0 : index
    %740 = vector.load %arg6[%c8, %c0_178] : memref<116x128xf32, #tpu.memory_space<vmem>>, vector<1x128xf32>
    %741 = vector.shape_cast %740 : vector<1x128xf32> to vector<1x1x128xf32>
    %742 = vector.broadcast %741 : vector<1x1x128xf32> to vector<2x16x128xf32>
    %743 = arith.mulf %739, %742 : vector<2x16x128xf32>
    %744 = arith.addf %743, %426 : vector<2x16x128xf32>
    %745 = arith.addf %744, %738 : vector<2x16x128xf32>
    %c2_179 = arith.constant 2 : index
    %c0_180 = arith.constant 0 : index
    %c0_181 = arith.constant 0 : index
    %746 = vector.load %arg1[%c2_179, %c0_180, %c0_181] : memref<4x128x128xbf16, #tpu.memory_space<vmem>>, vector<1x128x128xbf16>
    %747 = vector.shape_cast %746 : vector<1x128x128xbf16> to vector<128x128xbf16>
    %c9 = arith.constant 9 : index
    %c0_182 = arith.constant 0 : index
    %748 = vector.load %arg6[%c9, %c0_182] : memref<116x128xf32, #tpu.memory_space<vmem>>, vector<1x128xf32>
    %749 = vector.shape_cast %745 : vector<2x16x128xf32> to vector<32x128xf32>
    %750 = arith.truncf %749 : vector<32x128xf32> to vector<32x128xbf16>
    %cst_183 = arith.constant dense<0.000000e+00> : vector<32x128xf32>
    %751 = tpu.matmul %750, %747, %cst_183 {dimension_numbers = #tpu.dot_dimension_numbers<[1], [0], [0], [1], [0, 0, 1, 1], [], []>} : vector<32x128xbf16>, vector<128x128xbf16>, vector<32x128xf32> -> vector<32x128xf32>
    %752 = vector.shape_cast %751 : vector<32x128xf32> to vector<2x16x128xf32>
    %753 = vector.shape_cast %748 : vector<1x128xf32> to vector<1x1x128xf32>
    %754 = vector.broadcast %753 : vector<1x1x128xf32> to vector<2x16x128xf32>
    %755 = arith.addf %752, %754 : vector<2x16x128xf32>
    %cst_184 = arith.constant 5.000000e-01 : f32
    %756 = vector.broadcast %cst_184 : f32 to vector<2x16x128xf32>
    %757 = arith.mulf %756, %92 : vector<2x16x128xf32>
    %758 = math.tanh %757 : vector<2x16x128xf32>
    %cst_185 = arith.constant 1.000000e+00 : f32
    %759 = vector.broadcast %cst_185 : f32 to vector<2x16x128xf32>
    %760 = arith.addf %759, %758 : vector<2x16x128xf32>
    %cst_186 = arith.constant 5.000000e-01 : f32
    %761 = vector.broadcast %cst_186 : f32 to vector<2x16x128xf32>
    %762 = arith.mulf %761, %760 : vector<2x16x128xf32>
    %763 = arith.mulf %92, %762 : vector<2x16x128xf32>
    %cst_187 = arith.constant 5.000000e-01 : f32
    %764 = vector.broadcast %cst_187 : f32 to vector<2x16x128xf32>
    %765 = arith.mulf %764, %755 : vector<2x16x128xf32>
    %766 = math.tanh %765 : vector<2x16x128xf32>
    %cst_188 = arith.constant 1.000000e+00 : f32
    %767 = vector.broadcast %cst_188 : f32 to vector<2x16x128xf32>
    %768 = arith.addf %767, %766 : vector<2x16x128xf32>
    %cst_189 = arith.constant 5.000000e-01 : f32
    %769 = vector.broadcast %cst_189 : f32 to vector<2x16x128xf32>
    %770 = arith.mulf %769, %768 : vector<2x16x128xf32>
    %771 = arith.mulf %755, %770 : vector<2x16x128xf32>
    %772 = arith.mulf %763, %771 : vector<2x16x128xf32>
    %c3_190 = arith.constant 3 : index
    %c0_191 = arith.constant 0 : index
    %c0_192 = arith.constant 0 : index
    %773 = vector.load %arg1[%c3_190, %c0_191, %c0_192] : memref<4x128x128xbf16, #tpu.memory_space<vmem>>, vector<1x128x128xbf16>
    %774 = vector.shape_cast %773 : vector<1x128x128xbf16> to vector<128x128xbf16>
    %c10 = arith.constant 10 : index
    %c0_193 = arith.constant 0 : index
    %775 = vector.load %arg6[%c10, %c0_193] : memref<116x128xf32, #tpu.memory_space<vmem>>, vector<1x128xf32>
    %776 = vector.shape_cast %772 : vector<2x16x128xf32> to vector<32x128xf32>
    %777 = arith.truncf %776 : vector<32x128xf32> to vector<32x128xbf16>
    %cst_194 = arith.constant dense<0.000000e+00> : vector<32x128xf32>
    %778 = tpu.matmul %777, %774, %cst_194 {dimension_numbers = #tpu.dot_dimension_numbers<[1], [0], [0], [1], [0, 0, 1, 1], [], []>} : vector<32x128xbf16>, vector<128x128xbf16>, vector<32x128xf32> -> vector<32x128xf32>
    %779 = vector.shape_cast %778 : vector<32x128xf32> to vector<2x16x128xf32>
    %780 = vector.shape_cast %775 : vector<1x128xf32> to vector<1x1x128xf32>
    %781 = vector.broadcast %780 : vector<1x1x128xf32> to vector<2x16x128xf32>
    %782 = arith.addf %779, %781 : vector<2x16x128xf32>
    %783 = arith.addf %782, %45 : vector<2x16x128xf32>
    %c11 = arith.constant 11 : index
    %c0_195 = arith.constant 0 : index
    %784 = vector.load %arg6[%c11, %c0_195] : memref<116x128xf32, #tpu.memory_space<vmem>>, vector<1x128xf32>
    %785 = vector.shape_cast %784 : vector<1x128xf32> to vector<1x1x128xf32>
    %786 = vector.broadcast %785 : vector<1x1x128xf32> to vector<2x16x128xf32>
    %787 = arith.mulf %786, %783 : vector<2x16x128xf32>
    %788 = arith.addf %0, %787 : vector<2x16x128xf32>
    %c12_196 = arith.constant 12 : index
    %c0_197 = arith.constant 0 : index
    %789 = vector.load %arg6[%c12_196, %c0_197] : memref<116x128xf32, #tpu.memory_space<vmem>>, vector<1x128xf32>
    %c13 = arith.constant 13 : index
    %c0_198 = arith.constant 0 : index
    %790 = vector.load %arg6[%c13, %c0_198] : memref<116x128xf32, #tpu.memory_space<vmem>>, vector<1x128xf32>
    %791 = vector.shape_cast %788 : vector<2x16x128xf32> to vector<32x128xf32>
    %cst_199 = arith.constant dense<0.000000e+00> : vector<128xf32>
    %792 = vector.multi_reduction <add>, %791, %cst_199 [0] : vector<32x128xf32> to vector<128xf32>
    %793 = vector.shape_cast %792 : vector<128xf32> to vector<1x128xf32>
    %794 = arith.mulf %791, %791 : vector<32x128xf32>
    %cst_200 = arith.constant dense<0.000000e+00> : vector<128xf32>
    %795 = vector.multi_reduction <add>, %794, %cst_200 [0] : vector<32x128xf32> to vector<128xf32>
    %796 = vector.shape_cast %795 : vector<128xf32> to vector<1x128xf32>
    %797 = tpu.concatenate %793, %796 in 0 : vector<1x128xf32>, vector<1x128xf32> -> vector<2x128xf32>
    %c8_i32_201 = arith.constant 8 : i32
    %798 = tpu.dynamic_rotate %797 by %c8_i32_201 dim 1 : vector<2x128xf32>, i32 -> vector<2x128xf32>
    %799 = arith.addf %797, %798 : vector<2x128xf32>
    %c16_i32_202 = arith.constant 16 : i32
    %800 = tpu.dynamic_rotate %799 by %c16_i32_202 dim 1 : vector<2x128xf32>, i32 -> vector<2x128xf32>
    %801 = arith.addf %799, %800 : vector<2x128xf32>
    %c32_i32_203 = arith.constant 32 : i32
    %802 = tpu.dynamic_rotate %801 by %c32_i32_203 dim 1 : vector<2x128xf32>, i32 -> vector<2x128xf32>
    %803 = arith.addf %801, %802 : vector<2x128xf32>
    %c64_i32_204 = arith.constant 64 : i32
    %804 = tpu.dynamic_rotate %803 by %c64_i32_204 dim 1 : vector<2x128xf32>, i32 -> vector<2x128xf32>
    %805 = arith.addf %803, %804 : vector<2x128xf32>
    %806 = vector.extract_strided_slice %805 {offsets = [0, 0], sizes = [1, 128], strides = [1, 1]} : vector<2x128xf32> to vector<1x128xf32>
    %cst_205 = arith.constant 0.001953125 : f32
    %807 = vector.broadcast %cst_205 : f32 to vector<1x128xf32>
    %808 = arith.mulf %806, %807 : vector<1x128xf32>
    %809 = vector.extract_strided_slice %805 {offsets = [1, 0], sizes = [1, 128], strides = [1, 1]} : vector<2x128xf32> to vector<1x128xf32>
    %cst_206 = arith.constant 0.001953125 : f32
    %810 = vector.broadcast %cst_206 : f32 to vector<1x128xf32>
    %811 = arith.mulf %809, %810 : vector<1x128xf32>
    %812 = arith.mulf %808, %808 : vector<1x128xf32>
    %813 = arith.subf %811, %812 : vector<1x128xf32>
    %cst_207 = arith.constant 0.000000e+00 : f32
    %814 = vector.broadcast %cst_207 : f32 to vector<1x128xf32>
    %815 = arith.maximumf %813, %814 : vector<1x128xf32>
    %cst_208 = arith.constant 9.99999974E-6 : f32
    %816 = vector.broadcast %cst_208 : f32 to vector<1x128xf32>
    %817 = arith.addf %815, %816 : vector<1x128xf32>
    %818 = math.rsqrt %817 : vector<1x128xf32>
    %819 = arith.mulf %818, %789 : vector<1x128xf32>
    %820 = vector.shape_cast %819 : vector<1x128xf32> to vector<1x1x128xf32>
    %821 = vector.broadcast %820 : vector<1x1x128xf32> to vector<2x16x128xf32>
    %822 = arith.mulf %788, %821 : vector<2x16x128xf32>
    %823 = arith.mulf %808, %819 : vector<1x128xf32>
    %824 = arith.subf %790, %823 : vector<1x128xf32>
    %825 = vector.shape_cast %824 : vector<1x128xf32> to vector<1x1x128xf32>
    %826 = vector.broadcast %825 : vector<1x1x128xf32> to vector<2x16x128xf32>
    %827 = arith.addf %822, %826 : vector<2x16x128xf32>
    %c0_209 = arith.constant 0 : index
    %c0_210 = arith.constant 0 : index
    %828 = vector.load %arg2[%c0_209, %c0_210] : memref<128x512xbf16, #tpu.memory_space<vmem>>, vector<128x512xbf16>
    %c0_211 = arith.constant 0 : index
    %c0_212 = arith.constant 0 : index
    %829 = vector.load %arg7[%c0_211, %c0_212] : memref<12x512xf32, #tpu.memory_space<vmem>>, vector<1x512xf32>
    %830 = vector.shape_cast %827 : vector<2x16x128xf32> to vector<32x128xf32>
    %831 = arith.truncf %830 : vector<32x128xf32> to vector<32x128xbf16>
    %cst_213 = arith.constant dense<0.000000e+00> : vector<32x512xf32>
    %832 = tpu.matmul %831, %828, %cst_213 {dimension_numbers = #tpu.dot_dimension_numbers<[1], [0], [0], [1], [0, 0, 1, 1], [], []>} : vector<32x128xbf16>, vector<128x512xbf16>, vector<32x512xf32> -> vector<32x512xf32>
    %833 = vector.shape_cast %832 : vector<32x512xf32> to vector<2x16x512xf32>
    %834 = vector.shape_cast %829 : vector<1x512xf32> to vector<1x1x512xf32>
    %835 = vector.broadcast %834 : vector<1x1x512xf32> to vector<2x16x512xf32>
    %836 = arith.addf %833, %835 : vector<2x16x512xf32>
    %c0_214 = arith.constant 0 : index
    %c8_215 = arith.constant 8 : index
    %c0_216 = arith.constant 0 : index
    %837 = vector.load %arg10[%c0_214, %c8_215, %c0_216] : memref<2x32x512xf32, #tpu.memory_space<vmem>>, vector<2x16x512xf32>
    tpu.vector_store %arg10[%c0_214, %c8_215, %c0_216], %836 {strides = array<i32>} : memref<2x32x512xf32, #tpu.memory_space<vmem>>, vector<2x16x512xf32>,
    %c1_217 = arith.constant 1 : index
    %c0_218 = arith.constant 0 : index
    %838 = vector.load %arg7[%c1_217, %c0_218] : memref<12x512xf32, #tpu.memory_space<vmem>>, vector<1x512xf32>
    %c0_219 = arith.constant 0 : index
    %c7_220 = arith.constant 7 : index
    %c0_221 = arith.constant 0 : index
    %839 = vector.load %arg10[%c0_219, %c7_220, %c0_221] : memref<2x32x512xf32, #tpu.memory_space<vmem>>, vector<2x10x512xf32>
    %cst_222 = arith.constant 0.000000e+00 : f32
    %840 = vector.broadcast %cst_222 : f32 to vector<2x8x512xf32>
    %cst_223 = arith.constant 0.000000e+00 : f32
    %841 = vector.broadcast %cst_223 : f32 to vector<2x8x512xf32>
    %842 = vector.shape_cast %838 : vector<1x512xf32> to vector<1x1x512xf32>
    %843 = vector.broadcast %842 : vector<1x1x512xf32> to vector<2x8x512xf32>
    %844 = arith.addf %840, %843 : vector<2x8x512xf32>
    %c32_i32_224 = arith.constant 32 : i32
    %845 = tpu.dynamic_rotate %839 by %c32_i32_224 dim 2 : vector<2x10x512xf32>, i32 -> vector<2x10x512xf32>
    %846 = vector.extract_strided_slice %845 {offsets = [0, 0, 0], sizes = [2, 8, 512], strides = [1, 1, 1]} : vector<2x10x512xf32> to vector<2x8x512xf32>
    %c3_225 = arith.constant 3 : index
    %c0_226 = arith.constant 0 : index
    %847 = vector.load %arg7[%c3_225, %c0_226] : memref<12x512xf32, #tpu.memory_space<vmem>>, vector<1x512xf32>
    %848 = vector.shape_cast %847 : vector<1x512xf32> to vector<1x1x512xf32>
    %849 = vector.broadcast %848 : vector<1x1x512xf32> to vector<2x8x512xf32>
    %850 = arith.mulf %846, %849 : vector<2x8x512xf32>
    %851 = arith.addf %844, %850 : vector<2x8x512xf32>
    %852 = vector.extract_strided_slice %845 {offsets = [0, 1, 0], sizes = [2, 8, 512], strides = [1, 1, 1]} : vector<2x10x512xf32> to vector<2x8x512xf32>
    %c6_227 = arith.constant 6 : index
    %c0_228 = arith.constant 0 : index
    %853 = vector.load %arg7[%c6_227, %c0_228] : memref<12x512xf32, #tpu.memory_space<vmem>>, vector<1x512xf32>
    %854 = vector.shape_cast %853 : vector<1x512xf32> to vector<1x1x512xf32>
    %855 = vector.broadcast %854 : vector<1x1x512xf32> to vector<2x8x512xf32>
    %856 = arith.mulf %852, %855 : vector<2x8x512xf32>
    %857 = arith.addf %841, %856 : vector<2x8x512xf32>
    %858 = vector.extract_strided_slice %845 {offsets = [0, 2, 0], sizes = [2, 8, 512], strides = [1, 1, 1]} : vector<2x10x512xf32> to vector<2x8x512xf32>
    %c9_229 = arith.constant 9 : index
    %c0_230 = arith.constant 0 : index
    %859 = vector.load %arg7[%c9_229, %c0_230] : memref<12x512xf32, #tpu.memory_space<vmem>>, vector<1x512xf32>
    %860 = vector.shape_cast %859 : vector<1x512xf32> to vector<1x1x512xf32>
    %861 = vector.broadcast %860 : vector<1x1x512xf32> to vector<2x8x512xf32>
    %862 = arith.mulf %858, %861 : vector<2x8x512xf32>
    %863 = arith.addf %851, %862 : vector<2x8x512xf32>
    %864 = vector.extract_strided_slice %839 {offsets = [0, 0, 0], sizes = [2, 8, 512], strides = [1, 1, 1]} : vector<2x10x512xf32> to vector<2x8x512xf32>
    %c4_231 = arith.constant 4 : index
    %c0_232 = arith.constant 0 : index
    %865 = vector.load %arg7[%c4_231, %c0_232] : memref<12x512xf32, #tpu.memory_space<vmem>>, vector<1x512xf32>
    %866 = vector.shape_cast %865 : vector<1x512xf32> to vector<1x1x512xf32>
    %867 = vector.broadcast %866 : vector<1x1x512xf32> to vector<2x8x512xf32>
    %868 = arith.mulf %864, %867 : vector<2x8x512xf32>
    %869 = arith.addf %857, %868 : vector<2x8x512xf32>
    %870 = vector.extract_strided_slice %839 {offsets = [0, 1, 0], sizes = [2, 8, 512], strides = [1, 1, 1]} : vector<2x10x512xf32> to vector<2x8x512xf32>
    %c7_233 = arith.constant 7 : index
    %c0_234 = arith.constant 0 : index
    %871 = vector.load %arg7[%c7_233, %c0_234] : memref<12x512xf32, #tpu.memory_space<vmem>>, vector<1x512xf32>
    %872 = vector.shape_cast %871 : vector<1x512xf32> to vector<1x1x512xf32>
    %873 = vector.broadcast %872 : vector<1x1x512xf32> to vector<2x8x512xf32>
    %874 = arith.mulf %870, %873 : vector<2x8x512xf32>
    %875 = arith.addf %863, %874 : vector<2x8x512xf32>
    %876 = vector.extract_strided_slice %839 {offsets = [0, 2, 0], sizes = [2, 8, 512], strides = [1, 1, 1]} : vector<2x10x512xf32> to vector<2x8x512xf32>
    %c10_235 = arith.constant 10 : index
    %c0_236 = arith.constant 0 : index
    %877 = vector.load %arg7[%c10_235, %c0_236] : memref<12x512xf32, #tpu.memory_space<vmem>>, vector<1x512xf32>
    %878 = vector.shape_cast %877 : vector<1x512xf32> to vector<1x1x512xf32>
    %879 = vector.broadcast %878 : vector<1x1x512xf32> to vector<2x8x512xf32>
    %880 = arith.mulf %876, %879 : vector<2x8x512xf32>
    %881 = arith.addf %869, %880 : vector<2x8x512xf32>
    %c480_i32 = arith.constant 480 : i32
    %882 = tpu.dynamic_rotate %839 by %c480_i32 dim 2 : vector<2x10x512xf32>, i32 -> vector<2x10x512xf32>
    %883 = vector.extract_strided_slice %882 {offsets = [0, 0, 0], sizes = [2, 8, 512], strides = [1, 1, 1]} : vector<2x10x512xf32> to vector<2x8x512xf32>
    %c5_237 = arith.constant 5 : index
    %c0_238 = arith.constant 0 : index
    %884 = vector.load %arg7[%c5_237, %c0_238] : memref<12x512xf32, #tpu.memory_space<vmem>>, vector<1x512xf32>
    %885 = vector.shape_cast %884 : vector<1x512xf32> to vector<1x1x512xf32>
    %886 = vector.broadcast %885 : vector<1x1x512xf32> to vector<2x8x512xf32>
    %887 = arith.mulf %883, %886 : vector<2x8x512xf32>
    %888 = arith.addf %875, %887 : vector<2x8x512xf32>
    %889 = vector.extract_strided_slice %882 {offsets = [0, 1, 0], sizes = [2, 8, 512], strides = [1, 1, 1]} : vector<2x10x512xf32> to vector<2x8x512xf32>
    %c8_239 = arith.constant 8 : index
    %c0_240 = arith.constant 0 : index
    %890 = vector.load %arg7[%c8_239, %c0_240] : memref<12x512xf32, #tpu.memory_space<vmem>>, vector<1x512xf32>
    %891 = vector.shape_cast %890 : vector<1x512xf32> to vector<1x1x512xf32>
    %892 = vector.broadcast %891 : vector<1x1x512xf32> to vector<2x8x512xf32>
    %893 = arith.mulf %889, %892 : vector<2x8x512xf32>
    %894 = arith.addf %881, %893 : vector<2x8x512xf32>
    %895 = vector.extract_strided_slice %882 {offsets = [0, 2, 0], sizes = [2, 8, 512], strides = [1, 1, 1]} : vector<2x10x512xf32> to vector<2x8x512xf32>
    %c11_241 = arith.constant 11 : index
    %c0_242 = arith.constant 0 : index
    %896 = vector.load %arg7[%c11_241, %c0_242] : memref<12x512xf32, #tpu.memory_space<vmem>>, vector<1x512xf32>
    %897 = vector.shape_cast %896 : vector<1x512xf32> to vector<1x1x512xf32>
    %898 = vector.broadcast %897 : vector<1x1x512xf32> to vector<2x8x512xf32>
    %899 = arith.mulf %895, %898 : vector<2x8x512xf32>
    %900 = arith.addf %888, %899 : vector<2x8x512xf32>
    %901 = arith.addf %900, %894 : vector<2x8x512xf32>
    %c0_243 = arith.constant 0 : index
    %c15 = arith.constant 15 : index
    %c0_244 = arith.constant 0 : index
    %902 = vector.load %arg10[%c0_243, %c15, %c0_244] : memref<2x32x512xf32, #tpu.memory_space<vmem>>, vector<2x10x512xf32>
    %cst_245 = arith.constant 0.000000e+00 : f32
    %903 = vector.broadcast %cst_245 : f32 to vector<2x8x512xf32>
    %cst_246 = arith.constant 0.000000e+00 : f32
    %904 = vector.broadcast %cst_246 : f32 to vector<2x8x512xf32>
    %905 = vector.shape_cast %838 : vector<1x512xf32> to vector<1x1x512xf32>
    %906 = vector.broadcast %905 : vector<1x1x512xf32> to vector<2x8x512xf32>
    %907 = arith.addf %903, %906 : vector<2x8x512xf32>
    %c32_i32_247 = arith.constant 32 : i32
    %908 = tpu.dynamic_rotate %902 by %c32_i32_247 dim 2 : vector<2x10x512xf32>, i32 -> vector<2x10x512xf32>
    %909 = vector.extract_strided_slice %908 {offsets = [0, 0, 0], sizes = [2, 8, 512], strides = [1, 1, 1]} : vector<2x10x512xf32> to vector<2x8x512xf32>
    %c3_248 = arith.constant 3 : index
    %c0_249 = arith.constant 0 : index
    %910 = vector.load %arg7[%c3_248, %c0_249] : memref<12x512xf32, #tpu.memory_space<vmem>>, vector<1x512xf32>
    %911 = vector.shape_cast %910 : vector<1x512xf32> to vector<1x1x512xf32>
    %912 = vector.broadcast %911 : vector<1x1x512xf32> to vector<2x8x512xf32>
    %913 = arith.mulf %909, %912 : vector<2x8x512xf32>
    %914 = arith.addf %907, %913 : vector<2x8x512xf32>
    %915 = vector.extract_strided_slice %908 {offsets = [0, 1, 0], sizes = [2, 8, 512], strides = [1, 1, 1]} : vector<2x10x512xf32> to vector<2x8x512xf32>
    %c6_250 = arith.constant 6 : index
    %c0_251 = arith.constant 0 : index
    %916 = vector.load %arg7[%c6_250, %c0_251] : memref<12x512xf32, #tpu.memory_space<vmem>>, vector<1x512xf32>
    %917 = vector.shape_cast %916 : vector<1x512xf32> to vector<1x1x512xf32>
    %918 = vector.broadcast %917 : vector<1x1x512xf32> to vector<2x8x512xf32>
    %919 = arith.mulf %915, %918 : vector<2x8x512xf32>
    %920 = arith.addf %904, %919 : vector<2x8x512xf32>
    %921 = vector.extract_strided_slice %908 {offsets = [0, 2, 0], sizes = [2, 8, 512], strides = [1, 1, 1]} : vector<2x10x512xf32> to vector<2x8x512xf32>
    %c9_252 = arith.constant 9 : index
    %c0_253 = arith.constant 0 : index
    %922 = vector.load %arg7[%c9_252, %c0_253] : memref<12x512xf32, #tpu.memory_space<vmem>>, vector<1x512xf32>
    %923 = vector.shape_cast %922 : vector<1x512xf32> to vector<1x1x512xf32>
    %924 = vector.broadcast %923 : vector<1x1x512xf32> to vector<2x8x512xf32>
    %925 = arith.mulf %921, %924 : vector<2x8x512xf32>
    %926 = arith.addf %914, %925 : vector<2x8x512xf32>
    %927 = vector.extract_strided_slice %902 {offsets = [0, 0, 0], sizes = [2, 8, 512], strides = [1, 1, 1]} : vector<2x10x512xf32> to vector<2x8x512xf32>
    %c4_254 = arith.constant 4 : index
    %c0_255 = arith.constant 0 : index
    %928 = vector.load %arg7[%c4_254, %c0_255] : memref<12x512xf32, #tpu.memory_space<vmem>>, vector<1x512xf32>
    %929 = vector.shape_cast %928 : vector<1x512xf32> to vector<1x1x512xf32>
    %930 = vector.broadcast %929 : vector<1x1x512xf32> to vector<2x8x512xf32>
    %931 = arith.mulf %927, %930 : vector<2x8x512xf32>
    %932 = arith.addf %920, %931 : vector<2x8x512xf32>
    %933 = vector.extract_strided_slice %902 {offsets = [0, 1, 0], sizes = [2, 8, 512], strides = [1, 1, 1]} : vector<2x10x512xf32> to vector<2x8x512xf32>
    %c7_256 = arith.constant 7 : index
    %c0_257 = arith.constant 0 : index
    %934 = vector.load %arg7[%c7_256, %c0_257] : memref<12x512xf32, #tpu.memory_space<vmem>>, vector<1x512xf32>
    %935 = vector.shape_cast %934 : vector<1x512xf32> to vector<1x1x512xf32>
    %936 = vector.broadcast %935 : vector<1x1x512xf32> to vector<2x8x512xf32>
    %937 = arith.mulf %933, %936 : vector<2x8x512xf32>
    %938 = arith.addf %926, %937 : vector<2x8x512xf32>
    %939 = vector.extract_strided_slice %902 {offsets = [0, 2, 0], sizes = [2, 8, 512], strides = [1, 1, 1]} : vector<2x10x512xf32> to vector<2x8x512xf32>
    %c10_258 = arith.constant 10 : index
    %c0_259 = arith.constant 0 : index
    %940 = vector.load %arg7[%c10_258, %c0_259] : memref<12x512xf32, #tpu.memory_space<vmem>>, vector<1x512xf32>
    %941 = vector.shape_cast %940 : vector<1x512xf32> to vector<1x1x512xf32>
    %942 = vector.broadcast %941 : vector<1x1x512xf32> to vector<2x8x512xf32>
    %943 = arith.mulf %939, %942 : vector<2x8x512xf32>
    %944 = arith.addf %932, %943 : vector<2x8x512xf32>
    %c480_i32_260 = arith.constant 480 : i32
    %945 = tpu.dynamic_rotate %902 by %c480_i32_260 dim 2 : vector<2x10x512xf32>, i32 -> vector<2x10x512xf32>
    %946 = vector.extract_strided_slice %945 {offsets = [0, 0, 0], sizes = [2, 8, 512], strides = [1, 1, 1]} : vector<2x10x512xf32> to vector<2x8x512xf32>
    %c5_261 = arith.constant 5 : index
    %c0_262 = arith.constant 0 : index
    %947 = vector.load %arg7[%c5_261, %c0_262] : memref<12x512xf32, #tpu.memory_space<vmem>>, vector<1x512xf32>
    %948 = vector.shape_cast %947 : vector<1x512xf32> to vector<1x1x512xf32>
    %949 = vector.broadcast %948 : vector<1x1x512xf32> to vector<2x8x512xf32>
    %950 = arith.mulf %946, %949 : vector<2x8x512xf32>
    %951 = arith.addf %938, %950 : vector<2x8x512xf32>
    %952 = vector.extract_strided_slice %945 {offsets = [0, 1, 0], sizes = [2, 8, 512], strides = [1, 1, 1]} : vector<2x10x512xf32> to vector<2x8x512xf32>
    %c8_263 = arith.constant 8 : index
    %c0_264 = arith.constant 0 : index
    %953 = vector.load %arg7[%c8_263, %c0_264] : memref<12x512xf32, #tpu.memory_space<vmem>>, vector<1x512xf32>
    %954 = vector.shape_cast %953 : vector<1x512xf32> to vector<1x1x512xf32>
    %955 = vector.broadcast %954 : vector<1x1x512xf32> to vector<2x8x512xf32>
    %956 = arith.mulf %952, %955 : vector<2x8x512xf32>
    %957 = arith.addf %944, %956 : vector<2x8x512xf32>
    %958 = vector.extract_strided_slice %945 {offsets = [0, 2, 0], sizes = [2, 8, 512], strides = [1, 1, 1]} : vector<2x10x512xf32> to vector<2x8x512xf32>
    %c11_265 = arith.constant 11 : index
    %c0_266 = arith.constant 0 : index
    %959 = vector.load %arg7[%c11_265, %c0_266] : memref<12x512xf32, #tpu.memory_space<vmem>>, vector<1x512xf32>
    %960 = vector.shape_cast %959 : vector<1x512xf32> to vector<1x1x512xf32>
    %961 = vector.broadcast %960 : vector<1x1x512xf32> to vector<2x8x512xf32>
    %962 = arith.mulf %958, %961 : vector<2x8x512xf32>
    %963 = arith.addf %951, %962 : vector<2x8x512xf32>
    %964 = arith.addf %963, %957 : vector<2x8x512xf32>
    %965 = tpu.concatenate %901, %964 in 1 : vector<2x8x512xf32>, vector<2x8x512xf32> -> vector<2x16x512xf32>
    %cst_267 = arith.constant 5.000000e-01 : f32
    %966 = vector.broadcast %cst_267 : f32 to vector<2x16x512xf32>
    %967 = arith.mulf %966, %965 : vector<2x16x512xf32>
    %cst_268 = arith.constant 4.471500e-02 : f32
    %968 = vector.broadcast %cst_268 : f32 to vector<2x16x512xf32>
    %969 = arith.mulf %968, %965 : vector<2x16x512xf32>
    %970 = arith.mulf %969, %965 : vector<2x16x512xf32>
    %971 = arith.mulf %970, %965 : vector<2x16x512xf32>
    %972 = arith.addf %965, %971 : vector<2x16x512xf32>
    %cst_269 = arith.constant 0.797884583 : f32
    %973 = vector.broadcast %cst_269 : f32 to vector<2x16x512xf32>
    %974 = arith.mulf %973, %972 : vector<2x16x512xf32>
    %975 = math.tanh %974 : vector<2x16x512xf32>
    %cst_270 = arith.constant 1.000000e+00 : f32
    %976 = vector.broadcast %cst_270 : f32 to vector<2x16x512xf32>
    %977 = arith.addf %976, %975 : vector<2x16x512xf32>
    %978 = arith.mulf %967, %977 : vector<2x16x512xf32>
    %979 = vector.shape_cast %978 : vector<2x16x512xf32> to vector<32x512xf32>
    %980 = arith.truncf %979 : vector<32x512xf32> to vector<32x512xbf16>
    %c0_271 = arith.constant 0 : index
    %c0_272 = arith.constant 0 : index
    %981 = vector.load %arg4[%c0_271, %c0_272] : memref<512x16xbf16, #tpu.memory_space<vmem>>, vector<512x16xbf16>
    %cst_273 = arith.constant dense<0.000000e+00> : vector<32x16xf32>
    %982 = tpu.matmul %980, %981, %cst_273 {dimension_numbers = #tpu.dot_dimension_numbers<[1], [0], [0], [1], [0, 0, 1, 1], [], []>} : vector<32x512xbf16>, vector<512x16xbf16>, vector<32x16xf32> -> vector<32x16xf32>
    %c16_274 = arith.constant 16 : index
    %c0_275 = arith.constant 0 : index
    %983 = vector.load %arg6[%c16_274, %c0_275] : memref<116x128xf32, #tpu.memory_space<vmem>>, vector<1x1xf32>
    %984 = vector.broadcast %983 : vector<1x1xf32> to vector<32x16xf32>
    %985 = arith.addf %982, %984 : vector<32x16xf32>
    %cst_276 = arith.constant 5.000000e-01 : f32
    %986 = vector.broadcast %cst_276 : f32 to vector<32x16xf32>
    %987 = arith.mulf %986, %985 : vector<32x16xf32>
    %cst_277 = arith.constant 4.471500e-02 : f32
    %988 = vector.broadcast %cst_277 : f32 to vector<32x16xf32>
    %989 = arith.mulf %988, %985 : vector<32x16xf32>
    %990 = arith.mulf %989, %985 : vector<32x16xf32>
    %991 = arith.mulf %990, %985 : vector<32x16xf32>
    %992 = arith.addf %985, %991 : vector<32x16xf32>
    %cst_278 = arith.constant 0.797884583 : f32
    %993 = vector.broadcast %cst_278 : f32 to vector<32x16xf32>
    %994 = arith.mulf %993, %992 : vector<32x16xf32>
    %995 = math.tanh %994 : vector<32x16xf32>
    %cst_279 = arith.constant 1.000000e+00 : f32
    %996 = vector.broadcast %cst_279 : f32 to vector<32x16xf32>
    %997 = arith.addf %996, %995 : vector<32x16xf32>
    %998 = arith.mulf %987, %997 : vector<32x16xf32>
    %999 = arith.truncf %998 : vector<32x16xf32> to vector<32x16xbf16>
    %c0_280 = arith.constant 0 : index
    %c0_281 = arith.constant 0 : index
    %1000 = vector.load %arg5[%c0_280, %c0_281] : memref<16x512xbf16, #tpu.memory_space<vmem>>, vector<16x512xbf16>
    %cst_282 = arith.constant dense<0.000000e+00> : vector<32x512xf32>
    %1001 = tpu.matmul %999, %1000, %cst_282 {dimension_numbers = #tpu.dot_dimension_numbers<[1], [0], [0], [1], [0, 0, 1, 1], [], []>} : vector<32x16xbf16>, vector<16x512xbf16>, vector<32x512xf32> -> vector<32x512xf32>
    %1002 = vector.shape_cast %1001 : vector<32x512xf32> to vector<2x16x512xf32>
    %c2_283 = arith.constant 2 : index
    %c0_284 = arith.constant 0 : index
    %1003 = vector.load %arg7[%c2_283, %c0_284] : memref<12x512xf32, #tpu.memory_space<vmem>>, vector<1x512xf32>
    %1004 = arith.subf %978, %1002 : vector<2x16x512xf32>
    %1005 = vector.shape_cast %1003 : vector<1x512xf32> to vector<1x1x512xf32>
    %1006 = vector.broadcast %1005 : vector<1x1x512xf32> to vector<2x16x512xf32>
    %1007 = arith.mulf %1006, %1004 : vector<2x16x512xf32>
    %1008 = arith.addf %978, %1007 : vector<2x16x512xf32>
    %c0_285 = arith.constant 0 : index
    %c0_286 = arith.constant 0 : index
    %1009 = vector.load %arg3[%c0_285, %c0_286] : memref<512x128xbf16, #tpu.memory_space<vmem>>, vector<512x128xbf16>
    %c14_287 = arith.constant 14 : index
    %c0_288 = arith.constant 0 : index
    %1010 = vector.load %arg6[%c14_287, %c0_288] : memref<116x128xf32, #tpu.memory_space<vmem>>, vector<1x128xf32>
    %1011 = vector.shape_cast %1008 : vector<2x16x512xf32> to vector<32x512xf32>
    %1012 = arith.truncf %1011 : vector<32x512xf32> to vector<32x512xbf16>
    %cst_289 = arith.constant dense<0.000000e+00> : vector<32x128xf32>
    %1013 = tpu.matmul %1012, %1009, %cst_289 {dimension_numbers = #tpu.dot_dimension_numbers<[1], [0], [0], [1], [0, 0, 1, 1], [], []>} : vector<32x512xbf16>, vector<512x128xbf16>, vector<32x128xf32> -> vector<32x128xf32>
    %1014 = vector.shape_cast %1013 : vector<32x128xf32> to vector<2x16x128xf32>
    %1015 = vector.shape_cast %1010 : vector<1x128xf32> to vector<1x1x128xf32>
    %1016 = vector.broadcast %1015 : vector<1x1x128xf32> to vector<2x16x128xf32>
    %1017 = arith.addf %1014, %1016 : vector<2x16x128xf32>
    %c15_290 = arith.constant 15 : index
    %c0_291 = arith.constant 0 : index
    %1018 = vector.load %arg6[%c15_290, %c0_291] : memref<116x128xf32, #tpu.memory_space<vmem>>, vector<1x128xf32>
    %1019 = vector.shape_cast %1018 : vector<1x128xf32> to vector<1x1x128xf32>
    %1020 = vector.broadcast %1019 : vector<1x1x128xf32> to vector<2x16x128xf32>
    %1021 = arith.mulf %1020, %1017 : vector<2x16x128xf32>
    %1022 = arith.addf %788, %1021 : vector<2x16x128xf32>
    %c0_292 = arith.constant 0 : index
    %c0_293 = arith.constant 0 : index
    %c0_294 = arith.constant 0 : index
    %1023 = vector.load %arg8[%c0_292, %c0_293, %c0_294] : memref<2x16x128xf32, #tpu.memory_space<vmem>>, vector<2x16x128xf32>
    tpu.vector_store %arg8[%c0_292, %c0_293, %c0_294], %1022 {strides = array<i32>} : memref<2x16x128xf32, #tpu.memory_space<vmem>>, vector<2x16x128xf32>,
    return
  }
}

</mosaic_0001>

<llo_original>
// kernel: moga_block.1
$region0: #{moga_block.1}
  #allocation0 [shape = 'u32[]', space=smem, size = 0x4, offset = 0x4, fixed_abs, tag = 'smem constant byte address 0x4 - core index']
  #allocation1 [shape = 'u32[144,128]{1,0:T(1,128)}', space=vmem, size = 0x12000, scoped, tag = 'internal scratch']
  #allocation2 [shape = 'f32[2,48,128]{2,1,0:T(8,128)}', space=vmem, size = 0xc000, scoped, tag = 'scratch operand']
  #allocation3 [shape = 'f32[2,32,512]{2,1,0:T(8,128)}', space=vmem, size = 0x20000, scoped, tag = 'scratch operand']
  %s0 = inlined_call_operand.vmem [shape: f32[2,16,128], index: 0, kind: input, shape index: {}]
  %s1 = inlined_call_operand.vmem [shape: bf16[4,128,128], index: 1, kind: input, shape index: {}]
  %s2 = inlined_call_operand.vmem [shape: bf16[128,512], index: 2, kind: input, shape index: {}]
  %s3 = inlined_call_operand.vmem [shape: bf16[512,128], index: 3, kind: input, shape index: {}]
  %s4 = inlined_call_operand.vmem [shape: bf16[512,16], index: 4, kind: input, shape index: {}]
  %s5 = inlined_call_operand.vmem [shape: bf16[16,512], index: 5, kind: input, shape index: {}]
  %s6 = inlined_call_operand.vmem [shape: f32[116,128], index: 6, kind: input, shape index: {}]
  %s7 = inlined_call_operand.vmem [shape: f32[12,512], index: 7, kind: input, shape index: {}]
  %s8 = inlined_call_operand.vmem [shape: f32[2,16,128], index: 8, kind: output, shape index: {}]
  %s9 = sld [smem:[#allocation0]]
  $region42: #{moga_block.1} parent=0
    _
  %s11 = ssub.s32 1, %s9
  %s12 = scalar_select 0, %s11, %s9
  // Predicated region
  $region2: #{moga_block.1} parent=0 // pred_check
    _
  $region3: #{moga_block.1} parent=0 // pred_check_branch
    %14 = sbr.rel (0) target = $region5
  $region4: #{moga_block.1} parent=0 // pred_region
    _
  $region5: #{moga_block.1} parent=0 // pred_fallthru
    _
  // Predicated region
  $region6: #{moga_block.1} parent=0 // pred_check
    _
  $region7: #{moga_block.1} parent=0 // pred_check_branch
    %16 = sbr.rel (0) target = $region9
  $region8: #{moga_block.1} parent=0 // pred_region
    _
  $region9: #{moga_block.1} parent=0 // pred_fallthru
    _
  // Predicated region
  $region10: #{moga_block.1} parent=0 // pred_check
    _
  $region11: #{moga_block.1} parent=0 // pred_check_branch
    %18 = sbr.rel (0) target = $region13
  $region12: #{moga_block.1} parent=0 // pred_region
    _
  $region13: #{moga_block.1} parent=0 // pred_fallthru
    _
  // Predicated region
  $region14: #{moga_block.1} parent=0 // pred_check
    _
  $region15: #{moga_block.1} parent=0 // pred_check_branch
    %20 = sbr.rel (0) target = $region17
  $region16: #{moga_block.1} parent=0 // pred_region
    _
  $region17: #{moga_block.1} parent=0 // pred_fallthru
    _
  // Predicated region
  $region18: #{moga_block.1} parent=0 // pred_check
    _
  $region19: #{moga_block.1} parent=0 // pred_check_branch
    %22 = sbr.rel (0) target = $region21
  $region20: #{moga_block.1} parent=0 // pred_region
    _
  $region21: #{moga_block.1} parent=0 // pred_fallthru
    _
  // Predicated region
  $region22: #{moga_block.1} parent=0 // pred_check
    _
  $region23: #{moga_block.1} parent=0 // pred_check_branch
    %24 = sbr.rel (0) target = $region25
  $region24: #{moga_block.1} parent=0 // pred_region
    _
  $region25: #{moga_block.1} parent=0 // pred_fallthru
    _
  // Predicated region
  $region26: #{moga_block.1} parent=0 // pred_check
    _
  $region27: #{moga_block.1} parent=0 // pred_check_branch
    %26 = sbr.rel (0) target = $region29
  $region28: #{moga_block.1} parent=0 // pred_region
    _
  $region29: #{moga_block.1} parent=0 // pred_fallthru
    _
  // Predicated region
  $region30: #{moga_block.1} parent=0 // pred_check
    _
  $region31: #{moga_block.1} parent=0 // pred_check_branch
    %28 = sbr.rel (0) target = $region33
  $region32: #{moga_block.1} parent=0 // pred_region
    _
  $region33: #{moga_block.1} parent=0 // pred_fallthru
    _
  %v30 = vld [vmem:[%s0] sm:$0xff]
  %v31 = vld [vmem:[%s0 + $0x8] sm:$0xff]
  %v32 = vld [vmem:[%s0 + $0x10] sm:$0xff]
  %v33 = vld [vmem:[%s0 + $0x18] sm:$0xff]
  %34 = vst [vmem:[#allocation2] sm:$0xff] 0.0
  %35 = vst [vmem:[#allocation2 + $0x8] sm:$0xff] 0.0
  %36 = vst [vmem:[#allocation2 + $0x30] sm:$0xff] 0.0
  %37 = vst [vmem:[#allocation2 + $0x38] sm:$0xff] 0.0
  %38 = vst [vmem:[#allocation2 + $0x20] sm:$0xff] 0.0
  %39 = vst [vmem:[#allocation2 + $0x28] sm:$0xff] 0.0
  %40 = vst [vmem:[#allocation2 + $0x50] sm:$0xff] 0.0
  %41 = vst [vmem:[#allocation2 + $0x58] sm:$0xff] 0.0
  %42 = vst [vmem:[#allocation3] sm:$0xff] 0.0
  %43 = vst [vmem:[#allocation3 + $0x8] sm:$0xff] 0.0
  %44 = vst [vmem:[#allocation3 + $0x10] sm:$0xff] 0.0
  %45 = vst [vmem:[#allocation3 + $0x18] sm:$0xff] 0.0
  %46 = vst [vmem:[#allocation3 + $0x80] sm:$0xff] 0.0
  %47 = vst [vmem:[#allocation3 + $0x88] sm:$0xff] 0.0
  %48 = vst [vmem:[#allocation3 + $0x90] sm:$0xff] 0.0
  %49 = vst [vmem:[#allocation3 + $0x98] sm:$0xff] 0.0
  %50 = vst [vmem:[#allocation3 + $0x60] sm:$0xff] 0.0
  %51 = vst [vmem:[#allocation3 + $0x68] sm:$0xff] 0.0
  %52 = vst [vmem:[#allocation3 + $0x70] sm:$0xff] 0.0
  %53 = vst [vmem:[#allocation3 + $0x78] sm:$0xff] 0.0
  %54 = vst [vmem:[#allocation3 + $0xe0] sm:$0xff] 0.0
  %55 = vst [vmem:[#allocation3 + $0xe8] sm:$0xff] 0.0
  %56 = vst [vmem:[#allocation3 + $0xf0] sm:$0xff] 0.0
  %57 = vst [vmem:[#allocation3 + $0xf8] sm:$0xff] 0.0
  %v58 = vld [vmem:[%s6] sm:$0x1]
  %v59 = vld [vmem:[%s6 + $0x1] sm:$0x1]
  %v60 = vadd.f32 %v30, %v31
  %v61 = vadd.f32 %v60, %v32
  %v62 = vadd.f32 %v61, %v33
  %v63 = vrot.slane %v62, 4
  %v64 = vadd.f32 %v62, %v63
  %v65 = vrot.slane %v64, 2
  %v66 = vadd.f32 %v64, %v65
  %v67 = vrot.slane %v66, 1
  %v68 = vadd.f32 %v66, %v67
  %v69 = vmul.f32 %v30, %v30
  %v70 = vmul.f32 %v31, %v31
  %v71 = vmul.f32 %v32, %v32
  %v72 = vmul.f32 %v33, %v33
  %v73 = vadd.f32 %v69, %v70
  %v74 = vadd.f32 %v73, %v71
  %v75 = vadd.f32 %v74, %v72
  %v76 = vrot.slane %v75, 4
  %v77 = vadd.f32 %v75, %v76
  %v78 = vrot.slane %v77, 2
  %v79 = vadd.f32 %v77, %v78
  %v80 = vrot.slane %v79, 1
  %v81 = vadd.f32 %v79, %v80
  %vm82 = vcmask 1040384
  %v83 = vsel %vm82, %v68, %v81
  %84 = vrot.lane.b32.xlu0 %v83, 8
  %v85 = vpop.permute.xlu0 %84
  %v86 = vadd.f32 %v83, %v85
  %87 = vrot.lane.b32.xlu0 %v86, 16
  %v88 = vpop.permute.xlu0 %87
  %v89 = vadd.f32 %v86, %v88
  %90 = vrot.lane.b32.xlu0 %v89, 32
  %v91 = vpop.permute.xlu0 %90
  %v92 = vadd.f32 %v89, %v91
  %93 = vrot.lane.b32.xlu0 %v92, 64
  %v94 = vpop.permute.xlu0 %93
  %v95 = vadd.f32 %v92, %v94
  %v96 = vmul.f32 %v95, 0.001953125
  %v97 = vmul.f32 %v96, %v96
  %v99 = vrot.slane %v97, 7
  %v101 = vsub.f32 %v96, %v99
  %v102 = vmax.f32 %v101, 0.0
  %v103 = vadd.f32 %v102, 1e-05
  %v104 = vrsqrt.pop %v103
  %v106 = vrot.slane %v58, 7
  %v108 = vmul.f32 %v104, %v106
  %v109 = vlaneseq
  %v110 = vshrl.u32 %v109, 7
  %v111 = vsub.s32 1, %v110
  %v112 = vrot.slane %v108, %v111
  %v113 = vmul.f32 %v30, %v112
  %v114 = vmul.f32 %v31, %v112
  %v115 = vmul.f32 %v32, %v112
  %v116 = vmul.f32 %v33, %v112
  %v118 = vrot.slane %v108, 1
  %v120 = vmul.f32 %v96, %v118
  %v121 = vsub.f32 %v59, %v120
  %v122 = vlaneseq
  %v123 = vshrl.u32 %v122, 7
  %v124 = vsub.s32 0, %v123
  %v125 = vrot.slane %v121, %v124
  %v126 = vadd.f32 %v113, %v125
  %v127 = vadd.f32 %v114, %v125
  %v128 = vadd.f32 %v115, %v125
  %v129 = vadd.f32 %v116, %v125
  %v130 = vld [vmem:[%s1] sm:$0xf]
  %v131 = vld [vmem:[%s1 + $0x4] sm:$0xf]
  %v132 = vld [vmem:[%s1 + $0x8] sm:$0xf]
  %v133 = vld [vmem:[%s1 + $0xc] sm:$0xf]
  %v134 = vld [vmem:[%s1 + $0x10] sm:$0xf]
  %v135 = vld [vmem:[%s1 + $0x14] sm:$0xf]
  %v136 = vld [vmem:[%s1 + $0x18] sm:$0xf]
  %v137 = vld [vmem:[%s1 + $0x1c] sm:$0xf]
  %v138 = vld [vmem:[%s1 + $0x20] sm:$0xf]
  %v139 = vld [vmem:[%s1 + $0x24] sm:$0xf]
  %v140 = vld [vmem:[%s1 + $0x28] sm:$0xf]
  %v141 = vld [vmem:[%s1 + $0x2c] sm:$0xf]
  %v142 = vld [vmem:[%s1 + $0x30] sm:$0xf]
  %v143 = vld [vmem:[%s1 + $0x34] sm:$0xf]
  %v144 = vld [vmem:[%s1 + $0x38] sm:$0xf]
  %v145 = vld [vmem:[%s1 + $0x3c] sm:$0xf]
  %v146 = vld [vmem:[%s6 + $0x2] sm:$0x1]
  %v147 = vpack.c.bf16 %v127, %v126
  %v148 = vpack.c.bf16 %v129, %v128
  %v165 = vunpack.c.l.b16 %v130
  %v166 = vunpack.c.l.b16 %v131
  %v167 = vunpack.c.l.b16 %v132
  %v168 = vunpack.c.l.b16 %v133
  %v169 = vunpack.c.l.b16 %v134
  %v170 = vunpack.c.l.b16 %v135
  %v171 = vunpack.c.l.b16 %v136
  %v172 = vunpack.c.l.b16 %v137
  %v173 = vunpack.c.l.b16 %v138
  %v174 = vunpack.c.l.b16 %v139
  %v175 = vunpack.c.l.b16 %v140
  %v176 = vunpack.c.l.b16 %v141
  %v177 = vunpack.c.l.b16 %v142
  %v178 = vunpack.c.l.b16 %v143
  %v179 = vunpack.c.l.b16 %v144
  %v180 = vunpack.c.l.b16 %v145
  %v181 = vpack.c.b16 %v166, %v165
  %v182 = vpack.c.b16 %v168, %v167
  %v183 = vpack.c.b16 %v170, %v169
  %v184 = vpack.c.b16 %v172, %v171
  %v185 = vpack.c.b16 %v174, %v173
  %v186 = vpack.c.b16 %v176, %v175
  %v187 = vpack.c.b16 %v178, %v177
  %v188 = vpack.c.b16 %v180, %v179
  %197 = vmatprep.subr.bf16.mxu0 0
  %198 = vmatpush1.bf16.msra.mxu0 %v181
  %199 = vmatprep.subr.bf16.mxu0 0
  %200 = vmatpush1.bf16.msra.mxu0 %v182
  %201 = vmatprep.subr.bf16.mxu0 0
  %202 = vmatpush1.bf16.msra.mxu0 %v183
  %203 = vmatprep.subr.bf16.mxu0 0
  %204 = vmatpush1.bf16.msra.mxu0 %v184
  %205 = vmatprep.subr.bf16.mxu0 0
  %206 = vmatpush1.bf16.msra.mxu0 %v185
  %207 = vmatprep.subr.bf16.mxu0 0
  %208 = vmatpush1.bf16.msra.mxu0 %v186
  %209 = vmatprep.subr.bf16.mxu0 0
  %210 = vmatpush1.bf16.msra.mxu0 %v187
  %211 = vmatprep.subr.bf16.mxu0 0
  %212 = vmatpush1.bf16.msra.mxu0 %v188
  %213 = vmatprep.subr.bf16.mxu0 0
  %214 = vmatpush1.bf16.msra.mxu0 0
  %215 = vmatprep.subr.bf16.mxu0 0
  %216 = vmatpush1.bf16.msra.mxu0 0
  %217 = vmatprep.subr.bf16.mxu0 0
  %218 = vmatpush1.bf16.msra.mxu0 0
  %219 = vmatprep.subr.bf16.mxu0 0
  %220 = vmatpush1.bf16.msra.mxu0 0
  %221 = vmatprep.subr.bf16.mxu0 0
  %222 = vmatpush1.bf16.msra.mxu0 0
  %223 = vmatprep.subr.bf16.mxu0 0
  %224 = vmatpush1.bf16.msra.mxu0 0
  %225 = vmatprep.subr.bf16.mxu0 0
  %226 = vmatpush1.bf16.msra.mxu0 0
  %227 = vmatprep.subr.bf16.mxu0 0
  %228 = vmatpush1.bf16.msra.mxu0 0
  %229 = vmatprep.mubr.bf16.mxu0 0
  %230 = vmatmul.mubr.bf16.gmra.mrb[0].mxu0 %v147
  %v231 = vpop.f32.mrb[0].mxu0
  %v232 = vadd.f32 0.0, %v231
  %v233 = vpop.f32.mrb[0].mxu0
  %v234 = vpop.f32.mrb[0].mxu0
  %v235 = vadd.f32 0.0, %v234
  %v236 = vpop.f32.mrb[0].mxu0
  %237 = vmatprep.mubr.bf16.mxu0 0
  %238 = vmatmul.mubr.bf16.gmra.mrb[0].mxu0 %v148
  %v239 = vpop.f32.mrb[0].mxu0
  %v240 = vadd.f32 0.0, %v239
  %v241 = vpop.f32.mrb[0].mxu0
  %v242 = vpop.f32.mrb[0].mxu0
  %v243 = vadd.f32 0.0, %v242
  %v244 = vpop.f32.mrb[0].mxu0
  %245 = vdwg.mxu0
  %v246 = vlaneseq
  %v247 = vshrl.u32 %v246, 7
  %v248 = vsub.s32 0, %v247
  %v249 = vrot.slane %v146, %v248
  %v250 = vadd.f32 %v232, %v249
  %v251 = vadd.f32 %v235, %v249
  %v252 = vadd.f32 %v240, %v249
  %v253 = vadd.f32 %v243, %v249
  %v254 = vld [vmem:[%s6 + $0x3] sm:$0x1]
  %v255 = vadd.f32 %v250, %v251
  %v256 = vrot.slane %v255, 4
  %v257 = vadd.f32 %v255, %v256
  %v258 = vrot.slane %v257, 2
  %v259 = vadd.f32 %v257, %v258
  %v260 = vrot.slane %v259, 1
  %v261 = vadd.f32 %v259, %v260
  %v262 = vadd.f32 %v252, %v253
  %v263 = vrot.slane %v262, 4
  %v264 = vadd.f32 %v262, %v263
  %v265 = vrot.slane %v264, 2
  %v266 = vadd.f32 %v264, %v265
  %v267 = vrot.slane %v266, 1
  %v268 = vadd.f32 %v266, %v267
  %vm271 = vcmask 1041409
  %v272 = vsel %vm271, %v268, %v261
  %274 = vrot.lane.b32.xlu0 %v272, 8
  %v275 = vpop.permute.xlu0 %274
  %v277 = vrot.slane %v275, 1
  %v280 = vadd.f32 %v261, %v275
  %v281 = vadd.f32 %v268, %v277
  %v284 = vrot.slane %v281, 7
  %v285 = vsel %vm271, %v284, %v280
  %287 = vrot.lane.b32.xlu0 %v285, 16
  %v288 = vpop.permute.xlu0 %287
  %v290 = vrot.slane %v288, 1
  %v293 = vadd.f32 %v280, %v288
  %v294 = vadd.f32 %v281, %v290
  %v297 = vrot.slane %v294, 7
  %v298 = vsel %vm271, %v297, %v293
  %300 = vrot.lane.b32.xlu0 %v298, 32
  %v301 = vpop.permute.xlu0 %300
  %v303 = vrot.slane %v301, 1
  %v306 = vadd.f32 %v293, %v301
  %v307 = vadd.f32 %v294, %v303
  %v310 = vrot.slane %v307, 7
  %v311 = vsel %vm271, %v310, %v306
  %313 = vrot.lane.b32.xlu0 %v311, 64
  %v314 = vpop.permute.xlu0 %313
  %v316 = vrot.slane %v314, 1
  %v319 = vadd.f32 %v306, %v314
  %v320 = vadd.f32 %v307, %v316
  %v321 = vmul.f32 %v319, 0.00390625
  %v322 = vmul.f32 %v320, 0.00390625
  %v323 = vlaneseq
  %v324 = vshrl.u32 %v323, 7
  %v325 = vsub.s32 0, %v324
  %v326 = vrot.slane %v321, %v325
  %v327 = vlaneseq
  %v328 = vshrl.u32 %v327, 7
  %v329 = vsub.s32 0, %v328
  %v330 = vrot.slane %v322, %v329
  %v331 = vsub.f32 %v250, %v326
  %v332 = vsub.f32 %v251, %v326
  %v333 = vsub.f32 %v252, %v330
  %v334 = vsub.f32 %v253, %v330
  %v335 = vlaneseq
  %v336 = vshrl.u32 %v335, 7
  %v337 = vsub.s32 0, %v336
  %v338 = vrot.slane %v254, %v337
  %v339 = vmul.f32 %v338, %v331
  %v340 = vmul.f32 %v338, %v332
  %v341 = vmul.f32 %v338, %v333
  %v342 = vmul.f32 %v338, %v334
  %v343 = vadd.f32 %v250, %v339
  %v344 = vadd.f32 %v251, %v340
  %v345 = vadd.f32 %v252, %v341
  %v346 = vadd.f32 %v253, %v342
  %v347 = vmul.f32 %v343, 0.5
  %v348 = vmul.f32 %v344, 0.5
  %v349 = vmul.f32 %v345, 0.5
  %v350 = vmul.f32 %v346, 0.5
  %v351 = vtanh.pop %v347
  %v352 = vtanh.pop %v348
  %v353 = vtanh.pop %v349
  %v354 = vtanh.pop %v350
  %v355 = vadd.f32 %v351, 1.0
  %v356 = vadd.f32 %v352, 1.0
  %v357 = vadd.f32 %v353, 1.0
  %v358 = vadd.f32 %v354, 1.0
  %v359 = vmul.f32 %v355, 0.5
  %v360 = vmul.f32 %v356, 0.5
  %v361 = vmul.f32 %v357, 0.5
  %v362 = vmul.f32 %v358, 0.5
  %v363 = vmul.f32 %v343, %v359
  %v364 = vmul.f32 %v344, %v360
  %v365 = vmul.f32 %v345, %v361
  %v366 = vmul.f32 %v346, %v362
  %s367 = scalar_lea.vmem %s1, 64
  %v368 = vld [vmem:[%s367] sm:$0xf]
  %v369 = vld [vmem:[%s367 + $0x4] sm:$0xf]
  %v370 = vld [vmem:[%s367 + $0x8] sm:$0xf]
  %v371 = vld [vmem:[%s367 + $0xc] sm:$0xf]
  %v372 = vld [vmem:[%s367 + $0x10] sm:$0xf]
  %v373 = vld [vmem:[%s367 + $0x14] sm:$0xf]
  %v374 = vld [vmem:[%s367 + $0x18] sm:$0xf]
  %v375 = vld [vmem:[%s367 + $0x1c] sm:$0xf]
  %v376 = vld [vmem:[%s367 + $0x20] sm:$0xf]
  %v377 = vld [vmem:[%s367 + $0x24] sm:$0xf]
  %v378 = vld [vmem:[%s367 + $0x28] sm:$0xf]
  %v379 = vld [vmem:[%s367 + $0x2c] sm:$0xf]
  %v380 = vld [vmem:[%s367 + $0x30] sm:$0xf]
  %v381 = vld [vmem:[%s367 + $0x34] sm:$0xf]
  %v382 = vld [vmem:[%s367 + $0x38] sm:$0xf]
  %v383 = vld [vmem:[%s367 + $0x3c] sm:$0xf]
  %v384 = vld [vmem:[%s6 + $0x4] sm:$0x1]
  %v385 = vpack.c.bf16 %v364, %v363
  %v386 = vpack.c.bf16 %v366, %v365
  %v403 = vunpack.c.l.b16 %v368
  %v404 = vunpack.c.l.b16 %v369
  %v405 = vunpack.c.l.b16 %v370
  %v406 = vunpack.c.l.b16 %v371
  %v407 = vunpack.c.l.b16 %v372
  %v408 = vunpack.c.l.b16 %v373
  %v409 = vunpack.c.l.b16 %v374
  %v410 = vunpack.c.l.b16 %v375
  %v411 = vunpack.c.l.b16 %v376
  %v412 = vunpack.c.l.b16 %v377
  %v413 = vunpack.c.l.b16 %v378
  %v414 = vunpack.c.l.b16 %v379
  %v415 = vunpack.c.l.b16 %v380
  %v416 = vunpack.c.l.b16 %v381
  %v417 = vunpack.c.l.b16 %v382
  %v418 = vunpack.c.l.b16 %v383
  %v419 = vpack.c.b16 %v404, %v403
  %v420 = vpack.c.b16 %v406, %v405
  %v421 = vpack.c.b16 %v408, %v407
  %v422 = vpack.c.b16 %v410, %v409
  %v423 = vpack.c.b16 %v412, %v411
  %v424 = vpack.c.b16 %v414, %v413
  %v425 = vpack.c.b16 %v416, %v415
  %v426 = vpack.c.b16 %v418, %v417
  %435 = vmatprep.subr.bf16.mxu0 0
  %436 = vmatpush1.bf16.msra.mxu0 %v419
  %437 = vmatprep.subr.bf16.mxu0 0
  %438 = vmatpush1.bf16.msra.mxu0 %v420
  %439 = vmatprep.subr.bf16.mxu0 0
  %440 = vmatpush1.bf16.msra.mxu0 %v421
  %441 = vmatprep.subr.bf16.mxu0 0
  %442 = vmatpush1.bf16.msra.mxu0 %v422
  %443 = vmatprep.subr.bf16.mxu0 0
  %444 = vmatpush1.bf16.msra.mxu0 %v423
  %445 = vmatprep.subr.bf16.mxu0 0
  %446 = vmatpush1.bf16.msra.mxu0 %v424
  %447 = vmatprep.subr.bf16.mxu0 0
  %448 = vmatpush1.bf16.msra.mxu0 %v425
  %449 = vmatprep.subr.bf16.mxu0 0
  %450 = vmatpush1.bf16.msra.mxu0 %v426
  %451 = vmatprep.subr.bf16.mxu0 0
  %452 = vmatpush1.bf16.msra.mxu0 0
  %453 = vmatprep.subr.bf16.mxu0 0
  %454 = vmatpush1.bf16.msra.mxu0 0
  %455 = vmatprep.subr.bf16.mxu0 0
  %456 = vmatpush1.bf16.msra.mxu0 0
  %457 = vmatprep.subr.bf16.mxu0 0
  %458 = vmatpush1.bf16.msra.mxu0 0
  %459 = vmatprep.subr.bf16.mxu0 0
  %460 = vmatpush1.bf16.msra.mxu0 0
  %461 = vmatprep.subr.bf16.mxu0 0
  %462 = vmatpush1.bf16.msra.mxu0 0
  %463 = vmatprep.subr.bf16.mxu0 0
  %464 = vmatpush1.bf16.msra.mxu0 0
  %465 = vmatprep.subr.bf16.mxu0 0
  %466 = vmatpush1.bf16.msra.mxu0 0
  %467 = vmatprep.mubr.bf16.mxu0 0
  %468 = vmatmul.mubr.bf16.gmra.mrb[0].mxu0 %v385
  %v469 = vpop.f32.mrb[0].mxu0
  %v470 = vadd.f32 0.0, %v469
  %v471 = vpop.f32.mrb[0].mxu0
  %v472 = vpop.f32.mrb[0].mxu0
  %v473 = vadd.f32 0.0, %v472
  %v474 = vpop.f32.mrb[0].mxu0
  %475 = vmatprep.mubr.bf16.mxu0 0
  %476 = vmatmul.mubr.bf16.gmra.mrb[0].mxu0 %v386
  %v477 = vpop.f32.mrb[0].mxu0
  %v478 = vadd.f32 0.0, %v477
  %v479 = vpop.f32.mrb[0].mxu0
  %v480 = vpop.f32.mrb[0].mxu0
  %v481 = vadd.f32 0.0, %v480
  %v482 = vpop.f32.mrb[0].mxu0
  %483 = vdwg.mxu0
  %v484 = vlaneseq
  %v485 = vshrl.u32 %v484, 7
  %v486 = vsub.s32 0, %v485
  %v487 = vrot.slane %v384, %v486
  %v488 = vadd.f32 %v470, %v487
  %v489 = vadd.f32 %v473, %v487
  %v490 = vadd.f32 %v478, %v487
  %v491 = vadd.f32 %v481, %v487
  %492 = vst [vmem:[#allocation2 + $0x10] sm:$0xff] %v363
  %493 = vst [vmem:[#allocation2 + $0x18] sm:$0xff] %v364
  %494 = vst [vmem:[#allocation2 + $0x40] sm:$0xff] %v365
  %495 = vst [vmem:[#allocation2 + $0x48] sm:$0xff] %v366
  %v496 = vld [vmem:[%s6 + $0x5] sm:$0x1]
  %v497 = vld [vmem:[#allocation2 + $0xe] sm:$0xff]
  %v498 = vld [vmem:[#allocation2 + $0x16] sm:$0xff]
  %v499 = vld [vmem:[#allocation2 + $0x1e] sm:$0xf]
  %v500 = vld [vmem:[#allocation2 + $0x3e] sm:$0xff]
  %v501 = vld [vmem:[#allocation2 + $0x46] sm:$0xff]
  %v502 = vld [vmem:[#allocation2 + $0x4e] sm:$0xf]
  %v503 = vlaneseq
  %v504 = vshrl.u32 %v503, 7
  %v505 = vsub.s32 0, %v504
  %v506 = vrot.slane %v496, %v505
  %v507 = vadd.f32 %v506, 0.0
  %508 = vrot.lane.b32.xlu0 %v497, 16
  %v509 = vpop.permute.xlu0 %508
  %510 = vrot.lane.b32.xlu0 %v498, 16
  %v511 = vpop.permute.xlu0 %510
  %512 = vrot.lane.b32.xlu0 %v499, 16
  %v513 = vpop.permute.xlu0 %512
  %514 = vrot.lane.b32.xlu0 %v500, 16
  %v515 = vpop.permute.xlu0 %514
  %516 = vrot.lane.b32.xlu0 %v501, 16
  %v517 = vpop.permute.xlu0 %516
  %518 = vrot.lane.b32.xlu0 %v502, 16
  %v519 = vpop.permute.xlu0 %518
  %v520 = vld [vmem:[%s6 + $0x11] sm:$0x1]
  %v521 = vlaneseq
  %v522 = vshrl.u32 %v521, 7
  %v523 = vsub.s32 0, %v522
  %v524 = vrot.slane %v520, %v523
  %v525 = vmul.f32 %v509, %v524
  %v526 = vmul.f32 %v511, %v524
  %v527 = vmul.f32 %v515, %v524
  %v528 = vmul.f32 %v517, %v524
  %v529 = vadd.f32 %v507, %v525
  %v530 = vadd.f32 %v507, %v526
  %v531 = vadd.f32 %v507, %v527
  %v532 = vadd.f32 %v507, %v528
  %v533 = vld [vmem:[%s6 + $0x16] sm:$0x1]
  %v534 = vlaneseq
  %v535 = vshrl.u32 %v534, 7
  %v536 = vsub.s32 0, %v535
  %v537 = vrot.slane %v533, %v536
  %v538 = vmul.f32 %v509, %v537
  %v539 = vmul.f32 %v511, %v537
  %v540 = vmul.f32 %v513, %v537
  %v541 = vmul.f32 %v515, %v537
  %v542 = vmul.f32 %v517, %v537
  %v543 = vmul.f32 %v519, %v537
  %v544 = vadd.f32 %v538, 0.0
  %v545 = vadd.f32 %v539, 0.0
  %v546 = vadd.f32 %v540, 0.0
  %v547 = vadd.f32 %v541, 0.0
  %v548 = vadd.f32 %v542, 0.0
  %v549 = vadd.f32 %v543, 0.0
  %v550 = vld [vmem:[%s6 + $0x1b] sm:$0x1]
  %v551 = vlaneseq
  %v552 = vshrl.u32 %v551, 7
  %v553 = vsub.s32 0, %v552
  %v554 = vrot.slane %v550, %v553
  %v555 = vmul.f32 %v509, %v554
  %v556 = vmul.f32 %v511, %v554
  %v557 = vmul.f32 %v513, %v554
  %v558 = vmul.f32 %v515, %v554
  %v559 = vmul.f32 %v517, %v554
  %v560 = vmul.f32 %v519, %v554
  %v561 = vadd.f32 %v555, 0.0
  %v562 = vadd.f32 %v556, 0.0
  %v563 = vadd.f32 %v557, 0.0
  %v564 = vadd.f32 %v558, 0.0
  %v565 = vadd.f32 %v559, 0.0
  %v566 = vadd.f32 %v560, 0.0
  %v567 = vld [vmem:[%s6 + $0x20] sm:$0x1]
  %v568 = vlaneseq
  %v569 = vshrl.u32 %v568, 7
  %v570 = vsub.s32 0, %v569
  %v571 = vrot.slane %v567, %v570
  %v572 = vmul.f32 %v509, %v571
  %v573 = vmul.f32 %v511, %v571
  %v574 = vmul.f32 %v513, %v571
  %v575 = vmul.f32 %v515, %v571
  %v576 = vmul.f32 %v517, %v571
  %v577 = vmul.f32 %v519, %v571
  %v578 = vadd.f32 %v572, 0.0
  %v579 = vadd.f32 %v573, 0.0
  %v580 = vadd.f32 %v574, 0.0
  %v581 = vadd.f32 %v575, 0.0
  %v582 = vadd.f32 %v576, 0.0
  %v583 = vadd.f32 %v577, 0.0
  %v584 = vld [vmem:[%s6 + $0x25] sm:$0x1]
  %v585 = vlaneseq
  %v586 = vshrl.u32 %v585, 7
  %v587 = vsub.s32 0, %v586
  %v588 = vrot.slane %v584, %v587
  %v589 = vmul.f32 %v509, %v588
  %v590 = vmul.f32 %v511, %v588
  %v591 = vmul.f32 %v513, %v588
  %v592 = vmul.f32 %v515, %v588
  %v593 = vmul.f32 %v517, %v588
  %v594 = vmul.f32 %v519, %v588
  %vm601 = vcmask 1043456
  %v602 = vrot.slane %v589, 4
  %v603 = vrot.slane %v590, 4
  %v604 = vsel %vm601, %v602, %v603
  %v605 = vrot.slane %v591, 4
  %v606 = vsel %vm601, %v603, %v605
  %v607 = vrot.slane %v592, 4
  %v608 = vrot.slane %v593, 4
  %v609 = vsel %vm601, %v607, %v608
  %v610 = vrot.slane %v594, 4
  %v611 = vsel %vm601, %v608, %v610
  %v616 = vadd.f32 %v529, %v604
  %v617 = vadd.f32 %v530, %v606
  %v618 = vadd.f32 %v531, %v609
  %v619 = vadd.f32 %v532, %v611
  %620 = vrot.lane.b32.xlu0 %v497, 8
  %v621 = vpop.permute.xlu0 %620
  %622 = vrot.lane.b32.xlu0 %v498, 8
  %v623 = vpop.permute.xlu0 %622
  %624 = vrot.lane.b32.xlu0 %v499, 8
  %v625 = vpop.permute.xlu0 %624
  %626 = vrot.lane.b32.xlu0 %v500, 8
  %v627 = vpop.permute.xlu0 %626
  %628 = vrot.lane.b32.xlu0 %v501, 8
  %v629 = vpop.permute.xlu0 %628
  %630 = vrot.lane.b32.xlu0 %v502, 8
  %v631 = vpop.permute.xlu0 %630
  %v632 = vld [vmem:[%s6 + $0x12] sm:$0x1]
  %v633 = vlaneseq
  %v634 = vshrl.u32 %v633, 7
  %v635 = vsub.s32 0, %v634
  %v636 = vrot.slane %v632, %v635
  %v637 = vmul.f32 %v621, %v636
  %v638 = vmul.f32 %v623, %v636
  %v639 = vmul.f32 %v627, %v636
  %v640 = vmul.f32 %v629, %v636
  %v645 = vrot.slane %v637, 7
  %v646 = vrot.slane %v638, 7
  %v647 = vsel %vm82, %v645, %v646
  %v648 = vrot.slane %v639, 7
  %v649 = vrot.slane %v640, 7
  %v650 = vsel %vm82, %v648, %v649
  %v657 = vadd.f32 %v544, %v645
  %v658 = vadd.f32 %v545, %v647
  %v659 = vadd.f32 %v546, %v646
  %v660 = vadd.f32 %v547, %v648
  %v661 = vadd.f32 %v548, %v650
  %v662 = vadd.f32 %v549, %v649
  %v663 = vld [vmem:[%s6 + $0x17] sm:$0x1]
  %v664 = vlaneseq
  %v665 = vshrl.u32 %v664, 7
  %v666 = vsub.s32 0, %v665
  %v667 = vrot.slane %v663, %v666
  %v668 = vmul.f32 %v621, %v667
  %v669 = vmul.f32 %v623, %v667
  %v670 = vmul.f32 %v625, %v667
  %v671 = vmul.f32 %v627, %v667
  %v672 = vmul.f32 %v629, %v667
  %v673 = vmul.f32 %v631, %v667
  %v680 = vrot.slane %v668, 7
  %v681 = vrot.slane %v669, 7
  %v682 = vsel %vm82, %v680, %v681
  %v683 = vrot.slane %v670, 7
  %v684 = vsel %vm82, %v681, %v683
  %v685 = vrot.slane %v671, 7
  %v686 = vrot.slane %v672, 7
  %v687 = vsel %vm82, %v685, %v686
  %v688 = vrot.slane %v673, 7
  %v689 = vsel %vm82, %v686, %v688
  %v696 = vadd.f32 %v561, %v680
  %v697 = vadd.f32 %v562, %v682
  %v698 = vadd.f32 %v563, %v684
  %v699 = vadd.f32 %v564, %v685
  %v700 = vadd.f32 %v565, %v687
  %v701 = vadd.f32 %v566, %v689
  %v702 = vld [vmem:[%s6 + $0x1c] sm:$0x1]
  %v703 = vlaneseq
  %v704 = vshrl.u32 %v703, 7
  %v705 = vsub.s32 0, %v704
  %v706 = vrot.slane %v702, %v705
  %v707 = vmul.f32 %v621, %v706
  %v708 = vmul.f32 %v623, %v706
  %v709 = vmul.f32 %v625, %v706
  %v710 = vmul.f32 %v627, %v706
  %v711 = vmul.f32 %v629, %v706
  %v712 = vmul.f32 %v631, %v706
  %v719 = vrot.slane %v707, 7
  %v720 = vrot.slane %v708, 7
  %v721 = vsel %vm82, %v719, %v720
  %v722 = vrot.slane %v709, 7
  %v723 = vsel %vm82, %v720, %v722
  %v724 = vrot.slane %v710, 7
  %v725 = vrot.slane %v711, 7
  %v726 = vsel %vm82, %v724, %v725
  %v727 = vrot.slane %v712, 7
  %v728 = vsel %vm82, %v725, %v727
  %v735 = vadd.f32 %v578, %v719
  %v736 = vadd.f32 %v579, %v721
  %v737 = vadd.f32 %v580, %v723
  %v738 = vadd.f32 %v581, %v724
  %v739 = vadd.f32 %v582, %v726
  %v740 = vadd.f32 %v583, %v728
  %v741 = vld [vmem:[%s6 + $0x21] sm:$0x1]
  %v742 = vlaneseq
  %v743 = vshrl.u32 %v742, 7
  %v744 = vsub.s32 0, %v743
  %v745 = vrot.slane %v741, %v744
  %v746 = vmul.f32 %v621, %v745
  %v747 = vmul.f32 %v623, %v745
  %v748 = vmul.f32 %v625, %v745
  %v749 = vmul.f32 %v627, %v745
  %v750 = vmul.f32 %v629, %v745
  %v751 = vmul.f32 %v631, %v745
  %vm758 = vcmask 1044480
  %v759 = vrot.slane %v746, 3
  %v760 = vrot.slane %v747, 3
  %v761 = vsel %vm758, %v759, %v760
  %v762 = vrot.slane %v748, 3
  %v763 = vsel %vm758, %v760, %v762
  %v764 = vrot.slane %v749, 3
  %v765 = vrot.slane %v750, 3
  %v766 = vsel %vm758, %v764, %v765
  %v767 = vrot.slane %v751, 3
  %v768 = vsel %vm758, %v765, %v767
  %v773 = vadd.f32 %v616, %v761
  %v774 = vadd.f32 %v617, %v763
  %v775 = vadd.f32 %v618, %v766
  %v776 = vadd.f32 %v619, %v768
  %v777 = vld [vmem:[%s6 + $0x26] sm:$0x1]
  %v778 = vlaneseq
  %v779 = vshrl.u32 %v778, 7
  %v780 = vsub.s32 0, %v779
  %v781 = vrot.slane %v777, %v780
  %v782 = vmul.f32 %v621, %v781
  %v783 = vmul.f32 %v623, %v781
  %v784 = vmul.f32 %v625, %v781
  %v785 = vmul.f32 %v627, %v781
  %v786 = vmul.f32 %v629, %v781
  %v787 = vmul.f32 %v631, %v781
  %v794 = vrot.slane %v782, 3
  %v795 = vrot.slane %v783, 3
  %v796 = vsel %vm758, %v794, %v795
  %v797 = vrot.slane %v784, 3
  %v798 = vsel %vm758, %v795, %v797
  %v799 = vrot.slane %v785, 3
  %v800 = vrot.slane %v786, 3
  %v801 = vsel %vm758, %v799, %v800
  %v802 = vrot.slane %v787, 3
  %v803 = vsel %vm758, %v800, %v802
  %v810 = vadd.f32 %v657, %v796
  %v811 = vadd.f32 %v658, %v798
  %v812 = vadd.f32 %v659, %v797
  %v813 = vadd.f32 %v660, %v801
  %v814 = vadd.f32 %v661, %v803
  %v815 = vadd.f32 %v662, %v802
  %v816 = vld [vmem:[%s6 + $0x13] sm:$0x1]
  %v817 = vlaneseq
  %v818 = vshrl.u32 %v817, 7
  %v819 = vsub.s32 0, %v818
  %v820 = vrot.slane %v816, %v819
  %v821 = vmul.f32 %v497, %v820
  %v822 = vmul.f32 %v498, %v820
  %v823 = vmul.f32 %v500, %v820
  %v824 = vmul.f32 %v501, %v820
  %vm829 = vcmask 1041408
  %v830 = vrot.slane %v821, 6
  %v831 = vrot.slane %v822, 6
  %v832 = vsel %vm829, %v830, %v831
  %v833 = vrot.slane %v823, 6
  %v834 = vrot.slane %v824, 6
  %v835 = vsel %vm829, %v833, %v834
  %v842 = vadd.f32 %v696, %v830
  %v843 = vadd.f32 %v697, %v832
  %v844 = vadd.f32 %v698, %v831
  %v845 = vadd.f32 %v699, %v833
  %v846 = vadd.f32 %v700, %v835
  %v847 = vadd.f32 %v701, %v834
  %v848 = vld [vmem:[%s6 + $0x18] sm:$0x1]
  %v849 = vlaneseq
  %v850 = vshrl.u32 %v849, 7
  %v851 = vsub.s32 0, %v850
  %v852 = vrot.slane %v848, %v851
  %v853 = vmul.f32 %v497, %v852
  %v854 = vmul.f32 %v498, %v852
  %v855 = vmul.f32 %v499, %v852
  %v856 = vmul.f32 %v500, %v852
  %v857 = vmul.f32 %v501, %v852
  %v858 = vmul.f32 %v502, %v852
  %v865 = vrot.slane %v853, 6
  %v866 = vrot.slane %v854, 6
  %v867 = vsel %vm829, %v865, %v866
  %v868 = vrot.slane %v855, 6
  %v869 = vsel %vm829, %v866, %v868
  %v870 = vrot.slane %v856, 6
  %v871 = vrot.slane %v857, 6
  %v872 = vsel %vm829, %v870, %v871
  %v873 = vrot.slane %v858, 6
  %v874 = vsel %vm829, %v871, %v873
  %v881 = vadd.f32 %v735, %v865
  %v882 = vadd.f32 %v736, %v867
  %v883 = vadd.f32 %v737, %v869
  %v884 = vadd.f32 %v738, %v870
  %v885 = vadd.f32 %v739, %v872
  %v886 = vadd.f32 %v740, %v874
  %v887 = vld [vmem:[%s6 + $0x1d] sm:$0x1]
  %v888 = vlaneseq
  %v889 = vshrl.u32 %v888, 7
  %v890 = vsub.s32 0, %v889
  %v891 = vrot.slane %v887, %v890
  %v892 = vmul.f32 %v497, %v891
  %v893 = vmul.f32 %v498, %v891
  %v894 = vmul.f32 %v499, %v891
  %v895 = vmul.f32 %v500, %v891
  %v896 = vmul.f32 %v501, %v891
  %v897 = vmul.f32 %v502, %v891
  %vm904 = vcmask 1045504
  %v905 = vrot.slane %v892, 2
  %v906 = vrot.slane %v893, 2
  %v907 = vsel %vm904, %v905, %v906
  %v908 = vrot.slane %v894, 2
  %v909 = vsel %vm904, %v906, %v908
  %v910 = vrot.slane %v895, 2
  %v911 = vrot.slane %v896, 2
  %v912 = vsel %vm904, %v910, %v911
  %v913 = vrot.slane %v897, 2
  %v914 = vsel %vm904, %v911, %v913
  %v919 = vadd.f32 %v773, %v907
  %v920 = vadd.f32 %v774, %v909
  %v921 = vadd.f32 %v775, %v912
  %v922 = vadd.f32 %v776, %v914
  %v923 = vld [vmem:[%s6 + $0x22] sm:$0x1]
  %v924 = vlaneseq
  %v925 = vshrl.u32 %v924, 7
  %v926 = vsub.s32 0, %v925
  %v927 = vrot.slane %v923, %v926
  %v928 = vmul.f32 %v497, %v927
  %v929 = vmul.f32 %v498, %v927
  %v930 = vmul.f32 %v499, %v927
  %v931 = vmul.f32 %v500, %v927
  %v932 = vmul.f32 %v501, %v927
  %v933 = vmul.f32 %v502, %v927
  %v940 = vrot.slane %v928, 2
  %v941 = vrot.slane %v929, 2
  %v942 = vsel %vm904, %v940, %v941
  %v943 = vrot.slane %v930, 2
  %v944 = vsel %vm904, %v941, %v943
  %v945 = vrot.slane %v931, 2
  %v946 = vrot.slane %v932, 2
  %v947 = vsel %vm904, %v945, %v946
  %v948 = vrot.slane %v933, 2
  %v949 = vsel %vm904, %v946, %v948
  %v956 = vadd.f32 %v810, %v942
  %v957 = vadd.f32 %v811, %v944
  %v958 = vadd.f32 %v812, %v943
  %v959 = vadd.f32 %v813, %v947
  %v960 = vadd.f32 %v814, %v949
  %v961 = vadd.f32 %v815, %v948
  %v962 = vld [vmem:[%s6 + $0x27] sm:$0x1]
  %v963 = vlaneseq
  %v964 = vshrl.u32 %v963, 7
  %v965 = vsub.s32 0, %v964
  %v966 = vrot.slane %v962, %v965
  %v967 = vmul.f32 %v497, %v966
  %v968 = vmul.f32 %v498, %v966
  %v969 = vmul.f32 %v499, %v966
  %v970 = vmul.f32 %v500, %v966
  %v971 = vmul.f32 %v501, %v966
  %v972 = vmul.f32 %v502, %v966
  %v979 = vrot.slane %v967, 2
  %v980 = vrot.slane %v968, 2
  %v981 = vsel %vm904, %v979, %v980
  %v982 = vrot.slane %v969, 2
  %v983 = vsel %vm904, %v980, %v982
  %v984 = vrot.slane %v970, 2
  %v985 = vrot.slane %v971, 2
  %v986 = vsel %vm904, %v984, %v985
  %v987 = vrot.slane %v972, 2
  %v988 = vsel %vm904, %v985, %v987
  %v995 = vadd.f32 %v842, %v981
  %v996 = vadd.f32 %v843, %v983
  %v997 = vadd.f32 %v844, %v982
  %v998 = vadd.f32 %v845, %v986
  %v999 = vadd.f32 %v846, %v988
  %v1000 = vadd.f32 %v847, %v987
  %1001 = vrot.lane.b32.xlu0 %v497, 120
  %v1002 = vpop.permute.xlu0 %1001
  %1003 = vrot.lane.b32.xlu0 %v498, 120
  %v1004 = vpop.permute.xlu0 %1003
  %1005 = vrot.lane.b32.xlu0 %v499, 120
  %v1006 = vpop.permute.xlu0 %1005
  %1007 = vrot.lane.b32.xlu0 %v500, 120
  %v1008 = vpop.permute.xlu0 %1007
  %1009 = vrot.lane.b32.xlu0 %v501, 120
  %v1010 = vpop.permute.xlu0 %1009
  %1011 = vrot.lane.b32.xlu0 %v502, 120
  %v1012 = vpop.permute.xlu0 %1011
  %v1013 = vld [vmem:[%s6 + $0x14] sm:$0x1]
  %v1014 = vlaneseq
  %v1015 = vshrl.u32 %v1014, 7
  %v1016 = vsub.s32 0, %v1015
  %v1017 = vrot.slane %v1013, %v1016
  %v1018 = vmul.f32 %v1002, %v1017
  %v1019 = vmul.f32 %v1004, %v1017
  %v1020 = vmul.f32 %v1008, %v1017
  %v1021 = vmul.f32 %v1010, %v1017
  %vm1026 = vcmask 1042432
  %v1027 = vrot.slane %v1018, 5
  %v1028 = vrot.slane %v1019, 5
  %v1029 = vsel %vm1026, %v1027, %v1028
  %v1030 = vrot.slane %v1020, 5
  %v1031 = vrot.slane %v1021, 5
  %v1032 = vsel %vm1026, %v1030, %v1031
  %v1039 = vadd.f32 %v881, %v1027
  %v1040 = vadd.f32 %v882, %v1029
  %v1041 = vadd.f32 %v883, %v1028
  %v1042 = vadd.f32 %v884, %v1030
  %v1043 = vadd.f32 %v885, %v1032
  %v1044 = vadd.f32 %v886, %v1031
  %v1045 = vld [vmem:[%s6 + $0x19] sm:$0x1]
  %v1046 = vlaneseq
  %v1047 = vshrl.u32 %v1046, 7
  %v1048 = vsub.s32 0, %v1047
  %v1049 = vrot.slane %v1045, %v1048
  %v1050 = vmul.f32 %v1002, %v1049
  %v1051 = vmul.f32 %v1004, %v1049
  %v1052 = vmul.f32 %v1006, %v1049
  %v1053 = vmul.f32 %v1008, %v1049
  %v1054 = vmul.f32 %v1010, %v1049
  %v1055 = vmul.f32 %v1012, %v1049
  %vm1062 = vcmask 1046528
  %v1063 = vrot.slane %v1050, 1
  %v1064 = vrot.slane %v1051, 1
  %v1065 = vsel %vm1062, %v1063, %v1064
  %v1066 = vrot.slane %v1052, 1
  %v1067 = vsel %vm1062, %v1064, %v1066
  %v1068 = vrot.slane %v1053, 1
  %v1069 = vrot.slane %v1054, 1
  %v1070 = vsel %vm1062, %v1068, %v1069
  %v1071 = vrot.slane %v1055, 1
  %v1072 = vsel %vm1062, %v1069, %v1071
  %v1077 = vadd.f32 %v919, %v1065
  %v1078 = vadd.f32 %v920, %v1067
  %v1079 = vadd.f32 %v921, %v1070
  %v1080 = vadd.f32 %v922, %v1072
  %v1081 = vld [vmem:[%s6 + $0x1e] sm:$0x1]
  %v1082 = vlaneseq
  %v1083 = vshrl.u32 %v1082, 7
  %v1084 = vsub.s32 0, %v1083
  %v1085 = vrot.slane %v1081, %v1084
  %v1086 = vmul.f32 %v1002, %v1085
  %v1087 = vmul.f32 %v1004, %v1085
  %v1088 = vmul.f32 %v1006, %v1085
  %v1089 = vmul.f32 %v1008, %v1085
  %v1090 = vmul.f32 %v1010, %v1085
  %v1091 = vmul.f32 %v1012, %v1085
  %v1098 = vrot.slane %v1086, 1
  %v1099 = vrot.slane %v1087, 1
  %v1100 = vsel %vm1062, %v1098, %v1099
  %v1101 = vrot.slane %v1088, 1
  %v1102 = vsel %vm1062, %v1099, %v1101
  %v1103 = vrot.slane %v1089, 1
  %v1104 = vrot.slane %v1090, 1
  %v1105 = vsel %vm1062, %v1103, %v1104
  %v1106 = vrot.slane %v1091, 1
  %v1107 = vsel %vm1062, %v1104, %v1106
  %v1114 = vadd.f32 %v956, %v1100
  %v1115 = vadd.f32 %v957, %v1102
  %v1116 = vadd.f32 %v958, %v1101
  %v1117 = vadd.f32 %v959, %v1105
  %v1118 = vadd.f32 %v960, %v1107
  %v1119 = vadd.f32 %v961, %v1106
  %v1120 = vld [vmem:[%s6 + $0x23] sm:$0x1]
  %v1121 = vlaneseq
  %v1122 = vshrl.u32 %v1121, 7
  %v1123 = vsub.s32 0, %v1122
  %v1124 = vrot.slane %v1120, %v1123
  %v1125 = vmul.f32 %v1002, %v1124
  %v1126 = vmul.f32 %v1004, %v1124
  %v1127 = vmul.f32 %v1006, %v1124
  %v1128 = vmul.f32 %v1008, %v1124
  %v1129 = vmul.f32 %v1010, %v1124
  %v1130 = vmul.f32 %v1012, %v1124
  %v1137 = vrot.slane %v1125, 1
  %v1138 = vrot.slane %v1126, 1
  %v1139 = vsel %vm1062, %v1137, %v1138
  %v1140 = vrot.slane %v1127, 1
  %v1141 = vsel %vm1062, %v1138, %v1140
  %v1142 = vrot.slane %v1128, 1
  %v1143 = vrot.slane %v1129, 1
  %v1144 = vsel %vm1062, %v1142, %v1143
  %v1145 = vrot.slane %v1130, 1
  %v1146 = vsel %vm1062, %v1143, %v1145
  %v1153 = vadd.f32 %v995, %v1139
  %v1154 = vadd.f32 %v996, %v1141
  %v1155 = vadd.f32 %v997, %v1140
  %v1156 = vadd.f32 %v998, %v1144
  %v1157 = vadd.f32 %v999, %v1146
  %v1158 = vadd.f32 %v1000, %v1145
  %v1159 = vld [vmem:[%s6 + $0x28] sm:$0x1]
  %v1160 = vlaneseq
  %v1161 = vshrl.u32 %v1160, 7
  %v1162 = vsub.s32 0, %v1161
  %v1163 = vrot.slane %v1159, %v1162
  %v1164 = vmul.f32 %v1002, %v1163
  %v1165 = vmul.f32 %v1004, %v1163
  %v1166 = vmul.f32 %v1006, %v1163
  %v1167 = vmul.f32 %v1008, %v1163
  %v1168 = vmul.f32 %v1010, %v1163
  %v1169 = vmul.f32 %v1012, %v1163
  %v1176 = vrot.slane %v1164, 1
  %v1177 = vrot.slane %v1165, 1
  %v1178 = vsel %vm1062, %v1176, %v1177
  %v1179 = vrot.slane %v1166, 1
  %v1180 = vsel %vm1062, %v1177, %v1179
  %v1181 = vrot.slane %v1167, 1
  %v1182 = vrot.slane %v1168, 1
  %v1183 = vsel %vm1062, %v1181, %v1182
  %v1184 = vrot.slane %v1169, 1
  %v1185 = vsel %vm1062, %v1182, %v1184
  %v1192 = vadd.f32 %v1039, %v1178
  %v1193 = vadd.f32 %v1040, %v1180
  %v1194 = vadd.f32 %v1041, %v1179
  %v1195 = vadd.f32 %v1042, %v1183
  %v1196 = vadd.f32 %v1043, %v1185
  %v1197 = vadd.f32 %v1044, %v1184
  %1198 = vrot.lane.b32.xlu0 %v497, 112
  %v1199 = vpop.permute.xlu0 %1198
  %1200 = vrot.lane.b32.xlu0 %v498, 112
  %v1201 = vpop.permute.xlu0 %1200
  %1202 = vrot.lane.b32.xlu0 %v499, 112
  %v1203 = vpop.permute.xlu0 %1202
  %1204 = vrot.lane.b32.xlu0 %v500, 112
  %v1205 = vpop.permute.xlu0 %1204
  %1206 = vrot.lane.b32.xlu0 %v501, 112
  %v1207 = vpop.permute.xlu0 %1206
  %1208 = vrot.lane.b32.xlu0 %v502, 112
  %v1209 = vpop.permute.xlu0 %1208
  %v1210 = vld [vmem:[%s6 + $0x15] sm:$0x1]
  %v1211 = vlaneseq
  %v1212 = vshrl.u32 %v1211, 7
  %v1213 = vsub.s32 0, %v1212
  %v1214 = vrot.slane %v1210, %v1213
  %v1215 = vmul.f32 %v1199, %v1214
  %v1216 = vmul.f32 %v1201, %v1214
  %v1217 = vmul.f32 %v1205, %v1214
  %v1218 = vmul.f32 %v1207, %v1214
  %v1219 = vadd.f32 %v1077, %v1215
  %v1220 = vadd.f32 %v1078, %v1216
  %v1221 = vadd.f32 %v1079, %v1217
  %v1222 = vadd.f32 %v1080, %v1218
  %v1223 = vld [vmem:[%s6 + $0x1a] sm:$0x1]
  %v1224 = vlaneseq
  %v1225 = vshrl.u32 %v1224, 7
  %v1226 = vsub.s32 0, %v1225
  %v1227 = vrot.slane %v1223, %v1226
  %v1228 = vmul.f32 %v1199, %v1227
  %v1229 = vmul.f32 %v1201, %v1227
  %v1230 = vmul.f32 %v1203, %v1227
  %v1231 = vmul.f32 %v1205, %v1227
  %v1232 = vmul.f32 %v1207, %v1227
  %v1233 = vmul.f32 %v1209, %v1227
  %v1234 = vadd.f32 %v1114, %v1228
  %v1235 = vadd.f32 %v1115, %v1229
  %v1236 = vadd.f32 %v1116, %v1230
  %v1237 = vadd.f32 %v1117, %v1231
  %v1238 = vadd.f32 %v1118, %v1232
  %v1239 = vadd.f32 %v1119, %v1233
  %v1240 = vld [vmem:[%s6 + $0x1f] sm:$0x1]
  %v1241 = vlaneseq
  %v1242 = vshrl.u32 %v1241, 7
  %v1243 = vsub.s32 0, %v1242
  %v1244 = vrot.slane %v1240, %v1243
  %v1245 = vmul.f32 %v1199, %v1244
  %v1246 = vmul.f32 %v1201, %v1244
  %v1247 = vmul.f32 %v1203, %v1244
  %v1248 = vmul.f32 %v1205, %v1244
  %v1249 = vmul.f32 %v1207, %v1244
  %v1250 = vmul.f32 %v1209, %v1244
  %v1251 = vadd.f32 %v1153, %v1245
  %v1252 = vadd.f32 %v1154, %v1246
  %v1253 = vadd.f32 %v1155, %v1247
  %v1254 = vadd.f32 %v1156, %v1248
  %v1255 = vadd.f32 %v1157, %v1249
  %v1256 = vadd.f32 %v1158, %v1250
  %v1257 = vld [vmem:[%s6 + $0x24] sm:$0x1]
  %v1258 = vlaneseq
  %v1259 = vshrl.u32 %v1258, 7
  %v1260 = vsub.s32 0, %v1259
  %v1261 = vrot.slane %v1257, %v1260
  %v1262 = vmul.f32 %v1199, %v1261
  %v1263 = vmul.f32 %v1201, %v1261
  %v1264 = vmul.f32 %v1203, %v1261
  %v1265 = vmul.f32 %v1205, %v1261
  %v1266 = vmul.f32 %v1207, %v1261
  %v1267 = vmul.f32 %v1209, %v1261
  %v1268 = vadd.f32 %v1192, %v1262
  %v1269 = vadd.f32 %v1193, %v1263
  %v1270 = vadd.f32 %v1194, %v1264
  %v1271 = vadd.f32 %v1195, %v1265
  %v1272 = vadd.f32 %v1196, %v1266
  %v1273 = vadd.f32 %v1197, %v1267
  %v1274 = vld [vmem:[%s6 + $0x29] sm:$0x1]
  %v1275 = vlaneseq
  %v1276 = vshrl.u32 %v1275, 7
  %v1277 = vsub.s32 0, %v1276
  %v1278 = vrot.slane %v1274, %v1277
  %v1279 = vmul.f32 %v1199, %v1278
  %v1280 = vmul.f32 %v1201, %v1278
  %v1281 = vmul.f32 %v1203, %v1278
  %v1282 = vmul.f32 %v1205, %v1278
  %v1283 = vmul.f32 %v1207, %v1278
  %v1284 = vmul.f32 %v1209, %v1278
  %v1291 = vrot.slane %v1279, 4
  %v1292 = vrot.slane %v1280, 4
  %v1293 = vsel %vm601, %v1291, %v1292
  %v1294 = vrot.slane %v1281, 4
  %v1295 = vsel %vm601, %v1292, %v1294
  %v1296 = vrot.slane %v1282, 4
  %v1297 = vrot.slane %v1283, 4
  %v1298 = vsel %vm601, %v1296, %v1297
  %v1299 = vrot.slane %v1284, 4
  %v1300 = vsel %vm601, %v1297, %v1299
  %v1305 = vadd.f32 %v1219, %v1293
  %v1306 = vadd.f32 %v1220, %v1295
  %v1307 = vadd.f32 %v1221, %v1298
  %v1308 = vadd.f32 %v1222, %v1300
  %v1315 = vrot.slane %v1234, 1
  %v1316 = vrot.slane %v1235, 1
  %v1317 = vsel %vm1062, %v1315, %v1316
  %v1318 = vrot.slane %v1236, 1
  %v1319 = vsel %vm1062, %v1316, %v1318
  %v1320 = vrot.slane %v1237, 1
  %v1321 = vrot.slane %v1238, 1
  %v1322 = vsel %vm1062, %v1320, %v1321
  %v1323 = vrot.slane %v1239, 1
  %v1324 = vsel %vm1062, %v1321, %v1323
  %v1329 = vadd.f32 %v1305, %v1317
  %v1330 = vadd.f32 %v1306, %v1319
  %v1331 = vadd.f32 %v1307, %v1322
  %v1332 = vadd.f32 %v1308, %v1324
  %v1339 = vrot.slane %v1251, 2
  %v1340 = vrot.slane %v1252, 2
  %v1341 = vsel %vm904, %v1339, %v1340
  %v1342 = vrot.slane %v1253, 2
  %v1343 = vsel %vm904, %v1340, %v1342
  %v1344 = vrot.slane %v1254, 2
  %v1345 = vrot.slane %v1255, 2
  %v1346 = vsel %vm904, %v1344, %v1345
  %v1347 = vrot.slane %v1256, 2
  %v1348 = vsel %vm904, %v1345, %v1347
  %v1353 = vadd.f32 %v1329, %v1341
  %v1354 = vadd.f32 %v1330, %v1343
  %v1355 = vadd.f32 %v1331, %v1346
  %v1356 = vadd.f32 %v1332, %v1348
  %v1363 = vrot.slane %v1268, 3
  %v1364 = vrot.slane %v1269, 3
  %v1365 = vsel %vm758, %v1363, %v1364
  %v1366 = vrot.slane %v1270, 3
  %v1367 = vsel %vm758, %v1364, %v1366
  %v1368 = vrot.slane %v1271, 3
  %v1369 = vrot.slane %v1272, 3
  %v1370 = vsel %vm758, %v1368, %v1369
  %v1371 = vrot.slane %v1273, 3
  %v1372 = vsel %vm758, %v1369, %v1371
  %v1377 = vadd.f32 %v1353, %v1365
  %v1378 = vadd.f32 %v1354, %v1367
  %v1379 = vadd.f32 %v1355, %v1370
  %v1380 = vadd.f32 %v1356, %v1372
  %1381 = vst [vmem:[#allocation2 + $0x10] sm:$0xff] %v1377
  %1382 = vst [vmem:[#allocation2 + $0x18] sm:$0xff] %v1378
  %1383 = vst [vmem:[#allocation2 + $0x40] sm:$0xff] %v1379
  %1384 = vst [vmem:[#allocation2 + $0x48] sm:$0xff] %v1380
  %v1385 = vld [vmem:[%s6 + $0x6] sm:$0x1]
  %v1386 = vld [vmem:[#allocation2 + $0xc] sm:$0xff]
  %v1387 = vld [vmem:[#allocation2 + $0x14] sm:$0xff]
  %v1388 = vld [vmem:[#allocation2 + $0x1c] sm:$0xff]
  %v1389 = vld [vmem:[#allocation2 + $0x3c] sm:$0xff]
  %v1390 = vld [vmem:[#allocation2 + $0x44] sm:$0xff]
  %v1391 = vld [vmem:[#allocation2 + $0x4c] sm:$0xff]
  %v1392 = vlaneseq
  %v1393 = vshrl.u32 %v1392, 7
  %v1394 = vsub.s32 0, %v1393
  %v1395 = vrot.slane %v1385, %v1394
  %v1396 = vadd.f32 %v1395, 0.0
  %1397 = vrot.lane.b32.xlu0 %v1386, 32
  %v1398 = vpop.permute.xlu0 %1397
  %1399 = vrot.lane.b32.xlu0 %v1387, 32
  %v1400 = vpop.permute.xlu0 %1399
  %1401 = vrot.lane.b32.xlu0 %v1388, 32
  %v1402 = vpop.permute.xlu0 %1401
  %1403 = vrot.lane.b32.xlu0 %v1389, 32
  %v1404 = vpop.permute.xlu0 %1403
  %1405 = vrot.lane.b32.xlu0 %v1390, 32
  %v1406 = vpop.permute.xlu0 %1405
  %1407 = vrot.lane.b32.xlu0 %v1391, 32
  %v1408 = vpop.permute.xlu0 %1407
  %v1409 = vld [vmem:[%s6 + $0x2a] sm:$0x1]
  %v1410 = vlaneseq
  %v1411 = vshrl.u32 %v1410, 7
  %v1412 = vsub.s32 0, %v1411
  %v1413 = vrot.slane %v1409, %v1412
  %v1414 = vmul.f32 %v1398, %v1413
  %v1415 = vmul.f32 %v1400, %v1413
  %v1416 = vmul.f32 %v1404, %v1413
  %v1417 = vmul.f32 %v1406, %v1413
  %v1418 = vadd.f32 %v1396, %v1414
  %v1419 = vadd.f32 %v1396, %v1415
  %v1420 = vadd.f32 %v1396, %v1416
  %v1421 = vadd.f32 %v1396, %v1417
  %v1422 = vld [vmem:[%s6 + $0x2f] sm:$0x1]
  %v1423 = vlaneseq
  %v1424 = vshrl.u32 %v1423, 7
  %v1425 = vsub.s32 0, %v1424
  %v1426 = vrot.slane %v1422, %v1425
  %v1427 = vmul.f32 %v1398, %v1426
  %v1428 = vmul.f32 %v1400, %v1426
  %v1429 = vmul.f32 %v1402, %v1426
  %v1430 = vmul.f32 %v1404, %v1426
  %v1431 = vmul.f32 %v1406, %v1426
  %v1432 = vmul.f32 %v1408, %v1426
  %v1433 = vadd.f32 %v1427, 0.0
  %v1434 = vadd.f32 %v1428, 0.0
  %v1435 = vadd.f32 %v1429, 0.0
  %v1436 = vadd.f32 %v1430, 0.0
  %v1437 = vadd.f32 %v1431, 0.0
  %v1438 = vadd.f32 %v1432, 0.0
  %v1439 = vld [vmem:[%s6 + $0x34] sm:$0x1]
  %v1440 = vlaneseq
  %v1441 = vshrl.u32 %v1440, 7
  %v1442 = vsub.s32 0, %v1441
  %v1443 = vrot.slane %v1439, %v1442
  %v1444 = vmul.f32 %v1398, %v1443
  %v1445 = vmul.f32 %v1400, %v1443
  %v1446 = vmul.f32 %v1402, %v1443
  %v1447 = vmul.f32 %v1404, %v1443
  %v1448 = vmul.f32 %v1406, %v1443
  %v1449 = vmul.f32 %v1408, %v1443
  %v1450 = vadd.f32 %v1444, 0.0
  %v1451 = vadd.f32 %v1445, 0.0
  %v1452 = vadd.f32 %v1446, 0.0
  %v1453 = vadd.f32 %v1447, 0.0
  %v1454 = vadd.f32 %v1448, 0.0
  %v1455 = vadd.f32 %v1449, 0.0
  %v1456 = vld [vmem:[%s6 + $0x39] sm:$0x1]
  %v1457 = vlaneseq
  %v1458 = vshrl.u32 %v1457, 7
  %v1459 = vsub.s32 0, %v1458
  %v1460 = vrot.slane %v1456, %v1459
  %v1461 = vmul.f32 %v1398, %v1460
  %v1462 = vmul.f32 %v1400, %v1460
  %v1463 = vmul.f32 %v1402, %v1460
  %v1464 = vmul.f32 %v1404, %v1460
  %v1465 = vmul.f32 %v1406, %v1460
  %v1466 = vmul.f32 %v1408, %v1460
  %v1467 = vadd.f32 %v1461, 0.0
  %v1468 = vadd.f32 %v1462, 0.0
  %v1469 = vadd.f32 %v1463, 0.0
  %v1470 = vadd.f32 %v1464, 0.0
  %v1471 = vadd.f32 %v1465, 0.0
  %v1472 = vadd.f32 %v1466, 0.0
  %v1473 = vld [vmem:[%s6 + $0x3e] sm:$0x1]
  %v1474 = vlaneseq
  %v1475 = vshrl.u32 %v1474, 7
  %v1476 = vsub.s32 0, %v1475
  %v1477 = vrot.slane %v1473, %v1476
  %v1478 = vmul.f32 %v1400, %v1477
  %v1479 = vmul.f32 %v1402, %v1477
  %v1480 = vmul.f32 %v1406, %v1477
  %v1481 = vmul.f32 %v1408, %v1477
  %v1482 = vadd.f32 %v1418, %v1478
  %v1483 = vadd.f32 %v1419, %v1479
  %v1484 = vadd.f32 %v1420, %v1480
  %v1485 = vadd.f32 %v1421, %v1481
  %1486 = vrot.lane.b32.xlu0 %v1386, 16
  %v1487 = vpop.permute.xlu0 %1486
  %1488 = vrot.lane.b32.xlu0 %v1387, 16
  %v1489 = vpop.permute.xlu0 %1488
  %1490 = vrot.lane.b32.xlu0 %v1388, 16
  %v1491 = vpop.permute.xlu0 %1490
  %1492 = vrot.lane.b32.xlu0 %v1389, 16
  %v1493 = vpop.permute.xlu0 %1492
  %1494 = vrot.lane.b32.xlu0 %v1390, 16
  %v1495 = vpop.permute.xlu0 %1494
  %1496 = vrot.lane.b32.xlu0 %v1391, 16
  %v1497 = vpop.permute.xlu0 %1496
  %v1498 = vld [vmem:[%s6 + $0x2b] sm:$0x1]
  %v1499 = vlaneseq
  %v1500 = vshrl.u32 %v1499, 7
  %v1501 = vsub.s32 0, %v1500
  %v1502 = vrot.slane %v1498, %v1501
  %v1503 = vmul.f32 %v1487, %v1502
  %v1504 = vmul.f32 %v1489, %v1502
  %v1505 = vmul.f32 %v1493, %v1502
  %v1506 = vmul.f32 %v1495, %v1502
  %v1511 = vrot.slane %v1503, 6
  %v1512 = vrot.slane %v1504, 6
  %v1513 = vsel %vm829, %v1511, %v1512
  %v1514 = vrot.slane %v1505, 6
  %v1515 = vrot.slane %v1506, 6
  %v1516 = vsel %vm829, %v1514, %v1515
  %v1523 = vadd.f32 %v1433, %v1511
  %v1524 = vadd.f32 %v1434, %v1513
  %v1525 = vadd.f32 %v1435, %v1512
  %v1526 = vadd.f32 %v1436, %v1514
  %v1527 = vadd.f32 %v1437, %v1516
  %v1528 = vadd.f32 %v1438, %v1515
  %v1529 = vld [vmem:[%s6 + $0x30] sm:$0x1]
  %v1530 = vlaneseq
  %v1531 = vshrl.u32 %v1530, 7
  %v1532 = vsub.s32 0, %v1531
  %v1533 = vrot.slane %v1529, %v1532
  %v1534 = vmul.f32 %v1487, %v1533
  %v1535 = vmul.f32 %v1489, %v1533
  %v1536 = vmul.f32 %v1491, %v1533
  %v1537 = vmul.f32 %v1493, %v1533
  %v1538 = vmul.f32 %v1495, %v1533
  %v1539 = vmul.f32 %v1497, %v1533
  %v1546 = vrot.slane %v1534, 6
  %v1547 = vrot.slane %v1535, 6
  %v1548 = vsel %vm829, %v1546, %v1547
  %v1549 = vrot.slane %v1536, 6
  %v1550 = vsel %vm829, %v1547, %v1549
  %v1551 = vrot.slane %v1537, 6
  %v1552 = vrot.slane %v1538, 6
  %v1553 = vsel %vm829, %v1551, %v1552
  %v1554 = vrot.slane %v1539, 6
  %v1555 = vsel %vm829, %v1552, %v1554
  %v1562 = vadd.f32 %v1450, %v1546
  %v1563 = vadd.f32 %v1451, %v1548
  %v1564 = vadd.f32 %v1452, %v1550
  %v1565 = vadd.f32 %v1453, %v1551
  %v1566 = vadd.f32 %v1454, %v1553
  %v1567 = vadd.f32 %v1455, %v1555
  %v1568 = vld [vmem:[%s6 + $0x35] sm:$0x1]
  %v1569 = vlaneseq
  %v1570 = vshrl.u32 %v1569, 7
  %v1571 = vsub.s32 0, %v1570
  %v1572 = vrot.slane %v1568, %v1571
  %v1573 = vmul.f32 %v1487, %v1572
  %v1574 = vmul.f32 %v1489, %v1572
  %v1575 = vmul.f32 %v1491, %v1572
  %v1576 = vmul.f32 %v1493, %v1572
  %v1577 = vmul.f32 %v1495, %v1572
  %v1578 = vmul.f32 %v1497, %v1572
  %v1585 = vrot.slane %v1573, 6
  %v1586 = vrot.slane %v1574, 6
  %v1587 = vsel %vm829, %v1585, %v1586
  %v1588 = vrot.slane %v1575, 6
  %v1589 = vsel %vm829, %v1586, %v1588
  %v1590 = vrot.slane %v1576, 6
  %v1591 = vrot.slane %v1577, 6
  %v1592 = vsel %vm829, %v1590, %v1591
  %v1593 = vrot.slane %v1578, 6
  %v1594 = vsel %vm829, %v1591, %v1593
  %v1601 = vadd.f32 %v1467, %v1585
  %v1602 = vadd.f32 %v1468, %v1587
  %v1603 = vadd.f32 %v1469, %v1589
  %v1604 = vadd.f32 %v1470, %v1590
  %v1605 = vadd.f32 %v1471, %v1592
  %v1606 = vadd.f32 %v1472, %v1594
  %v1607 = vld [vmem:[%s6 + $0x3a] sm:$0x1]
  %v1608 = vlaneseq
  %v1609 = vshrl.u32 %v1608, 7
  %v1610 = vsub.s32 0, %v1609
  %v1611 = vrot.slane %v1607, %v1610
  %v1612 = vmul.f32 %v1487, %v1611
  %v1613 = vmul.f32 %v1489, %v1611
  %v1614 = vmul.f32 %v1491, %v1611
  %v1615 = vmul.f32 %v1493, %v1611
  %v1616 = vmul.f32 %v1495, %v1611
  %v1617 = vmul.f32 %v1497, %v1611
  %v1624 = vrot.slane %v1612, 6
  %v1625 = vrot.slane %v1613, 6
  %v1626 = vsel %vm829, %v1624, %v1625
  %v1627 = vrot.slane %v1614, 6
  %v1628 = vsel %vm829, %v1625, %v1627
  %v1629 = vrot.slane %v1615, 6
  %v1630 = vrot.slane %v1616, 6
  %v1631 = vsel %vm829, %v1629, %v1630
  %v1632 = vrot.slane %v1617, 6
  %v1633 = vsel %vm829, %v1630, %v1632
  %v1638 = vadd.f32 %v1482, %v1626
  %v1639 = vadd.f32 %v1483, %v1628
  %v1640 = vadd.f32 %v1484, %v1631
  %v1641 = vadd.f32 %v1485, %v1633
  %v1642 = vld [vmem:[%s6 + $0x3f] sm:$0x1]
  %v1643 = vlaneseq
  %v1644 = vshrl.u32 %v1643, 7
  %v1645 = vsub.s32 0, %v1644
  %v1646 = vrot.slane %v1642, %v1645
  %v1647 = vmul.f32 %v1489, %v1646
  %v1648 = vmul.f32 %v1491, %v1646
  %v1649 = vmul.f32 %v1495, %v1646
  %v1650 = vmul.f32 %v1497, %v1646
  %v1655 = vrot.slane %v1647, 6
  %v1656 = vrot.slane %v1648, 6
  %v1657 = vsel %vm829, %v1655, %v1656
  %v1658 = vrot.slane %v1649, 6
  %v1659 = vrot.slane %v1650, 6
  %v1660 = vsel %vm829, %v1658, %v1659
  %v1667 = vadd.f32 %v1523, %v1655
  %v1668 = vadd.f32 %v1524, %v1657
  %v1669 = vadd.f32 %v1525, %v1656
  %v1670 = vadd.f32 %v1526, %v1658
  %v1671 = vadd.f32 %v1527, %v1660
  %v1672 = vadd.f32 %v1528, %v1659
  %v1673 = vld [vmem:[%s6 + $0x2c] sm:$0x1]
  %v1674 = vlaneseq
  %v1675 = vshrl.u32 %v1674, 7
  %v1676 = vsub.s32 0, %v1675
  %v1677 = vrot.slane %v1673, %v1676
  %v1678 = vmul.f32 %v1386, %v1677
  %v1679 = vmul.f32 %v1387, %v1677
  %v1680 = vmul.f32 %v1389, %v1677
  %v1681 = vmul.f32 %v1390, %v1677
  %v1686 = vrot.slane %v1678, 4
  %v1687 = vrot.slane %v1679, 4
  %v1688 = vsel %vm601, %v1686, %v1687
  %v1689 = vrot.slane %v1680, 4
  %v1690 = vrot.slane %v1681, 4
  %v1691 = vsel %vm601, %v1689, %v1690
  %v1698 = vadd.f32 %v1562, %v1686
  %v1699 = vadd.f32 %v1563, %v1688
  %v1700 = vadd.f32 %v1564, %v1687
  %v1701 = vadd.f32 %v1565, %v1689
  %v1702 = vadd.f32 %v1566, %v1691
  %v1703 = vadd.f32 %v1567, %v1690
  %v1704 = vld [vmem:[%s6 + $0x31] sm:$0x1]
  %v1705 = vlaneseq
  %v1706 = vshrl.u32 %v1705, 7
  %v1707 = vsub.s32 0, %v1706
  %v1708 = vrot.slane %v1704, %v1707
  %v1709 = vmul.f32 %v1386, %v1708
  %v1710 = vmul.f32 %v1387, %v1708
  %v1711 = vmul.f32 %v1388, %v1708
  %v1712 = vmul.f32 %v1389, %v1708
  %v1713 = vmul.f32 %v1390, %v1708
  %v1714 = vmul.f32 %v1391, %v1708
  %v1721 = vrot.slane %v1709, 4
  %v1722 = vrot.slane %v1710, 4
  %v1723 = vsel %vm601, %v1721, %v1722
  %v1724 = vrot.slane %v1711, 4
  %v1725 = vsel %vm601, %v1722, %v1724
  %v1726 = vrot.slane %v1712, 4
  %v1727 = vrot.slane %v1713, 4
  %v1728 = vsel %vm601, %v1726, %v1727
  %v1729 = vrot.slane %v1714, 4
  %v1730 = vsel %vm601, %v1727, %v1729
  %v1737 = vadd.f32 %v1601, %v1721
  %v1738 = vadd.f32 %v1602, %v1723
  %v1739 = vadd.f32 %v1603, %v1725
  %v1740 = vadd.f32 %v1604, %v1726
  %v1741 = vadd.f32 %v1605, %v1728
  %v1742 = vadd.f32 %v1606, %v1730
  %v1743 = vld [vmem:[%s6 + $0x36] sm:$0x1]
  %v1744 = vlaneseq
  %v1745 = vshrl.u32 %v1744, 7
  %v1746 = vsub.s32 0, %v1745
  %v1747 = vrot.slane %v1743, %v1746
  %v1748 = vmul.f32 %v1386, %v1747
  %v1749 = vmul.f32 %v1387, %v1747
  %v1750 = vmul.f32 %v1388, %v1747
  %v1751 = vmul.f32 %v1389, %v1747
  %v1752 = vmul.f32 %v1390, %v1747
  %v1753 = vmul.f32 %v1391, %v1747
  %v1760 = vrot.slane %v1748, 4
  %v1761 = vrot.slane %v1749, 4
  %v1762 = vsel %vm601, %v1760, %v1761
  %v1763 = vrot.slane %v1750, 4
  %v1764 = vsel %vm601, %v1761, %v1763
  %v1765 = vrot.slane %v1751, 4
  %v1766 = vrot.slane %v1752, 4
  %v1767 = vsel %vm601, %v1765, %v1766
  %v1768 = vrot.slane %v1753, 4
  %v1769 = vsel %vm601, %v1766, %v1768
  %v1774 = vadd.f32 %v1638, %v1762
  %v1775 = vadd.f32 %v1639, %v1764
  %v1776 = vadd.f32 %v1640, %v1767
  %v1777 = vadd.f32 %v1641, %v1769
  %v1778 = vld [vmem:[%s6 + $0x3b] sm:$0x1]
  %v1779 = vlaneseq
  %v1780 = vshrl.u32 %v1779, 7
  %v1781 = vsub.s32 0, %v1780
  %v1782 = vrot.slane %v1778, %v1781
  %v1783 = vmul.f32 %v1386, %v1782
  %v1784 = vmul.f32 %v1387, %v1782
  %v1785 = vmul.f32 %v1388, %v1782
  %v1786 = vmul.f32 %v1389, %v1782
  %v1787 = vmul.f32 %v1390, %v1782
  %v1788 = vmul.f32 %v1391, %v1782
  %v1795 = vrot.slane %v1783, 4
  %v1796 = vrot.slane %v1784, 4
  %v1797 = vsel %vm601, %v1795, %v1796
  %v1798 = vrot.slane %v1785, 4
  %v1799 = vsel %vm601, %v1796, %v1798
  %v1800 = vrot.slane %v1786, 4
  %v1801 = vrot.slane %v1787, 4
  %v1802 = vsel %vm601, %v1800, %v1801
  %v1803 = vrot.slane %v1788, 4
  %v1804 = vsel %vm601, %v1801, %v1803
  %v1811 = vadd.f32 %v1667, %v1797
  %v1812 = vadd.f32 %v1668, %v1799
  %v1813 = vadd.f32 %v1669, %v1798
  %v1814 = vadd.f32 %v1670, %v1802
  %v1815 = vadd.f32 %v1671, %v1804
  %v1816 = vadd.f32 %v1672, %v1803
  %v1817 = vld [vmem:[%s6 + $0x40] sm:$0x1]
  %v1818 = vlaneseq
  %v1819 = vshrl.u32 %v1818, 7
  %v1820 = vsub.s32 0, %v1819
  %v1821 = vrot.slane %v1817, %v1820
  %v1822 = vmul.f32 %v1387, %v1821
  %v1823 = vmul.f32 %v1388, %v1821
  %v1824 = vmul.f32 %v1390, %v1821
  %v1825 = vmul.f32 %v1391, %v1821
  %v1830 = vrot.slane %v1822, 4
  %v1831 = vrot.slane %v1823, 4
  %v1832 = vsel %vm601, %v1830, %v1831
  %v1833 = vrot.slane %v1824, 4
  %v1834 = vrot.slane %v1825, 4
  %v1835 = vsel %vm601, %v1833, %v1834
  %v1842 = vadd.f32 %v1698, %v1830
  %v1843 = vadd.f32 %v1699, %v1832
  %v1844 = vadd.f32 %v1700, %v1831
  %v1845 = vadd.f32 %v1701, %v1833
  %v1846 = vadd.f32 %v1702, %v1835
  %v1847 = vadd.f32 %v1703, %v1834
  %1848 = vrot.lane.b32.xlu0 %v1386, 112
  %v1849 = vpop.permute.xlu0 %1848
  %1850 = vrot.lane.b32.xlu0 %v1387, 112
  %v1851 = vpop.permute.xlu0 %1850
  %1852 = vrot.lane.b32.xlu0 %v1388, 112
  %v1853 = vpop.permute.xlu0 %1852
  %1854 = vrot.lane.b32.xlu0 %v1389, 112
  %v1855 = vpop.permute.xlu0 %1854
  %1856 = vrot.lane.b32.xlu0 %v1390, 112
  %v1857 = vpop.permute.xlu0 %1856
  %1858 = vrot.lane.b32.xlu0 %v1391, 112
  %v1859 = vpop.permute.xlu0 %1858
  %v1860 = vld [vmem:[%s6 + $0x2d] sm:$0x1]
  %v1861 = vlaneseq
  %v1862 = vshrl.u32 %v1861, 7
  %v1863 = vsub.s32 0, %v1862
  %v1864 = vrot.slane %v1860, %v1863
  %v1865 = vmul.f32 %v1849, %v1864
  %v1866 = vmul.f32 %v1851, %v1864
  %v1867 = vmul.f32 %v1855, %v1864
  %v1868 = vmul.f32 %v1857, %v1864
  %v1873 = vrot.slane %v1865, 2
  %v1874 = vrot.slane %v1866, 2
  %v1875 = vsel %vm904, %v1873, %v1874
  %v1876 = vrot.slane %v1867, 2
  %v1877 = vrot.slane %v1868, 2
  %v1878 = vsel %vm904, %v1876, %v1877
  %v1885 = vadd.f32 %v1737, %v1873
  %v1886 = vadd.f32 %v1738, %v1875
  %v1887 = vadd.f32 %v1739, %v1874
  %v1888 = vadd.f32 %v1740, %v1876
  %v1889 = vadd.f32 %v1741, %v1878
  %v1890 = vadd.f32 %v1742, %v1877
  %v1891 = vld [vmem:[%s6 + $0x32] sm:$0x1]
  %v1892 = vlaneseq
  %v1893 = vshrl.u32 %v1892, 7
  %v1894 = vsub.s32 0, %v1893
  %v1895 = vrot.slane %v1891, %v1894
  %v1896 = vmul.f32 %v1849, %v1895
  %v1897 = vmul.f32 %v1851, %v1895
  %v1898 = vmul.f32 %v1853, %v1895
  %v1899 = vmul.f32 %v1855, %v1895
  %v1900 = vmul.f32 %v1857, %v1895
  %v1901 = vmul.f32 %v1859, %v1895
  %v1908 = vrot.slane %v1896, 2
  %v1909 = vrot.slane %v1897, 2
  %v1910 = vsel %vm904, %v1908, %v1909
  %v1911 = vrot.slane %v1898, 2
  %v1912 = vsel %vm904, %v1909, %v1911
  %v1913 = vrot.slane %v1899, 2
  %v1914 = vrot.slane %v1900, 2
  %v1915 = vsel %vm904, %v1913, %v1914
  %v1916 = vrot.slane %v1901, 2
  %v1917 = vsel %vm904, %v1914, %v1916
  %v1922 = vadd.f32 %v1774, %v1910
  %v1923 = vadd.f32 %v1775, %v1912
  %v1924 = vadd.f32 %v1776, %v1915
  %v1925 = vadd.f32 %v1777, %v1917
  %v1926 = vld [vmem:[%s6 + $0x37] sm:$0x1]
  %v1927 = vlaneseq
  %v1928 = vshrl.u32 %v1927, 7
  %v1929 = vsub.s32 0, %v1928
  %v1930 = vrot.slane %v1926, %v1929
  %v1931 = vmul.f32 %v1849, %v1930
  %v1932 = vmul.f32 %v1851, %v1930
  %v1933 = vmul.f32 %v1853, %v1930
  %v1934 = vmul.f32 %v1855, %v1930
  %v1935 = vmul.f32 %v1857, %v1930
  %v1936 = vmul.f32 %v1859, %v1930
  %v1943 = vrot.slane %v1931, 2
  %v1944 = vrot.slane %v1932, 2
  %v1945 = vsel %vm904, %v1943, %v1944
  %v1946 = vrot.slane %v1933, 2
  %v1947 = vsel %vm904, %v1944, %v1946
  %v1948 = vrot.slane %v1934, 2
  %v1949 = vrot.slane %v1935, 2
  %v1950 = vsel %vm904, %v1948, %v1949
  %v1951 = vrot.slane %v1936, 2
  %v1952 = vsel %vm904, %v1949, %v1951
  %v1959 = vadd.f32 %v1811, %v1945
  %v1960 = vadd.f32 %v1812, %v1947
  %v1961 = vadd.f32 %v1813, %v1946
  %v1962 = vadd.f32 %v1814, %v1950
  %v1963 = vadd.f32 %v1815, %v1952
  %v1964 = vadd.f32 %v1816, %v1951
  %v1965 = vld [vmem:[%s6 + $0x3c] sm:$0x1]
  %v1966 = vlaneseq
  %v1967 = vshrl.u32 %v1966, 7
  %v1968 = vsub.s32 0, %v1967
  %v1969 = vrot.slane %v1965, %v1968
  %v1970 = vmul.f32 %v1849, %v1969
  %v1971 = vmul.f32 %v1851, %v1969
  %v1972 = vmul.f32 %v1853, %v1969
  %v1973 = vmul.f32 %v1855, %v1969
  %v1974 = vmul.f32 %v1857, %v1969
  %v1975 = vmul.f32 %v1859, %v1969
  %v1982 = vrot.slane %v1970, 2
  %v1983 = vrot.slane %v1971, 2
  %v1984 = vsel %vm904, %v1982, %v1983
  %v1985 = vrot.slane %v1972, 2
  %v1986 = vsel %vm904, %v1983, %v1985
  %v1987 = vrot.slane %v1973, 2
  %v1988 = vrot.slane %v1974, 2
  %v1989 = vsel %vm904, %v1987, %v1988
  %v1990 = vrot.slane %v1975, 2
  %v1991 = vsel %vm904, %v1988, %v1990
  %v1998 = vadd.f32 %v1842, %v1984
  %v1999 = vadd.f32 %v1843, %v1986
  %v2000 = vadd.f32 %v1844, %v1985
  %v2001 = vadd.f32 %v1845, %v1989
  %v2002 = vadd.f32 %v1846, %v1991
  %v2003 = vadd.f32 %v1847, %v1990
  %v2004 = vld [vmem:[%s6 + $0x41] sm:$0x1]
  %v2005 = vlaneseq
  %v2006 = vshrl.u32 %v2005, 7
  %v2007 = vsub.s32 0, %v2006
  %v2008 = vrot.slane %v2004, %v2007
  %v2009 = vmul.f32 %v1851, %v2008
  %v2010 = vmul.f32 %v1853, %v2008
  %v2011 = vmul.f32 %v1857, %v2008
  %v2012 = vmul.f32 %v1859, %v2008
  %v2017 = vrot.slane %v2009, 2
  %v2018 = vrot.slane %v2010, 2
  %v2019 = vsel %vm904, %v2017, %v2018
  %v2020 = vrot.slane %v2011, 2
  %v2021 = vrot.slane %v2012, 2
  %v2022 = vsel %vm904, %v2020, %v2021
  %v2029 = vadd.f32 %v1885, %v2017
  %v2030 = vadd.f32 %v1886, %v2019
  %v2031 = vadd.f32 %v1887, %v2018
  %v2032 = vadd.f32 %v1888, %v2020
  %v2033 = vadd.f32 %v1889, %v2022
  %v2034 = vadd.f32 %v1890, %v2021
  %2035 = vrot.lane.b32.xlu0 %v1386, 96
  %v2036 = vpop.permute.xlu0 %2035
  %2037 = vrot.lane.b32.xlu0 %v1387, 96
  %v2038 = vpop.permute.xlu0 %2037
  %2039 = vrot.lane.b32.xlu0 %v1388, 96
  %v2040 = vpop.permute.xlu0 %2039
  %2041 = vrot.lane.b32.xlu0 %v1389, 96
  %v2042 = vpop.permute.xlu0 %2041
  %2043 = vrot.lane.b32.xlu0 %v1390, 96
  %v2044 = vpop.permute.xlu0 %2043
  %2045 = vrot.lane.b32.xlu0 %v1391, 96
  %v2046 = vpop.permute.xlu0 %2045
  %v2047 = vld [vmem:[%s6 + $0x2e] sm:$0x1]
  %v2048 = vlaneseq
  %v2049 = vshrl.u32 %v2048, 7
  %v2050 = vsub.s32 0, %v2049
  %v2051 = vrot.slane %v2047, %v2050
  %v2052 = vmul.f32 %v2036, %v2051
  %v2053 = vmul.f32 %v2038, %v2051
  %v2054 = vmul.f32 %v2042, %v2051
  %v2055 = vmul.f32 %v2044, %v2051
  %v2056 = vadd.f32 %v1922, %v2052
  %v2057 = vadd.f32 %v1923, %v2053
  %v2058 = vadd.f32 %v1924, %v2054
  %v2059 = vadd.f32 %v1925, %v2055
  %v2060 = vld [vmem:[%s6 + $0x33] sm:$0x1]
  %v2061 = vlaneseq
  %v2062 = vshrl.u32 %v2061, 7
  %v2063 = vsub.s32 0, %v2062
  %v2064 = vrot.slane %v2060, %v2063
  %v2065 = vmul.f32 %v2036, %v2064
  %v2066 = vmul.f32 %v2038, %v2064
  %v2067 = vmul.f32 %v2040, %v2064
  %v2068 = vmul.f32 %v2042, %v2064
  %v2069 = vmul.f32 %v2044, %v2064
  %v2070 = vmul.f32 %v2046, %v2064
  %v2071 = vadd.f32 %v1959, %v2065
  %v2072 = vadd.f32 %v1960, %v2066
  %v2073 = vadd.f32 %v1961, %v2067
  %v2074 = vadd.f32 %v1962, %v2068
  %v2075 = vadd.f32 %v1963, %v2069
  %v2076 = vadd.f32 %v1964, %v2070
  %v2077 = vld [vmem:[%s6 + $0x38] sm:$0x1]
  %v2078 = vlaneseq
  %v2079 = vshrl.u32 %v2078, 7
  %v2080 = vsub.s32 0, %v2079
  %v2081 = vrot.slane %v2077, %v2080
  %v2082 = vmul.f32 %v2036, %v2081
  %v2083 = vmul.f32 %v2038, %v2081
  %v2084 = vmul.f32 %v2040, %v2081
  %v2085 = vmul.f32 %v2042, %v2081
  %v2086 = vmul.f32 %v2044, %v2081
  %v2087 = vmul.f32 %v2046, %v2081
  %v2088 = vadd.f32 %v1998, %v2082
  %v2089 = vadd.f32 %v1999, %v2083
  %v2090 = vadd.f32 %v2000, %v2084
  %v2091 = vadd.f32 %v2001, %v2085
  %v2092 = vadd.f32 %v2002, %v2086
  %v2093 = vadd.f32 %v2003, %v2087
  %v2094 = vld [vmem:[%s6 + $0x3d] sm:$0x1]
  %v2095 = vlaneseq
  %v2096 = vshrl.u32 %v2095, 7
  %v2097 = vsub.s32 0, %v2096
  %v2098 = vrot.slane %v2094, %v2097
  %v2099 = vmul.f32 %v2036, %v2098
  %v2100 = vmul.f32 %v2038, %v2098
  %v2101 = vmul.f32 %v2040, %v2098
  %v2102 = vmul.f32 %v2042, %v2098
  %v2103 = vmul.f32 %v2044, %v2098
  %v2104 = vmul.f32 %v2046, %v2098
  %v2105 = vadd.f32 %v2029, %v2099
  %v2106 = vadd.f32 %v2030, %v2100
  %v2107 = vadd.f32 %v2031, %v2101
  %v2108 = vadd.f32 %v2032, %v2102
  %v2109 = vadd.f32 %v2033, %v2103
  %v2110 = vadd.f32 %v2034, %v2104
  %v2111 = vld [vmem:[%s6 + $0x42] sm:$0x1]
  %v2112 = vlaneseq
  %v2113 = vshrl.u32 %v2112, 7
  %v2114 = vsub.s32 0, %v2113
  %v2115 = vrot.slane %v2111, %v2114
  %v2116 = vmul.f32 %v2038, %v2115
  %v2117 = vmul.f32 %v2040, %v2115
  %v2118 = vmul.f32 %v2044, %v2115
  %v2119 = vmul.f32 %v2046, %v2115
  %v2120 = vadd.f32 %v2056, %v2116
  %v2121 = vadd.f32 %v2057, %v2117
  %v2122 = vadd.f32 %v2058, %v2118
  %v2123 = vadd.f32 %v2059, %v2119
  %v2130 = vrot.slane %v2071, 2
  %v2131 = vrot.slane %v2072, 2
  %v2132 = vsel %vm904, %v2130, %v2131
  %v2133 = vrot.slane %v2073, 2
  %v2134 = vsel %vm904, %v2131, %v2133
  %v2135 = vrot.slane %v2074, 2
  %v2136 = vrot.slane %v2075, 2
  %v2137 = vsel %vm904, %v2135, %v2136
  %v2138 = vrot.slane %v2076, 2
  %v2139 = vsel %vm904, %v2136, %v2138
  %v2144 = vadd.f32 %v2120, %v2132
  %v2145 = vadd.f32 %v2121, %v2134
  %v2146 = vadd.f32 %v2122, %v2137
  %v2147 = vadd.f32 %v2123, %v2139
  %v2154 = vrot.slane %v2088, 4
  %v2155 = vrot.slane %v2089, 4
  %v2156 = vsel %vm601, %v2154, %v2155
  %v2157 = vrot.slane %v2090, 4
  %v2158 = vsel %vm601, %v2155, %v2157
  %v2159 = vrot.slane %v2091, 4
  %v2160 = vrot.slane %v2092, 4
  %v2161 = vsel %vm601, %v2159, %v2160
  %v2162 = vrot.slane %v2093, 4
  %v2163 = vsel %vm601, %v2160, %v2162
  %v2168 = vadd.f32 %v2144, %v2156
  %v2169 = vadd.f32 %v2145, %v2158
  %v2170 = vadd.f32 %v2146, %v2161
  %v2171 = vadd.f32 %v2147, %v2163
  %v2178 = vrot.slane %v2105, 6
  %v2179 = vrot.slane %v2106, 6
  %v2180 = vsel %vm829, %v2178, %v2179
  %v2181 = vrot.slane %v2107, 6
  %v2182 = vsel %vm829, %v2179, %v2181
  %v2183 = vrot.slane %v2108, 6
  %v2184 = vrot.slane %v2109, 6
  %v2185 = vsel %vm829, %v2183, %v2184
  %v2186 = vrot.slane %v2110, 6
  %v2187 = vsel %vm829, %v2184, %v2186
  %v2192 = vadd.f32 %v2168, %v2180
  %v2193 = vadd.f32 %v2169, %v2182
  %v2194 = vadd.f32 %v2170, %v2185
  %v2195 = vadd.f32 %v2171, %v2187
  %v2196 = vld [vmem:[%s6 + $0x7] sm:$0x1]
  %v2197 = vld [vmem:[#allocation2 + $0x7] sm:$0xff]
  %v2198 = vld [vmem:[#allocation2 + $0xf] sm:$0xff]
  %v2199 = vld [vmem:[#allocation2 + $0x17] sm:$0xff]
  %v2200 = vld [vmem:[#allocation2 + $0x1f] sm:$0xff]
  %v2201 = vld [vmem:[#allocation2 + $0x27] sm:$0x3]
  %v2202 = vld [vmem:[#allocation2 + $0x37] sm:$0xff]
  %v2203 = vld [vmem:[#allocation2 + $0x3f] sm:$0xff]
  %v2204 = vld [vmem:[#allocation2 + $0x47] sm:$0xff]
  %v2205 = vld [vmem:[#allocation2 + $0x4f] sm:$0xff]
  %v2206 = vld [vmem:[#allocation2 + $0x57] sm:$0x3]
  %v2207 = vlaneseq
  %v2208 = vshrl.u32 %v2207, 7
  %v2209 = vsub.s32 0, %v2208
  %v2210 = vrot.slane %v2196, %v2209
  %v2211 = vadd.f32 %v2210, 0.0
  %2212 = vrot.lane.b32.xlu0 %v2197, 72
  %v2213 = vpop.permute.xlu0 %2212
  %2214 = vrot.lane.b32.xlu0 %v2198, 72
  %v2215 = vpop.permute.xlu0 %2214
  %2216 = vrot.lane.b32.xlu0 %v2199, 72
  %v2217 = vpop.permute.xlu0 %2216
  %2218 = vrot.lane.b32.xlu0 %v2200, 72
  %v2219 = vpop.permute.xlu0 %2218
  %2220 = vrot.lane.b32.xlu0 %v2201, 72
  %v2221 = vpop.permute.xlu0 %2220
  %2222 = vrot.lane.b32.xlu0 %v2202, 72
  %v2223 = vpop.permute.xlu0 %2222
  %2224 = vrot.lane.b32.xlu0 %v2203, 72
  %v2225 = vpop.permute.xlu0 %2224
  %2226 = vrot.lane.b32.xlu0 %v2204, 72
  %v2227 = vpop.permute.xlu0 %2226
  %2228 = vrot.lane.b32.xlu0 %v2205, 72
  %v2229 = vpop.permute.xlu0 %2228
  %2230 = vrot.lane.b32.xlu0 %v2206, 72
  %v2231 = vpop.permute.xlu0 %2230
  %v2232 = vld [vmem:[%s6 + $0x43] sm:$0x1]
  %v2233 = vlaneseq
  %v2234 = vshrl.u32 %v2233, 7
  %v2235 = vsub.s32 0, %v2234
  %v2236 = vrot.slane %v2232, %v2235
  %v2237 = vmul.f32 %v2213, %v2236
  %v2238 = vmul.f32 %v2215, %v2236
  %v2239 = vmul.f32 %v2223, %v2236
  %v2240 = vmul.f32 %v2225, %v2236
  %v2241 = vadd.f32 %v2211, %v2237
  %v2242 = vadd.f32 %v2211, %v2238
  %v2243 = vadd.f32 %v2211, %v2239
  %v2244 = vadd.f32 %v2211, %v2240
  %v2245 = vld [vmem:[%s6 + $0x4a] sm:$0x1]
  %v2246 = vlaneseq
  %v2247 = vshrl.u32 %v2246, 7
  %v2248 = vsub.s32 0, %v2247
  %v2249 = vrot.slane %v2245, %v2248
  %v2250 = vmul.f32 %v2213, %v2249
  %v2251 = vmul.f32 %v2215, %v2249
  %v2252 = vmul.f32 %v2217, %v2249
  %v2253 = vmul.f32 %v2223, %v2249
  %v2254 = vmul.f32 %v2225, %v2249
  %v2255 = vmul.f32 %v2227, %v2249
  %v2256 = vadd.f32 %v2250, 0.0
  %v2257 = vadd.f32 %v2251, 0.0
  %v2258 = vadd.f32 %v2252, 0.0
  %v2259 = vadd.f32 %v2253, 0.0
  %v2260 = vadd.f32 %v2254, 0.0
  %v2261 = vadd.f32 %v2255, 0.0
  %v2262 = vld [vmem:[%s6 + $0x51] sm:$0x1]
  %v2263 = vlaneseq
  %v2264 = vshrl.u32 %v2263, 7
  %v2265 = vsub.s32 0, %v2264
  %v2266 = vrot.slane %v2262, %v2265
  %v2267 = vmul.f32 %v2213, %v2266
  %v2268 = vmul.f32 %v2215, %v2266
  %v2269 = vmul.f32 %v2217, %v2266
  %v2270 = vmul.f32 %v2223, %v2266
  %v2271 = vmul.f32 %v2225, %v2266
  %v2272 = vmul.f32 %v2227, %v2266
  %v2273 = vadd.f32 %v2267, 0.0
  %v2274 = vadd.f32 %v2268, 0.0
  %v2275 = vadd.f32 %v2269, 0.0
  %v2276 = vadd.f32 %v2270, 0.0
  %v2277 = vadd.f32 %v2271, 0.0
  %v2278 = vadd.f32 %v2272, 0.0
  %v2279 = vld [vmem:[%s6 + $0x58] sm:$0x1]
  %v2280 = vlaneseq
  %v2281 = vshrl.u32 %v2280, 7
  %v2282 = vsub.s32 0, %v2281
  %v2283 = vrot.slane %v2279, %v2282
  %v2284 = vmul.f32 %v2215, %v2283
  %v2285 = vmul.f32 %v2217, %v2283
  %v2286 = vmul.f32 %v2219, %v2283
  %v2287 = vmul.f32 %v2225, %v2283
  %v2288 = vmul.f32 %v2227, %v2283
  %v2289 = vmul.f32 %v2229, %v2283
  %v2290 = vadd.f32 %v2284, 0.0
  %v2291 = vadd.f32 %v2285, 0.0
  %v2292 = vadd.f32 %v2286, 0.0
  %v2293 = vadd.f32 %v2287, 0.0
  %v2294 = vadd.f32 %v2288, 0.0
  %v2295 = vadd.f32 %v2289, 0.0
  %v2296 = vld [vmem:[%s6 + $0x5f] sm:$0x1]
  %v2297 = vlaneseq
  %v2298 = vshrl.u32 %v2297, 7
  %v2299 = vsub.s32 0, %v2298
  %v2300 = vrot.slane %v2296, %v2299
  %v2301 = vmul.f32 %v2215, %v2300
  %v2302 = vmul.f32 %v2217, %v2300
  %v2303 = vmul.f32 %v2219, %v2300
  %v2304 = vmul.f32 %v2225, %v2300
  %v2305 = vmul.f32 %v2227, %v2300
  %v2306 = vmul.f32 %v2229, %v2300
  %v2313 = vrot.slane %v2301, 4
  %v2314 = vrot.slane %v2302, 4
  %v2315 = vsel %vm601, %v2313, %v2314
  %v2316 = vrot.slane %v2303, 4
  %v2317 = vsel %vm601, %v2314, %v2316
  %v2318 = vrot.slane %v2304, 4
  %v2319 = vrot.slane %v2305, 4
  %v2320 = vsel %vm601, %v2318, %v2319
  %v2321 = vrot.slane %v2306, 4
  %v2322 = vsel %vm601, %v2319, %v2321
  %v2327 = vadd.f32 %v2241, %v2315
  %v2328 = vadd.f32 %v2242, %v2317
  %v2329 = vadd.f32 %v2243, %v2320
  %v2330 = vadd.f32 %v2244, %v2322
  %v2331 = vld [vmem:[%s6 + $0x66] sm:$0x1]
  %v2332 = vlaneseq
  %v2333 = vshrl.u32 %v2332, 7
  %v2334 = vsub.s32 0, %v2333
  %v2335 = vrot.slane %v2331, %v2334
  %v2336 = vmul.f32 %v2215, %v2335
  %v2337 = vmul.f32 %v2217, %v2335
  %v2338 = vmul.f32 %v2219, %v2335
  %v2339 = vmul.f32 %v2225, %v2335
  %v2340 = vmul.f32 %v2227, %v2335
  %v2341 = vmul.f32 %v2229, %v2335
  %v2348 = vrot.slane %v2336, 4
  %v2349 = vrot.slane %v2337, 4
  %v2350 = vsel %vm601, %v2348, %v2349
  %v2351 = vrot.slane %v2338, 4
  %v2352 = vsel %vm601, %v2349, %v2351
  %v2353 = vrot.slane %v2339, 4
  %v2354 = vrot.slane %v2340, 4
  %v2355 = vsel %vm601, %v2353, %v2354
  %v2356 = vrot.slane %v2341, 4
  %v2357 = vsel %vm601, %v2354, %v2356
  %v2364 = vadd.f32 %v2256, %v2350
  %v2365 = vadd.f32 %v2257, %v2352
  %v2366 = vadd.f32 %v2258, %v2351
  %v2367 = vadd.f32 %v2259, %v2355
  %v2368 = vadd.f32 %v2260, %v2357
  %v2369 = vadd.f32 %v2261, %v2356
  %v2370 = vld [vmem:[%s6 + $0x6d] sm:$0x1]
  %v2371 = vlaneseq
  %v2372 = vshrl.u32 %v2371, 7
  %v2373 = vsub.s32 0, %v2372
  %v2374 = vrot.slane %v2370, %v2373
  %v2375 = vmul.f32 %v2217, %v2374
  %v2376 = vmul.f32 %v2219, %v2374
  %v2377 = vmul.f32 %v2221, %v2374
  %v2378 = vmul.f32 %v2227, %v2374
  %v2379 = vmul.f32 %v2229, %v2374
  %v2380 = vmul.f32 %v2231, %v2374
  %v2387 = vrot.slane %v2375, 4
  %v2388 = vrot.slane %v2376, 4
  %v2389 = vsel %vm601, %v2387, %v2388
  %v2390 = vrot.slane %v2377, 4
  %v2391 = vsel %vm601, %v2388, %v2390
  %v2392 = vrot.slane %v2378, 4
  %v2393 = vrot.slane %v2379, 4
  %v2394 = vsel %vm601, %v2392, %v2393
  %v2395 = vrot.slane %v2380, 4
  %v2396 = vsel %vm601, %v2393, %v2395
  %v2403 = vadd.f32 %v2273, %v2387
  %v2404 = vadd.f32 %v2274, %v2389
  %v2405 = vadd.f32 %v2275, %v2391
  %v2406 = vadd.f32 %v2276, %v2392
  %v2407 = vadd.f32 %v2277, %v2394
  %v2408 = vadd.f32 %v2278, %v2396
  %2409 = vrot.lane.b32.xlu0 %v2197, 48
  %v2410 = vpop.permute.xlu0 %2409
  %2411 = vrot.lane.b32.xlu0 %v2198, 48
  %v2412 = vpop.permute.xlu0 %2411
  %2413 = vrot.lane.b32.xlu0 %v2199, 48
  %v2414 = vpop.permute.xlu0 %2413
  %2415 = vrot.lane.b32.xlu0 %v2200, 48
  %v2416 = vpop.permute.xlu0 %2415
  %2417 = vrot.lane.b32.xlu0 %v2201, 48
  %v2418 = vpop.permute.xlu0 %2417
  %2419 = vrot.lane.b32.xlu0 %v2202, 48
  %v2420 = vpop.permute.xlu0 %2419
  %2421 = vrot.lane.b32.xlu0 %v2203, 48
  %v2422 = vpop.permute.xlu0 %2421
  %2423 = vrot.lane.b32.xlu0 %v2204, 48
  %v2424 = vpop.permute.xlu0 %2423
  %2425 = vrot.lane.b32.xlu0 %v2205, 48
  %v2426 = vpop.permute.xlu0 %2425
  %2427 = vrot.lane.b32.xlu0 %v2206, 48
  %v2428 = vpop.permute.xlu0 %2427
  %v2429 = vld [vmem:[%s6 + $0x44] sm:$0x1]
  %v2430 = vlaneseq
  %v2431 = vshrl.u32 %v2430, 7
  %v2432 = vsub.s32 0, %v2431
  %v2433 = vrot.slane %v2429, %v2432
  %v2434 = vmul.f32 %v2410, %v2433
  %v2435 = vmul.f32 %v2412, %v2433
  %v2436 = vmul.f32 %v2420, %v2433
  %v2437 = vmul.f32 %v2422, %v2433
  %v2442 = vrot.slane %v2434, 7
  %v2443 = vrot.slane %v2435, 7
  %v2444 = vsel %vm82, %v2442, %v2443
  %v2445 = vrot.slane %v2436, 7
  %v2446 = vrot.slane %v2437, 7
  %v2447 = vsel %vm82, %v2445, %v2446
  %v2454 = vadd.f32 %v2290, %v2442
  %v2455 = vadd.f32 %v2291, %v2444
  %v2456 = vadd.f32 %v2292, %v2443
  %v2457 = vadd.f32 %v2293, %v2445
  %v2458 = vadd.f32 %v2294, %v2447
  %v2459 = vadd.f32 %v2295, %v2446
  %v2460 = vld [vmem:[%s6 + $0x4b] sm:$0x1]
  %v2461 = vlaneseq
  %v2462 = vshrl.u32 %v2461, 7
  %v2463 = vsub.s32 0, %v2462
  %v2464 = vrot.slane %v2460, %v2463
  %v2465 = vmul.f32 %v2410, %v2464
  %v2466 = vmul.f32 %v2412, %v2464
  %v2467 = vmul.f32 %v2414, %v2464
  %v2468 = vmul.f32 %v2420, %v2464
  %v2469 = vmul.f32 %v2422, %v2464
  %v2470 = vmul.f32 %v2424, %v2464
  %v2477 = vrot.slane %v2465, 3
  %v2478 = vrot.slane %v2466, 3
  %v2479 = vsel %vm758, %v2477, %v2478
  %v2480 = vrot.slane %v2467, 3
  %v2481 = vsel %vm758, %v2478, %v2480
  %v2482 = vrot.slane %v2468, 3
  %v2483 = vrot.slane %v2469, 3
  %v2484 = vsel %vm758, %v2482, %v2483
  %v2485 = vrot.slane %v2470, 3
  %v2486 = vsel %vm758, %v2483, %v2485
  %v2491 = vadd.f32 %v2327, %v2479
  %v2492 = vadd.f32 %v2328, %v2481
  %v2493 = vadd.f32 %v2329, %v2484
  %v2494 = vadd.f32 %v2330, %v2486
  %v2495 = vld [vmem:[%s6 + $0x52] sm:$0x1]
  %v2496 = vlaneseq
  %v2497 = vshrl.u32 %v2496, 7
  %v2498 = vsub.s32 0, %v2497
  %v2499 = vrot.slane %v2495, %v2498
  %v2500 = vmul.f32 %v2410, %v2499
  %v2501 = vmul.f32 %v2412, %v2499
  %v2502 = vmul.f32 %v2414, %v2499
  %v2503 = vmul.f32 %v2420, %v2499
  %v2504 = vmul.f32 %v2422, %v2499
  %v2505 = vmul.f32 %v2424, %v2499
  %v2512 = vrot.slane %v2500, 3
  %v2513 = vrot.slane %v2501, 3
  %v2514 = vsel %vm758, %v2512, %v2513
  %v2515 = vrot.slane %v2502, 3
  %v2516 = vsel %vm758, %v2513, %v2515
  %v2517 = vrot.slane %v2503, 3
  %v2518 = vrot.slane %v2504, 3
  %v2519 = vsel %vm758, %v2517, %v2518
  %v2520 = vrot.slane %v2505, 3
  %v2521 = vsel %vm758, %v2518, %v2520
  %v2528 = vadd.f32 %v2364, %v2514
  %v2529 = vadd.f32 %v2365, %v2516
  %v2530 = vadd.f32 %v2366, %v2515
  %v2531 = vadd.f32 %v2367, %v2519
  %v2532 = vadd.f32 %v2368, %v2521
  %v2533 = vadd.f32 %v2369, %v2520
  %v2534 = vld [vmem:[%s6 + $0x59] sm:$0x1]
  %v2535 = vlaneseq
  %v2536 = vshrl.u32 %v2535, 7
  %v2537 = vsub.s32 0, %v2536
  %v2538 = vrot.slane %v2534, %v2537
  %v2539 = vmul.f32 %v2412, %v2538
  %v2540 = vmul.f32 %v2414, %v2538
  %v2541 = vmul.f32 %v2416, %v2538
  %v2542 = vmul.f32 %v2422, %v2538
  %v2543 = vmul.f32 %v2424, %v2538
  %v2544 = vmul.f32 %v2426, %v2538
  %v2551 = vrot.slane %v2539, 3
  %v2552 = vrot.slane %v2540, 3
  %v2553 = vsel %vm758, %v2551, %v2552
  %v2554 = vrot.slane %v2541, 3
  %v2555 = vsel %vm758, %v2552, %v2554
  %v2556 = vrot.slane %v2542, 3
  %v2557 = vrot.slane %v2543, 3
  %v2558 = vsel %vm758, %v2556, %v2557
  %v2559 = vrot.slane %v2544, 3
  %v2560 = vsel %vm758, %v2557, %v2559
  %v2567 = vadd.f32 %v2403, %v2551
  %v2568 = vadd.f32 %v2404, %v2553
  %v2569 = vadd.f32 %v2405, %v2555
  %v2570 = vadd.f32 %v2406, %v2556
  %v2571 = vadd.f32 %v2407, %v2558
  %v2572 = vadd.f32 %v2408, %v2560
  %v2573 = vld [vmem:[%s6 + $0x60] sm:$0x1]
  %v2574 = vlaneseq
  %v2575 = vshrl.u32 %v2574, 7
  %v2576 = vsub.s32 0, %v2575
  %v2577 = vrot.slane %v2573, %v2576
  %v2578 = vmul.f32 %v2412, %v2577
  %v2579 = vmul.f32 %v2414, %v2577
  %v2580 = vmul.f32 %v2416, %v2577
  %v2581 = vmul.f32 %v2422, %v2577
  %v2582 = vmul.f32 %v2424, %v2577
  %v2583 = vmul.f32 %v2426, %v2577
  %v2590 = vrot.slane %v2578, 3
  %v2591 = vrot.slane %v2579, 3
  %v2592 = vsel %vm758, %v2590, %v2591
  %v2593 = vrot.slane %v2580, 3
  %v2594 = vsel %vm758, %v2591, %v2593
  %v2595 = vrot.slane %v2581, 3
  %v2596 = vrot.slane %v2582, 3
  %v2597 = vsel %vm758, %v2595, %v2596
  %v2598 = vrot.slane %v2583, 3
  %v2599 = vsel %vm758, %v2596, %v2598
  %v2606 = vadd.f32 %v2454, %v2592
  %v2607 = vadd.f32 %v2455, %v2594
  %v2608 = vadd.f32 %v2456, %v2593
  %v2609 = vadd.f32 %v2457, %v2597
  %v2610 = vadd.f32 %v2458, %v2599
  %v2611 = vadd.f32 %v2459, %v2598
  %v2612 = vld [vmem:[%s6 + $0x67] sm:$0x1]
  %v2613 = vlaneseq
  %v2614 = vshrl.u32 %v2613, 7
  %v2615 = vsub.s32 0, %v2614
  %v2616 = vrot.slane %v2612, %v2615
  %v2617 = vmul.f32 %v2412, %v2616
  %v2618 = vmul.f32 %v2414, %v2616
  %v2619 = vmul.f32 %v2416, %v2616
  %v2620 = vmul.f32 %v2422, %v2616
  %v2621 = vmul.f32 %v2424, %v2616
  %v2622 = vmul.f32 %v2426, %v2616
  %v2629 = vrot.slane %v2617, 7
  %v2630 = vrot.slane %v2618, 7
  %v2631 = vsel %vm82, %v2629, %v2630
  %v2632 = vrot.slane %v2619, 7
  %v2633 = vsel %vm82, %v2630, %v2632
  %v2634 = vrot.slane %v2620, 7
  %v2635 = vrot.slane %v2621, 7
  %v2636 = vsel %vm82, %v2634, %v2635
  %v2637 = vrot.slane %v2622, 7
  %v2638 = vsel %vm82, %v2635, %v2637
  %v2643 = vadd.f32 %v2491, %v2631
  %v2644 = vadd.f32 %v2492, %v2633
  %v2645 = vadd.f32 %v2493, %v2636
  %v2646 = vadd.f32 %v2494, %v2638
  %v2647 = vld [vmem:[%s6 + $0x6e] sm:$0x1]
  %v2648 = vlaneseq
  %v2649 = vshrl.u32 %v2648, 7
  %v2650 = vsub.s32 0, %v2649
  %v2651 = vrot.slane %v2647, %v2650
  %v2652 = vmul.f32 %v2414, %v2651
  %v2653 = vmul.f32 %v2416, %v2651
  %v2654 = vmul.f32 %v2418, %v2651
  %v2655 = vmul.f32 %v2424, %v2651
  %v2656 = vmul.f32 %v2426, %v2651
  %v2657 = vmul.f32 %v2428, %v2651
  %v2664 = vrot.slane %v2652, 7
  %v2665 = vrot.slane %v2653, 7
  %v2666 = vsel %vm82, %v2664, %v2665
  %v2667 = vrot.slane %v2654, 7
  %v2668 = vsel %vm82, %v2665, %v2667
  %v2669 = vrot.slane %v2655, 7
  %v2670 = vrot.slane %v2656, 7
  %v2671 = vsel %vm82, %v2669, %v2670
  %v2672 = vrot.slane %v2657, 7
  %v2673 = vsel %vm82, %v2670, %v2672
  %v2680 = vadd.f32 %v2528, %v2664
  %v2681 = vadd.f32 %v2529, %v2666
  %v2682 = vadd.f32 %v2530, %v2668
  %v2683 = vadd.f32 %v2531, %v2669
  %v2684 = vadd.f32 %v2532, %v2671
  %v2685 = vadd.f32 %v2533, %v2673
  %2686 = vrot.lane.b32.xlu0 %v2197, 24
  %v2687 = vpop.permute.xlu0 %2686
  %2688 = vrot.lane.b32.xlu0 %v2198, 24
  %v2689 = vpop.permute.xlu0 %2688
  %2690 = vrot.lane.b32.xlu0 %v2199, 24
  %v2691 = vpop.permute.xlu0 %2690
  %2692 = vrot.lane.b32.xlu0 %v2200, 24
  %v2693 = vpop.permute.xlu0 %2692
  %2694 = vrot.lane.b32.xlu0 %v2201, 24
  %v2695 = vpop.permute.xlu0 %2694
  %2696 = vrot.lane.b32.xlu0 %v2202, 24
  %v2697 = vpop.permute.xlu0 %2696
  %2698 = vrot.lane.b32.xlu0 %v2203, 24
  %v2699 = vpop.permute.xlu0 %2698
  %2700 = vrot.lane.b32.xlu0 %v2204, 24
  %v2701 = vpop.permute.xlu0 %2700
  %2702 = vrot.lane.b32.xlu0 %v2205, 24
  %v2703 = vpop.permute.xlu0 %2702
  %2704 = vrot.lane.b32.xlu0 %v2206, 24
  %v2705 = vpop.permute.xlu0 %2704
  %v2706 = vld [vmem:[%s6 + $0x45] sm:$0x1]
  %v2707 = vlaneseq
  %v2708 = vshrl.u32 %v2707, 7
  %v2709 = vsub.s32 0, %v2708
  %v2710 = vrot.slane %v2706, %v2709
  %v2711 = vmul.f32 %v2687, %v2710
  %v2712 = vmul.f32 %v2689, %v2710
  %v2713 = vmul.f32 %v2697, %v2710
  %v2714 = vmul.f32 %v2699, %v2710
  %v2719 = vrot.slane %v2711, 2
  %v2720 = vrot.slane %v2712, 2
  %v2721 = vsel %vm904, %v2719, %v2720
  %v2722 = vrot.slane %v2713, 2
  %v2723 = vrot.slane %v2714, 2
  %v2724 = vsel %vm904, %v2722, %v2723
  %v2731 = vadd.f32 %v2567, %v2719
  %v2732 = vadd.f32 %v2568, %v2721
  %v2733 = vadd.f32 %v2569, %v2720
  %v2734 = vadd.f32 %v2570, %v2722
  %v2735 = vadd.f32 %v2571, %v2724
  %v2736 = vadd.f32 %v2572, %v2723
  %v2737 = vld [vmem:[%s6 + $0x4c] sm:$0x1]
  %v2738 = vlaneseq
  %v2739 = vshrl.u32 %v2738, 7
  %v2740 = vsub.s32 0, %v2739
  %v2741 = vrot.slane %v2737, %v2740
  %v2742 = vmul.f32 %v2687, %v2741
  %v2743 = vmul.f32 %v2689, %v2741
  %v2744 = vmul.f32 %v2691, %v2741
  %v2745 = vmul.f32 %v2697, %v2741
  %v2746 = vmul.f32 %v2699, %v2741
  %v2747 = vmul.f32 %v2701, %v2741
  %v2754 = vrot.slane %v2742, 2
  %v2755 = vrot.slane %v2743, 2
  %v2756 = vsel %vm904, %v2754, %v2755
  %v2757 = vrot.slane %v2744, 2
  %v2758 = vsel %vm904, %v2755, %v2757
  %v2759 = vrot.slane %v2745, 2
  %v2760 = vrot.slane %v2746, 2
  %v2761 = vsel %vm904, %v2759, %v2760
  %v2762 = vrot.slane %v2747, 2
  %v2763 = vsel %vm904, %v2760, %v2762
  %v2770 = vadd.f32 %v2606, %v2756
  %v2771 = vadd.f32 %v2607, %v2758
  %v2772 = vadd.f32 %v2608, %v2757
  %v2773 = vadd.f32 %v2609, %v2761
  %v2774 = vadd.f32 %v2610, %v2763
  %v2775 = vadd.f32 %v2611, %v2762
  %v2776 = vld [vmem:[%s6 + $0x53] sm:$0x1]
  %v2777 = vlaneseq
  %v2778 = vshrl.u32 %v2777, 7
  %v2779 = vsub.s32 0, %v2778
  %v2780 = vrot.slane %v2776, %v2779
  %v2781 = vmul.f32 %v2687, %v2780
  %v2782 = vmul.f32 %v2689, %v2780
  %v2783 = vmul.f32 %v2691, %v2780
  %v2784 = vmul.f32 %v2697, %v2780
  %v2785 = vmul.f32 %v2699, %v2780
  %v2786 = vmul.f32 %v2701, %v2780
  %v2793 = vrot.slane %v2781, 6
  %v2794 = vrot.slane %v2782, 6
  %v2795 = vsel %vm829, %v2793, %v2794
  %v2796 = vrot.slane %v2783, 6
  %v2797 = vsel %vm829, %v2794, %v2796
  %v2798 = vrot.slane %v2784, 6
  %v2799 = vrot.slane %v2785, 6
  %v2800 = vsel %vm829, %v2798, %v2799
  %v2801 = vrot.slane %v2786, 6
  %v2802 = vsel %vm829, %v2799, %v2801
  %v2807 = vadd.f32 %v2643, %v2795
  %v2808 = vadd.f32 %v2644, %v2797
  %v2809 = vadd.f32 %v2645, %v2800
  %v2810 = vadd.f32 %v2646, %v2802
  %v2811 = vld [vmem:[%s6 + $0x5a] sm:$0x1]
  %v2812 = vlaneseq
  %v2813 = vshrl.u32 %v2812, 7
  %v2814 = vsub.s32 0, %v2813
  %v2815 = vrot.slane %v2811, %v2814
  %v2816 = vmul.f32 %v2689, %v2815
  %v2817 = vmul.f32 %v2691, %v2815
  %v2818 = vmul.f32 %v2693, %v2815
  %v2819 = vmul.f32 %v2699, %v2815
  %v2820 = vmul.f32 %v2701, %v2815
  %v2821 = vmul.f32 %v2703, %v2815
  %v2828 = vrot.slane %v2816, 6
  %v2829 = vrot.slane %v2817, 6
  %v2830 = vsel %vm829, %v2828, %v2829
  %v2831 = vrot.slane %v2818, 6
  %v2832 = vsel %vm829, %v2829, %v2831
  %v2833 = vrot.slane %v2819, 6
  %v2834 = vrot.slane %v2820, 6
  %v2835 = vsel %vm829, %v2833, %v2834
  %v2836 = vrot.slane %v2821, 6
  %v2837 = vsel %vm829, %v2834, %v2836
  %v2844 = vadd.f32 %v2680, %v2828
  %v2845 = vadd.f32 %v2681, %v2830
  %v2846 = vadd.f32 %v2682, %v2832
  %v2847 = vadd.f32 %v2683, %v2833
  %v2848 = vadd.f32 %v2684, %v2835
  %v2849 = vadd.f32 %v2685, %v2837
  %v2850 = vld [vmem:[%s6 + $0x61] sm:$0x1]
  %v2851 = vlaneseq
  %v2852 = vshrl.u32 %v2851, 7
  %v2853 = vsub.s32 0, %v2852
  %v2854 = vrot.slane %v2850, %v2853
  %v2855 = vmul.f32 %v2689, %v2854
  %v2856 = vmul.f32 %v2691, %v2854
  %v2857 = vmul.f32 %v2693, %v2854
  %v2858 = vmul.f32 %v2699, %v2854
  %v2859 = vmul.f32 %v2701, %v2854
  %v2860 = vmul.f32 %v2703, %v2854
  %v2867 = vrot.slane %v2855, 6
  %v2868 = vrot.slane %v2856, 6
  %v2869 = vsel %vm829, %v2867, %v2868
  %v2870 = vrot.slane %v2857, 6
  %v2871 = vsel %vm829, %v2868, %v2870
  %v2872 = vrot.slane %v2858, 6
  %v2873 = vrot.slane %v2859, 6
  %v2874 = vsel %vm829, %v2872, %v2873
  %v2875 = vrot.slane %v2860, 6
  %v2876 = vsel %vm829, %v2873, %v2875
  %v2883 = vadd.f32 %v2731, %v2867
  %v2884 = vadd.f32 %v2732, %v2869
  %v2885 = vadd.f32 %v2733, %v2871
  %v2886 = vadd.f32 %v2734, %v2872
  %v2887 = vadd.f32 %v2735, %v2874
  %v2888 = vadd.f32 %v2736, %v2876
  %v2889 = vld [vmem:[%s6 + $0x68] sm:$0x1]
  %v2890 = vlaneseq
  %v2891 = vshrl.u32 %v2890, 7
  %v2892 = vsub.s32 0, %v2891
  %v2893 = vrot.slane %v2889, %v2892
  %v2894 = vmul.f32 %v2689, %v2893
  %v2895 = vmul.f32 %v2691, %v2893
  %v2896 = vmul.f32 %v2693, %v2893
  %v2897 = vmul.f32 %v2699, %v2893
  %v2898 = vmul.f32 %v2701, %v2893
  %v2899 = vmul.f32 %v2703, %v2893
  %v2906 = vrot.slane %v2894, 6
  %v2907 = vrot.slane %v2895, 6
  %v2908 = vsel %vm829, %v2906, %v2907
  %v2909 = vrot.slane %v2896, 6
  %v2910 = vsel %vm829, %v2907, %v2909
  %v2911 = vrot.slane %v2897, 6
  %v2912 = vrot.slane %v2898, 6
  %v2913 = vsel %vm829, %v2911, %v2912
  %v2914 = vrot.slane %v2899, 6
  %v2915 = vsel %vm829, %v2912, %v2914
  %v2922 = vadd.f32 %v2770, %v2908
  %v2923 = vadd.f32 %v2771, %v2910
  %v2924 = vadd.f32 %v2772, %v2909
  %v2925 = vadd.f32 %v2773, %v2913
  %v2926 = vadd.f32 %v2774, %v2915
  %v2927 = vadd.f32 %v2775, %v2914
  %v2928 = vld [vmem:[%s6 + $0x6f] sm:$0x1]
  %v2929 = vlaneseq
  %v2930 = vshrl.u32 %v2929, 7
  %v2931 = vsub.s32 0, %v2930
  %v2932 = vrot.slane %v2928, %v2931
  %v2933 = vmul.f32 %v2691, %v2932
  %v2934 = vmul.f32 %v2693, %v2932
  %v2935 = vmul.f32 %v2695, %v2932
  %v2936 = vmul.f32 %v2701, %v2932
  %v2937 = vmul.f32 %v2703, %v2932
  %v2938 = vmul.f32 %v2705, %v2932
  %v2945 = vrot.slane %v2933, 2
  %v2946 = vrot.slane %v2934, 2
  %v2947 = vsel %vm904, %v2945, %v2946
  %v2948 = vrot.slane %v2935, 2
  %v2949 = vsel %vm904, %v2946, %v2948
  %v2950 = vrot.slane %v2936, 2
  %v2951 = vrot.slane %v2937, 2
  %v2952 = vsel %vm904, %v2950, %v2951
  %v2953 = vrot.slane %v2938, 2
  %v2954 = vsel %vm904, %v2951, %v2953
  %v2959 = vadd.f32 %v2807, %v2947
  %v2960 = vadd.f32 %v2808, %v2949
  %v2961 = vadd.f32 %v2809, %v2952
  %v2962 = vadd.f32 %v2810, %v2954
  %v2963 = vld [vmem:[%s6 + $0x46] sm:$0x1]
  %v2964 = vlaneseq
  %v2965 = vshrl.u32 %v2964, 7
  %v2966 = vsub.s32 0, %v2965
  %v2967 = vrot.slane %v2963, %v2966
  %v2968 = vmul.f32 %v2197, %v2967
  %v2969 = vmul.f32 %v2198, %v2967
  %v2970 = vmul.f32 %v2202, %v2967
  %v2971 = vmul.f32 %v2203, %v2967
  %v2976 = vrot.slane %v2968, 5
  %v2977 = vrot.slane %v2969, 5
  %v2978 = vsel %vm1026, %v2976, %v2977
  %v2979 = vrot.slane %v2970, 5
  %v2980 = vrot.slane %v2971, 5
  %v2981 = vsel %vm1026, %v2979, %v2980
  %v2988 = vadd.f32 %v2844, %v2976
  %v2989 = vadd.f32 %v2845, %v2978
  %v2990 = vadd.f32 %v2846, %v2977
  %v2991 = vadd.f32 %v2847, %v2979
  %v2992 = vadd.f32 %v2848, %v2981
  %v2993 = vadd.f32 %v2849, %v2980
  %v2994 = vld [vmem:[%s6 + $0x4d] sm:$0x1]
  %v2995 = vlaneseq
  %v2996 = vshrl.u32 %v2995, 7
  %v2997 = vsub.s32 0, %v2996
  %v2998 = vrot.slane %v2994, %v2997
  %v2999 = vmul.f32 %v2197, %v2998
  %v3000 = vmul.f32 %v2198, %v2998
  %v3001 = vmul.f32 %v2199, %v2998
  %v3002 = vmul.f32 %v2202, %v2998
  %v3003 = vmul.f32 %v2203, %v2998
  %v3004 = vmul.f32 %v2204, %v2998
  %v3011 = vrot.slane %v2999, 5
  %v3012 = vrot.slane %v3000, 5
  %v3013 = vsel %vm1026, %v3011, %v3012
  %v3014 = vrot.slane %v3001, 5
  %v3015 = vsel %vm1026, %v3012, %v3014
  %v3016 = vrot.slane %v3002, 5
  %v3017 = vrot.slane %v3003, 5
  %v3018 = vsel %vm1026, %v3016, %v3017
  %v3019 = vrot.slane %v3004, 5
  %v3020 = vsel %vm1026, %v3017, %v3019
  %v3027 = vadd.f32 %v2883, %v3011
  %v3028 = vadd.f32 %v2884, %v3013
  %v3029 = vadd.f32 %v2885, %v3015
  %v3030 = vadd.f32 %v2886, %v3016
  %v3031 = vadd.f32 %v2887, %v3018
  %v3032 = vadd.f32 %v2888, %v3020
  %v3033 = vld [vmem:[%s6 + $0x54] sm:$0x1]
  %v3034 = vlaneseq
  %v3035 = vshrl.u32 %v3034, 7
  %v3036 = vsub.s32 0, %v3035
  %v3037 = vrot.slane %v3033, %v3036
  %v3038 = vmul.f32 %v2197, %v3037
  %v3039 = vmul.f32 %v2198, %v3037
  %v3040 = vmul.f32 %v2199, %v3037
  %v3041 = vmul.f32 %v2202, %v3037
  %v3042 = vmul.f32 %v2203, %v3037
  %v3043 = vmul.f32 %v2204, %v3037
  %v3050 = vrot.slane %v3038, 5
  %v3051 = vrot.slane %v3039, 5
  %v3052 = vsel %vm1026, %v3050, %v3051
  %v3053 = vrot.slane %v3040, 5
  %v3054 = vsel %vm1026, %v3051, %v3053
  %v3055 = vrot.slane %v3041, 5
  %v3056 = vrot.slane %v3042, 5
  %v3057 = vsel %vm1026, %v3055, %v3056
  %v3058 = vrot.slane %v3043, 5
  %v3059 = vsel %vm1026, %v3056, %v3058
  %v3066 = vadd.f32 %v2922, %v3052
  %v3067 = vadd.f32 %v2923, %v3054
  %v3068 = vadd.f32 %v2924, %v3053
  %v3069 = vadd.f32 %v2925, %v3057
  %v3070 = vadd.f32 %v2926, %v3059
  %v3071 = vadd.f32 %v2927, %v3058
  %v3072 = vld [vmem:[%s6 + $0x5b] sm:$0x1]
  %v3073 = vlaneseq
  %v3074 = vshrl.u32 %v3073, 7
  %v3075 = vsub.s32 0, %v3074
  %v3076 = vrot.slane %v3072, %v3075
  %v3077 = vmul.f32 %v2198, %v3076
  %v3078 = vmul.f32 %v2199, %v3076
  %v3079 = vmul.f32 %v2200, %v3076
  %v3080 = vmul.f32 %v2203, %v3076
  %v3081 = vmul.f32 %v2204, %v3076
  %v3082 = vmul.f32 %v2205, %v3076
  %v3089 = vrot.slane %v3077, 1
  %v3090 = vrot.slane %v3078, 1
  %v3091 = vsel %vm1062, %v3089, %v3090
  %v3092 = vrot.slane %v3079, 1
  %v3093 = vsel %vm1062, %v3090, %v3092
  %v3094 = vrot.slane %v3080, 1
  %v3095 = vrot.slane %v3081, 1
  %v3096 = vsel %vm1062, %v3094, %v3095
  %v3097 = vrot.slane %v3082, 1
  %v3098 = vsel %vm1062, %v3095, %v3097
  %v3103 = vadd.f32 %v2959, %v3091
  %v3104 = vadd.f32 %v2960, %v3093
  %v3105 = vadd.f32 %v2961, %v3096
  %v3106 = vadd.f32 %v2962, %v3098
  %v3107 = vld [vmem:[%s6 + $0x62] sm:$0x1]
  %v3108 = vlaneseq
  %v3109 = vshrl.u32 %v3108, 7
  %v3110 = vsub.s32 0, %v3109
  %v3111 = vrot.slane %v3107, %v3110
  %v3112 = vmul.f32 %v2198, %v3111
  %v3113 = vmul.f32 %v2199, %v3111
  %v3114 = vmul.f32 %v2200, %v3111
  %v3115 = vmul.f32 %v2203, %v3111
  %v3116 = vmul.f32 %v2204, %v3111
  %v3117 = vmul.f32 %v2205, %v3111
  %v3124 = vrot.slane %v3112, 1
  %v3125 = vrot.slane %v3113, 1
  %v3126 = vsel %vm1062, %v3124, %v3125
  %v3127 = vrot.slane %v3114, 1
  %v3128 = vsel %vm1062, %v3125, %v3127
  %v3129 = vrot.slane %v3115, 1
  %v3130 = vrot.slane %v3116, 1
  %v3131 = vsel %vm1062, %v3129, %v3130
  %v3132 = vrot.slane %v3117, 1
  %v3133 = vsel %vm1062, %v3130, %v3132
  %v3140 = vadd.f32 %v2988, %v3126
  %v3141 = vadd.f32 %v2989, %v3128
  %v3142 = vadd.f32 %v2990, %v3127
  %v3143 = vadd.f32 %v2991, %v3131
  %v3144 = vadd.f32 %v2992, %v3133
  %v3145 = vadd.f32 %v2993, %v3132
  %v3146 = vld [vmem:[%s6 + $0x69] sm:$0x1]
  %v3147 = vlaneseq
  %v3148 = vshrl.u32 %v3147, 7
  %v3149 = vsub.s32 0, %v3148
  %v3150 = vrot.slane %v3146, %v3149
  %v3151 = vmul.f32 %v2198, %v3150
  %v3152 = vmul.f32 %v2199, %v3150
  %v3153 = vmul.f32 %v2200, %v3150
  %v3154 = vmul.f32 %v2203, %v3150
  %v3155 = vmul.f32 %v2204, %v3150
  %v3156 = vmul.f32 %v2205, %v3150
  %v3163 = vrot.slane %v3151, 1
  %v3164 = vrot.slane %v3152, 1
  %v3165 = vsel %vm1062, %v3163, %v3164
  %v3166 = vrot.slane %v3153, 1
  %v3167 = vsel %vm1062, %v3164, %v3166
  %v3168 = vrot.slane %v3154, 1
  %v3169 = vrot.slane %v3155, 1
  %v3170 = vsel %vm1062, %v3168, %v3169
  %v3171 = vrot.slane %v3156, 1
  %v3172 = vsel %vm1062, %v3169, %v3171
  %v3179 = vadd.f32 %v3027, %v3165
  %v3180 = vadd.f32 %v3028, %v3167
  %v3181 = vadd.f32 %v3029, %v3166
  %v3182 = vadd.f32 %v3030, %v3170
  %v3183 = vadd.f32 %v3031, %v3172
  %v3184 = vadd.f32 %v3032, %v3171
  %v3185 = vld [vmem:[%s6 + $0x70] sm:$0x1]
  %v3186 = vlaneseq
  %v3187 = vshrl.u32 %v3186, 7
  %v3188 = vsub.s32 0, %v3187
  %v3189 = vrot.slane %v3185, %v3188
  %v3190 = vmul.f32 %v2199, %v3189
  %v3191 = vmul.f32 %v2200, %v3189
  %v3192 = vmul.f32 %v2201, %v3189
  %v3193 = vmul.f32 %v2204, %v3189
  %v3194 = vmul.f32 %v2205, %v3189
  %v3195 = vmul.f32 %v2206, %v3189
  %v3202 = vrot.slane %v3190, 1
  %v3203 = vrot.slane %v3191, 1
  %v3204 = vsel %vm1062, %v3202, %v3203
  %v3205 = vrot.slane %v3192, 1
  %v3206 = vsel %vm1062, %v3203, %v3205
  %v3207 = vrot.slane %v3193, 1
  %v3208 = vrot.slane %v3194, 1
  %v3209 = vsel %vm1062, %v3207, %v3208
  %v3210 = vrot.slane %v3195, 1
  %v3211 = vsel %vm1062, %v3208, %v3210
  %v3218 = vadd.f32 %v3066, %v3204
  %v3219 = vadd.f32 %v3067, %v3206
  %v3220 = vadd.f32 %v3068, %v3205
  %v3221 = vadd.f32 %v3069, %v3209
  %v3222 = vadd.f32 %v3070, %v3211
  %v3223 = vadd.f32 %v3071, %v3210
  %3224 = vrot.lane.b32.xlu0 %v2197, 104
  %v3225 = vpop.permute.xlu0 %3224
  %3226 = vrot.lane.b32.xlu0 %v2198, 104
  %v3227 = vpop.permute.xlu0 %3226
  %3228 = vrot.lane.b32.xlu0 %v2199, 104
  %v3229 = vpop.permute.xlu0 %3228
  %3230 = vrot.lane.b32.xlu0 %v2200, 104
  %v3231 = vpop.permute.xlu0 %3230
  %3232 = vrot.lane.b32.xlu0 %v2201, 104
  %v3233 = vpop.permute.xlu0 %3232
  %3234 = vrot.lane.b32.xlu0 %v2202, 104
  %v3235 = vpop.permute.xlu0 %3234
  %3236 = vrot.lane.b32.xlu0 %v2203, 104
  %v3237 = vpop.permute.xlu0 %3236
  %3238 = vrot.lane.b32.xlu0 %v2204, 104
  %v3239 = vpop.permute.xlu0 %3238
  %3240 = vrot.lane.b32.xlu0 %v2205, 104
  %v3241 = vpop.permute.xlu0 %3240
  %3242 = vrot.lane.b32.xlu0 %v2206, 104
  %v3243 = vpop.permute.xlu0 %3242
  %v3244 = vld [vmem:[%s6 + $0x47] sm:$0x1]
  %v3245 = vlaneseq
  %v3246 = vshrl.u32 %v3245, 7
  %v3247 = vsub.s32 0, %v3246
  %v3248 = vrot.slane %v3244, %v3247
  %v3249 = vmul.f32 %v3225, %v3248
  %v3250 = vmul.f32 %v3227, %v3248
  %v3251 = vmul.f32 %v3235, %v3248
  %v3252 = vmul.f32 %v3237, %v3248
  %v3253 = vadd.f32 %v3103, %v3249
  %v3254 = vadd.f32 %v3104, %v3250
  %v3255 = vadd.f32 %v3105, %v3251
  %v3256 = vadd.f32 %v3106, %v3252
  %v3257 = vld [vmem:[%s6 + $0x4e] sm:$0x1]
  %v3258 = vlaneseq
  %v3259 = vshrl.u32 %v3258, 7
  %v3260 = vsub.s32 0, %v3259
  %v3261 = vrot.slane %v3257, %v3260
  %v3262 = vmul.f32 %v3225, %v3261
  %v3263 = vmul.f32 %v3227, %v3261
  %v3264 = vmul.f32 %v3229, %v3261
  %v3265 = vmul.f32 %v3235, %v3261
  %v3266 = vmul.f32 %v3237, %v3261
  %v3267 = vmul.f32 %v3239, %v3261
  %v3268 = vadd.f32 %v3140, %v3262
  %v3269 = vadd.f32 %v3141, %v3263
  %v3270 = vadd.f32 %v3142, %v3264
  %v3271 = vadd.f32 %v3143, %v3265
  %v3272 = vadd.f32 %v3144, %v3266
  %v3273 = vadd.f32 %v3145, %v3267
  %v3274 = vld [vmem:[%s6 + $0x55] sm:$0x1]
  %v3275 = vlaneseq
  %v3276 = vshrl.u32 %v3275, 7
  %v3277 = vsub.s32 0, %v3276
  %v3278 = vrot.slane %v3274, %v3277
  %v3279 = vmul.f32 %v3225, %v3278
  %v3280 = vmul.f32 %v3227, %v3278
  %v3281 = vmul.f32 %v3229, %v3278
  %v3282 = vmul.f32 %v3235, %v3278
  %v3283 = vmul.f32 %v3237, %v3278
  %v3284 = vmul.f32 %v3239, %v3278
  %v3285 = vadd.f32 %v3179, %v3279
  %v3286 = vadd.f32 %v3180, %v3280
  %v3287 = vadd.f32 %v3181, %v3281
  %v3288 = vadd.f32 %v3182, %v3282
  %v3289 = vadd.f32 %v3183, %v3283
  %v3290 = vadd.f32 %v3184, %v3284
  %v3291 = vld [vmem:[%s6 + $0x5c] sm:$0x1]
  %v3292 = vlaneseq
  %v3293 = vshrl.u32 %v3292, 7
  %v3294 = vsub.s32 0, %v3293
  %v3295 = vrot.slane %v3291, %v3294
  %v3296 = vmul.f32 %v3227, %v3295
  %v3297 = vmul.f32 %v3229, %v3295
  %v3298 = vmul.f32 %v3231, %v3295
  %v3299 = vmul.f32 %v3237, %v3295
  %v3300 = vmul.f32 %v3239, %v3295
  %v3301 = vmul.f32 %v3241, %v3295
  %v3302 = vadd.f32 %v3218, %v3296
  %v3303 = vadd.f32 %v3219, %v3297
  %v3304 = vadd.f32 %v3220, %v3298
  %v3305 = vadd.f32 %v3221, %v3299
  %v3306 = vadd.f32 %v3222, %v3300
  %v3307 = vadd.f32 %v3223, %v3301
  %v3308 = vld [vmem:[%s6 + $0x63] sm:$0x1]
  %v3309 = vlaneseq
  %v3310 = vshrl.u32 %v3309, 7
  %v3311 = vsub.s32 0, %v3310
  %v3312 = vrot.slane %v3308, %v3311
  %v3313 = vmul.f32 %v3227, %v3312
  %v3314 = vmul.f32 %v3229, %v3312
  %v3315 = vmul.f32 %v3231, %v3312
  %v3316 = vmul.f32 %v3237, %v3312
  %v3317 = vmul.f32 %v3239, %v3312
  %v3318 = vmul.f32 %v3241, %v3312
  %v3325 = vrot.slane %v3313, 4
  %v3326 = vrot.slane %v3314, 4
  %v3327 = vsel %vm601, %v3325, %v3326
  %v3328 = vrot.slane %v3315, 4
  %v3329 = vsel %vm601, %v3326, %v3328
  %v3330 = vrot.slane %v3316, 4
  %v3331 = vrot.slane %v3317, 4
  %v3332 = vsel %vm601, %v3330, %v3331
  %v3333 = vrot.slane %v3318, 4
  %v3334 = vsel %vm601, %v3331, %v3333
  %v3339 = vadd.f32 %v3253, %v3327
  %v3340 = vadd.f32 %v3254, %v3329
  %v3341 = vadd.f32 %v3255, %v3332
  %v3342 = vadd.f32 %v3256, %v3334
  %v3343 = vld [vmem:[%s6 + $0x6a] sm:$0x1]
  %v3344 = vlaneseq
  %v3345 = vshrl.u32 %v3344, 7
  %v3346 = vsub.s32 0, %v3345
  %v3347 = vrot.slane %v3343, %v3346
  %v3348 = vmul.f32 %v3227, %v3347
  %v3349 = vmul.f32 %v3229, %v3347
  %v3350 = vmul.f32 %v3231, %v3347
  %v3351 = vmul.f32 %v3237, %v3347
  %v3352 = vmul.f32 %v3239, %v3347
  %v3353 = vmul.f32 %v3241, %v3347
  %v3360 = vrot.slane %v3348, 4
  %v3361 = vrot.slane %v3349, 4
  %v3362 = vsel %vm601, %v3360, %v3361
  %v3363 = vrot.slane %v3350, 4
  %v3364 = vsel %vm601, %v3361, %v3363
  %v3365 = vrot.slane %v3351, 4
  %v3366 = vrot.slane %v3352, 4
  %v3367 = vsel %vm601, %v3365, %v3366
  %v3368 = vrot.slane %v3353, 4
  %v3369 = vsel %vm601, %v3366, %v3368
  %v3376 = vadd.f32 %v3268, %v3362
  %v3377 = vadd.f32 %v3269, %v3364
  %v3378 = vadd.f32 %v3270, %v3363
  %v3379 = vadd.f32 %v3271, %v3367
  %v3380 = vadd.f32 %v3272, %v3369
  %v3381 = vadd.f32 %v3273, %v3368
  %v3382 = vld [vmem:[%s6 + $0x71] sm:$0x1]
  %v3383 = vlaneseq
  %v3384 = vshrl.u32 %v3383, 7
  %v3385 = vsub.s32 0, %v3384
  %v3386 = vrot.slane %v3382, %v3385
  %v3387 = vmul.f32 %v3229, %v3386
  %v3388 = vmul.f32 %v3231, %v3386
  %v3389 = vmul.f32 %v3233, %v3386
  %v3390 = vmul.f32 %v3239, %v3386
  %v3391 = vmul.f32 %v3241, %v3386
  %v3392 = vmul.f32 %v3243, %v3386
  %v3399 = vrot.slane %v3387, 4
  %v3400 = vrot.slane %v3388, 4
  %v3401 = vsel %vm601, %v3399, %v3400
  %v3402 = vrot.slane %v3389, 4
  %v3403 = vsel %vm601, %v3400, %v3402
  %v3404 = vrot.slane %v3390, 4
  %v3405 = vrot.slane %v3391, 4
  %v3406 = vsel %vm601, %v3404, %v3405
  %v3407 = vrot.slane %v3392, 4
  %v3408 = vsel %vm601, %v3405, %v3407
  %v3415 = vadd.f32 %v3285, %v3399
  %v3416 = vadd.f32 %v3286, %v3401
  %v3417 = vadd.f32 %v3287, %v3403
  %v3418 = vadd.f32 %v3288, %v3404
  %v3419 = vadd.f32 %v3289, %v3406
  %v3420 = vadd.f32 %v3290, %v3408
  %3421 = vrot.lane.b32.xlu0 %v2197, 80
  %v3422 = vpop.permute.xlu0 %3421
  %3423 = vrot.lane.b32.xlu0 %v2198, 80
  %v3424 = vpop.permute.xlu0 %3423
  %3425 = vrot.lane.b32.xlu0 %v2199, 80
  %v3426 = vpop.permute.xlu0 %3425
  %3427 = vrot.lane.b32.xlu0 %v2200, 80
  %v3428 = vpop.permute.xlu0 %3427
  %3429 = vrot.lane.b32.xlu0 %v2201, 80
  %v3430 = vpop.permute.xlu0 %3429
  %3431 = vrot.lane.b32.xlu0 %v2202, 80
  %v3432 = vpop.permute.xlu0 %3431
  %3433 = vrot.lane.b32.xlu0 %v2203, 80
  %v3434 = vpop.permute.xlu0 %3433
  %3435 = vrot.lane.b32.xlu0 %v2204, 80
  %v3436 = vpop.permute.xlu0 %3435
  %3437 = vrot.lane.b32.xlu0 %v2205, 80
  %v3438 = vpop.permute.xlu0 %3437
  %3439 = vrot.lane.b32.xlu0 %v2206, 80
  %v3440 = vpop.permute.xlu0 %3439
  %v3441 = vld [vmem:[%s6 + $0x48] sm:$0x1]
  %v3442 = vlaneseq
  %v3443 = vshrl.u32 %v3442, 7
  %v3444 = vsub.s32 0, %v3443
  %v3445 = vrot.slane %v3441, %v3444
  %v3446 = vmul.f32 %v3422, %v3445
  %v3447 = vmul.f32 %v3424, %v3445
  %v3448 = vmul.f32 %v3432, %v3445
  %v3449 = vmul.f32 %v3434, %v3445
  %v3454 = vrot.slane %v3446, 7
  %v3455 = vrot.slane %v3447, 7
  %v3456 = vsel %vm82, %v3454, %v3455
  %v3457 = vrot.slane %v3448, 7
  %v3458 = vrot.slane %v3449, 7
  %v3459 = vsel %vm82, %v3457, %v3458
  %v3466 = vadd.f32 %v3302, %v3454
  %v3467 = vadd.f32 %v3303, %v3456
  %v3468 = vadd.f32 %v3304, %v3455
  %v3469 = vadd.f32 %v3305, %v3457
  %v3470 = vadd.f32 %v3306, %v3459
  %v3471 = vadd.f32 %v3307, %v3458
  %v3472 = vld [vmem:[%s6 + $0x4f] sm:$0x1]
  %v3473 = vlaneseq
  %v3474 = vshrl.u32 %v3473, 7
  %v3475 = vsub.s32 0, %v3474
  %v3476 = vrot.slane %v3472, %v3475
  %v3477 = vmul.f32 %v3422, %v3476
  %v3478 = vmul.f32 %v3424, %v3476
  %v3479 = vmul.f32 %v3426, %v3476
  %v3480 = vmul.f32 %v3432, %v3476
  %v3481 = vmul.f32 %v3434, %v3476
  %v3482 = vmul.f32 %v3436, %v3476
  %v3489 = vrot.slane %v3477, 3
  %v3490 = vrot.slane %v3478, 3
  %v3491 = vsel %vm758, %v3489, %v3490
  %v3492 = vrot.slane %v3479, 3
  %v3493 = vsel %vm758, %v3490, %v3492
  %v3494 = vrot.slane %v3480, 3
  %v3495 = vrot.slane %v3481, 3
  %v3496 = vsel %vm758, %v3494, %v3495
  %v3497 = vrot.slane %v3482, 3
  %v3498 = vsel %vm758, %v3495, %v3497
  %v3503 = vadd.f32 %v3339, %v3491
  %v3504 = vadd.f32 %v3340, %v3493
  %v3505 = vadd.f32 %v3341, %v3496
  %v3506 = vadd.f32 %v3342, %v3498
  %v3507 = vld [vmem:[%s6 + $0x56] sm:$0x1]
  %v3508 = vlaneseq
  %v3509 = vshrl.u32 %v3508, 7
  %v3510 = vsub.s32 0, %v3509
  %v3511 = vrot.slane %v3507, %v3510
  %v3512 = vmul.f32 %v3422, %v3511
  %v3513 = vmul.f32 %v3424, %v3511
  %v3514 = vmul.f32 %v3426, %v3511
  %v3515 = vmul.f32 %v3432, %v3511
  %v3516 = vmul.f32 %v3434, %v3511
  %v3517 = vmul.f32 %v3436, %v3511
  %v3524 = vrot.slane %v3512, 3
  %v3525 = vrot.slane %v3513, 3
  %v3526 = vsel %vm758, %v3524, %v3525
  %v3527 = vrot.slane %v3514, 3
  %v3528 = vsel %vm758, %v3525, %v3527
  %v3529 = vrot.slane %v3515, 3
  %v3530 = vrot.slane %v3516, 3
  %v3531 = vsel %vm758, %v3529, %v3530
  %v3532 = vrot.slane %v3517, 3
  %v3533 = vsel %vm758, %v3530, %v3532
  %v3540 = vadd.f32 %v3376, %v3526
  %v3541 = vadd.f32 %v3377, %v3528
  %v3542 = vadd.f32 %v3378, %v3527
  %v3543 = vadd.f32 %v3379, %v3531
  %v3544 = vadd.f32 %v3380, %v3533
  %v3545 = vadd.f32 %v3381, %v3532
  %v3546 = vld [vmem:[%s6 + $0x5d] sm:$0x1]
  %v3547 = vlaneseq
  %v3548 = vshrl.u32 %v3547, 7
  %v3549 = vsub.s32 0, %v3548
  %v3550 = vrot.slane %v3546, %v3549
  %v3551 = vmul.f32 %v3424, %v3550
  %v3552 = vmul.f32 %v3426, %v3550
  %v3553 = vmul.f32 %v3428, %v3550
  %v3554 = vmul.f32 %v3434, %v3550
  %v3555 = vmul.f32 %v3436, %v3550
  %v3556 = vmul.f32 %v3438, %v3550
  %v3563 = vrot.slane %v3551, 3
  %v3564 = vrot.slane %v3552, 3
  %v3565 = vsel %vm758, %v3563, %v3564
  %v3566 = vrot.slane %v3553, 3
  %v3567 = vsel %vm758, %v3564, %v3566
  %v3568 = vrot.slane %v3554, 3
  %v3569 = vrot.slane %v3555, 3
  %v3570 = vsel %vm758, %v3568, %v3569
  %v3571 = vrot.slane %v3556, 3
  %v3572 = vsel %vm758, %v3569, %v3571
  %v3579 = vadd.f32 %v3415, %v3563
  %v3580 = vadd.f32 %v3416, %v3565
  %v3581 = vadd.f32 %v3417, %v3567
  %v3582 = vadd.f32 %v3418, %v3568
  %v3583 = vadd.f32 %v3419, %v3570
  %v3584 = vadd.f32 %v3420, %v3572
  %v3585 = vld [vmem:[%s6 + $0x64] sm:$0x1]
  %v3586 = vlaneseq
  %v3587 = vshrl.u32 %v3586, 7
  %v3588 = vsub.s32 0, %v3587
  %v3589 = vrot.slane %v3585, %v3588
  %v3590 = vmul.f32 %v3424, %v3589
  %v3591 = vmul.f32 %v3426, %v3589
  %v3592 = vmul.f32 %v3428, %v3589
  %v3593 = vmul.f32 %v3434, %v3589
  %v3594 = vmul.f32 %v3436, %v3589
  %v3595 = vmul.f32 %v3438, %v3589
  %v3602 = vrot.slane %v3590, 3
  %v3603 = vrot.slane %v3591, 3
  %v3604 = vsel %vm758, %v3602, %v3603
  %v3605 = vrot.slane %v3592, 3
  %v3606 = vsel %vm758, %v3603, %v3605
  %v3607 = vrot.slane %v3593, 3
  %v3608 = vrot.slane %v3594, 3
  %v3609 = vsel %vm758, %v3607, %v3608
  %v3610 = vrot.slane %v3595, 3
  %v3611 = vsel %vm758, %v3608, %v3610
  %v3618 = vadd.f32 %v3466, %v3604
  %v3619 = vadd.f32 %v3467, %v3606
  %v3620 = vadd.f32 %v3468, %v3605
  %v3621 = vadd.f32 %v3469, %v3609
  %v3622 = vadd.f32 %v3470, %v3611
  %v3623 = vadd.f32 %v3471, %v3610
  %v3624 = vld [vmem:[%s6 + $0x6b] sm:$0x1]
  %v3625 = vlaneseq
  %v3626 = vshrl.u32 %v3625, 7
  %v3627 = vsub.s32 0, %v3626
  %v3628 = vrot.slane %v3624, %v3627
  %v3629 = vmul.f32 %v3424, %v3628
  %v3630 = vmul.f32 %v3426, %v3628
  %v3631 = vmul.f32 %v3428, %v3628
  %v3632 = vmul.f32 %v3434, %v3628
  %v3633 = vmul.f32 %v3436, %v3628
  %v3634 = vmul.f32 %v3438, %v3628
  %v3641 = vrot.slane %v3629, 7
  %v3642 = vrot.slane %v3630, 7
  %v3643 = vsel %vm82, %v3641, %v3642
  %v3644 = vrot.slane %v3631, 7
  %v3645 = vsel %vm82, %v3642, %v3644
  %v3646 = vrot.slane %v3632, 7
  %v3647 = vrot.slane %v3633, 7
  %v3648 = vsel %vm82, %v3646, %v3647
  %v3649 = vrot.slane %v3634, 7
  %v3650 = vsel %vm82, %v3647, %v3649
  %v3655 = vadd.f32 %v3503, %v3643
  %v3656 = vadd.f32 %v3504, %v3645
  %v3657 = vadd.f32 %v3505, %v3648
  %v3658 = vadd.f32 %v3506, %v3650
  %v3659 = vld [vmem:[%s6 + $0x72] sm:$0x1]
  %v3660 = vlaneseq
  %v3661 = vshrl.u32 %v3660, 7
  %v3662 = vsub.s32 0, %v3661
  %v3663 = vrot.slane %v3659, %v3662
  %v3664 = vmul.f32 %v3426, %v3663
  %v3665 = vmul.f32 %v3428, %v3663
  %v3666 = vmul.f32 %v3430, %v3663
  %v3667 = vmul.f32 %v3436, %v3663
  %v3668 = vmul.f32 %v3438, %v3663
  %v3669 = vmul.f32 %v3440, %v3663
  %v3676 = vrot.slane %v3664, 7
  %v3677 = vrot.slane %v3665, 7
  %v3678 = vsel %vm82, %v3676, %v3677
  %v3679 = vrot.slane %v3666, 7
  %v3680 = vsel %vm82, %v3677, %v3679
  %v3681 = vrot.slane %v3667, 7
  %v3682 = vrot.slane %v3668, 7
  %v3683 = vsel %vm82, %v3681, %v3682
  %v3684 = vrot.slane %v3669, 7
  %v3685 = vsel %vm82, %v3682, %v3684
  %v3692 = vadd.f32 %v3540, %v3676
  %v3693 = vadd.f32 %v3541, %v3678
  %v3694 = vadd.f32 %v3542, %v3680
  %v3695 = vadd.f32 %v3543, %v3681
  %v3696 = vadd.f32 %v3544, %v3683
  %v3697 = vadd.f32 %v3545, %v3685
  %3698 = vrot.lane.b32.xlu0 %v2197, 56
  %v3699 = vpop.permute.xlu0 %3698
  %3700 = vrot.lane.b32.xlu0 %v2198, 56
  %v3701 = vpop.permute.xlu0 %3700
  %3702 = vrot.lane.b32.xlu0 %v2199, 56
  %v3703 = vpop.permute.xlu0 %3702
  %3704 = vrot.lane.b32.xlu0 %v2200, 56
  %v3705 = vpop.permute.xlu0 %3704
  %3706 = vrot.lane.b32.xlu0 %v2201, 56
  %v3707 = vpop.permute.xlu0 %3706
  %3708 = vrot.lane.b32.xlu0 %v2202, 56
  %v3709 = vpop.permute.xlu0 %3708
  %3710 = vrot.lane.b32.xlu0 %v2203, 56
  %v3711 = vpop.permute.xlu0 %3710
  %3712 = vrot.lane.b32.xlu0 %v2204, 56
  %v3713 = vpop.permute.xlu0 %3712
  %3714 = vrot.lane.b32.xlu0 %v2205, 56
  %v3715 = vpop.permute.xlu0 %3714
  %3716 = vrot.lane.b32.xlu0 %v2206, 56
  %v3717 = vpop.permute.xlu0 %3716
  %v3718 = vld [vmem:[%s6 + $0x49] sm:$0x1]
  %v3719 = vlaneseq
  %v3720 = vshrl.u32 %v3719, 7
  %v3721 = vsub.s32 0, %v3720
  %v3722 = vrot.slane %v3718, %v3721
  %v3723 = vmul.f32 %v3699, %v3722
  %v3724 = vmul.f32 %v3701, %v3722
  %v3725 = vmul.f32 %v3709, %v3722
  %v3726 = vmul.f32 %v3711, %v3722
  %v3731 = vrot.slane %v3723, 2
  %v3732 = vrot.slane %v3724, 2
  %v3733 = vsel %vm904, %v3731, %v3732
  %v3734 = vrot.slane %v3725, 2
  %v3735 = vrot.slane %v3726, 2
  %v3736 = vsel %vm904, %v3734, %v3735
  %v3743 = vadd.f32 %v3579, %v3731
  %v3744 = vadd.f32 %v3580, %v3733
  %v3745 = vadd.f32 %v3581, %v3732
  %v3746 = vadd.f32 %v3582, %v3734
  %v3747 = vadd.f32 %v3583, %v3736
  %v3748 = vadd.f32 %v3584, %v3735
  %v3749 = vld [vmem:[%s6 + $0x50] sm:$0x1]
  %v3750 = vlaneseq
  %v3751 = vshrl.u32 %v3750, 7
  %v3752 = vsub.s32 0, %v3751
  %v3753 = vrot.slane %v3749, %v3752
  %v3754 = vmul.f32 %v3699, %v3753
  %v3755 = vmul.f32 %v3701, %v3753
  %v3756 = vmul.f32 %v3703, %v3753
  %v3757 = vmul.f32 %v3709, %v3753
  %v3758 = vmul.f32 %v3711, %v3753
  %v3759 = vmul.f32 %v3713, %v3753
  %v3766 = vrot.slane %v3754, 2
  %v3767 = vrot.slane %v3755, 2
  %v3768 = vsel %vm904, %v3766, %v3767
  %v3769 = vrot.slane %v3756, 2
  %v3770 = vsel %vm904, %v3767, %v3769
  %v3771 = vrot.slane %v3757, 2
  %v3772 = vrot.slane %v3758, 2
  %v3773 = vsel %vm904, %v3771, %v3772
  %v3774 = vrot.slane %v3759, 2
  %v3775 = vsel %vm904, %v3772, %v3774
  %v3782 = vadd.f32 %v3618, %v3768
  %v3783 = vadd.f32 %v3619, %v3770
  %v3784 = vadd.f32 %v3620, %v3769
  %v3785 = vadd.f32 %v3621, %v3773
  %v3786 = vadd.f32 %v3622, %v3775
  %v3787 = vadd.f32 %v3623, %v3774
  %v3788 = vld [vmem:[%s6 + $0x57] sm:$0x1]
  %v3789 = vlaneseq
  %v3790 = vshrl.u32 %v3789, 7
  %v3791 = vsub.s32 0, %v3790
  %v3792 = vrot.slane %v3788, %v3791
  %v3793 = vmul.f32 %v3699, %v3792
  %v3794 = vmul.f32 %v3701, %v3792
  %v3795 = vmul.f32 %v3703, %v3792
  %v3796 = vmul.f32 %v3709, %v3792
  %v3797 = vmul.f32 %v3711, %v3792
  %v3798 = vmul.f32 %v3713, %v3792
  %v3805 = vrot.slane %v3793, 6
  %v3806 = vrot.slane %v3794, 6
  %v3807 = vsel %vm829, %v3805, %v3806
  %v3808 = vrot.slane %v3795, 6
  %v3809 = vsel %vm829, %v3806, %v3808
  %v3810 = vrot.slane %v3796, 6
  %v3811 = vrot.slane %v3797, 6
  %v3812 = vsel %vm829, %v3810, %v3811
  %v3813 = vrot.slane %v3798, 6
  %v3814 = vsel %vm829, %v3811, %v3813
  %v3819 = vadd.f32 %v3655, %v3807
  %v3820 = vadd.f32 %v3656, %v3809
  %v3821 = vadd.f32 %v3657, %v3812
  %v3822 = vadd.f32 %v3658, %v3814
  %v3823 = vld [vmem:[%s6 + $0x5e] sm:$0x1]
  %v3824 = vlaneseq
  %v3825 = vshrl.u32 %v3824, 7
  %v3826 = vsub.s32 0, %v3825
  %v3827 = vrot.slane %v3823, %v3826
  %v3828 = vmul.f32 %v3701, %v3827
  %v3829 = vmul.f32 %v3703, %v3827
  %v3830 = vmul.f32 %v3705, %v3827
  %v3831 = vmul.f32 %v3711, %v3827
  %v3832 = vmul.f32 %v3713, %v3827
  %v3833 = vmul.f32 %v3715, %v3827
  %v3840 = vrot.slane %v3828, 6
  %v3841 = vrot.slane %v3829, 6
  %v3842 = vsel %vm829, %v3840, %v3841
  %v3843 = vrot.slane %v3830, 6
  %v3844 = vsel %vm829, %v3841, %v3843
  %v3845 = vrot.slane %v3831, 6
  %v3846 = vrot.slane %v3832, 6
  %v3847 = vsel %vm829, %v3845, %v3846
  %v3848 = vrot.slane %v3833, 6
  %v3849 = vsel %vm829, %v3846, %v3848
  %v3856 = vadd.f32 %v3692, %v3840
  %v3857 = vadd.f32 %v3693, %v3842
  %v3858 = vadd.f32 %v3694, %v3844
  %v3859 = vadd.f32 %v3695, %v3845
  %v3860 = vadd.f32 %v3696, %v3847
  %v3861 = vadd.f32 %v3697, %v3849
  %v3862 = vld [vmem:[%s6 + $0x65] sm:$0x1]
  %v3863 = vlaneseq
  %v3864 = vshrl.u32 %v3863, 7
  %v3865 = vsub.s32 0, %v3864
  %v3866 = vrot.slane %v3862, %v3865
  %v3867 = vmul.f32 %v3701, %v3866
  %v3868 = vmul.f32 %v3703, %v3866
  %v3869 = vmul.f32 %v3705, %v3866
  %v3870 = vmul.f32 %v3711, %v3866
  %v3871 = vmul.f32 %v3713, %v3866
  %v3872 = vmul.f32 %v3715, %v3866
  %v3879 = vrot.slane %v3867, 6
  %v3880 = vrot.slane %v3868, 6
  %v3881 = vsel %vm829, %v3879, %v3880
  %v3882 = vrot.slane %v3869, 6
  %v3883 = vsel %vm829, %v3880, %v3882
  %v3884 = vrot.slane %v3870, 6
  %v3885 = vrot.slane %v3871, 6
  %v3886 = vsel %vm829, %v3884, %v3885
  %v3887 = vrot.slane %v3872, 6
  %v3888 = vsel %vm829, %v3885, %v3887
  %v3895 = vadd.f32 %v3743, %v3879
  %v3896 = vadd.f32 %v3744, %v3881
  %v3897 = vadd.f32 %v3745, %v3883
  %v3898 = vadd.f32 %v3746, %v3884
  %v3899 = vadd.f32 %v3747, %v3886
  %v3900 = vadd.f32 %v3748, %v3888
  %v3901 = vld [vmem:[%s6 + $0x6c] sm:$0x1]
  %v3902 = vlaneseq
  %v3903 = vshrl.u32 %v3902, 7
  %v3904 = vsub.s32 0, %v3903
  %v3905 = vrot.slane %v3901, %v3904
  %v3906 = vmul.f32 %v3701, %v3905
  %v3907 = vmul.f32 %v3703, %v3905
  %v3908 = vmul.f32 %v3705, %v3905
  %v3909 = vmul.f32 %v3711, %v3905
  %v3910 = vmul.f32 %v3713, %v3905
  %v3911 = vmul.f32 %v3715, %v3905
  %v3918 = vrot.slane %v3906, 6
  %v3919 = vrot.slane %v3907, 6
  %v3920 = vsel %vm829, %v3918, %v3919
  %v3921 = vrot.slane %v3908, 6
  %v3922 = vsel %vm829, %v3919, %v3921
  %v3923 = vrot.slane %v3909, 6
  %v3924 = vrot.slane %v3910, 6
  %v3925 = vsel %vm829, %v3923, %v3924
  %v3926 = vrot.slane %v3911, 6
  %v3927 = vsel %vm829, %v3924, %v3926
  %v3934 = vadd.f32 %v3782, %v3920
  %v3935 = vadd.f32 %v3783, %v3922
  %v3936 = vadd.f32 %v3784, %v3921
  %v3937 = vadd.f32 %v3785, %v3925
  %v3938 = vadd.f32 %v3786, %v3927
  %v3939 = vadd.f32 %v3787, %v3926
  %v3940 = vld [vmem:[%s6 + $0x73] sm:$0x1]
  %v3941 = vlaneseq
  %v3942 = vshrl.u32 %v3941, 7
  %v3943 = vsub.s32 0, %v3942
  %v3944 = vrot.slane %v3940, %v3943
  %v3945 = vmul.f32 %v3703, %v3944
  %v3946 = vmul.f32 %v3705, %v3944
  %v3947 = vmul.f32 %v3707, %v3944
  %v3948 = vmul.f32 %v3713, %v3944
  %v3949 = vmul.f32 %v3715, %v3944
  %v3950 = vmul.f32 %v3717, %v3944
  %v3957 = vrot.slane %v3945, 2
  %v3958 = vrot.slane %v3946, 2
  %v3959 = vsel %vm904, %v3957, %v3958
  %v3960 = vrot.slane %v3947, 2
  %v3961 = vsel %vm904, %v3958, %v3960
  %v3962 = vrot.slane %v3948, 2
  %v3963 = vrot.slane %v3949, 2
  %v3964 = vsel %vm904, %v3962, %v3963
  %v3965 = vrot.slane %v3950, 2
  %v3966 = vsel %vm904, %v3963, %v3965
  %v3971 = vadd.f32 %v3819, %v3959
  %v3972 = vadd.f32 %v3820, %v3961
  %v3973 = vadd.f32 %v3821, %v3964
  %v3974 = vadd.f32 %v3822, %v3966
  %v3981 = vrot.slane %v3856, 3
  %v3982 = vrot.slane %v3857, 3
  %v3983 = vsel %vm758, %v3981, %v3982
  %v3984 = vrot.slane %v3858, 3
  %v3985 = vsel %vm758, %v3982, %v3984
  %v3986 = vrot.slane %v3859, 3
  %v3987 = vrot.slane %v3860, 3
  %v3988 = vsel %vm758, %v3986, %v3987
  %v3989 = vrot.slane %v3861, 3
  %v3990 = vsel %vm758, %v3987, %v3989
  %v3995 = vadd.f32 %v3971, %v3983
  %v3996 = vadd.f32 %v3972, %v3985
  %v3997 = vadd.f32 %v3973, %v3988
  %v3998 = vadd.f32 %v3974, %v3990
  %v4005 = vrot.slane %v3895, 6
  %v4006 = vrot.slane %v3896, 6
  %v4007 = vsel %vm829, %v4005, %v4006
  %v4008 = vrot.slane %v3897, 6
  %v4009 = vsel %vm829, %v4006, %v4008
  %v4010 = vrot.slane %v3898, 6
  %v4011 = vrot.slane %v3899, 6
  %v4012 = vsel %vm829, %v4010, %v4011
  %v4013 = vrot.slane %v3900, 6
  %v4014 = vsel %vm829, %v4011, %v4013
  %v4019 = vadd.f32 %v3995, %v4007
  %v4020 = vadd.f32 %v3996, %v4009
  %v4021 = vadd.f32 %v3997, %v4012
  %v4022 = vadd.f32 %v3998, %v4014
  %v4029 = vrot.slane %v3934, 1
  %v4030 = vrot.slane %v3935, 1
  %v4031 = vsel %vm1062, %v4029, %v4030
  %v4032 = vrot.slane %v3936, 1
  %v4033 = vsel %vm1062, %v4030, %v4032
  %v4034 = vrot.slane %v3937, 1
  %v4035 = vrot.slane %v3938, 1
  %v4036 = vsel %vm1062, %v4034, %v4035
  %v4037 = vrot.slane %v3939, 1
  %v4038 = vsel %vm1062, %v4035, %v4037
  %v4043 = vadd.f32 %v4019, %v4031
  %v4044 = vadd.f32 %v4020, %v4033
  %v4045 = vadd.f32 %v4021, %v4036
  %v4046 = vadd.f32 %v4022, %v4038
  %v4047 = vld [vmem:[#allocation2 + $0x10] sm:$0xff]
  %v4048 = vld [vmem:[#allocation2 + $0x18] sm:$0xff]
  %v4049 = vld [vmem:[#allocation2 + $0x40] sm:$0xff]
  %v4050 = vld [vmem:[#allocation2 + $0x48] sm:$0xff]
  %v4051 = vld [vmem:[%s6 + $0x8] sm:$0x1]
  %v4052 = vlaneseq
  %v4053 = vshrl.u32 %v4052, 7
  %v4054 = vsub.s32 0, %v4053
  %v4055 = vrot.slane %v4051, %v4054
  %v4056 = vmul.f32 %v4047, %v4055
  %v4057 = vmul.f32 %v4048, %v4055
  %v4058 = vmul.f32 %v4049, %v4055
  %v4059 = vmul.f32 %v4050, %v4055
  %v4060 = vadd.f32 %v4056, %v2192
  %v4061 = vadd.f32 %v4057, %v2193
  %v4062 = vadd.f32 %v4058, %v2194
  %v4063 = vadd.f32 %v4059, %v2195
  %v4064 = vadd.f32 %v4060, %v4043
  %v4065 = vadd.f32 %v4061, %v4044
  %v4066 = vadd.f32 %v4062, %v4045
  %v4067 = vadd.f32 %v4063, %v4046
  %s4068 = scalar_lea.vmem %s1, 128
  %v4069 = vld [vmem:[%s4068] sm:$0xf]
  %v4070 = vld [vmem:[%s4068 + $0x4] sm:$0xf]
  %v4071 = vld [vmem:[%s4068 + $0x8] sm:$0xf]
  %v4072 = vld [vmem:[%s4068 + $0xc] sm:$0xf]
  %v4073 = vld [vmem:[%s4068 + $0x10] sm:$0xf]
  %v4074 = vld [vmem:[%s4068 + $0x14] sm:$0xf]
  %v4075 = vld [vmem:[%s4068 + $0x18] sm:$0xf]
  %v4076 = vld [vmem:[%s4068 + $0x1c] sm:$0xf]
  %v4077 = vld [vmem:[%s4068 + $0x20] sm:$0xf]
  %v4078 = vld [vmem:[%s4068 + $0x24] sm:$0xf]
  %v4079 = vld [vmem:[%s4068 + $0x28] sm:$0xf]
  %v4080 = vld [vmem:[%s4068 + $0x2c] sm:$0xf]
  %v4081 = vld [vmem:[%s4068 + $0x30] sm:$0xf]
  %v4082 = vld [vmem:[%s4068 + $0x34] sm:$0xf]
  %v4083 = vld [vmem:[%s4068 + $0x38] sm:$0xf]
  %v4084 = vld [vmem:[%s4068 + $0x3c] sm:$0xf]
  %v4085 = vld [vmem:[%s6 + $0x9] sm:$0x1]
  %v4086 = vpack.c.bf16 %v4065, %v4064
  %v4087 = vpack.c.bf16 %v4067, %v4066
  %v4104 = vunpack.c.l.b16 %v4069
  %v4105 = vunpack.c.l.b16 %v4070
  %v4106 = vunpack.c.l.b16 %v4071
  %v4107 = vunpack.c.l.b16 %v4072
  %v4108 = vunpack.c.l.b16 %v4073
  %v4109 = vunpack.c.l.b16 %v4074
  %v4110 = vunpack.c.l.b16 %v4075
  %v4111 = vunpack.c.l.b16 %v4076
  %v4112 = vunpack.c.l.b16 %v4077
  %v4113 = vunpack.c.l.b16 %v4078
  %v4114 = vunpack.c.l.b16 %v4079
  %v4115 = vunpack.c.l.b16 %v4080
  %v4116 = vunpack.c.l.b16 %v4081
  %v4117 = vunpack.c.l.b16 %v4082
  %v4118 = vunpack.c.l.b16 %v4083
  %v4119 = vunpack.c.l.b16 %v4084
  %v4120 = vpack.c.b16 %v4105, %v4104
  %v4121 = vpack.c.b16 %v4107, %v4106
  %v4122 = vpack.c.b16 %v4109, %v4108
  %v4123 = vpack.c.b16 %v4111, %v4110
  %v4124 = vpack.c.b16 %v4113, %v4112
  %v4125 = vpack.c.b16 %v4115, %v4114
  %v4126 = vpack.c.b16 %v4117, %v4116
  %v4127 = vpack.c.b16 %v4119, %v4118
  %4136 = vmatprep.subr.bf16.mxu0 0
  %4137 = vmatpush1.bf16.msra.mxu0 %v4120
  %4138 = vmatprep.subr.bf16.mxu0 0
  %4139 = vmatpush1.bf16.msra.mxu0 %v4121
  %4140 = vmatprep.subr.bf16.mxu0 0
  %4141 = vmatpush1.bf16.msra.mxu0 %v4122
  %4142 = vmatprep.subr.bf16.mxu0 0
  %4143 = vmatpush1.bf16.msra.mxu0 %v4123
  %4144 = vmatprep.subr.bf16.mxu0 0
  %4145 = vmatpush1.bf16.msra.mxu0 %v4124
  %4146 = vmatprep.subr.bf16.mxu0 0
  %4147 = vmatpush1.bf16.msra.mxu0 %v4125
  %4148 = vmatprep.subr.bf16.mxu0 0
  %4149 = vmatpush1.bf16.msra.mxu0 %v4126
  %4150 = vmatprep.subr.bf16.mxu0 0
  %4151 = vmatpush1.bf16.msra.mxu0 %v4127
  %4152 = vmatprep.subr.bf16.mxu0 0
  %4153 = vmatpush1.bf16.msra.mxu0 0
  %4154 = vmatprep.subr.bf16.mxu0 0
  %4155 = vmatpush1.bf16.msra.mxu0 0
  %4156 = vmatprep.subr.bf16.mxu0 0
  %4157 = vmatpush1.bf16.msra.mxu0 0
  %4158 = vmatprep.subr.bf16.mxu0 0
  %4159 = vmatpush1.bf16.msra.mxu0 0
  %4160 = vmatprep.subr.bf16.mxu0 0
  %4161 = vmatpush1.bf16.msra.mxu0 0
  %4162 = vmatprep.subr.bf16.mxu0 0
  %4163 = vmatpush1.bf16.msra.mxu0 0
  %4164 = vmatprep.subr.bf16.mxu0 0
  %4165 = vmatpush1.bf16.msra.mxu0 0
  %4166 = vmatprep.subr.bf16.mxu0 0
  %4167 = vmatpush1.bf16.msra.mxu0 0
  %4168 = vmatprep.mubr.bf16.mxu0 0
  %4169 = vmatmul.mubr.bf16.gmra.mrb[0].mxu0 %v4086
  %v4170 = vpop.f32.mrb[0].mxu0
  %v4171 = vadd.f32 0.0, %v4170
  %v4172 = vpop.f32.mrb[0].mxu0
  %v4173 = vpop.f32.mrb[0].mxu0
  %v4174 = vadd.f32 0.0, %v4173
  %v4175 = vpop.f32.mrb[0].mxu0
  %4176 = vmatprep.mubr.bf16.mxu0 0
  %4177 = vmatmul.mubr.bf16.gmra.mrb[0].mxu0 %v4087
  %v4178 = vpop.f32.mrb[0].mxu0
  %v4179 = vadd.f32 0.0, %v4178
  %v4180 = vpop.f32.mrb[0].mxu0
  %v4181 = vpop.f32.mrb[0].mxu0
  %v4182 = vadd.f32 0.0, %v4181
  %v4183 = vpop.f32.mrb[0].mxu0
  %4184 = vdwg.mxu0
  %v4185 = vlaneseq
  %v4186 = vshrl.u32 %v4185, 7
  %v4187 = vsub.s32 0, %v4186
  %v4188 = vrot.slane %v4085, %v4187
  %v4189 = vadd.f32 %v4171, %v4188
  %v4190 = vadd.f32 %v4174, %v4188
  %v4191 = vadd.f32 %v4179, %v4188
  %v4192 = vadd.f32 %v4182, %v4188
  %v4193 = vmul.f32 %v488, 0.5
  %v4194 = vmul.f32 %v489, 0.5
  %v4195 = vmul.f32 %v490, 0.5
  %v4196 = vmul.f32 %v491, 0.5
  %v4197 = vtanh.pop %v4193
  %v4198 = vtanh.pop %v4194
  %v4199 = vtanh.pop %v4195
  %v4200 = vtanh.pop %v4196
  %v4201 = vadd.f32 %v4197, 1.0
  %v4202 = vadd.f32 %v4198, 1.0
  %v4203 = vadd.f32 %v4199, 1.0
  %v4204 = vadd.f32 %v4200, 1.0
  %v4205 = vmul.f32 %v4201, 0.5
  %v4206 = vmul.f32 %v4202, 0.5
  %v4207 = vmul.f32 %v4203, 0.5
  %v4208 = vmul.f32 %v4204, 0.5
  %v4209 = vmul.f32 %v488, %v4205
  %v4210 = vmul.f32 %v489, %v4206
  %v4211 = vmul.f32 %v490, %v4207
  %v4212 = vmul.f32 %v491, %v4208
  %v4213 = vmul.f32 %v4189, 0.5
  %v4214 = vmul.f32 %v4190, 0.5
  %v4215 = vmul.f32 %v4191, 0.5
  %v4216 = vmul.f32 %v4192, 0.5
  %v4217 = vtanh.pop %v4213
  %v4218 = vtanh.pop %v4214
  %v4219 = vtanh.pop %v4215
  %v4220 = vtanh.pop %v4216
  %v4221 = vadd.f32 %v4217, 1.0
  %v4222 = vadd.f32 %v4218, 1.0
  %v4223 = vadd.f32 %v4219, 1.0
  %v4224 = vadd.f32 %v4220, 1.0
  %v4225 = vmul.f32 %v4221, 0.5
  %v4226 = vmul.f32 %v4222, 0.5
  %v4227 = vmul.f32 %v4223, 0.5
  %v4228 = vmul.f32 %v4224, 0.5
  %v4229 = vmul.f32 %v4189, %v4225
  %v4230 = vmul.f32 %v4190, %v4226
  %v4231 = vmul.f32 %v4191, %v4227
  %v4232 = vmul.f32 %v4192, %v4228
  %v4233 = vmul.f32 %v4209, %v4229
  %v4234 = vmul.f32 %v4210, %v4230
  %v4235 = vmul.f32 %v4211, %v4231
  %v4236 = vmul.f32 %v4212, %v4232
  %s4237 = scalar_lea.vmem %s1, 192
  %v4238 = vld [vmem:[%s4237] sm:$0xf]
  %v4239 = vld [vmem:[%s4237 + $0x4] sm:$0xf]
  %v4240 = vld [vmem:[%s4237 + $0x8] sm:$0xf]
  %v4241 = vld [vmem:[%s4237 + $0xc] sm:$0xf]
  %v4242 = vld [vmem:[%s4237 + $0x10] sm:$0xf]
  %v4243 = vld [vmem:[%s4237 + $0x14] sm:$0xf]
  %v4244 = vld [vmem:[%s4237 + $0x18] sm:$0xf]
  %v4245 = vld [vmem:[%s4237 + $0x1c] sm:$0xf]
  %v4246 = vld [vmem:[%s4237 + $0x20] sm:$0xf]
  %v4247 = vld [vmem:[%s4237 + $0x24] sm:$0xf]
  %v4248 = vld [vmem:[%s4237 + $0x28] sm:$0xf]
  %v4249 = vld [vmem:[%s4237 + $0x2c] sm:$0xf]
  %v4250 = vld [vmem:[%s4237 + $0x30] sm:$0xf]
  %v4251 = vld [vmem:[%s4237 + $0x34] sm:$0xf]
  %v4252 = vld [vmem:[%s4237 + $0x38] sm:$0xf]
  %v4253 = vld [vmem:[%s4237 + $0x3c] sm:$0xf]
  %v4254 = vld [vmem:[%s6 + $0xa] sm:$0x1]
  %v4255 = vpack.c.bf16 %v4234, %v4233
  %v4256 = vpack.c.bf16 %v4236, %v4235
  %v4273 = vunpack.c.l.b16 %v4238
  %v4274 = vunpack.c.l.b16 %v4239
  %v4275 = vunpack.c.l.b16 %v4240
  %v4276 = vunpack.c.l.b16 %v4241
  %v4277 = vunpack.c.l.b16 %v4242
  %v4278 = vunpack.c.l.b16 %v4243
  %v4279 = vunpack.c.l.b16 %v4244
  %v4280 = vunpack.c.l.b16 %v4245
  %v4281 = vunpack.c.l.b16 %v4246
  %v4282 = vunpack.c.l.b16 %v4247
  %v4283 = vunpack.c.l.b16 %v4248
  %v4284 = vunpack.c.l.b16 %v4249
  %v4285 = vunpack.c.l.b16 %v4250
  %v4286 = vunpack.c.l.b16 %v4251
  %v4287 = vunpack.c.l.b16 %v4252
  %v4288 = vunpack.c.l.b16 %v4253
  %v4289 = vpack.c.b16 %v4274, %v4273
  %v4290 = vpack.c.b16 %v4276, %v4275
  %v4291 = vpack.c.b16 %v4278, %v4277
  %v4292 = vpack.c.b16 %v4280, %v4279
  %v4293 = vpack.c.b16 %v4282, %v4281
  %v4294 = vpack.c.b16 %v4284, %v4283
  %v4295 = vpack.c.b16 %v4286, %v4285
  %v4296 = vpack.c.b16 %v4288, %v4287
  %4305 = vmatprep.subr.bf16.mxu0 0
  %4306 = vmatpush1.bf16.msra.mxu0 %v4289
  %4307 = vmatprep.subr.bf16.mxu0 0
  %4308 = vmatpush1.bf16.msra.mxu0 %v4290
  %4309 = vmatprep.subr.bf16.mxu0 0
  %4310 = vmatpush1.bf16.msra.mxu0 %v4291
  %4311 = vmatprep.subr.bf16.mxu0 0
  %4312 = vmatpush1.bf16.msra.mxu0 %v4292
  %4313 = vmatprep.subr.bf16.mxu0 0
  %4314 = vmatpush1.bf16.msra.mxu0 %v4293
  %4315 = vmatprep.subr.bf16.mxu0 0
  %4316 = vmatpush1.bf16.msra.mxu0 %v4294
  %4317 = vmatprep.subr.bf16.mxu0 0
  %4318 = vmatpush1.bf16.msra.mxu0 %v4295
  %4319 = vmatprep.subr.bf16.mxu0 0
  %4320 = vmatpush1.bf16.msra.mxu0 %v4296
  %4321 = vmatprep.subr.bf16.mxu0 0
  %4322 = vmatpush1.bf16.msra.mxu0 0
  %4323 = vmatprep.subr.bf16.mxu0 0
  %4324 = vmatpush1.bf16.msra.mxu0 0
  %4325 = vmatprep.subr.bf16.mxu0 0
  %4326 = vmatpush1.bf16.msra.mxu0 0
  %4327 = vmatprep.subr.bf16.mxu0 0
  %4328 = vmatpush1.bf16.msra.mxu0 0
  %4329 = vmatprep.subr.bf16.mxu0 0
  %4330 = vmatpush1.bf16.msra.mxu0 0
  %4331 = vmatprep.subr.bf16.mxu0 0
  %4332 = vmatpush1.bf16.msra.mxu0 0
  %4333 = vmatprep.subr.bf16.mxu0 0
  %4334 = vmatpush1.bf16.msra.mxu0 0
  %4335 = vmatprep.subr.bf16.mxu0 0
  %4336 = vmatpush1.bf16.msra.mxu0 0
  %4337 = vmatprep.mubr.bf16.mxu0 0
  %4338 = vmatmul.mubr.bf16.gmra.mrb[0].mxu0 %v4255
  %v4339 = vpop.f32.mrb[0].mxu0
  %v4340 = vadd.f32 0.0, %v4339
  %v4341 = vpop.f32.mrb[0].mxu0
  %v4342 = vpop.f32.mrb[0].mxu0
  %v4343 = vadd.f32 0.0, %v4342
  %v4344 = vpop.f32.mrb[0].mxu0
  %4345 = vmatprep.mubr.bf16.mxu0 0
  %4346 = vmatmul.mubr.bf16.gmra.mrb[0].mxu0 %v4256
  %v4347 = vpop.f32.mrb[0].mxu0
  %v4348 = vadd.f32 0.0, %v4347
  %v4349 = vpop.f32.mrb[0].mxu0
  %v4350 = vpop.f32.mrb[0].mxu0
  %v4351 = vadd.f32 0.0, %v4350
  %v4352 = vpop.f32.mrb[0].mxu0
  %4353 = vdwg.mxu0
  %v4354 = vlaneseq
  %v4355 = vshrl.u32 %v4354, 7
  %v4356 = vsub.s32 0, %v4355
  %v4357 = vrot.slane %v4254, %v4356
  %v4358 = vadd.f32 %v4340, %v4357
  %v4359 = vadd.f32 %v4343, %v4357
  %v4360 = vadd.f32 %v4348, %v4357
  %v4361 = vadd.f32 %v4351, %v4357
  %v4362 = vadd.f32 %v4358, %v126
  %v4363 = vadd.f32 %v4359, %v127
  %v4364 = vadd.f32 %v4360, %v128
  %v4365 = vadd.f32 %v4361, %v129
  %v4366 = vld [vmem:[%s6 + $0xb] sm:$0x1]
  %v4367 = vlaneseq
  %v4368 = vshrl.u32 %v4367, 7
  %v4369 = vsub.s32 0, %v4368
  %v4370 = vrot.slane %v4366, %v4369
  %v4371 = vmul.f32 %v4370, %v4362
  %v4372 = vmul.f32 %v4370, %v4363
  %v4373 = vmul.f32 %v4370, %v4364
  %v4374 = vmul.f32 %v4370, %v4365
  %v4375 = vadd.f32 %v30, %v4371
  %v4376 = vadd.f32 %v31, %v4372
  %v4377 = vadd.f32 %v32, %v4373
  %v4378 = vadd.f32 %v33, %v4374
  %v4379 = vld [vmem:[%s6 + $0xc] sm:$0x1]
  %v4380 = vld [vmem:[%s6 + $0xd] sm:$0x1]
  %v4381 = vadd.f32 %v4375, %v4376
  %v4382 = vadd.f32 %v4381, %v4377
  %v4383 = vadd.f32 %v4382, %v4378
  %v4384 = vrot.slane %v4383, 4
  %v4385 = vadd.f32 %v4383, %v4384
  %v4386 = vrot.slane %v4385, 2
  %v4387 = vadd.f32 %v4385, %v4386
  %v4388 = vrot.slane %v4387, 1
  %v4389 = vadd.f32 %v4387, %v4388
  %v4390 = vmul.f32 %v4375, %v4375
  %v4391 = vmul.f32 %v4376, %v4376
  %v4392 = vmul.f32 %v4377, %v4377
  %v4393 = vmul.f32 %v4378, %v4378
  %v4394 = vadd.f32 %v4390, %v4391
  %v4395 = vadd.f32 %v4394, %v4392
  %v4396 = vadd.f32 %v4395, %v4393
  %v4397 = vrot.slane %v4396, 4
  %v4398 = vadd.f32 %v4396, %v4397
  %v4399 = vrot.slane %v4398, 2
  %v4400 = vadd.f32 %v4398, %v4399
  %v4401 = vrot.slane %v4400, 1
  %v4402 = vadd.f32 %v4400, %v4401
  %v4403 = vsel %vm82, %v4389, %v4402
  %4404 = vrot.lane.b32.xlu0 %v4403, 8
  %v4405 = vpop.permute.xlu0 %4404
  %v4406 = vadd.f32 %v4403, %v4405
  %4407 = vrot.lane.b32.xlu0 %v4406, 16
  %v4408 = vpop.permute.xlu0 %4407
  %v4409 = vadd.f32 %v4406, %v4408
  %4410 = vrot.lane.b32.xlu0 %v4409, 32
  %v4411 = vpop.permute.xlu0 %4410
  %v4412 = vadd.f32 %v4409, %v4411
  %4413 = vrot.lane.b32.xlu0 %v4412, 64
  %v4414 = vpop.permute.xlu0 %4413
  %v4415 = vadd.f32 %v4412, %v4414
  %v4416 = vmul.f32 %v4415, 0.001953125
  %v4417 = vmul.f32 %v4416, %v4416
  %v4419 = vrot.slane %v4417, 7
  %v4421 = vsub.f32 %v4416, %v4419
  %v4422 = vmax.f32 %v4421, 0.0
  %v4423 = vadd.f32 %v4422, 1e-05
  %v4424 = vrsqrt.pop %v4423
  %v4426 = vrot.slane %v4379, 7
  %v4428 = vmul.f32 %v4424, %v4426
  %v4429 = vlaneseq
  %v4430 = vshrl.u32 %v4429, 7
  %v4431 = vsub.s32 1, %v4430
  %v4432 = vrot.slane %v4428, %v4431
  %v4433 = vmul.f32 %v4375, %v4432
  %v4434 = vmul.f32 %v4376, %v4432
  %v4435 = vmul.f32 %v4377, %v4432
  %v4436 = vmul.f32 %v4378, %v4432
  %v4438 = vrot.slane %v4428, 1
  %v4440 = vmul.f32 %v4416, %v4438
  %v4441 = vsub.f32 %v4380, %v4440
  %v4442 = vlaneseq
  %v4443 = vshrl.u32 %v4442, 7
  %v4444 = vsub.s32 0, %v4443
  %v4445 = vrot.slane %v4441, %v4444
  %v4446 = vadd.f32 %v4433, %v4445
  %v4447 = vadd.f32 %v4434, %v4445
  %v4448 = vadd.f32 %v4435, %v4445
  %v4449 = vadd.f32 %v4436, %v4445
  %v4450 = vld [vmem:[%s2] sm:$0xff]
  %v4451 = vld [vmem:[%s2 + $0x8] sm:$0xff]
  %v4452 = vld [vmem:[%s2 + $0x10] sm:$0xff]
  %v4453 = vld [vmem:[%s2 + $0x18] sm:$0xff]
  %v4454 = vld [vmem:[%s2 + $0x20] sm:$0xff]
  %v4455 = vld [vmem:[%s2 + $0x28] sm:$0xff]
  %v4456 = vld [vmem:[%s2 + $0x30] sm:$0xff]
  %v4457 = vld [vmem:[%s2 + $0x38] sm:$0xff]
  %v4458 = vld [vmem:[%s2 + $0x40] sm:$0xff]
  %v4459 = vld [vmem:[%s2 + $0x48] sm:$0xff]
  %v4460 = vld [vmem:[%s2 + $0x50] sm:$0xff]
  %v4461 = vld [vmem:[%s2 + $0x58] sm:$0xff]
  %v4462 = vld [vmem:[%s2 + $0x60] sm:$0xff]
  %v4463 = vld [vmem:[%s2 + $0x68] sm:$0xff]
  %v4464 = vld [vmem:[%s2 + $0x70] sm:$0xff]
  %v4465 = vld [vmem:[%s2 + $0x78] sm:$0xff]
  %v4466 = vld [vmem:[%s2 + $0x80] sm:$0xff]
  %v4467 = vld [vmem:[%s2 + $0x88] sm:$0xff]
  %v4468 = vld [vmem:[%s2 + $0x90] sm:$0xff]
  %v4469 = vld [vmem:[%s2 + $0x98] sm:$0xff]
  %v4470 = vld [vmem:[%s2 + $0xa0] sm:$0xff]
  %v4471 = vld [vmem:[%s2 + $0xa8] sm:$0xff]
  %v4472 = vld [vmem:[%s2 + $0xb0] sm:$0xff]
  %v4473 = vld [vmem:[%s2 + $0xb8] sm:$0xff]
  %v4474 = vld [vmem:[%s2 + $0xc0] sm:$0xff]
  %v4475 = vld [vmem:[%s2 + $0xc8] sm:$0xff]
  %v4476 = vld [vmem:[%s2 + $0xd0] sm:$0xff]
  %v4477 = vld [vmem:[%s2 + $0xd8] sm:$0xff]
  %v4478 = vld [vmem:[%s2 + $0xe0] sm:$0xff]
  %v4479 = vld [vmem:[%s2 + $0xe8] sm:$0xff]
  %v4480 = vld [vmem:[%s2 + $0xf0] sm:$0xff]
  %v4481 = vld [vmem:[%s2 + $0xf8] sm:$0xff]
  %v4482 = vld [vmem:[%s7] ss:$8 sm:$0xf]
  %v4483 = vpack.c.bf16 %v4447, %v4446
  %v4484 = vpack.c.bf16 %v4449, %v4448
  %v4517 = vunpack.c.l.b16 %v4450
  %v4518 = vunpack.c.h.b16 %v4450
  %v4519 = vunpack.c.l.b16 %v4451
  %v4520 = vunpack.c.h.b16 %v4451
  %v4521 = vunpack.c.l.b16 %v4452
  %v4522 = vunpack.c.h.b16 %v4452
  %v4523 = vunpack.c.l.b16 %v4453
  %v4524 = vunpack.c.h.b16 %v4453
  %v4525 = vunpack.c.l.b16 %v4454
  %v4526 = vunpack.c.h.b16 %v4454
  %v4527 = vunpack.c.l.b16 %v4455
  %v4528 = vunpack.c.h.b16 %v4455
  %v4529 = vunpack.c.l.b16 %v4456
  %v4530 = vunpack.c.h.b16 %v4456
  %v4531 = vunpack.c.l.b16 %v4457
  %v4532 = vunpack.c.h.b16 %v4457
  %v4533 = vunpack.c.l.b16 %v4458
  %v4534 = vunpack.c.h.b16 %v4458
  %v4535 = vunpack.c.l.b16 %v4459
  %v4536 = vunpack.c.h.b16 %v4459
  %v4537 = vunpack.c.l.b16 %v4460
  %v4538 = vunpack.c.h.b16 %v4460
  %v4539 = vunpack.c.l.b16 %v4461
  %v4540 = vunpack.c.h.b16 %v4461
  %v4541 = vunpack.c.l.b16 %v4462
  %v4542 = vunpack.c.h.b16 %v4462
  %v4543 = vunpack.c.l.b16 %v4463
  %v4544 = vunpack.c.h.b16 %v4463
  %v4545 = vunpack.c.l.b16 %v4464
  %v4546 = vunpack.c.h.b16 %v4464
  %v4547 = vunpack.c.l.b16 %v4465
  %v4548 = vunpack.c.h.b16 %v4465
  %v4549 = vunpack.c.l.b16 %v4466
  %v4550 = vunpack.c.h.b16 %v4466
  %v4551 = vunpack.c.l.b16 %v4467
  %v4552 = vunpack.c.h.b16 %v4467
  %v4553 = vunpack.c.l.b16 %v4468
  %v4554 = vunpack.c.h.b16 %v4468
  %v4555 = vunpack.c.l.b16 %v4469
  %v4556 = vunpack.c.h.b16 %v4469
  %v4557 = vunpack.c.l.b16 %v4470
  %v4558 = vunpack.c.h.b16 %v4470
  %v4559 = vunpack.c.l.b16 %v4471
  %v4560 = vunpack.c.h.b16 %v4471
  %v4561 = vunpack.c.l.b16 %v4472
  %v4562 = vunpack.c.h.b16 %v4472
  %v4563 = vunpack.c.l.b16 %v4473
  %v4564 = vunpack.c.h.b16 %v4473
  %v4565 = vunpack.c.l.b16 %v4474
  %v4566 = vunpack.c.h.b16 %v4474
  %v4567 = vunpack.c.l.b16 %v4475
  %v4568 = vunpack.c.h.b16 %v4475
  %v4569 = vunpack.c.l.b16 %v4476
  %v4570 = vunpack.c.h.b16 %v4476
  %v4571 = vunpack.c.l.b16 %v4477
  %v4572 = vunpack.c.h.b16 %v4477
  %v4573 = vunpack.c.l.b16 %v4478
  %v4574 = vunpack.c.h.b16 %v4478
  %v4575 = vunpack.c.l.b16 %v4479
  %v4576 = vunpack.c.h.b16 %v4479
  %v4577 = vunpack.c.l.b16 %v4480
  %v4578 = vunpack.c.h.b16 %v4480
  %v4579 = vunpack.c.l.b16 %v4481
  %v4580 = vunpack.c.h.b16 %v4481
  %v4581 = vpack.c.b16 %v4521, %v4517
  %v4582 = vpack.c.b16 %v4522, %v4518
  %v4583 = vpack.c.b16 %v4523, %v4519
  %v4584 = vpack.c.b16 %v4524, %v4520
  %v4585 = vpack.c.b16 %v4529, %v4525
  %v4586 = vpack.c.b16 %v4530, %v4526
  %v4587 = vpack.c.b16 %v4531, %v4527
  %v4588 = vpack.c.b16 %v4532, %v4528
  %v4589 = vpack.c.b16 %v4537, %v4533
  %v4590 = vpack.c.b16 %v4538, %v4534
  %v4591 = vpack.c.b16 %v4539, %v4535
  %v4592 = vpack.c.b16 %v4540, %v4536
  %v4593 = vpack.c.b16 %v4545, %v4541
  %v4594 = vpack.c.b16 %v4546, %v4542
  %v4595 = vpack.c.b16 %v4547, %v4543
  %v4596 = vpack.c.b16 %v4548, %v4544
  %v4597 = vpack.c.b16 %v4553, %v4549
  %v4598 = vpack.c.b16 %v4554, %v4550
  %v4599 = vpack.c.b16 %v4555, %v4551
  %v4600 = vpack.c.b16 %v4556, %v4552
  %v4601 = vpack.c.b16 %v4561, %v4557
  %v4602 = vpack.c.b16 %v4562, %v4558
  %v4603 = vpack.c.b16 %v4563, %v4559
  %v4604 = vpack.c.b16 %v4564, %v4560
  %v4605 = vpack.c.b16 %v4569, %v4565
  %v4606 = vpack.c.b16 %v4570, %v4566
  %v4607 = vpack.c.b16 %v4571, %v4567
  %v4608 = vpack.c.b16 %v4572, %v4568
  %v4609 = vpack.c.b16 %v4577, %v4573
  %v4610 = vpack.c.b16 %v4578, %v4574
  %v4611 = vpack.c.b16 %v4579, %v4575
  %v4612 = vpack.c.b16 %v4580, %v4576
  %4645 = vmatprep.subr.bf16.mxu0 %v4582
  %4646 = vmatpush1.bf16.msra.mxu0 %v4581
  %4647 = vmatprep.subr.bf16.mxu0 %v4586
  %4648 = vmatpush1.bf16.msra.mxu0 %v4585
  %4649 = vmatprep.subr.bf16.mxu0 %v4590
  %4650 = vmatpush1.bf16.msra.mxu0 %v4589
  %4651 = vmatprep.subr.bf16.mxu0 %v4594
  %4652 = vmatpush1.bf16.msra.mxu0 %v4593
  %4653 = vmatprep.subr.bf16.mxu0 %v4598
  %4654 = vmatpush1.bf16.msra.mxu0 %v4597
  %4655 = vmatprep.subr.bf16.mxu0 %v4602
  %4656 = vmatpush1.bf16.msra.mxu0 %v4601
  %4657 = vmatprep.subr.bf16.mxu0 %v4606
  %4658 = vmatpush1.bf16.msra.mxu0 %v4605
  %4659 = vmatprep.subr.bf16.mxu0 %v4610
  %4660 = vmatpush1.bf16.msra.mxu0 %v4609
  %4661 = vmatprep.subr.bf16.mxu0 0
  %4662 = vmatpush1.bf16.msra.mxu0 0
  %4663 = vmatprep.subr.bf16.mxu0 0
  %4664 = vmatpush1.bf16.msra.mxu0 0
  %4665 = vmatprep.subr.bf16.mxu0 0
  %4666 = vmatpush1.bf16.msra.mxu0 0
  %4667 = vmatprep.subr.bf16.mxu0 0
  %4668 = vmatpush1.bf16.msra.mxu0 0
  %4669 = vmatprep.subr.bf16.mxu0 0
  %4670 = vmatpush1.bf16.msra.mxu0 0
  %4671 = vmatprep.subr.bf16.mxu0 0
  %4672 = vmatpush1.bf16.msra.mxu0 0
  %4673 = vmatprep.subr.bf16.mxu0 0
  %4674 = vmatpush1.bf16.msra.mxu0 0
  %4675 = vmatprep.subr.bf16.mxu0 0
  %4676 = vmatpush1.bf16.msra.mxu0 0
  %4677 = vmatprep.mubr.bf16.mxu0 0
  %4678 = vmatmul.mubr.bf16.gmra.mrb[0].mxu0 %v4483
  %v4679 = vpop.f32.mrb[0].mxu0
  %v4680 = vadd.f32 0.0, %v4679
  %v4681 = vpop.f32.mrb[0].mxu0
  %v4682 = vadd.f32 0.0, %v4681
  %v4683 = vpop.f32.mrb[0].mxu0
  %v4684 = vadd.f32 0.0, %v4683
  %v4685 = vpop.f32.mrb[0].mxu0
  %v4686 = vadd.f32 0.0, %v4685
  %4687 = vmatprep.mubr.bf16.mxu0 0
  %4688 = vmatmul.mubr.bf16.gmra.mrb[0].mxu0 %v4484
  %v4689 = vpop.f32.mrb[0].mxu0
  %v4690 = vadd.f32 0.0, %v4689
  %v4691 = vpop.f32.mrb[0].mxu0
  %v4692 = vadd.f32 0.0, %v4691
  %v4693 = vpop.f32.mrb[0].mxu0
  %v4694 = vadd.f32 0.0, %v4693
  %v4695 = vpop.f32.mrb[0].mxu0
  %v4696 = vadd.f32 0.0, %v4695
  %4697 = vdwg.mxu0
  %4698 = vmatprep.subr.bf16.mxu0 %v4584
  %4699 = vmatpush1.bf16.msra.mxu0 %v4583
  %4700 = vmatprep.subr.bf16.mxu0 %v4588
  %4701 = vmatpush1.bf16.msra.mxu0 %v4587
  %4702 = vmatprep.subr.bf16.mxu0 %v4592
  %4703 = vmatpush1.bf16.msra.mxu0 %v4591
  %4704 = vmatprep.subr.bf16.mxu0 %v4596
  %4705 = vmatpush1.bf16.msra.mxu0 %v4595
  %4706 = vmatprep.subr.bf16.mxu0 %v4600
  %4707 = vmatpush1.bf16.msra.mxu0 %v4599
  %4708 = vmatprep.subr.bf16.mxu0 %v4604
  %4709 = vmatpush1.bf16.msra.mxu0 %v4603
  %4710 = vmatprep.subr.bf16.mxu0 %v4608
  %4711 = vmatpush1.bf16.msra.mxu0 %v4607
  %4712 = vmatprep.subr.bf16.mxu0 %v4612
  %4713 = vmatpush1.bf16.msra.mxu0 %v4611
  %4714 = vmatprep.subr.bf16.mxu0 0
  %4715 = vmatpush1.bf16.msra.mxu0 0
  %4716 = vmatprep.subr.bf16.mxu0 0
  %4717 = vmatpush1.bf16.msra.mxu0 0
  %4718 = vmatprep.subr.bf16.mxu0 0
  %4719 = vmatpush1.bf16.msra.mxu0 0
  %4720 = vmatprep.subr.bf16.mxu0 0
  %4721 = vmatpush1.bf16.msra.mxu0 0
  %4722 = vmatprep.subr.bf16.mxu0 0
  %4723 = vmatpush1.bf16.msra.mxu0 0
  %4724 = vmatprep.subr.bf16.mxu0 0
  %4725 = vmatpush1.bf16.msra.mxu0 0
  %4726 = vmatprep.subr.bf16.mxu0 0
  %4727 = vmatpush1.bf16.msra.mxu0 0
  %4728 = vmatprep.subr.bf16.mxu0 0
  %4729 = vmatpush1.bf16.msra.mxu0 0
  %4730 = vmatprep.mubr.bf16.mxu0 0
  %4731 = vmatmul.mubr.bf16.gmra.mrb[0].mxu0 %v4483
  %v4732 = vpop.f32.mrb[0].mxu0
  %v4733 = vadd.f32 0.0, %v4732
  %v4734 = vpop.f32.mrb[0].mxu0
  %v4735 = vadd.f32 0.0, %v4734
  %v4736 = vpop.f32.mrb[0].mxu0
  %v4737 = vadd.f32 0.0, %v4736
  %v4738 = vpop.f32.mrb[0].mxu0
  %v4739 = vadd.f32 0.0, %v4738
  %4740 = vmatprep.mubr.bf16.mxu0 0
  %4741 = vmatmul.mubr.bf16.gmra.mrb[0].mxu0 %v4484
  %v4742 = vpop.f32.mrb[0].mxu0
  %v4743 = vadd.f32 0.0, %v4742
  %v4744 = vpop.f32.mrb[0].mxu0
  %v4745 = vadd.f32 0.0, %v4744
  %v4746 = vpop.f32.mrb[0].mxu0
  %v4747 = vadd.f32 0.0, %v4746
  %v4748 = vpop.f32.mrb[0].mxu0
  %v4749 = vadd.f32 0.0, %v4748
  %4750 = vdwg.mxu0
  %v4752 = vlaneseq
  %v4753 = vshrl.u32 %v4752, 7
  %v4754 = vsub.s32 0, %v4753
  %v4755 = vrot.slane %v4482, %v4754
  %v4756 = vlaneseq
  %v4757 = vshrl.u32 %v4756, 7
  %v4758 = vsub.s32 1, %v4757
  %v4759 = vrot.slane %v4482, %v4758
  %v4760 = vlaneseq
  %v4761 = vshrl.u32 %v4760, 7
  %v4762 = vsub.s32 2, %v4761
  %v4763 = vrot.slane %v4482, %v4762
  %v4764 = vlaneseq
  %v4765 = vshrl.u32 %v4764, 7
  %v4766 = vsub.s32 3, %v4765
  %v4767 = vrot.slane %v4482, %v4766
  %v4772 = vadd.f32 %v4680, %v4755
  %v4773 = vadd.f32 %v4682, %v4759
  %v4774 = vadd.f32 %v4733, %v4763
  %v4775 = vadd.f32 %v4735, %v4767
  %v4776 = vadd.f32 %v4684, %v4755
  %v4777 = vadd.f32 %v4686, %v4759
  %v4778 = vadd.f32 %v4737, %v4763
  %v4779 = vadd.f32 %v4739, %v4767
  %v4780 = vadd.f32 %v4690, %v4755
  %v4781 = vadd.f32 %v4692, %v4759
  %v4782 = vadd.f32 %v4743, %v4763
  %v4783 = vadd.f32 %v4745, %v4767
  %v4784 = vadd.f32 %v4694, %v4755
  %v4785 = vadd.f32 %v4696, %v4759
  %v4786 = vadd.f32 %v4747, %v4763
  %v4787 = vadd.f32 %v4749, %v4767
  %4788 = vst [vmem:[#allocation3 + $0x20] sm:$0xff] %v4772
  %4789 = vst [vmem:[#allocation3 + $0x28] sm:$0xff] %v4773
  %4790 = vst [vmem:[#allocation3 + $0x30] sm:$0xff] %v4774
  %4791 = vst [vmem:[#allocation3 + $0x38] sm:$0xff] %v4775
  %4792 = vst [vmem:[#allocation3 + $0x40] sm:$0xff] %v4776
  %4793 = vst [vmem:[#allocation3 + $0x48] sm:$0xff] %v4777
  %4794 = vst [vmem:[#allocation3 + $0x50] sm:$0xff] %v4778
  %4795 = vst [vmem:[#allocation3 + $0x58] sm:$0xff] %v4779
  %4796 = vst [vmem:[#allocation3 + $0xa0] sm:$0xff] %v4780
  %4797 = vst [vmem:[#allocation3 + $0xa8] sm:$0xff] %v4781
  %4798 = vst [vmem:[#allocation3 + $0xb0] sm:$0xff] %v4782
  %4799 = vst [vmem:[#allocation3 + $0xb8] sm:$0xff] %v4783
  %4800 = vst [vmem:[#allocation3 + $0xc0] sm:$0xff] %v4784
  %4801 = vst [vmem:[#allocation3 + $0xc8] sm:$0xff] %v4785
  %4802 = vst [vmem:[#allocation3 + $0xd0] sm:$0xff] %v4786
  %4803 = vst [vmem:[#allocation3 + $0xd8] sm:$0xff] %v4787
  %s4804 = scalar_lea.vmem %s7, 1
  %v4805 = vld [vmem:[%s4804] ss:$8 sm:$0xf]
  %v4806 = vld [vmem:[#allocation3] sm:$0x80]
  %v4807 = vld [vmem:[#allocation3 + $0x8] sm:$0x80]
  %v4808 = vld [vmem:[#allocation3 + $0x10] sm:$0x80]
  %v4809 = vld [vmem:[#allocation3 + $0x18] sm:$0x80]
  %v4810 = vld [vmem:[#allocation3 + $0x20] sm:$0xff]
  %v4811 = vld [vmem:[#allocation3 + $0x28] sm:$0xff]
  %v4812 = vld [vmem:[#allocation3 + $0x30] sm:$0xff]
  %v4813 = vld [vmem:[#allocation3 + $0x38] sm:$0xff]
  %v4814 = vld [vmem:[#allocation3 + $0x40] sm:$0x1]
  %v4815 = vld [vmem:[#allocation3 + $0x48] sm:$0x1]
  %v4816 = vld [vmem:[#allocation3 + $0x50] sm:$0x1]
  %v4817 = vld [vmem:[#allocation3 + $0x58] sm:$0x1]
  %v4818 = vld [vmem:[#allocation3 + $0x80] sm:$0x80]
  %v4819 = vld [vmem:[#allocation3 + $0x88] sm:$0x80]
  %v4820 = vld [vmem:[#allocation3 + $0x90] sm:$0x80]
  %v4821 = vld [vmem:[#allocation3 + $0x98] sm:$0x80]
  %v4822 = vld [vmem:[#allocation3 + $0xa0] sm:$0xff]
  %v4823 = vld [vmem:[#allocation3 + $0xa8] sm:$0xff]
  %v4824 = vld [vmem:[#allocation3 + $0xb0] sm:$0xff]
  %v4825 = vld [vmem:[#allocation3 + $0xb8] sm:$0xff]
  %v4826 = vld [vmem:[#allocation3 + $0xc0] sm:$0x1]
  %v4827 = vld [vmem:[#allocation3 + $0xc8] sm:$0x1]
  %v4828 = vld [vmem:[#allocation3 + $0xd0] sm:$0x1]
  %v4829 = vld [vmem:[#allocation3 + $0xd8] sm:$0x1]
  %v4831 = vlaneseq
  %v4832 = vshrl.u32 %v4831, 7
  %v4833 = vsub.s32 0, %v4832
  %v4834 = vrot.slane %v4805, %v4833
  %v4835 = vlaneseq
  %v4836 = vshrl.u32 %v4835, 7
  %v4837 = vsub.s32 1, %v4836
  %v4838 = vrot.slane %v4805, %v4837
  %v4839 = vlaneseq
  %v4840 = vshrl.u32 %v4839, 7
  %v4841 = vsub.s32 2, %v4840
  %v4842 = vrot.slane %v4805, %v4841
  %v4843 = vlaneseq
  %v4844 = vshrl.u32 %v4843, 7
  %v4845 = vsub.s32 3, %v4844
  %v4846 = vrot.slane %v4805, %v4845
  %v4851 = vadd.f32 %v4834, 0.0
  %v4852 = vadd.f32 %v4838, 0.0
  %v4853 = vadd.f32 %v4842, 0.0
  %v4854 = vadd.f32 %v4846, 0.0
  %v4879 = vrot.slane %v4806, 7
  %v4880 = vrot.slane %v4810, 7
  %v4881 = vsel %vm82, %v4879, %v4880
  %v4882 = vrot.slane %v4807, 7
  %v4883 = vrot.slane %v4811, 7
  %v4884 = vsel %vm82, %v4882, %v4883
  %v4885 = vrot.slane %v4808, 7
  %v4886 = vrot.slane %v4812, 7
  %v4887 = vsel %vm82, %v4885, %v4886
  %v4888 = vrot.slane %v4809, 7
  %v4889 = vrot.slane %v4813, 7
  %v4890 = vsel %vm82, %v4888, %v4889
  %v4891 = vrot.slane %v4814, 7
  %v4892 = vsel %vm82, %v4880, %v4891
  %v4893 = vrot.slane %v4815, 7
  %v4894 = vsel %vm82, %v4883, %v4893
  %v4895 = vrot.slane %v4816, 7
  %v4896 = vsel %vm82, %v4886, %v4895
  %v4897 = vrot.slane %v4817, 7
  %v4898 = vsel %vm82, %v4889, %v4897
  %v4899 = vrot.slane %v4818, 7
  %v4900 = vrot.slane %v4822, 7
  %v4901 = vsel %vm82, %v4899, %v4900
  %v4902 = vrot.slane %v4819, 7
  %v4903 = vrot.slane %v4823, 7
  %v4904 = vsel %vm82, %v4902, %v4903
  %v4905 = vrot.slane %v4820, 7
  %v4906 = vrot.slane %v4824, 7
  %v4907 = vsel %vm82, %v4905, %v4906
  %v4908 = vrot.slane %v4821, 7
  %v4909 = vrot.slane %v4825, 7
  %v4910 = vsel %vm82, %v4908, %v4909
  %v4911 = vrot.slane %v4826, 7
  %v4912 = vsel %vm82, %v4900, %v4911
  %v4913 = vrot.slane %v4827, 7
  %v4914 = vsel %vm82, %v4903, %v4913
  %v4915 = vrot.slane %v4828, 7
  %v4916 = vsel %vm82, %v4906, %v4915
  %v4917 = vrot.slane %v4829, 7
  %v4918 = vsel %vm82, %v4909, %v4917
  %4935 = vrot.lane.b32.xlu0 %v4881, 32
  %v4936 = vpop.permute.xlu0 %4935
  %4937 = vrot.lane.b32.xlu0 %v4892, 32
  %v4938 = vpop.permute.xlu0 %4937
  %4939 = vrot.lane.b32.xlu0 %v4901, 32
  %v4940 = vpop.permute.xlu0 %4939
  %4941 = vrot.lane.b32.xlu0 %v4912, 32
  %v4942 = vpop.permute.xlu0 %4941
  %4943 = vrot.lane.b32.xlu0 %v4884, 32
  %v4944 = vpop.permute.xlu0 %4943
  %4945 = vrot.lane.b32.xlu0 %v4894, 32
  %v4946 = vpop.permute.xlu0 %4945
  %4947 = vrot.lane.b32.xlu0 %v4904, 32
  %v4948 = vpop.permute.xlu0 %4947
  %4949 = vrot.lane.b32.xlu0 %v4914, 32
  %v4950 = vpop.permute.xlu0 %4949
  %4951 = vrot.lane.b32.xlu0 %v4887, 32
  %v4952 = vpop.permute.xlu0 %4951
  %4953 = vrot.lane.b32.xlu0 %v4896, 32
  %v4954 = vpop.permute.xlu0 %4953
  %4955 = vrot.lane.b32.xlu0 %v4907, 32
  %v4956 = vpop.permute.xlu0 %4955
  %4957 = vrot.lane.b32.xlu0 %v4916, 32
  %v4958 = vpop.permute.xlu0 %4957
  %4959 = vrot.lane.b32.xlu0 %v4890, 32
  %v4960 = vpop.permute.xlu0 %4959
  %4961 = vrot.lane.b32.xlu0 %v4898, 32
  %v4962 = vpop.permute.xlu0 %4961
  %4963 = vrot.lane.b32.xlu0 %v4910, 32
  %v4964 = vpop.permute.xlu0 %4963
  %4965 = vrot.lane.b32.xlu0 %v4918, 32
  %v4966 = vpop.permute.xlu0 %4965
  %v4967 = vlaneseq
  %v4968 = vand.u32 %v4967, 127
  %vm4969 = vcmp.lt.s32.totalorder %v4968, 32
  %v4970 = vsel %vm4969, %v4952, %v4960
  %v4971 = vsel %vm4969, %v4954, %v4962
  %v4972 = vsel %vm4969, %v4956, %v4964
  %v4973 = vsel %vm4969, %v4958, %v4966
  %v4974 = vsel %vm4969, %v4944, %v4952
  %v4975 = vsel %vm4969, %v4946, %v4954
  %v4976 = vsel %vm4969, %v4948, %v4956
  %v4977 = vsel %vm4969, %v4950, %v4958
  %v4978 = vsel %vm4969, %v4936, %v4944
  %v4979 = vsel %vm4969, %v4938, %v4946
  %v4980 = vsel %vm4969, %v4940, %v4948
  %v4981 = vsel %vm4969, %v4942, %v4950
  %v4982 = vsel %vm4969, %v4960, %v4936
  %v4983 = vsel %vm4969, %v4962, %v4938
  %v4984 = vsel %vm4969, %v4964, %v4940
  %v4985 = vsel %vm4969, %v4966, %v4942
  %s4986 = scalar_lea.vmem %s7, 3
  %v4987 = vld [vmem:[%s4986] ss:$8 sm:$0xf]
  %v4989 = vlaneseq
  %v4990 = vshrl.u32 %v4989, 7
  %v4991 = vsub.s32 0, %v4990
  %v4992 = vrot.slane %v4987, %v4991
  %v4993 = vlaneseq
  %v4994 = vshrl.u32 %v4993, 7
  %v4995 = vsub.s32 1, %v4994
  %v4996 = vrot.slane %v4987, %v4995
  %v4997 = vlaneseq
  %v4998 = vshrl.u32 %v4997, 7
  %v4999 = vsub.s32 2, %v4998
  %v5000 = vrot.slane %v4987, %v4999
  %v5001 = vlaneseq
  %v5002 = vshrl.u32 %v5001, 7
  %v5003 = vsub.s32 3, %v5002
  %v5004 = vrot.slane %v4987, %v5003
  %v5009 = vmul.f32 %v4982, %v4992
  %v5010 = vmul.f32 %v4978, %v4996
  %v5011 = vmul.f32 %v4974, %v5000
  %v5012 = vmul.f32 %v4970, %v5004
  %v5013 = vmul.f32 %v4984, %v4992
  %v5014 = vmul.f32 %v4980, %v4996
  %v5015 = vmul.f32 %v4976, %v5000
  %v5016 = vmul.f32 %v4972, %v5004
  %v5017 = vadd.f32 %v4851, %v5009
  %v5018 = vadd.f32 %v4852, %v5010
  %v5019 = vadd.f32 %v4853, %v5011
  %v5020 = vadd.f32 %v4854, %v5012
  %v5021 = vadd.f32 %v4851, %v5013
  %v5022 = vadd.f32 %v4852, %v5014
  %v5023 = vadd.f32 %v4853, %v5015
  %v5024 = vadd.f32 %v4854, %v5016
  %s5025 = scalar_lea.vmem %s7, 6
  %v5026 = vld [vmem:[%s5025] ss:$8 sm:$0xf]
  %v5028 = vlaneseq
  %v5029 = vshrl.u32 %v5028, 7
  %v5030 = vsub.s32 0, %v5029
  %v5031 = vrot.slane %v5026, %v5030
  %v5032 = vlaneseq
  %v5033 = vshrl.u32 %v5032, 7
  %v5034 = vsub.s32 1, %v5033
  %v5035 = vrot.slane %v5026, %v5034
  %v5036 = vlaneseq
  %v5037 = vshrl.u32 %v5036, 7
  %v5038 = vsub.s32 2, %v5037
  %v5039 = vrot.slane %v5026, %v5038
  %v5040 = vlaneseq
  %v5041 = vshrl.u32 %v5040, 7
  %v5042 = vsub.s32 3, %v5041
  %v5043 = vrot.slane %v5026, %v5042
  %v5048 = vmul.f32 %v4982, %v5031
  %v5049 = vmul.f32 %v4978, %v5035
  %v5050 = vmul.f32 %v4974, %v5039
  %v5051 = vmul.f32 %v4970, %v5043
  %v5052 = vmul.f32 %v4983, %v5031
  %v5053 = vmul.f32 %v4979, %v5035
  %v5054 = vmul.f32 %v4975, %v5039
  %v5055 = vmul.f32 %v4971, %v5043
  %v5056 = vmul.f32 %v4984, %v5031
  %v5057 = vmul.f32 %v4980, %v5035
  %v5058 = vmul.f32 %v4976, %v5039
  %v5059 = vmul.f32 %v4972, %v5043
  %v5060 = vmul.f32 %v4985, %v5031
  %v5061 = vmul.f32 %v4981, %v5035
  %v5062 = vmul.f32 %v4977, %v5039
  %v5063 = vmul.f32 %v4973, %v5043
  %v5064 = vadd.f32 %v5048, 0.0
  %v5065 = vadd.f32 %v5049, 0.0
  %v5066 = vadd.f32 %v5050, 0.0
  %v5067 = vadd.f32 %v5051, 0.0
  %v5068 = vadd.f32 %v5052, 0.0
  %v5069 = vadd.f32 %v5053, 0.0
  %v5070 = vadd.f32 %v5054, 0.0
  %v5071 = vadd.f32 %v5055, 0.0
  %v5072 = vadd.f32 %v5056, 0.0
  %v5073 = vadd.f32 %v5057, 0.0
  %v5074 = vadd.f32 %v5058, 0.0
  %v5075 = vadd.f32 %v5059, 0.0
  %v5076 = vadd.f32 %v5060, 0.0
  %v5077 = vadd.f32 %v5061, 0.0
  %v5078 = vadd.f32 %v5062, 0.0
  %v5079 = vadd.f32 %v5063, 0.0
  %s5080 = scalar_lea.vmem %s7, 33
  %v5081 = vld [vmem:[%s5080] ss:$8 sm:$0xf]
  %v5083 = vlaneseq
  %v5084 = vshrl.u32 %v5083, 7
  %v5085 = vsub.s32 0, %v5084
  %v5086 = vrot.slane %v5081, %v5085
  %v5087 = vlaneseq
  %v5088 = vshrl.u32 %v5087, 7
  %v5089 = vsub.s32 1, %v5088
  %v5090 = vrot.slane %v5081, %v5089
  %v5091 = vlaneseq
  %v5092 = vshrl.u32 %v5091, 7
  %v5093 = vsub.s32 2, %v5092
  %v5094 = vrot.slane %v5081, %v5093
  %v5095 = vlaneseq
  %v5096 = vshrl.u32 %v5095, 7
  %v5097 = vsub.s32 3, %v5096
  %v5098 = vrot.slane %v5081, %v5097
  %v5103 = vmul.f32 %v4982, %v5086
  %v5104 = vmul.f32 %v4978, %v5090
  %v5105 = vmul.f32 %v4974, %v5094
  %v5106 = vmul.f32 %v4970, %v5098
  %v5107 = vmul.f32 %v4983, %v5086
  %v5108 = vmul.f32 %v4979, %v5090
  %v5109 = vmul.f32 %v4975, %v5094
  %v5110 = vmul.f32 %v4971, %v5098
  %v5111 = vmul.f32 %v4984, %v5086
  %v5112 = vmul.f32 %v4980, %v5090
  %v5113 = vmul.f32 %v4976, %v5094
  %v5114 = vmul.f32 %v4972, %v5098
  %v5115 = vmul.f32 %v4985, %v5086
  %v5116 = vmul.f32 %v4981, %v5090
  %v5117 = vmul.f32 %v4977, %v5094
  %v5118 = vmul.f32 %v4973, %v5098
  %v5135 = vrot.slane %v5103, 2
  %v5136 = vrot.slane %v5107, 2
  %v5137 = vsel %vm904, %v5135, %v5136
  %v5138 = vrot.slane %v5104, 2
  %v5139 = vrot.slane %v5108, 2
  %v5140 = vsel %vm904, %v5138, %v5139
  %v5141 = vrot.slane %v5105, 2
  %v5142 = vrot.slane %v5109, 2
  %v5143 = vsel %vm904, %v5141, %v5142
  %v5144 = vrot.slane %v5106, 2
  %v5145 = vrot.slane %v5110, 2
  %v5146 = vsel %vm904, %v5144, %v5145
  %v5147 = vrot.slane %v5111, 2
  %v5148 = vrot.slane %v5115, 2
  %v5149 = vsel %vm904, %v5147, %v5148
  %v5150 = vrot.slane %v5112, 2
  %v5151 = vrot.slane %v5116, 2
  %v5152 = vsel %vm904, %v5150, %v5151
  %v5153 = vrot.slane %v5113, 2
  %v5154 = vrot.slane %v5117, 2
  %v5155 = vsel %vm904, %v5153, %v5154
  %v5156 = vrot.slane %v5114, 2
  %v5157 = vrot.slane %v5118, 2
  %v5158 = vsel %vm904, %v5156, %v5157
  %v5167 = vadd.f32 %v5017, %v5137
  %v5168 = vadd.f32 %v5018, %v5140
  %v5169 = vadd.f32 %v5019, %v5143
  %v5170 = vadd.f32 %v5020, %v5146
  %v5171 = vadd.f32 %v5021, %v5149
  %v5172 = vadd.f32 %v5022, %v5152
  %v5173 = vadd.f32 %v5023, %v5155
  %v5174 = vadd.f32 %v5024, %v5158
  %s5175 = scalar_lea.vmem %s7, 4
  %v5176 = vld [vmem:[%s5175] ss:$8 sm:$0xf]
  %v5178 = vlaneseq
  %v5179 = vshrl.u32 %v5178, 7
  %v5180 = vsub.s32 0, %v5179
  %v5181 = vrot.slane %v5176, %v5180
  %v5182 = vlaneseq
  %v5183 = vshrl.u32 %v5182, 7
  %v5184 = vsub.s32 1, %v5183
  %v5185 = vrot.slane %v5176, %v5184
  %v5186 = vlaneseq
  %v5187 = vshrl.u32 %v5186, 7
  %v5188 = vsub.s32 2, %v5187
  %v5189 = vrot.slane %v5176, %v5188
  %v5190 = vlaneseq
  %v5191 = vshrl.u32 %v5190, 7
  %v5192 = vsub.s32 3, %v5191
  %v5193 = vrot.slane %v5176, %v5192
  %v5198 = vmul.f32 %v4806, %v5181
  %v5199 = vmul.f32 %v4807, %v5185
  %v5200 = vmul.f32 %v4808, %v5189
  %v5201 = vmul.f32 %v4809, %v5193
  %v5202 = vmul.f32 %v4810, %v5181
  %v5203 = vmul.f32 %v4811, %v5185
  %v5204 = vmul.f32 %v4812, %v5189
  %v5205 = vmul.f32 %v4813, %v5193
  %v5206 = vmul.f32 %v4818, %v5181
  %v5207 = vmul.f32 %v4819, %v5185
  %v5208 = vmul.f32 %v4820, %v5189
  %v5209 = vmul.f32 %v4821, %v5193
  %v5210 = vmul.f32 %v4822, %v5181
  %v5211 = vmul.f32 %v4823, %v5185
  %v5212 = vmul.f32 %v4824, %v5189
  %v5213 = vmul.f32 %v4825, %v5193
  %v5230 = vrot.slane %v5198, 6
  %v5231 = vrot.slane %v5202, 6
  %v5232 = vsel %vm829, %v5230, %v5231
  %v5233 = vrot.slane %v5199, 6
  %v5234 = vrot.slane %v5203, 6
  %v5235 = vsel %vm829, %v5233, %v5234
  %v5236 = vrot.slane %v5200, 6
  %v5237 = vrot.slane %v5204, 6
  %v5238 = vsel %vm829, %v5236, %v5237
  %v5239 = vrot.slane %v5201, 6
  %v5240 = vrot.slane %v5205, 6
  %v5241 = vsel %vm829, %v5239, %v5240
  %v5242 = vrot.slane %v5206, 6
  %v5243 = vrot.slane %v5210, 6
  %v5244 = vsel %vm829, %v5242, %v5243
  %v5245 = vrot.slane %v5207, 6
  %v5246 = vrot.slane %v5211, 6
  %v5247 = vsel %vm829, %v5245, %v5246
  %v5248 = vrot.slane %v5208, 6
  %v5249 = vrot.slane %v5212, 6
  %v5250 = vsel %vm829, %v5248, %v5249
  %v5251 = vrot.slane %v5209, 6
  %v5252 = vrot.slane %v5213, 6
  %v5253 = vsel %vm829, %v5251, %v5252
  %v5270 = vadd.f32 %v5064, %v5232
  %v5271 = vadd.f32 %v5065, %v5235
  %v5272 = vadd.f32 %v5066, %v5238
  %v5273 = vadd.f32 %v5067, %v5241
  %v5274 = vadd.f32 %v5068, %v5231
  %v5275 = vadd.f32 %v5069, %v5234
  %v5276 = vadd.f32 %v5070, %v5237
  %v5277 = vadd.f32 %v5071, %v5240
  %v5278 = vadd.f32 %v5072, %v5244
  %v5279 = vadd.f32 %v5073, %v5247
  %v5280 = vadd.f32 %v5074, %v5250
  %v5281 = vadd.f32 %v5075, %v5253
  %v5282 = vadd.f32 %v5076, %v5243
  %v5283 = vadd.f32 %v5077, %v5246
  %v5284 = vadd.f32 %v5078, %v5249
  %v5285 = vadd.f32 %v5079, %v5252
  %s5286 = scalar_lea.vmem %s7, 7
  %v5287 = vld [vmem:[%s5286] ss:$8 sm:$0xf]
  %v5289 = vlaneseq
  %v5290 = vshrl.u32 %v5289, 7
  %v5291 = vsub.s32 0, %v5290
  %v5292 = vrot.slane %v5287, %v5291
  %v5293 = vlaneseq
  %v5294 = vshrl.u32 %v5293, 7
  %v5295 = vsub.s32 1, %v5294
  %v5296 = vrot.slane %v5287, %v5295
  %v5297 = vlaneseq
  %v5298 = vshrl.u32 %v5297, 7
  %v5299 = vsub.s32 2, %v5298
  %v5300 = vrot.slane %v5287, %v5299
  %v5301 = vlaneseq
  %v5302 = vshrl.u32 %v5301, 7
  %v5303 = vsub.s32 3, %v5302
  %v5304 = vrot.slane %v5287, %v5303
  %v5309 = vmul.f32 %v4810, %v5292
  %v5310 = vmul.f32 %v4811, %v5296
  %v5311 = vmul.f32 %v4812, %v5300
  %v5312 = vmul.f32 %v4813, %v5304
  %v5313 = vmul.f32 %v4822, %v5292
  %v5314 = vmul.f32 %v4823, %v5296
  %v5315 = vmul.f32 %v4824, %v5300
  %v5316 = vmul.f32 %v4825, %v5304
  %v5317 = vadd.f32 %v5167, %v5309
  %v5318 = vadd.f32 %v5168, %v5310
  %v5319 = vadd.f32 %v5169, %v5311
  %v5320 = vadd.f32 %v5170, %v5312
  %v5321 = vadd.f32 %v5171, %v5313
  %v5322 = vadd.f32 %v5172, %v5314
  %v5323 = vadd.f32 %v5173, %v5315
  %v5324 = vadd.f32 %v5174, %v5316
  %s5325 = scalar_lea.vmem %s7, 34
  %v5326 = vld [vmem:[%s5325] ss:$8 sm:$0xf]
  %v5328 = vlaneseq
  %v5329 = vshrl.u32 %v5328, 7
  %v5330 = vsub.s32 0, %v5329
  %v5331 = vrot.slane %v5326, %v5330
  %v5332 = vlaneseq
  %v5333 = vshrl.u32 %v5332, 7
  %v5334 = vsub.s32 1, %v5333
  %v5335 = vrot.slane %v5326, %v5334
  %v5336 = vlaneseq
  %v5337 = vshrl.u32 %v5336, 7
  %v5338 = vsub.s32 2, %v5337
  %v5339 = vrot.slane %v5326, %v5338
  %v5340 = vlaneseq
  %v5341 = vshrl.u32 %v5340, 7
  %v5342 = vsub.s32 3, %v5341
  %v5343 = vrot.slane %v5326, %v5342
  %v5348 = vmul.f32 %v4810, %v5331
  %v5349 = vmul.f32 %v4811, %v5335
  %v5350 = vmul.f32 %v4812, %v5339
  %v5351 = vmul.f32 %v4813, %v5343
  %v5352 = vmul.f32 %v4814, %v5331
  %v5353 = vmul.f32 %v4815, %v5335
  %v5354 = vmul.f32 %v4816, %v5339
  %v5355 = vmul.f32 %v4817, %v5343
  %v5356 = vmul.f32 %v4822, %v5331
  %v5357 = vmul.f32 %v4823, %v5335
  %v5358 = vmul.f32 %v4824, %v5339
  %v5359 = vmul.f32 %v4825, %v5343
  %v5360 = vmul.f32 %v4826, %v5331
  %v5361 = vmul.f32 %v4827, %v5335
  %v5362 = vmul.f32 %v4828, %v5339
  %v5363 = vmul.f32 %v4829, %v5343
  %v5364 = vadd.f32 %v5270, %v5348
  %v5365 = vadd.f32 %v5271, %v5349
  %v5366 = vadd.f32 %v5272, %v5350
  %v5367 = vadd.f32 %v5273, %v5351
  %v5368 = vadd.f32 %v5274, %v5352
  %v5369 = vadd.f32 %v5275, %v5353
  %v5370 = vadd.f32 %v5276, %v5354
  %v5371 = vadd.f32 %v5277, %v5355
  %v5372 = vadd.f32 %v5278, %v5356
  %v5373 = vadd.f32 %v5279, %v5357
  %v5374 = vadd.f32 %v5280, %v5358
  %v5375 = vadd.f32 %v5281, %v5359
  %v5376 = vadd.f32 %v5282, %v5360
  %v5377 = vadd.f32 %v5283, %v5361
  %v5378 = vadd.f32 %v5284, %v5362
  %v5379 = vadd.f32 %v5285, %v5363
  %5380 = vrot.lane.b32.xlu0 %v4881, 96
  %v5381 = vpop.permute.xlu0 %5380
  %5382 = vrot.lane.b32.xlu0 %v4892, 96
  %v5383 = vpop.permute.xlu0 %5382
  %5384 = vrot.lane.b32.xlu0 %v4901, 96
  %v5385 = vpop.permute.xlu0 %5384
  %5386 = vrot.lane.b32.xlu0 %v4912, 96
  %v5387 = vpop.permute.xlu0 %5386
  %5388 = vrot.lane.b32.xlu0 %v4884, 96
  %v5389 = vpop.permute.xlu0 %5388
  %5390 = vrot.lane.b32.xlu0 %v4894, 96
  %v5391 = vpop.permute.xlu0 %5390
  %5392 = vrot.lane.b32.xlu0 %v4904, 96
  %v5393 = vpop.permute.xlu0 %5392
  %5394 = vrot.lane.b32.xlu0 %v4914, 96
  %v5395 = vpop.permute.xlu0 %5394
  %5396 = vrot.lane.b32.xlu0 %v4887, 96
  %v5397 = vpop.permute.xlu0 %5396
  %5398 = vrot.lane.b32.xlu0 %v4896, 96
  %v5399 = vpop.permute.xlu0 %5398
  %5400 = vrot.lane.b32.xlu0 %v4907, 96
  %v5401 = vpop.permute.xlu0 %5400
  %5402 = vrot.lane.b32.xlu0 %v4916, 96
  %v5403 = vpop.permute.xlu0 %5402
  %5404 = vrot.lane.b32.xlu0 %v4890, 96
  %v5405 = vpop.permute.xlu0 %5404
  %5406 = vrot.lane.b32.xlu0 %v4898, 96
  %v5407 = vpop.permute.xlu0 %5406
  %5408 = vrot.lane.b32.xlu0 %v4910, 96
  %v5409 = vpop.permute.xlu0 %5408
  %5410 = vrot.lane.b32.xlu0 %v4918, 96
  %v5411 = vpop.permute.xlu0 %5410
  %vm5412 = vcmp.lt.s32.totalorder %v4968, 96
  %v5413 = vsel %vm5412, %v5397, %v5405
  %v5414 = vsel %vm5412, %v5399, %v5407
  %v5415 = vsel %vm5412, %v5401, %v5409
  %v5416 = vsel %vm5412, %v5403, %v5411
  %v5417 = vsel %vm5412, %v5389, %v5397
  %v5418 = vsel %vm5412, %v5391, %v5399
  %v5419 = vsel %vm5412, %v5393, %v5401
  %v5420 = vsel %vm5412, %v5395, %v5403
  %v5421 = vsel %vm5412, %v5381, %v5389
  %v5422 = vsel %vm5412, %v5383, %v5391
  %v5423 = vsel %vm5412, %v5385, %v5393
  %v5424 = vsel %vm5412, %v5387, %v5395
  %v5425 = vsel %vm5412, %v5405, %v5381
  %v5426 = vsel %vm5412, %v5407, %v5383
  %v5427 = vsel %vm5412, %v5409, %v5385
  %v5428 = vsel %vm5412, %v5411, %v5387
  %s5429 = scalar_lea.vmem %s7, 5
  %v5430 = vld [vmem:[%s5429] ss:$8 sm:$0xf]
  %v5432 = vlaneseq
  %v5433 = vshrl.u32 %v5432, 7
  %v5434 = vsub.s32 0, %v5433
  %v5435 = vrot.slane %v5430, %v5434
  %v5436 = vlaneseq
  %v5437 = vshrl.u32 %v5436, 7
  %v5438 = vsub.s32 1, %v5437
  %v5439 = vrot.slane %v5430, %v5438
  %v5440 = vlaneseq
  %v5441 = vshrl.u32 %v5440, 7
  %v5442 = vsub.s32 2, %v5441
  %v5443 = vrot.slane %v5430, %v5442
  %v5444 = vlaneseq
  %v5445 = vshrl.u32 %v5444, 7
  %v5446 = vsub.s32 3, %v5445
  %v5447 = vrot.slane %v5430, %v5446
  %v5452 = vmul.f32 %v5421, %v5435
  %v5453 = vmul.f32 %v5417, %v5439
  %v5454 = vmul.f32 %v5413, %v5443
  %v5455 = vmul.f32 %v5425, %v5447
  %v5456 = vmul.f32 %v5423, %v5435
  %v5457 = vmul.f32 %v5419, %v5439
  %v5458 = vmul.f32 %v5415, %v5443
  %v5459 = vmul.f32 %v5427, %v5447
  %v5460 = vadd.f32 %v5317, %v5452
  %v5461 = vadd.f32 %v5318, %v5453
  %v5462 = vadd.f32 %v5319, %v5454
  %v5463 = vadd.f32 %v5320, %v5455
  %v5464 = vadd.f32 %v5321, %v5456
  %v5465 = vadd.f32 %v5322, %v5457
  %v5466 = vadd.f32 %v5323, %v5458
  %v5467 = vadd.f32 %v5324, %v5459
  %s5468 = scalar_lea.vmem %s7, 32
  %v5469 = vld [vmem:[%s5468] ss:$8 sm:$0xf]
  %v5471 = vlaneseq
  %v5472 = vshrl.u32 %v5471, 7
  %v5473 = vsub.s32 0, %v5472
  %v5474 = vrot.slane %v5469, %v5473
  %v5475 = vlaneseq
  %v5476 = vshrl.u32 %v5475, 7
  %v5477 = vsub.s32 1, %v5476
  %v5478 = vrot.slane %v5469, %v5477
  %v5479 = vlaneseq
  %v5480 = vshrl.u32 %v5479, 7
  %v5481 = vsub.s32 2, %v5480
  %v5482 = vrot.slane %v5469, %v5481
  %v5483 = vlaneseq
  %v5484 = vshrl.u32 %v5483, 7
  %v5485 = vsub.s32 3, %v5484
  %v5486 = vrot.slane %v5469, %v5485
  %v5491 = vmul.f32 %v5421, %v5474
  %v5492 = vmul.f32 %v5417, %v5478
  %v5493 = vmul.f32 %v5413, %v5482
  %v5494 = vmul.f32 %v5425, %v5486
  %v5495 = vmul.f32 %v5422, %v5474
  %v5496 = vmul.f32 %v5418, %v5478
  %v5497 = vmul.f32 %v5414, %v5482
  %v5498 = vmul.f32 %v5426, %v5486
  %v5499 = vmul.f32 %v5423, %v5474
  %v5500 = vmul.f32 %v5419, %v5478
  %v5501 = vmul.f32 %v5415, %v5482
  %v5502 = vmul.f32 %v5427, %v5486
  %v5503 = vmul.f32 %v5424, %v5474
  %v5504 = vmul.f32 %v5420, %v5478
  %v5505 = vmul.f32 %v5416, %v5482
  %v5506 = vmul.f32 %v5428, %v5486
  %v5507 = vadd.f32 %v5364, %v5491
  %v5508 = vadd.f32 %v5365, %v5492
  %v5509 = vadd.f32 %v5366, %v5493
  %v5510 = vadd.f32 %v5367, %v5494
  %v5511 = vadd.f32 %v5368, %v5495
  %v5512 = vadd.f32 %v5369, %v5496
  %v5513 = vadd.f32 %v5370, %v5497
  %v5514 = vadd.f32 %v5371, %v5498
  %v5515 = vadd.f32 %v5372, %v5499
  %v5516 = vadd.f32 %v5373, %v5500
  %v5517 = vadd.f32 %v5374, %v5501
  %v5518 = vadd.f32 %v5375, %v5502
  %v5519 = vadd.f32 %v5376, %v5503
  %v5520 = vadd.f32 %v5377, %v5504
  %v5521 = vadd.f32 %v5378, %v5505
  %v5522 = vadd.f32 %v5379, %v5506
  %s5523 = scalar_lea.vmem %s7, 35
  %v5524 = vld [vmem:[%s5523] ss:$8 sm:$0xf]
  %v5526 = vlaneseq
  %v5527 = vshrl.u32 %v5526, 7
  %v5528 = vsub.s32 0, %v5527
  %v5529 = vrot.slane %v5524, %v5528
  %v5530 = vlaneseq
  %v5531 = vshrl.u32 %v5530, 7
  %v5532 = vsub.s32 1, %v5531
  %v5533 = vrot.slane %v5524, %v5532
  %v5534 = vlaneseq
  %v5535 = vshrl.u32 %v5534, 7
  %v5536 = vsub.s32 2, %v5535
  %v5537 = vrot.slane %v5524, %v5536
  %v5538 = vlaneseq
  %v5539 = vshrl.u32 %v5538, 7
  %v5540 = vsub.s32 3, %v5539
  %v5541 = vrot.slane %v5524, %v5540
  %v5546 = vmul.f32 %v5421, %v5529
  %v5547 = vmul.f32 %v5417, %v5533
  %v5548 = vmul.f32 %v5413, %v5537
  %v5549 = vmul.f32 %v5425, %v5541
  %v5550 = vmul.f32 %v5422, %v5529
  %v5551 = vmul.f32 %v5418, %v5533
  %v5552 = vmul.f32 %v5414, %v5537
  %v5553 = vmul.f32 %v5426, %v5541
  %v5554 = vmul.f32 %v5423, %v5529
  %v5555 = vmul.f32 %v5419, %v5533
  %v5556 = vmul.f32 %v5415, %v5537
  %v5557 = vmul.f32 %v5427, %v5541
  %v5558 = vmul.f32 %v5424, %v5529
  %v5559 = vmul.f32 %v5420, %v5533
  %v5560 = vmul.f32 %v5416, %v5537
  %v5561 = vmul.f32 %v5428, %v5541
  %v5578 = vrot.slane %v5546, 2
  %v5579 = vrot.slane %v5550, 2
  %v5580 = vsel %vm904, %v5578, %v5579
  %v5581 = vrot.slane %v5547, 2
  %v5582 = vrot.slane %v5551, 2
  %v5583 = vsel %vm904, %v5581, %v5582
  %v5584 = vrot.slane %v5548, 2
  %v5585 = vrot.slane %v5552, 2
  %v5586 = vsel %vm904, %v5584, %v5585
  %v5587 = vrot.slane %v5549, 2
  %v5588 = vrot.slane %v5553, 2
  %v5589 = vsel %vm904, %v5587, %v5588
  %v5590 = vrot.slane %v5554, 2
  %v5591 = vrot.slane %v5558, 2
  %v5592 = vsel %vm904, %v5590, %v5591
  %v5593 = vrot.slane %v5555, 2
  %v5594 = vrot.slane %v5559, 2
  %v5595 = vsel %vm904, %v5593, %v5594
  %v5596 = vrot.slane %v5556, 2
  %v5597 = vrot.slane %v5560, 2
  %v5598 = vsel %vm904, %v5596, %v5597
  %v5599 = vrot.slane %v5557, 2
  %v5600 = vrot.slane %v5561, 2
  %v5601 = vsel %vm904, %v5599, %v5600
  %v5610 = vadd.f32 %v5460, %v5580
  %v5611 = vadd.f32 %v5461, %v5583
  %v5612 = vadd.f32 %v5462, %v5586
  %v5613 = vadd.f32 %v5463, %v5589
  %v5614 = vadd.f32 %v5464, %v5592
  %v5615 = vadd.f32 %v5465, %v5595
  %v5616 = vadd.f32 %v5466, %v5598
  %v5617 = vadd.f32 %v5467, %v5601
  %v5634 = vrot.slane %v5507, 1
  %v5635 = vrot.slane %v5511, 1
  %v5636 = vsel %vm1062, %v5634, %v5635
  %v5637 = vrot.slane %v5508, 1
  %v5638 = vrot.slane %v5512, 1
  %v5639 = vsel %vm1062, %v5637, %v5638
  %v5640 = vrot.slane %v5509, 1
  %v5641 = vrot.slane %v5513, 1
  %v5642 = vsel %vm1062, %v5640, %v5641
  %v5643 = vrot.slane %v5510, 1
  %v5644 = vrot.slane %v5514, 1
  %v5645 = vsel %vm1062, %v5643, %v5644
  %v5646 = vrot.slane %v5515, 1
  %v5647 = vrot.slane %v5519, 1
  %v5648 = vsel %vm1062, %v5646, %v5647
  %v5649 = vrot.slane %v5516, 1
  %v5650 = vrot.slane %v5520, 1
  %v5651 = vsel %vm1062, %v5649, %v5650
  %v5652 = vrot.slane %v5517, 1
  %v5653 = vrot.slane %v5521, 1
  %v5654 = vsel %vm1062, %v5652, %v5653
  %v5655 = vrot.slane %v5518, 1
  %v5656 = vrot.slane %v5522, 1
  %v5657 = vsel %vm1062, %v5655, %v5656
  %v5666 = vadd.f32 %v5610, %v5636
  %v5667 = vadd.f32 %v5611, %v5639
  %v5668 = vadd.f32 %v5612, %v5642
  %v5669 = vadd.f32 %v5613, %v5645
  %v5670 = vadd.f32 %v5614, %v5648
  %v5671 = vadd.f32 %v5615, %v5651
  %v5672 = vadd.f32 %v5616, %v5654
  %v5673 = vadd.f32 %v5617, %v5657
  %v5674 = vld [vmem:[#allocation3 + $0x20] sm:$0x80]
  %v5675 = vld [vmem:[#allocation3 + $0x28] sm:$0x80]
  %v5676 = vld [vmem:[#allocation3 + $0x30] sm:$0x80]
  %v5677 = vld [vmem:[#allocation3 + $0x38] sm:$0x80]
  %v5678 = vld [vmem:[#allocation3 + $0x40] sm:$0xff]
  %v5679 = vld [vmem:[#allocation3 + $0x48] sm:$0xff]
  %v5680 = vld [vmem:[#allocation3 + $0x50] sm:$0xff]
  %v5681 = vld [vmem:[#allocation3 + $0x58] sm:$0xff]
  %v5682 = vld [vmem:[#allocation3 + $0x60] sm:$0x1]
  %v5683 = vld [vmem:[#allocation3 + $0x68] sm:$0x1]
  %v5684 = vld [vmem:[#allocation3 + $0x70] sm:$0x1]
  %v5685 = vld [vmem:[#allocation3 + $0x78] sm:$0x1]
  %v5686 = vld [vmem:[#allocation3 + $0xa0] sm:$0x80]
  %v5687 = vld [vmem:[#allocation3 + $0xa8] sm:$0x80]
  %v5688 = vld [vmem:[#allocation3 + $0xb0] sm:$0x80]
  %v5689 = vld [vmem:[#allocation3 + $0xb8] sm:$0x80]
  %v5690 = vld [vmem:[#allocation3 + $0xc0] sm:$0xff]
  %v5691 = vld [vmem:[#allocation3 + $0xc8] sm:$0xff]
  %v5692 = vld [vmem:[#allocation3 + $0xd0] sm:$0xff]
  %v5693 = vld [vmem:[#allocation3 + $0xd8] sm:$0xff]
  %v5694 = vld [vmem:[#allocation3 + $0xe0] sm:$0x1]
  %v5695 = vld [vmem:[#allocation3 + $0xe8] sm:$0x1]
  %v5696 = vld [vmem:[#allocation3 + $0xf0] sm:$0x1]
  %v5697 = vld [vmem:[#allocation3 + $0xf8] sm:$0x1]
  %v5722 = vrot.slane %v5674, 7
  %v5723 = vrot.slane %v5678, 7
  %v5724 = vsel %vm82, %v5722, %v5723
  %v5725 = vrot.slane %v5675, 7
  %v5726 = vrot.slane %v5679, 7
  %v5727 = vsel %vm82, %v5725, %v5726
  %v5728 = vrot.slane %v5676, 7
  %v5729 = vrot.slane %v5680, 7
  %v5730 = vsel %vm82, %v5728, %v5729
  %v5731 = vrot.slane %v5677, 7
  %v5732 = vrot.slane %v5681, 7
  %v5733 = vsel %vm82, %v5731, %v5732
  %v5734 = vrot.slane %v5682, 7
  %v5735 = vsel %vm82, %v5723, %v5734
  %v5736 = vrot.slane %v5683, 7
  %v5737 = vsel %vm82, %v5726, %v5736
  %v5738 = vrot.slane %v5684, 7
  %v5739 = vsel %vm82, %v5729, %v5738
  %v5740 = vrot.slane %v5685, 7
  %v5741 = vsel %vm82, %v5732, %v5740
  %v5742 = vrot.slane %v5686, 7
  %v5743 = vrot.slane %v5690, 7
  %v5744 = vsel %vm82, %v5742, %v5743
  %v5745 = vrot.slane %v5687, 7
  %v5746 = vrot.slane %v5691, 7
  %v5747 = vsel %vm82, %v5745, %v5746
  %v5748 = vrot.slane %v5688, 7
  %v5749 = vrot.slane %v5692, 7
  %v5750 = vsel %vm82, %v5748, %v5749
  %v5751 = vrot.slane %v5689, 7
  %v5752 = vrot.slane %v5693, 7
  %v5753 = vsel %vm82, %v5751, %v5752
  %v5754 = vrot.slane %v5694, 7
  %v5755 = vsel %vm82, %v5743, %v5754
  %v5756 = vrot.slane %v5695, 7
  %v5757 = vsel %vm82, %v5746, %v5756
  %v5758 = vrot.slane %v5696, 7
  %v5759 = vsel %vm82, %v5749, %v5758
  %v5760 = vrot.slane %v5697, 7
  %v5761 = vsel %vm82, %v5752, %v5760
  %5778 = vrot.lane.b32.xlu0 %v5724, 32
  %v5779 = vpop.permute.xlu0 %5778
  %5780 = vrot.lane.b32.xlu0 %v5735, 32
  %v5781 = vpop.permute.xlu0 %5780
  %5782 = vrot.lane.b32.xlu0 %v5744, 32
  %v5783 = vpop.permute.xlu0 %5782
  %5784 = vrot.lane.b32.xlu0 %v5755, 32
  %v5785 = vpop.permute.xlu0 %5784
  %5786 = vrot.lane.b32.xlu0 %v5727, 32
  %v5787 = vpop.permute.xlu0 %5786
  %5788 = vrot.lane.b32.xlu0 %v5737, 32
  %v5789 = vpop.permute.xlu0 %5788
  %5790 = vrot.lane.b32.xlu0 %v5747, 32
  %v5791 = vpop.permute.xlu0 %5790
  %5792 = vrot.lane.b32.xlu0 %v5757, 32
  %v5793 = vpop.permute.xlu0 %5792
  %5794 = vrot.lane.b32.xlu0 %v5730, 32
  %v5795 = vpop.permute.xlu0 %5794
  %5796 = vrot.lane.b32.xlu0 %v5739, 32
  %v5797 = vpop.permute.xlu0 %5796
  %5798 = vrot.lane.b32.xlu0 %v5750, 32
  %v5799 = vpop.permute.xlu0 %5798
  %5800 = vrot.lane.b32.xlu0 %v5759, 32
  %v5801 = vpop.permute.xlu0 %5800
  %5802 = vrot.lane.b32.xlu0 %v5733, 32
  %v5803 = vpop.permute.xlu0 %5802
  %5804 = vrot.lane.b32.xlu0 %v5741, 32
  %v5805 = vpop.permute.xlu0 %5804
  %5806 = vrot.lane.b32.xlu0 %v5753, 32
  %v5807 = vpop.permute.xlu0 %5806
  %5808 = vrot.lane.b32.xlu0 %v5761, 32
  %v5809 = vpop.permute.xlu0 %5808
  %v5810 = vsel %vm4969, %v5795, %v5803
  %v5811 = vsel %vm4969, %v5797, %v5805
  %v5812 = vsel %vm4969, %v5799, %v5807
  %v5813 = vsel %vm4969, %v5801, %v5809
  %v5814 = vsel %vm4969, %v5787, %v5795
  %v5815 = vsel %vm4969, %v5789, %v5797
  %v5816 = vsel %vm4969, %v5791, %v5799
  %v5817 = vsel %vm4969, %v5793, %v5801
  %v5818 = vsel %vm4969, %v5779, %v5787
  %v5819 = vsel %vm4969, %v5781, %v5789
  %v5820 = vsel %vm4969, %v5783, %v5791
  %v5821 = vsel %vm4969, %v5785, %v5793
  %v5822 = vsel %vm4969, %v5803, %v5779
  %v5823 = vsel %vm4969, %v5805, %v5781
  %v5824 = vsel %vm4969, %v5807, %v5783
  %v5825 = vsel %vm4969, %v5809, %v5785
  %v5826 = vmul.f32 %v5822, %v4992
  %v5827 = vmul.f32 %v5818, %v4996
  %v5828 = vmul.f32 %v5814, %v5000
  %v5829 = vmul.f32 %v5810, %v5004
  %v5830 = vmul.f32 %v5824, %v4992
  %v5831 = vmul.f32 %v5820, %v4996
  %v5832 = vmul.f32 %v5816, %v5000
  %v5833 = vmul.f32 %v5812, %v5004
  %v5834 = vadd.f32 %v4851, %v5826
  %v5835 = vadd.f32 %v4852, %v5827
  %v5836 = vadd.f32 %v4853, %v5828
  %v5837 = vadd.f32 %v4854, %v5829
  %v5838 = vadd.f32 %v4851, %v5830
  %v5839 = vadd.f32 %v4852, %v5831
  %v5840 = vadd.f32 %v4853, %v5832
  %v5841 = vadd.f32 %v4854, %v5833
  %v5842 = vmul.f32 %v5822, %v5031
  %v5843 = vmul.f32 %v5818, %v5035
  %v5844 = vmul.f32 %v5814, %v5039
  %v5845 = vmul.f32 %v5810, %v5043
  %v5846 = vmul.f32 %v5823, %v5031
  %v5847 = vmul.f32 %v5819, %v5035
  %v5848 = vmul.f32 %v5815, %v5039
  %v5849 = vmul.f32 %v5811, %v5043
  %v5850 = vmul.f32 %v5824, %v5031
  %v5851 = vmul.f32 %v5820, %v5035
  %v5852 = vmul.f32 %v5816, %v5039
  %v5853 = vmul.f32 %v5812, %v5043
  %v5854 = vmul.f32 %v5825, %v5031
  %v5855 = vmul.f32 %v5821, %v5035
  %v5856 = vmul.f32 %v5817, %v5039
  %v5857 = vmul.f32 %v5813, %v5043
  %v5858 = vadd.f32 %v5842, 0.0
  %v5859 = vadd.f32 %v5843, 0.0
  %v5860 = vadd.f32 %v5844, 0.0
  %v5861 = vadd.f32 %v5845, 0.0
  %v5862 = vadd.f32 %v5846, 0.0
  %v5863 = vadd.f32 %v5847, 0.0
  %v5864 = vadd.f32 %v5848, 0.0
  %v5865 = vadd.f32 %v5849, 0.0
  %v5866 = vadd.f32 %v5850, 0.0
  %v5867 = vadd.f32 %v5851, 0.0
  %v5868 = vadd.f32 %v5852, 0.0
  %v5869 = vadd.f32 %v5853, 0.0
  %v5870 = vadd.f32 %v5854, 0.0
  %v5871 = vadd.f32 %v5855, 0.0
  %v5872 = vadd.f32 %v5856, 0.0
  %v5873 = vadd.f32 %v5857, 0.0
  %v5874 = vmul.f32 %v5822, %v5086
  %v5875 = vmul.f32 %v5818, %v5090
  %v5876 = vmul.f32 %v5814, %v5094
  %v5877 = vmul.f32 %v5810, %v5098
  %v5878 = vmul.f32 %v5823, %v5086
  %v5879 = vmul.f32 %v5819, %v5090
  %v5880 = vmul.f32 %v5815, %v5094
  %v5881 = vmul.f32 %v5811, %v5098
  %v5882 = vmul.f32 %v5824, %v5086
  %v5883 = vmul.f32 %v5820, %v5090
  %v5884 = vmul.f32 %v5816, %v5094
  %v5885 = vmul.f32 %v5812, %v5098
  %v5886 = vmul.f32 %v5825, %v5086
  %v5887 = vmul.f32 %v5821, %v5090
  %v5888 = vmul.f32 %v5817, %v5094
  %v5889 = vmul.f32 %v5813, %v5098
  %v5906 = vrot.slane %v5874, 2
  %v5907 = vrot.slane %v5878, 2
  %v5908 = vsel %vm904, %v5906, %v5907
  %v5909 = vrot.slane %v5875, 2
  %v5910 = vrot.slane %v5879, 2
  %v5911 = vsel %vm904, %v5909, %v5910
  %v5912 = vrot.slane %v5876, 2
  %v5913 = vrot.slane %v5880, 2
  %v5914 = vsel %vm904, %v5912, %v5913
  %v5915 = vrot.slane %v5877, 2
  %v5916 = vrot.slane %v5881, 2
  %v5917 = vsel %vm904, %v5915, %v5916
  %v5918 = vrot.slane %v5882, 2
  %v5919 = vrot.slane %v5886, 2
  %v5920 = vsel %vm904, %v5918, %v5919
  %v5921 = vrot.slane %v5883, 2
  %v5922 = vrot.slane %v5887, 2
  %v5923 = vsel %vm904, %v5921, %v5922
  %v5924 = vrot.slane %v5884, 2
  %v5925 = vrot.slane %v5888, 2
  %v5926 = vsel %vm904, %v5924, %v5925
  %v5927 = vrot.slane %v5885, 2
  %v5928 = vrot.slane %v5889, 2
  %v5929 = vsel %vm904, %v5927, %v5928
  %v5938 = vadd.f32 %v5834, %v5908
  %v5939 = vadd.f32 %v5835, %v5911
  %v5940 = vadd.f32 %v5836, %v5914
  %v5941 = vadd.f32 %v5837, %v5917
  %v5942 = vadd.f32 %v5838, %v5920
  %v5943 = vadd.f32 %v5839, %v5923
  %v5944 = vadd.f32 %v5840, %v5926
  %v5945 = vadd.f32 %v5841, %v5929
  %v5946 = vmul.f32 %v5674, %v5181
  %v5947 = vmul.f32 %v5675, %v5185
  %v5948 = vmul.f32 %v5676, %v5189
  %v5949 = vmul.f32 %v5677, %v5193
  %v5950 = vmul.f32 %v5678, %v5181
  %v5951 = vmul.f32 %v5679, %v5185
  %v5952 = vmul.f32 %v5680, %v5189
  %v5953 = vmul.f32 %v5681, %v5193
  %v5954 = vmul.f32 %v5686, %v5181
  %v5955 = vmul.f32 %v5687, %v5185
  %v5956 = vmul.f32 %v5688, %v5189
  %v5957 = vmul.f32 %v5689, %v5193
  %v5958 = vmul.f32 %v5690, %v5181
  %v5959 = vmul.f32 %v5691, %v5185
  %v5960 = vmul.f32 %v5692, %v5189
  %v5961 = vmul.f32 %v5693, %v5193
  %v5978 = vrot.slane %v5946, 6
  %v5979 = vrot.slane %v5950, 6
  %v5980 = vsel %vm829, %v5978, %v5979
  %v5981 = vrot.slane %v5947, 6
  %v5982 = vrot.slane %v5951, 6
  %v5983 = vsel %vm829, %v5981, %v5982
  %v5984 = vrot.slane %v5948, 6
  %v5985 = vrot.slane %v5952, 6
  %v5986 = vsel %vm829, %v5984, %v5985
  %v5987 = vrot.slane %v5949, 6
  %v5988 = vrot.slane %v5953, 6
  %v5989 = vsel %vm829, %v5987, %v5988
  %v5990 = vrot.slane %v5954, 6
  %v5991 = vrot.slane %v5958, 6
  %v5992 = vsel %vm829, %v5990, %v5991
  %v5993 = vrot.slane %v5955, 6
  %v5994 = vrot.slane %v5959, 6
  %v5995 = vsel %vm829, %v5993, %v5994
  %v5996 = vrot.slane %v5956, 6
  %v5997 = vrot.slane %v5960, 6
  %v5998 = vsel %vm829, %v5996, %v5997
  %v5999 = vrot.slane %v5957, 6
  %v6000 = vrot.slane %v5961, 6
  %v6001 = vsel %vm829, %v5999, %v6000
  %v6018 = vadd.f32 %v5858, %v5980
  %v6019 = vadd.f32 %v5859, %v5983
  %v6020 = vadd.f32 %v5860, %v5986
  %v6021 = vadd.f32 %v5861, %v5989
  %v6022 = vadd.f32 %v5862, %v5979
  %v6023 = vadd.f32 %v5863, %v5982
  %v6024 = vadd.f32 %v5864, %v5985
  %v6025 = vadd.f32 %v5865, %v5988
  %v6026 = vadd.f32 %v5866, %v5992
  %v6027 = vadd.f32 %v5867, %v5995
  %v6028 = vadd.f32 %v5868, %v5998
  %v6029 = vadd.f32 %v5869, %v6001
  %v6030 = vadd.f32 %v5870, %v5991
  %v6031 = vadd.f32 %v5871, %v5994
  %v6032 = vadd.f32 %v5872, %v5997
  %v6033 = vadd.f32 %v5873, %v6000
  %v6034 = vmul.f32 %v5678, %v5292
  %v6035 = vmul.f32 %v5679, %v5296
  %v6036 = vmul.f32 %v5680, %v5300
  %v6037 = vmul.f32 %v5681, %v5304
  %v6038 = vmul.f32 %v5690, %v5292
  %v6039 = vmul.f32 %v5691, %v5296
  %v6040 = vmul.f32 %v5692, %v5300
  %v6041 = vmul.f32 %v5693, %v5304
  %v6042 = vadd.f32 %v5938, %v6034
  %v6043 = vadd.f32 %v5939, %v6035
  %v6044 = vadd.f32 %v5940, %v6036
  %v6045 = vadd.f32 %v5941, %v6037
  %v6046 = vadd.f32 %v5942, %v6038
  %v6047 = vadd.f32 %v5943, %v6039
  %v6048 = vadd.f32 %v5944, %v6040
  %v6049 = vadd.f32 %v5945, %v6041
  %v6050 = vmul.f32 %v5678, %v5331
  %v6051 = vmul.f32 %v5679, %v5335
  %v6052 = vmul.f32 %v5680, %v5339
  %v6053 = vmul.f32 %v5681, %v5343
  %v6054 = vmul.f32 %v5682, %v5331
  %v6055 = vmul.f32 %v5683, %v5335
  %v6056 = vmul.f32 %v5684, %v5339
  %v6057 = vmul.f32 %v5685, %v5343
  %v6058 = vmul.f32 %v5690, %v5331
  %v6059 = vmul.f32 %v5691, %v5335
  %v6060 = vmul.f32 %v5692, %v5339
  %v6061 = vmul.f32 %v5693, %v5343
  %v6062 = vmul.f32 %v5694, %v5331
  %v6063 = vmul.f32 %v5695, %v5335
  %v6064 = vmul.f32 %v5696, %v5339
  %v6065 = vmul.f32 %v5697, %v5343
  %v6066 = vadd.f32 %v6018, %v6050
  %v6067 = vadd.f32 %v6019, %v6051
  %v6068 = vadd.f32 %v6020, %v6052
  %v6069 = vadd.f32 %v6021, %v6053
  %v6070 = vadd.f32 %v6022, %v6054
  %v6071 = vadd.f32 %v6023, %v6055
  %v6072 = vadd.f32 %v6024, %v6056
  %v6073 = vadd.f32 %v6025, %v6057
  %v6074 = vadd.f32 %v6026, %v6058
  %v6075 = vadd.f32 %v6027, %v6059
  %v6076 = vadd.f32 %v6028, %v6060
  %v6077 = vadd.f32 %v6029, %v6061
  %v6078 = vadd.f32 %v6030, %v6062
  %v6079 = vadd.f32 %v6031, %v6063
  %v6080 = vadd.f32 %v6032, %v6064
  %v6081 = vadd.f32 %v6033, %v6065
  %6082 = vrot.lane.b32.xlu0 %v5724, 96
  %v6083 = vpop.permute.xlu0 %6082
  %6084 = vrot.lane.b32.xlu0 %v5735, 96
  %v6085 = vpop.permute.xlu0 %6084
  %6086 = vrot.lane.b32.xlu0 %v5744, 96
  %v6087 = vpop.permute.xlu0 %6086
  %6088 = vrot.lane.b32.xlu0 %v5755, 96
  %v6089 = vpop.permute.xlu0 %6088
  %6090 = vrot.lane.b32.xlu0 %v5727, 96
  %v6091 = vpop.permute.xlu0 %6090
  %6092 = vrot.lane.b32.xlu0 %v5737, 96
  %v6093 = vpop.permute.xlu0 %6092
  %6094 = vrot.lane.b32.xlu0 %v5747, 96
  %v6095 = vpop.permute.xlu0 %6094
  %6096 = vrot.lane.b32.xlu0 %v5757, 96
  %v6097 = vpop.permute.xlu0 %6096
  %6098 = vrot.lane.b32.xlu0 %v5730, 96
  %v6099 = vpop.permute.xlu0 %6098
  %6100 = vrot.lane.b32.xlu0 %v5739, 96
  %v6101 = vpop.permute.xlu0 %6100
  %6102 = vrot.lane.b32.xlu0 %v5750, 96
  %v6103 = vpop.permute.xlu0 %6102
  %6104 = vrot.lane.b32.xlu0 %v5759, 96
  %v6105 = vpop.permute.xlu0 %6104
  %6106 = vrot.lane.b32.xlu0 %v5733, 96
  %v6107 = vpop.permute.xlu0 %6106
  %6108 = vrot.lane.b32.xlu0 %v5741, 96
  %v6109 = vpop.permute.xlu0 %6108
  %6110 = vrot.lane.b32.xlu0 %v5753, 96
  %v6111 = vpop.permute.xlu0 %6110
  %6112 = vrot.lane.b32.xlu0 %v5761, 96
  %v6113 = vpop.permute.xlu0 %6112
  %v6114 = vsel %vm5412, %v6099, %v6107
  %v6115 = vsel %vm5412, %v6101, %v6109
  %v6116 = vsel %vm5412, %v6103, %v6111
  %v6117 = vsel %vm5412, %v6105, %v6113
  %v6118 = vsel %vm5412, %v6091, %v6099
  %v6119 = vsel %vm5412, %v6093, %v6101
  %v6120 = vsel %vm5412, %v6095, %v6103
  %v6121 = vsel %vm5412, %v6097, %v6105
  %v6122 = vsel %vm5412, %v6083, %v6091
  %v6123 = vsel %vm5412, %v6085, %v6093
  %v6124 = vsel %vm5412, %v6087, %v6095
  %v6125 = vsel %vm5412, %v6089, %v6097
  %v6126 = vsel %vm5412, %v6107, %v6083
  %v6127 = vsel %vm5412, %v6109, %v6085
  %v6128 = vsel %vm5412, %v6111, %v6087
  %v6129 = vsel %vm5412, %v6113, %v6089
  %v6130 = vmul.f32 %v6122, %v5435
  %v6131 = vmul.f32 %v6118, %v5439
  %v6132 = vmul.f32 %v6114, %v5443
  %v6133 = vmul.f32 %v6126, %v5447
  %v6134 = vmul.f32 %v6124, %v5435
  %v6135 = vmul.f32 %v6120, %v5439
  %v6136 = vmul.f32 %v6116, %v5443
  %v6137 = vmul.f32 %v6128, %v5447
  %v6138 = vadd.f32 %v6042, %v6130
  %v6139 = vadd.f32 %v6043, %v6131
  %v6140 = vadd.f32 %v6044, %v6132
  %v6141 = vadd.f32 %v6045, %v6133
  %v6142 = vadd.f32 %v6046, %v6134
  %v6143 = vadd.f32 %v6047, %v6135
  %v6144 = vadd.f32 %v6048, %v6136
  %v6145 = vadd.f32 %v6049, %v6137
  %v6146 = vmul.f32 %v6122, %v5474
  %v6147 = vmul.f32 %v6118, %v5478
  %v6148 = vmul.f32 %v6114, %v5482
  %v6149 = vmul.f32 %v6126, %v5486
  %v6150 = vmul.f32 %v6123, %v5474
  %v6151 = vmul.f32 %v6119, %v5478
  %v6152 = vmul.f32 %v6115, %v5482
  %v6153 = vmul.f32 %v6127, %v5486
  %v6154 = vmul.f32 %v6124, %v5474
  %v6155 = vmul.f32 %v6120, %v5478
  %v6156 = vmul.f32 %v6116, %v5482
  %v6157 = vmul.f32 %v6128, %v5486
  %v6158 = vmul.f32 %v6125, %v5474
  %v6159 = vmul.f32 %v6121, %v5478
  %v6160 = vmul.f32 %v6117, %v5482
  %v6161 = vmul.f32 %v6129, %v5486
  %v6162 = vadd.f32 %v6066, %v6146
  %v6163 = vadd.f32 %v6067, %v6147
  %v6164 = vadd.f32 %v6068, %v6148
  %v6165 = vadd.f32 %v6069, %v6149
  %v6166 = vadd.f32 %v6070, %v6150
  %v6167 = vadd.f32 %v6071, %v6151
  %v6168 = vadd.f32 %v6072, %v6152
  %v6169 = vadd.f32 %v6073, %v6153
  %v6170 = vadd.f32 %v6074, %v6154
  %v6171 = vadd.f32 %v6075, %v6155
  %v6172 = vadd.f32 %v6076, %v6156
  %v6173 = vadd.f32 %v6077, %v6157
  %v6174 = vadd.f32 %v6078, %v6158
  %v6175 = vadd.f32 %v6079, %v6159
  %v6176 = vadd.f32 %v6080, %v6160
  %v6177 = vadd.f32 %v6081, %v6161
  %v6178 = vmul.f32 %v6122, %v5529
  %v6179 = vmul.f32 %v6118, %v5533
  %v6180 = vmul.f32 %v6114, %v5537
  %v6181 = vmul.f32 %v6126, %v5541
  %v6182 = vmul.f32 %v6123, %v5529
  %v6183 = vmul.f32 %v6119, %v5533
  %v6184 = vmul.f32 %v6115, %v5537
  %v6185 = vmul.f32 %v6127, %v5541
  %v6186 = vmul.f32 %v6124, %v5529
  %v6187 = vmul.f32 %v6120, %v5533
  %v6188 = vmul.f32 %v6116, %v5537
  %v6189 = vmul.f32 %v6128, %v5541
  %v6190 = vmul.f32 %v6125, %v5529
  %v6191 = vmul.f32 %v6121, %v5533
  %v6192 = vmul.f32 %v6117, %v5537
  %v6193 = vmul.f32 %v6129, %v5541
  %v6210 = vrot.slane %v6178, 2
  %v6211 = vrot.slane %v6182, 2
  %v6212 = vsel %vm904, %v6210, %v6211
  %v6213 = vrot.slane %v6179, 2
  %v6214 = vrot.slane %v6183, 2
  %v6215 = vsel %vm904, %v6213, %v6214
  %v6216 = vrot.slane %v6180, 2
  %v6217 = vrot.slane %v6184, 2
  %v6218 = vsel %vm904, %v6216, %v6217
  %v6219 = vrot.slane %v6181, 2
  %v6220 = vrot.slane %v6185, 2
  %v6221 = vsel %vm904, %v6219, %v6220
  %v6222 = vrot.slane %v6186, 2
  %v6223 = vrot.slane %v6190, 2
  %v6224 = vsel %vm904, %v6222, %v6223
  %v6225 = vrot.slane %v6187, 2
  %v6226 = vrot.slane %v6191, 2
  %v6227 = vsel %vm904, %v6225, %v6226
  %v6228 = vrot.slane %v6188, 2
  %v6229 = vrot.slane %v6192, 2
  %v6230 = vsel %vm904, %v6228, %v6229
  %v6231 = vrot.slane %v6189, 2
  %v6232 = vrot.slane %v6193, 2
  %v6233 = vsel %vm904, %v6231, %v6232
  %v6242 = vadd.f32 %v6138, %v6212
  %v6243 = vadd.f32 %v6139, %v6215
  %v6244 = vadd.f32 %v6140, %v6218
  %v6245 = vadd.f32 %v6141, %v6221
  %v6246 = vadd.f32 %v6142, %v6224
  %v6247 = vadd.f32 %v6143, %v6227
  %v6248 = vadd.f32 %v6144, %v6230
  %v6249 = vadd.f32 %v6145, %v6233
  %v6266 = vrot.slane %v6162, 1
  %v6267 = vrot.slane %v6166, 1
  %v6268 = vsel %vm1062, %v6266, %v6267
  %v6269 = vrot.slane %v6163, 1
  %v6270 = vrot.slane %v6167, 1
  %v6271 = vsel %vm1062, %v6269, %v6270
  %v6272 = vrot.slane %v6164, 1
  %v6273 = vrot.slane %v6168, 1
  %v6274 = vsel %vm1062, %v6272, %v6273
  %v6275 = vrot.slane %v6165, 1
  %v6276 = vrot.slane %v6169, 1
  %v6277 = vsel %vm1062, %v6275, %v6276
  %v6278 = vrot.slane %v6170, 1
  %v6279 = vrot.slane %v6174, 1
  %v6280 = vsel %vm1062, %v6278, %v6279
  %v6281 = vrot.slane %v6171, 1
  %v6282 = vrot.slane %v6175, 1
  %v6283 = vsel %vm1062, %v6281, %v6282
  %v6284 = vrot.slane %v6172, 1
  %v6285 = vrot.slane %v6176, 1
  %v6286 = vsel %vm1062, %v6284, %v6285
  %v6287 = vrot.slane %v6173, 1
  %v6288 = vrot.slane %v6177, 1
  %v6289 = vsel %vm1062, %v6287, %v6288
  %v6298 = vadd.f32 %v6242, %v6268
  %v6299 = vadd.f32 %v6243, %v6271
  %v6300 = vadd.f32 %v6244, %v6274
  %v6301 = vadd.f32 %v6245, %v6277
  %v6302 = vadd.f32 %v6246, %v6280
  %v6303 = vadd.f32 %v6247, %v6283
  %v6304 = vadd.f32 %v6248, %v6286
  %v6305 = vadd.f32 %v6249, %v6289
  %v6306 = vmul.f32 %v5666, 0.5
  %v6307 = vmul.f32 %v5667, 0.5
  %v6308 = vmul.f32 %v5668, 0.5
  %v6309 = vmul.f32 %v5669, 0.5
  %v6310 = vmul.f32 %v6298, 0.5
  %v6311 = vmul.f32 %v6299, 0.5
  %v6312 = vmul.f32 %v6300, 0.5
  %v6313 = vmul.f32 %v6301, 0.5
  %v6314 = vmul.f32 %v5670, 0.5
  %v6315 = vmul.f32 %v5671, 0.5
  %v6316 = vmul.f32 %v5672, 0.5
  %v6317 = vmul.f32 %v5673, 0.5
  %v6318 = vmul.f32 %v6302, 0.5
  %v6319 = vmul.f32 %v6303, 0.5
  %v6320 = vmul.f32 %v6304, 0.5
  %v6321 = vmul.f32 %v6305, 0.5
  %v6322 = vmul.f32 %v5666, 0.044715
  %v6323 = vmul.f32 %v5667, 0.044715
  %v6324 = vmul.f32 %v5668, 0.044715
  %v6325 = vmul.f32 %v5669, 0.044715
  %v6326 = vmul.f32 %v6298, 0.044715
  %v6327 = vmul.f32 %v6299, 0.044715
  %v6328 = vmul.f32 %v6300, 0.044715
  %v6329 = vmul.f32 %v6301, 0.044715
  %v6330 = vmul.f32 %v5670, 0.044715
  %v6331 = vmul.f32 %v5671, 0.044715
  %v6332 = vmul.f32 %v5672, 0.044715
  %v6333 = vmul.f32 %v5673, 0.044715
  %v6334 = vmul.f32 %v6302, 0.044715
  %v6335 = vmul.f32 %v6303, 0.044715
  %v6336 = vmul.f32 %v6304, 0.044715
  %v6337 = vmul.f32 %v6305, 0.044715
  %v6338 = vmul.f32 %v6322, %v5666
  %v6339 = vmul.f32 %v6323, %v5667
  %v6340 = vmul.f32 %v6324, %v5668
  %v6341 = vmul.f32 %v6325, %v5669
  %v6342 = vmul.f32 %v6326, %v6298
  %v6343 = vmul.f32 %v6327, %v6299
  %v6344 = vmul.f32 %v6328, %v6300
  %v6345 = vmul.f32 %v6329, %v6301
  %v6346 = vmul.f32 %v6330, %v5670
  %v6347 = vmul.f32 %v6331, %v5671
  %v6348 = vmul.f32 %v6332, %v5672
  %v6349 = vmul.f32 %v6333, %v5673
  %v6350 = vmul.f32 %v6334, %v6302
  %v6351 = vmul.f32 %v6335, %v6303
  %v6352 = vmul.f32 %v6336, %v6304
  %v6353 = vmul.f32 %v6337, %v6305
  %v6354 = vmul.f32 %v6338, %v5666
  %v6355 = vmul.f32 %v6339, %v5667
  %v6356 = vmul.f32 %v6340, %v5668
  %v6357 = vmul.f32 %v6341, %v5669
  %v6358 = vmul.f32 %v6342, %v6298
  %v6359 = vmul.f32 %v6343, %v6299
  %v6360 = vmul.f32 %v6344, %v6300
  %v6361 = vmul.f32 %v6345, %v6301
  %v6362 = vmul.f32 %v6346, %v5670
  %v6363 = vmul.f32 %v6347, %v5671
  %v6364 = vmul.f32 %v6348, %v5672
  %v6365 = vmul.f32 %v6349, %v5673
  %v6366 = vmul.f32 %v6350, %v6302
  %v6367 = vmul.f32 %v6351, %v6303
  %v6368 = vmul.f32 %v6352, %v6304
  %v6369 = vmul.f32 %v6353, %v6305
  %v6370 = vadd.f32 %v5666, %v6354
  %v6371 = vadd.f32 %v5667, %v6355
  %v6372 = vadd.f32 %v5668, %v6356
  %v6373 = vadd.f32 %v5669, %v6357
  %v6374 = vadd.f32 %v6298, %v6358
  %v6375 = vadd.f32 %v6299, %v6359
  %v6376 = vadd.f32 %v6300, %v6360
  %v6377 = vadd.f32 %v6301, %v6361
  %v6378 = vadd.f32 %v5670, %v6362
  %v6379 = vadd.f32 %v5671, %v6363
  %v6380 = vadd.f32 %v5672, %v6364
  %v6381 = vadd.f32 %v5673, %v6365
  %v6382 = vadd.f32 %v6302, %v6366
  %v6383 = vadd.f32 %v6303, %v6367
  %v6384 = vadd.f32 %v6304, %v6368
  %v6385 = vadd.f32 %v6305, %v6369
  %v6386 = vmul.f32 %v6370, 0.7978846
  %v6387 = vmul.f32 %v6371, 0.7978846
  %v6388 = vmul.f32 %v6372, 0.7978846
  %v6389 = vmul.f32 %v6373, 0.7978846
  %v6390 = vmul.f32 %v6374, 0.7978846
  %v6391 = vmul.f32 %v6375, 0.7978846
  %v6392 = vmul.f32 %v6376, 0.7978846
  %v6393 = vmul.f32 %v6377, 0.7978846
  %v6394 = vmul.f32 %v6378, 0.7978846
  %v6395 = vmul.f32 %v6379, 0.7978846
  %v6396 = vmul.f32 %v6380, 0.7978846
  %v6397 = vmul.f32 %v6381, 0.7978846
  %v6398 = vmul.f32 %v6382, 0.7978846
  %v6399 = vmul.f32 %v6383, 0.7978846
  %v6400 = vmul.f32 %v6384, 0.7978846
  %v6401 = vmul.f32 %v6385, 0.7978846
  %v6402 = vtanh.pop %v6386
  %v6403 = vtanh.pop %v6387
  %v6404 = vtanh.pop %v6388
  %v6405 = vtanh.pop %v6389
  %v6406 = vtanh.pop %v6390
  %v6407 = vtanh.pop %v6391
  %v6408 = vtanh.pop %v6392
  %v6409 = vtanh.pop %v6393
  %v6410 = vtanh.pop %v6394
  %v6411 = vtanh.pop %v6395
  %v6412 = vtanh.pop %v6396
  %v6413 = vtanh.pop %v6397
  %v6414 = vtanh.pop %v6398
  %v6415 = vtanh.pop %v6399
  %v6416 = vtanh.pop %v6400
  %v6417 = vtanh.pop %v6401
  %v6418 = vadd.f32 %v6402, 1.0
  %v6419 = vadd.f32 %v6403, 1.0
  %v6420 = vadd.f32 %v6404, 1.0
  %v6421 = vadd.f32 %v6405, 1.0
  %v6422 = vadd.f32 %v6406, 1.0
  %v6423 = vadd.f32 %v6407, 1.0
  %v6424 = vadd.f32 %v6408, 1.0
  %v6425 = vadd.f32 %v6409, 1.0
  %v6426 = vadd.f32 %v6410, 1.0
  %v6427 = vadd.f32 %v6411, 1.0
  %v6428 = vadd.f32 %v6412, 1.0
  %v6429 = vadd.f32 %v6413, 1.0
  %v6430 = vadd.f32 %v6414, 1.0
  %v6431 = vadd.f32 %v6415, 1.0
  %v6432 = vadd.f32 %v6416, 1.0
  %v6433 = vadd.f32 %v6417, 1.0
  %v6434 = vmul.f32 %v6306, %v6418
  %v6435 = vmul.f32 %v6307, %v6419
  %v6436 = vmul.f32 %v6308, %v6420
  %v6437 = vmul.f32 %v6309, %v6421
  %v6438 = vmul.f32 %v6310, %v6422
  %v6439 = vmul.f32 %v6311, %v6423
  %v6440 = vmul.f32 %v6312, %v6424
  %v6441 = vmul.f32 %v6313, %v6425
  %v6442 = vmul.f32 %v6314, %v6426
  %v6443 = vmul.f32 %v6315, %v6427
  %v6444 = vmul.f32 %v6316, %v6428
  %v6445 = vmul.f32 %v6317, %v6429
  %v6446 = vmul.f32 %v6318, %v6430
  %v6447 = vmul.f32 %v6319, %v6431
  %v6448 = vmul.f32 %v6320, %v6432
  %v6449 = vmul.f32 %v6321, %v6433
  %v6450 = vpack.c.bf16 %v6438, %v6434
  %v6451 = vpack.c.bf16 %v6439, %v6435
  %v6452 = vpack.c.bf16 %v6440, %v6436
  %v6453 = vpack.c.bf16 %v6441, %v6437
  %v6454 = vpack.c.bf16 %v6446, %v6442
  %v6455 = vpack.c.bf16 %v6447, %v6443
  %v6456 = vpack.c.bf16 %v6448, %v6444
  %v6457 = vpack.c.bf16 %v6449, %v6445
  %v6458 = vld [vmem:[%s4] sm:$0xf]
  %v6459 = vld [vmem:[%s4 + $0x4] sm:$0xf]
  %v6460 = vld [vmem:[%s4 + $0x8] sm:$0xf]
  %v6461 = vld [vmem:[%s4 + $0xc] sm:$0xf]
  %v6462 = vld [vmem:[%s4 + $0x10] sm:$0xf]
  %v6463 = vld [vmem:[%s4 + $0x14] sm:$0xf]
  %v6464 = vld [vmem:[%s4 + $0x18] sm:$0xf]
  %v6465 = vld [vmem:[%s4 + $0x1c] sm:$0xf]
  %v6466 = vld [vmem:[%s4 + $0x20] sm:$0xf]
  %v6467 = vld [vmem:[%s4 + $0x24] sm:$0xf]
  %v6468 = vld [vmem:[%s4 + $0x28] sm:$0xf]
  %v6469 = vld [vmem:[%s4 + $0x2c] sm:$0xf]
  %v6470 = vld [vmem:[%s4 + $0x30] sm:$0xf]
  %v6471 = vld [vmem:[%s4 + $0x34] sm:$0xf]
  %v6472 = vld [vmem:[%s4 + $0x38] sm:$0xf]
  %v6473 = vld [vmem:[%s4 + $0x3c] sm:$0xf]
  %v6474 = vld [vmem:[%s4 + $0x40] sm:$0xf]
  %v6475 = vld [vmem:[%s4 + $0x44] sm:$0xf]
  %v6476 = vld [vmem:[%s4 + $0x48] sm:$0xf]
  %v6477 = vld [vmem:[%s4 + $0x4c] sm:$0xf]
  %v6478 = vld [vmem:[%s4 + $0x50] sm:$0xf]
  %v6479 = vld [vmem:[%s4 + $0x54] sm:$0xf]
  %v6480 = vld [vmem:[%s4 + $0x58] sm:$0xf]
  %v6481 = vld [vmem:[%s4 + $0x5c] sm:$0xf]
  %v6482 = vld [vmem:[%s4 + $0x60] sm:$0xf]
  %v6483 = vld [vmem:[%s4 + $0x64] sm:$0xf]
  %v6484 = vld [vmem:[%s4 + $0x68] sm:$0xf]
  %v6485 = vld [vmem:[%s4 + $0x6c] sm:$0xf]
  %v6486 = vld [vmem:[%s4 + $0x70] sm:$0xf]
  %v6487 = vld [vmem:[%s4 + $0x74] sm:$0xf]
  %v6488 = vld [vmem:[%s4 + $0x78] sm:$0xf]
  %v6489 = vld [vmem:[%s4 + $0x7c] sm:$0xf]
  %v6490 = vld [vmem:[%s4 + $0x80] sm:$0xf]
  %v6491 = vld [vmem:[%s4 + $0x84] sm:$0xf]
  %v6492 = vld [vmem:[%s4 + $0x88] sm:$0xf]
  %v6493 = vld [vmem:[%s4 + $0x8c] sm:$0xf]
  %v6494 = vld [vmem:[%s4 + $0x90] sm:$0xf]
  %v6495 = vld [vmem:[%s4 + $0x94] sm:$0xf]
  %v6496 = vld [vmem:[%s4 + $0x98] sm:$0xf]
  %v6497 = vld [vmem:[%s4 + $0x9c] sm:$0xf]
  %v6498 = vld [vmem:[%s4 + $0xa0] sm:$0xf]
  %v6499 = vld [vmem:[%s4 + $0xa4] sm:$0xf]
  %v6500 = vld [vmem:[%s4 + $0xa8] sm:$0xf]
  %v6501 = vld [vmem:[%s4 + $0xac] sm:$0xf]
  %v6502 = vld [vmem:[%s4 + $0xb0] sm:$0xf]
  %v6503 = vld [vmem:[%s4 + $0xb4] sm:$0xf]
  %v6504 = vld [vmem:[%s4 + $0xb8] sm:$0xf]
  %v6505 = vld [vmem:[%s4 + $0xbc] sm:$0xf]
  %v6506 = vld [vmem:[%s4 + $0xc0] sm:$0xf]
  %v6507 = vld [vmem:[%s4 + $0xc4] sm:$0xf]
  %v6508 = vld [vmem:[%s4 + $0xc8] sm:$0xf]
  %v6509 = vld [vmem:[%s4 + $0xcc] sm:$0xf]
  %v6510 = vld [vmem:[%s4 + $0xd0] sm:$0xf]
  %v6511 = vld [vmem:[%s4 + $0xd4] sm:$0xf]
  %v6512 = vld [vmem:[%s4 + $0xd8] sm:$0xf]
  %v6513 = vld [vmem:[%s4 + $0xdc] sm:$0xf]
  %v6514 = vld [vmem:[%s4 + $0xe0] sm:$0xf]
  %v6515 = vld [vmem:[%s4 + $0xe4] sm:$0xf]
  %v6516 = vld [vmem:[%s4 + $0xe8] sm:$0xf]
  %v6517 = vld [vmem:[%s4 + $0xec] sm:$0xf]
  %v6518 = vld [vmem:[%s4 + $0xf0] sm:$0xf]
  %v6519 = vld [vmem:[%s4 + $0xf4] sm:$0xf]
  %v6520 = vld [vmem:[%s4 + $0xf8] sm:$0xf]
  %v6521 = vld [vmem:[%s4 + $0xfc] sm:$0xf]
  %v6522 = vld [vmem:[%s6 + $0x10] sm:$0x1]
  %s6524 = vtos %v6522
  %v6525 = vstv %s6524
  %v6591 = vunpack.c.l.b16 %v6458
  %v6592 = vunpack.c.l.b16 %v6459
  %v6593 = vunpack.c.l.b16 %v6460
  %v6594 = vunpack.c.l.b16 %v6461
  %v6595 = vunpack.c.l.b16 %v6462
  %v6596 = vunpack.c.l.b16 %v6463
  %v6597 = vunpack.c.l.b16 %v6464
  %v6598 = vunpack.c.l.b16 %v6465
  %v6599 = vunpack.c.l.b16 %v6466
  %v6600 = vunpack.c.l.b16 %v6467
  %v6601 = vunpack.c.l.b16 %v6468
  %v6602 = vunpack.c.l.b16 %v6469
  %v6603 = vunpack.c.l.b16 %v6470
  %v6604 = vunpack.c.l.b16 %v6471
  %v6605 = vunpack.c.l.b16 %v6472
  %v6606 = vunpack.c.l.b16 %v6473
  %v6607 = vunpack.c.l.b16 %v6474
  %v6608 = vunpack.c.l.b16 %v6475
  %v6609 = vunpack.c.l.b16 %v6476
  %v6610 = vunpack.c.l.b16 %v6477
  %v6611 = vunpack.c.l.b16 %v6478
  %v6612 = vunpack.c.l.b16 %v6479
  %v6613 = vunpack.c.l.b16 %v6480
  %v6614 = vunpack.c.l.b16 %v6481
  %v6615 = vunpack.c.l.b16 %v6482
  %v6616 = vunpack.c.l.b16 %v6483
  %v6617 = vunpack.c.l.b16 %v6484
  %v6618 = vunpack.c.l.b16 %v6485
  %v6619 = vunpack.c.l.b16 %v6486
  %v6620 = vunpack.c.l.b16 %v6487
  %v6621 = vunpack.c.l.b16 %v6488
  %v6622 = vunpack.c.l.b16 %v6489
  %v6623 = vunpack.c.l.b16 %v6490
  %v6624 = vunpack.c.l.b16 %v6491
  %v6625 = vunpack.c.l.b16 %v6492
  %v6626 = vunpack.c.l.b16 %v6493
  %v6627 = vunpack.c.l.b16 %v6494
  %v6628 = vunpack.c.l.b16 %v6495
  %v6629 = vunpack.c.l.b16 %v6496
  %v6630 = vunpack.c.l.b16 %v6497
  %v6631 = vunpack.c.l.b16 %v6498
  %v6632 = vunpack.c.l.b16 %v6499
  %v6633 = vunpack.c.l.b16 %v6500
  %v6634 = vunpack.c.l.b16 %v6501
  %v6635 = vunpack.c.l.b16 %v6502
  %v6636 = vunpack.c.l.b16 %v6503
  %v6637 = vunpack.c.l.b16 %v6504
  %v6638 = vunpack.c.l.b16 %v6505
  %v6639 = vunpack.c.l.b16 %v6506
  %v6640 = vunpack.c.l.b16 %v6507
  %v6641 = vunpack.c.l.b16 %v6508
  %v6642 = vunpack.c.l.b16 %v6509
  %v6643 = vunpack.c.l.b16 %v6510
  %v6644 = vunpack.c.l.b16 %v6511
  %v6645 = vunpack.c.l.b16 %v6512
  %v6646 = vunpack.c.l.b16 %v6513
  %v6647 = vunpack.c.l.b16 %v6514
  %v6648 = vunpack.c.l.b16 %v6515
  %v6649 = vunpack.c.l.b16 %v6516
  %v6650 = vunpack.c.l.b16 %v6517
  %v6651 = vunpack.c.l.b16 %v6518
  %v6652 = vunpack.c.l.b16 %v6519
  %v6653 = vunpack.c.l.b16 %v6520
  %v6654 = vunpack.c.l.b16 %v6521
  %v6655 = vpack.c.b16 %v6592, %v6591
  %v6656 = vpack.c.b16 %v6594, %v6593
  %v6657 = vpack.c.b16 %v6596, %v6595
  %v6658 = vpack.c.b16 %v6598, %v6597
  %v6659 = vpack.c.b16 %v6600, %v6599
  %v6660 = vpack.c.b16 %v6602, %v6601
  %v6661 = vpack.c.b16 %v6604, %v6603
  %v6662 = vpack.c.b16 %v6606, %v6605
  %v6663 = vpack.c.b16 %v6608, %v6607
  %v6664 = vpack.c.b16 %v6610, %v6609
  %v6665 = vpack.c.b16 %v6612, %v6611
  %v6666 = vpack.c.b16 %v6614, %v6613
  %v6667 = vpack.c.b16 %v6616, %v6615
  %v6668 = vpack.c.b16 %v6618, %v6617
  %v6669 = vpack.c.b16 %v6620, %v6619
  %v6670 = vpack.c.b16 %v6622, %v6621
  %v6671 = vpack.c.b16 %v6624, %v6623
  %v6672 = vpack.c.b16 %v6626, %v6625
  %v6673 = vpack.c.b16 %v6628, %v6627
  %v6674 = vpack.c.b16 %v6630, %v6629
  %v6675 = vpack.c.b16 %v6632, %v6631
  %v6676 = vpack.c.b16 %v6634, %v6633
  %v6677 = vpack.c.b16 %v6636, %v6635
  %v6678 = vpack.c.b16 %v6638, %v6637
  %v6679 = vpack.c.b16 %v6640, %v6639
  %v6680 = vpack.c.b16 %v6642, %v6641
  %v6681 = vpack.c.b16 %v6644, %v6643
  %v6682 = vpack.c.b16 %v6646, %v6645
  %v6683 = vpack.c.b16 %v6648, %v6647
  %v6684 = vpack.c.b16 %v6650, %v6649
  %v6685 = vpack.c.b16 %v6652, %v6651
  %v6686 = vpack.c.b16 %v6654, %v6653
  %6719 = vmatprep.subr.bf16.mxu0 0
  %6720 = vmatpush1.bf16.msra.mxu0 %v6655
  %6721 = vmatprep.subr.bf16.mxu0 0
  %6722 = vmatpush1.bf16.msra.mxu0 %v6656
  %6723 = vmatprep.subr.bf16.mxu0 0
  %6724 = vmatpush1.bf16.msra.mxu0 %v6657
  %6725 = vmatprep.subr.bf16.mxu0 0
  %6726 = vmatpush1.bf16.msra.mxu0 %v6658
  %6727 = vmatprep.subr.bf16.mxu0 0
  %6728 = vmatpush1.bf16.msra.mxu0 %v6659
  %6729 = vmatprep.subr.bf16.mxu0 0
  %6730 = vmatpush1.bf16.msra.mxu0 %v6660
  %6731 = vmatprep.subr.bf16.mxu0 0
  %6732 = vmatpush1.bf16.msra.mxu0 %v6661
  %6733 = vmatprep.subr.bf16.mxu0 0
  %6734 = vmatpush1.bf16.msra.mxu0 %v6662
  %6735 = vmatprep.subr.bf16.mxu0 0
  %6736 = vmatpush1.bf16.msra.mxu0 %v6663
  %6737 = vmatprep.subr.bf16.mxu0 0
  %6738 = vmatpush1.bf16.msra.mxu0 %v6664
  %6739 = vmatprep.subr.bf16.mxu0 0
  %6740 = vmatpush1.bf16.msra.mxu0 %v6665
  %6741 = vmatprep.subr.bf16.mxu0 0
  %6742 = vmatpush1.bf16.msra.mxu0 %v6666
  %6743 = vmatprep.subr.bf16.mxu0 0
  %6744 = vmatpush1.bf16.msra.mxu0 %v6667
  %6745 = vmatprep.subr.bf16.mxu0 0
  %6746 = vmatpush1.bf16.msra.mxu0 %v6668
  %6747 = vmatprep.subr.bf16.mxu0 0
  %6748 = vmatpush1.bf16.msra.mxu0 %v6669
  %6749 = vmatprep.subr.bf16.mxu0 0
  %6750 = vmatpush1.bf16.msra.mxu0 %v6670
  %6751 = vmatprep.mubr.bf16.mxu0 %v6451
  %6752 = vmatmul.mubr.bf16.gmra.mrb[0].mxu0 %v6450
  %v6753 = vpop.f32.mrb[0].mxu0
  %v6754 = vadd.f32 %v6525, %v6753
  %v6755 = vpop.f32.mrb[0].mxu0
  %v6756 = vpop.f32.mrb[0].mxu0
  %v6757 = vadd.f32 %v6525, %v6756
  %v6758 = vpop.f32.mrb[0].mxu0
  %6759 = vmatprep.mubr.bf16.mxu0 %v6455
  %6760 = vmatmul.mubr.bf16.gmra.mrb[0].mxu0 %v6454
  %v6761 = vpop.f32.mrb[0].mxu0
  %v6762 = vadd.f32 %v6525, %v6761
  %v6763 = vpop.f32.mrb[0].mxu0
  %v6764 = vpop.f32.mrb[0].mxu0
  %v6765 = vadd.f32 %v6525, %v6764
  %v6766 = vpop.f32.mrb[0].mxu0
  %6767 = vdwg.mxu0
  %6768 = vmatprep.subr.bf16.mxu0 0
  %6769 = vmatpush1.bf16.msra.mxu0 %v6671
  %6770 = vmatprep.subr.bf16.mxu0 0
  %6771 = vmatpush1.bf16.msra.mxu0 %v6672
  %6772 = vmatprep.subr.bf16.mxu0 0
  %6773 = vmatpush1.bf16.msra.mxu0 %v6673
  %6774 = vmatprep.subr.bf16.mxu0 0
  %6775 = vmatpush1.bf16.msra.mxu0 %v6674
  %6776 = vmatprep.subr.bf16.mxu0 0
  %6777 = vmatpush1.bf16.msra.mxu0 %v6675
  %6778 = vmatprep.subr.bf16.mxu0 0
  %6779 = vmatpush1.bf16.msra.mxu0 %v6676
  %6780 = vmatprep.subr.bf16.mxu0 0
  %6781 = vmatpush1.bf16.msra.mxu0 %v6677
  %6782 = vmatprep.subr.bf16.mxu0 0
  %6783 = vmatpush1.bf16.msra.mxu0 %v6678
  %6784 = vmatprep.subr.bf16.mxu0 0
  %6785 = vmatpush1.bf16.msra.mxu0 %v6679
  %6786 = vmatprep.subr.bf16.mxu0 0
  %6787 = vmatpush1.bf16.msra.mxu0 %v6680
  %6788 = vmatprep.subr.bf16.mxu0 0
  %6789 = vmatpush1.bf16.msra.mxu0 %v6681
  %6790 = vmatprep.subr.bf16.mxu0 0
  %6791 = vmatpush1.bf16.msra.mxu0 %v6682
  %6792 = vmatprep.subr.bf16.mxu0 0
  %6793 = vmatpush1.bf16.msra.mxu0 %v6683
  %6794 = vmatprep.subr.bf16.mxu0 0
  %6795 = vmatpush1.bf16.msra.mxu0 %v6684
  %6796 = vmatprep.subr.bf16.mxu0 0
  %6797 = vmatpush1.bf16.msra.mxu0 %v6685
  %6798 = vmatprep.subr.bf16.mxu0 0
  %6799 = vmatpush1.bf16.msra.mxu0 %v6686
  %6800 = vmatprep.mubr.bf16.mxu0 %v6453
  %6801 = vmatmul.mubr.bf16.gmra.mrb[0].mxu0 %v6452
  %v6802 = vpop.f32.mrb[0].mxu0
  %v6803 = vadd.f32 %v6754, %v6802
  %v6804 = vpop.f32.mrb[0].mxu0
  %v6805 = vpop.f32.mrb[0].mxu0
  %v6806 = vadd.f32 %v6757, %v6805
  %v6807 = vpop.f32.mrb[0].mxu0
  %6808 = vmatprep.mubr.bf16.mxu0 %v6457
  %6809 = vmatmul.mubr.bf16.gmra.mrb[0].mxu0 %v6456
  %v6810 = vpop.f32.mrb[0].mxu0
  %v6811 = vadd.f32 %v6762, %v6810
  %v6812 = vpop.f32.mrb[0].mxu0
  %v6813 = vpop.f32.mrb[0].mxu0
  %v6814 = vadd.f32 %v6765, %v6813
  %v6815 = vpop.f32.mrb[0].mxu0
  %6816 = vdwg.mxu0
  %v6817 = vmul.f32 %v6803, 0.5
  %v6818 = vmul.f32 %v6806, 0.5
  %v6819 = vmul.f32 %v6811, 0.5
  %v6820 = vmul.f32 %v6814, 0.5
  %v6821 = vmul.f32 %v6803, 0.044715
  %v6822 = vmul.f32 %v6806, 0.044715
  %v6823 = vmul.f32 %v6811, 0.044715
  %v6824 = vmul.f32 %v6814, 0.044715
  %v6825 = vmul.f32 %v6821, %v6803
  %v6826 = vmul.f32 %v6822, %v6806
  %v6827 = vmul.f32 %v6823, %v6811
  %v6828 = vmul.f32 %v6824, %v6814
  %v6829 = vmul.f32 %v6825, %v6803
  %v6830 = vmul.f32 %v6826, %v6806
  %v6831 = vmul.f32 %v6827, %v6811
  %v6832 = vmul.f32 %v6828, %v6814
  %v6833 = vadd.f32 %v6803, %v6829
  %v6834 = vadd.f32 %v6806, %v6830
  %v6835 = vadd.f32 %v6811, %v6831
  %v6836 = vadd.f32 %v6814, %v6832
  %v6837 = vmul.f32 %v6833, 0.7978846
  %v6838 = vmul.f32 %v6834, 0.7978846
  %v6839 = vmul.f32 %v6835, 0.7978846
  %v6840 = vmul.f32 %v6836, 0.7978846
  %v6841 = vtanh.pop %v6837
  %v6842 = vtanh.pop %v6838
  %v6843 = vtanh.pop %v6839
  %v6844 = vtanh.pop %v6840
  %v6845 = vadd.f32 %v6841, 1.0
  %v6846 = vadd.f32 %v6842, 1.0
  %v6847 = vadd.f32 %v6843, 1.0
  %v6848 = vadd.f32 %v6844, 1.0
  %v6849 = vmul.f32 %v6817, %v6845
  %v6850 = vmul.f32 %v6818, %v6846
  %v6851 = vmul.f32 %v6819, %v6847
  %v6852 = vmul.f32 %v6820, %v6848
  %v6853 = vpack.c.bf16 %v6850, %v6849
  %v6854 = vpack.c.bf16 %v6852, %v6851
  %v6855 = vld [vmem:[%s5] sm:$0xff]
  %v6856 = vld [vmem:[%s5 + $0x8] sm:$0xff]
  %v6857 = vld [vmem:[%s5 + $0x10] sm:$0xff]
  %v6858 = vld [vmem:[%s5 + $0x18] sm:$0xff]
  %v6863 = vunpack.c.l.b16 %v6855
  %v6864 = vunpack.c.h.b16 %v6855
  %v6865 = vunpack.c.l.b16 %v6856
  %v6866 = vunpack.c.h.b16 %v6856
  %v6867 = vunpack.c.l.b16 %v6857
  %v6868 = vunpack.c.h.b16 %v6857
  %v6869 = vunpack.c.l.b16 %v6858
  %v6870 = vunpack.c.h.b16 %v6858
  %v6871 = vpack.c.b16 %v6867, %v6863
  %v6872 = vpack.c.b16 %v6868, %v6864
  %v6873 = vpack.c.b16 %v6869, %v6865
  %v6874 = vpack.c.b16 %v6870, %v6866
  %vm6879 = vcmask 130048
  %v6881 = vsel %vm6879, %v6853, 0
  %v6884 = vsel %vm6879, %v6854, 0
  %6886 = vmatprep.subr.bf16.mxu0 %v6872
  %6887 = vmatpush1.bf16.msra.mxu0 %v6871
  %6888 = vmatprep.subr.bf16.mxu0 0
  %6889 = vmatpush1.bf16.msra.mxu0 0
  %6890 = vmatprep.subr.bf16.mxu0 0
  %6891 = vmatpush1.bf16.msra.mxu0 0
  %6892 = vmatprep.subr.bf16.mxu0 0
  %6893 = vmatpush1.bf16.msra.mxu0 0
  %6894 = vmatprep.subr.bf16.mxu0 0
  %6895 = vmatpush1.bf16.msra.mxu0 0
  %6896 = vmatprep.subr.bf16.mxu0 0
  %6897 = vmatpush1.bf16.msra.mxu0 0
  %6898 = vmatprep.subr.bf16.mxu0 0
  %6899 = vmatpush1.bf16.msra.mxu0 0
  %6900 = vmatprep.subr.bf16.mxu0 0
  %6901 = vmatpush1.bf16.msra.mxu0 0
  %6902 = vmatprep.subr.bf16.mxu0 0
  %6903 = vmatpush1.bf16.msra.mxu0 0
  %6904 = vmatprep.subr.bf16.mxu0 0
  %6905 = vmatpush1.bf16.msra.mxu0 0
  %6906 = vmatprep.subr.bf16.mxu0 0
  %6907 = vmatpush1.bf16.msra.mxu0 0
  %6908 = vmatprep.subr.bf16.mxu0 0
  %6909 = vmatpush1.bf16.msra.mxu0 0
  %6910 = vmatprep.subr.bf16.mxu0 0
  %6911 = vmatpush1.bf16.msra.mxu0 0
  %6912 = vmatprep.subr.bf16.mxu0 0
  %6913 = vmatpush1.bf16.msra.mxu0 0
  %6914 = vmatprep.subr.bf16.mxu0 0
  %6915 = vmatpush1.bf16.msra.mxu0 0
  %6916 = vmatprep.subr.bf16.mxu0 0
  %6917 = vmatpush1.bf16.msra.mxu0 0
  %6918 = vmatprep.mubr.bf16.mxu0 0
  %6919 = vmatmul.mubr.bf16.gmra.mrb[0].mxu0 %v6881
  %v6920 = vpop.f32.mrb[0].mxu0
  %v6921 = vadd.f32 0.0, %v6920
  %v6922 = vpop.f32.mrb[0].mxu0
  %v6923 = vadd.f32 0.0, %v6922
  %v6924 = vpop.f32.mrb[0].mxu0
  %v6925 = vadd.f32 0.0, %v6924
  %v6926 = vpop.f32.mrb[0].mxu0
  %v6927 = vadd.f32 0.0, %v6926
  %6928 = vmatprep.mubr.bf16.mxu0 0
  %6929 = vmatmul.mubr.bf16.gmra.mrb[0].mxu0 %v6884
  %v6930 = vpop.f32.mrb[0].mxu0
  %v6931 = vadd.f32 0.0, %v6930
  %v6932 = vpop.f32.mrb[0].mxu0
  %v6933 = vadd.f32 0.0, %v6932
  %v6934 = vpop.f32.mrb[0].mxu0
  %v6935 = vadd.f32 0.0, %v6934
  %v6936 = vpop.f32.mrb[0].mxu0
  %v6937 = vadd.f32 0.0, %v6936
  %6938 = vdwg.mxu0
  %6939 = vmatprep.subr.bf16.mxu0 %v6874
  %6940 = vmatpush1.bf16.msra.mxu0 %v6873
  %6941 = vmatprep.subr.bf16.mxu0 0
  %6942 = vmatpush1.bf16.msra.mxu0 0
  %6943 = vmatprep.subr.bf16.mxu0 0
  %6944 = vmatpush1.bf16.msra.mxu0 0
  %6945 = vmatprep.subr.bf16.mxu0 0
  %6946 = vmatpush1.bf16.msra.mxu0 0
  %6947 = vmatprep.subr.bf16.mxu0 0
  %6948 = vmatpush1.bf16.msra.mxu0 0
  %6949 = vmatprep.subr.bf16.mxu0 0
  %6950 = vmatpush1.bf16.msra.mxu0 0
  %6951 = vmatprep.subr.bf16.mxu0 0
  %6952 = vmatpush1.bf16.msra.mxu0 0
  %6953 = vmatprep.subr.bf16.mxu0 0
  %6954 = vmatpush1.bf16.msra.mxu0 0
  %6955 = vmatprep.subr.bf16.mxu0 0
  %6956 = vmatpush1.bf16.msra.mxu0 0
  %6957 = vmatprep.subr.bf16.mxu0 0
  %6958 = vmatpush1.bf16.msra.mxu0 0
  %6959 = vmatprep.subr.bf16.mxu0 0
  %6960 = vmatpush1.bf16.msra.mxu0 0
  %6961 = vmatprep.subr.bf16.mxu0 0
  %6962 = vmatpush1.bf16.msra.mxu0 0
  %6963 = vmatprep.subr.bf16.mxu0 0
  %6964 = vmatpush1.bf16.msra.mxu0 0
  %6965 = vmatprep.subr.bf16.mxu0 0
  %6966 = vmatpush1.bf16.msra.mxu0 0
  %6967 = vmatprep.subr.bf16.mxu0 0
  %6968 = vmatpush1.bf16.msra.mxu0 0
  %6969 = vmatprep.subr.bf16.mxu0 0
  %6970 = vmatpush1.bf16.msra.mxu0 0
  %6971 = vmatprep.mubr.bf16.mxu0 0
  %6972 = vmatmul.mubr.bf16.gmra.mrb[0].mxu0 %v6881
  %v6973 = vpop.f32.mrb[0].mxu0
  %v6974 = vadd.f32 0.0, %v6973
  %v6975 = vpop.f32.mrb[0].mxu0
  %v6976 = vadd.f32 0.0, %v6975
  %v6977 = vpop.f32.mrb[0].mxu0
  %v6978 = vadd.f32 0.0, %v6977
  %v6979 = vpop.f32.mrb[0].mxu0
  %v6980 = vadd.f32 0.0, %v6979
  %6981 = vmatprep.mubr.bf16.mxu0 0
  %6982 = vmatmul.mubr.bf16.gmra.mrb[0].mxu0 %v6884
  %v6983 = vpop.f32.mrb[0].mxu0
  %v6984 = vadd.f32 0.0, %v6983
  %v6985 = vpop.f32.mrb[0].mxu0
  %v6986 = vadd.f32 0.0, %v6985
  %v6987 = vpop.f32.mrb[0].mxu0
  %v6988 = vadd.f32 0.0, %v6987
  %v6989 = vpop.f32.mrb[0].mxu0
  %v6990 = vadd.f32 0.0, %v6989
  %6991 = vdwg.mxu0
  %s6992 = scalar_lea.vmem %s7, 2
  %v6993 = vld [vmem:[%s6992] ss:$8 sm:$0xf]
  %v6994 = vsub.f32 %v6434, %v6921
  %v6995 = vsub.f32 %v6435, %v6923
  %v6996 = vsub.f32 %v6436, %v6974
  %v6997 = vsub.f32 %v6437, %v6976
  %v6998 = vsub.f32 %v6438, %v6925
  %v6999 = vsub.f32 %v6439, %v6927
  %v7000 = vsub.f32 %v6440, %v6978
  %v7001 = vsub.f32 %v6441, %v6980
  %v7002 = vsub.f32 %v6442, %v6931
  %v7003 = vsub.f32 %v6443, %v6933
  %v7004 = vsub.f32 %v6444, %v6984
  %v7005 = vsub.f32 %v6445, %v6986
  %v7006 = vsub.f32 %v6446, %v6935
  %v7007 = vsub.f32 %v6447, %v6937
  %v7008 = vsub.f32 %v6448, %v6988
  %v7009 = vsub.f32 %v6449, %v6990
  %v7011 = vlaneseq
  %v7012 = vshrl.u32 %v7011, 7
  %v7013 = vsub.s32 0, %v7012
  %v7014 = vrot.slane %v6993, %v7013
  %v7015 = vlaneseq
  %v7016 = vshrl.u32 %v7015, 7
  %v7017 = vsub.s32 1, %v7016
  %v7018 = vrot.slane %v6993, %v7017
  %v7019 = vlaneseq
  %v7020 = vshrl.u32 %v7019, 7
  %v7021 = vsub.s32 2, %v7020
  %v7022 = vrot.slane %v6993, %v7021
  %v7023 = vlaneseq
  %v7024 = vshrl.u32 %v7023, 7
  %v7025 = vsub.s32 3, %v7024
  %v7026 = vrot.slane %v6993, %v7025
  %v7031 = vmul.f32 %v7014, %v6994
  %v7032 = vmul.f32 %v7018, %v6995
  %v7033 = vmul.f32 %v7022, %v6996
  %v7034 = vmul.f32 %v7026, %v6997
  %v7035 = vmul.f32 %v7014, %v6998
  %v7036 = vmul.f32 %v7018, %v6999
  %v7037 = vmul.f32 %v7022, %v7000
  %v7038 = vmul.f32 %v7026, %v7001
  %v7039 = vmul.f32 %v7014, %v7002
  %v7040 = vmul.f32 %v7018, %v7003
  %v7041 = vmul.f32 %v7022, %v7004
  %v7042 = vmul.f32 %v7026, %v7005
  %v7043 = vmul.f32 %v7014, %v7006
  %v7044 = vmul.f32 %v7018, %v7007
  %v7045 = vmul.f32 %v7022, %v7008
  %v7046 = vmul.f32 %v7026, %v7009
  %v7047 = vadd.f32 %v6434, %v7031
  %v7048 = vadd.f32 %v6435, %v7032
  %v7049 = vadd.f32 %v6436, %v7033
  %v7050 = vadd.f32 %v6437, %v7034
  %v7051 = vadd.f32 %v6438, %v7035
  %v7052 = vadd.f32 %v6439, %v7036
  %v7053 = vadd.f32 %v6440, %v7037
  %v7054 = vadd.f32 %v6441, %v7038
  %v7055 = vadd.f32 %v6442, %v7039
  %v7056 = vadd.f32 %v6443, %v7040
  %v7057 = vadd.f32 %v6444, %v7041
  %v7058 = vadd.f32 %v6445, %v7042
  %v7059 = vadd.f32 %v6446, %v7043
  %v7060 = vadd.f32 %v6447, %v7044
  %v7061 = vadd.f32 %v6448, %v7045
  %v7062 = vadd.f32 %v6449, %v7046
  %v7063 = vld [vmem:[%s3] sm:$0xf]
  %v7064 = vld [vmem:[%s3 + $0x4] sm:$0xf]
  %v7065 = vld [vmem:[%s3 + $0x8] sm:$0xf]
  %v7066 = vld [vmem:[%s3 + $0xc] sm:$0xf]
  %v7067 = vld [vmem:[%s3 + $0x10] sm:$0xf]
  %v7068 = vld [vmem:[%s3 + $0x14] sm:$0xf]
  %v7069 = vld [vmem:[%s3 + $0x18] sm:$0xf]
  %v7070 = vld [vmem:[%s3 + $0x1c] sm:$0xf]
  %v7071 = vld [vmem:[%s3 + $0x20] sm:$0xf]
  %v7072 = vld [vmem:[%s3 + $0x24] sm:$0xf]
  %v7073 = vld [vmem:[%s3 + $0x28] sm:$0xf]
  %v7074 = vld [vmem:[%s3 + $0x2c] sm:$0xf]
  %v7075 = vld [vmem:[%s3 + $0x30] sm:$0xf]
  %v7076 = vld [vmem:[%s3 + $0x34] sm:$0xf]
  %v7077 = vld [vmem:[%s3 + $0x38] sm:$0xf]
  %v7078 = vld [vmem:[%s3 + $0x3c] sm:$0xf]
  %v7079 = vld [vmem:[%s3 + $0x40] sm:$0xf]
  %v7080 = vld [vmem:[%s3 + $0x44] sm:$0xf]
  %v7081 = vld [vmem:[%s3 + $0x48] sm:$0xf]
  %v7082 = vld [vmem:[%s3 + $0x4c] sm:$0xf]
  %v7083 = vld [vmem:[%s3 + $0x50] sm:$0xf]
  %v7084 = vld [vmem:[%s3 + $0x54] sm:$0xf]
  %v7085 = vld [vmem:[%s3 + $0x58] sm:$0xf]
  %v7086 = vld [vmem:[%s3 + $0x5c] sm:$0xf]
  %v7087 = vld [vmem:[%s3 + $0x60] sm:$0xf]
  %v7088 = vld [vmem:[%s3 + $0x64] sm:$0xf]
  %v7089 = vld [vmem:[%s3 + $0x68] sm:$0xf]
  %v7090 = vld [vmem:[%s3 + $0x6c] sm:$0xf]
  %v7091 = vld [vmem:[%s3 + $0x70] sm:$0xf]
  %v7092 = vld [vmem:[%s3 + $0x74] sm:$0xf]
  %v7093 = vld [vmem:[%s3 + $0x78] sm:$0xf]
  %v7094 = vld [vmem:[%s3 + $0x7c] sm:$0xf]
  %v7095 = vld [vmem:[%s3 + $0x80] sm:$0xf]
  %v7096 = vld [vmem:[%s3 + $0x84] sm:$0xf]
  %v7097 = vld [vmem:[%s3 + $0x88] sm:$0xf]
  %v7098 = vld [vmem:[%s3 + $0x8c] sm:$0xf]
  %v7099 = vld [vmem:[%s3 + $0x90] sm:$0xf]
  %v7100 = vld [vmem:[%s3 + $0x94] sm:$0xf]
  %v7101 = vld [vmem:[%s3 + $0x98] sm:$0xf]
  %v7102 = vld [vmem:[%s3 + $0x9c] sm:$0xf]
  %v7103 = vld [vmem:[%s3 + $0xa0] sm:$0xf]
  %v7104 = vld [vmem:[%s3 + $0xa4] sm:$0xf]
  %v7105 = vld [vmem:[%s3 + $0xa8] sm:$0xf]
  %v7106 = vld [vmem:[%s3 + $0xac] sm:$0xf]
  %v7107 = vld [vmem:[%s3 + $0xb0] sm:$0xf]
  %v7108 = vld [vmem:[%s3 + $0xb4] sm:$0xf]
  %v7109 = vld [vmem:[%s3 + $0xb8] sm:$0xf]
  %v7110 = vld [vmem:[%s3 + $0xbc] sm:$0xf]
  %v7111 = vld [vmem:[%s3 + $0xc0] sm:$0xf]
  %v7112 = vld [vmem:[%s3 + $0xc4] sm:$0xf]
  %v7113 = vld [vmem:[%s3 + $0xc8] sm:$0xf]
  %v7114 = vld [vmem:[%s3 + $0xcc] sm:$0xf]
  %v7115 = vld [vmem:[%s3 + $0xd0] sm:$0xf]
  %v7116 = vld [vmem:[%s3 + $0xd4] sm:$0xf]
  %v7117 = vld [vmem:[%s3 + $0xd8] sm:$0xf]
  %v7118 = vld [vmem:[%s3 + $0xdc] sm:$0xf]
  %v7119 = vld [vmem:[%s3 + $0xe0] sm:$0xf]
  %v7120 = vld [vmem:[%s3 + $0xe4] sm:$0xf]
  %v7121 = vld [vmem:[%s3 + $0xe8] sm:$0xf]
  %v7122 = vld [vmem:[%s3 + $0xec] sm:$0xf]
  %v7123 = vld [vmem:[%s3 + $0xf0] sm:$0xf]
  %v7124 = vld [vmem:[%s3 + $0xf4] sm:$0xf]
  %v7125 = vld [vmem:[%s3 + $0xf8] sm:$0xf]
  %v7126 = vld [vmem:[%s3 + $0xfc] sm:$0xf]
  %v7127 = vld [vmem:[%s6 + $0xe] sm:$0x1]
  %v7128 = vpack.c.bf16 %v7051, %v7047
  %v7129 = vpack.c.bf16 %v7052, %v7048
  %v7130 = vpack.c.bf16 %v7053, %v7049
  %v7131 = vpack.c.bf16 %v7054, %v7050
  %v7132 = vpack.c.bf16 %v7059, %v7055
  %v7133 = vpack.c.bf16 %v7060, %v7056
  %v7134 = vpack.c.bf16 %v7061, %v7057
  %v7135 = vpack.c.bf16 %v7062, %v7058
  %v7200 = vunpack.c.l.b16 %v7063
  %v7201 = vunpack.c.l.b16 %v7064
  %v7202 = vunpack.c.l.b16 %v7065
  %v7203 = vunpack.c.l.b16 %v7066
  %v7204 = vunpack.c.l.b16 %v7067
  %v7205 = vunpack.c.l.b16 %v7068
  %v7206 = vunpack.c.l.b16 %v7069
  %v7207 = vunpack.c.l.b16 %v7070
  %v7208 = vunpack.c.l.b16 %v7071
  %v7209 = vunpack.c.l.b16 %v7072
  %v7210 = vunpack.c.l.b16 %v7073
  %v7211 = vunpack.c.l.b16 %v7074
  %v7212 = vunpack.c.l.b16 %v7075
  %v7213 = vunpack.c.l.b16 %v7076
  %v7214 = vunpack.c.l.b16 %v7077
  %v7215 = vunpack.c.l.b16 %v7078
  %v7216 = vunpack.c.l.b16 %v7079
  %v7217 = vunpack.c.l.b16 %v7080
  %v7218 = vunpack.c.l.b16 %v7081
  %v7219 = vunpack.c.l.b16 %v7082
  %v7220 = vunpack.c.l.b16 %v7083
  %v7221 = vunpack.c.l.b16 %v7084
  %v7222 = vunpack.c.l.b16 %v7085
  %v7223 = vunpack.c.l.b16 %v7086
  %v7224 = vunpack.c.l.b16 %v7087
  %v7225 = vunpack.c.l.b16 %v7088
  %v7226 = vunpack.c.l.b16 %v7089
  %v7227 = vunpack.c.l.b16 %v7090
  %v7228 = vunpack.c.l.b16 %v7091
  %v7229 = vunpack.c.l.b16 %v7092
  %v7230 = vunpack.c.l.b16 %v7093
  %v7231 = vunpack.c.l.b16 %v7094
  %v7232 = vunpack.c.l.b16 %v7095
  %v7233 = vunpack.c.l.b16 %v7096
  %v7234 = vunpack.c.l.b16 %v7097
  %v7235 = vunpack.c.l.b16 %v7098
  %v7236 = vunpack.c.l.b16 %v7099
  %v7237 = vunpack.c.l.b16 %v7100
  %v7238 = vunpack.c.l.b16 %v7101
  %v7239 = vunpack.c.l.b16 %v7102
  %v7240 = vunpack.c.l.b16 %v7103
  %v7241 = vunpack.c.l.b16 %v7104
  %v7242 = vunpack.c.l.b16 %v7105
  %v7243 = vunpack.c.l.b16 %v7106
  %v7244 = vunpack.c.l.b16 %v7107
  %v7245 = vunpack.c.l.b16 %v7108
  %v7246 = vunpack.c.l.b16 %v7109
  %v7247 = vunpack.c.l.b16 %v7110
  %v7248 = vunpack.c.l.b16 %v7111
  %v7249 = vunpack.c.l.b16 %v7112
  %v7250 = vunpack.c.l.b16 %v7113
  %v7251 = vunpack.c.l.b16 %v7114
  %v7252 = vunpack.c.l.b16 %v7115
  %v7253 = vunpack.c.l.b16 %v7116
  %v7254 = vunpack.c.l.b16 %v7117
  %v7255 = vunpack.c.l.b16 %v7118
  %v7256 = vunpack.c.l.b16 %v7119
  %v7257 = vunpack.c.l.b16 %v7120
  %v7258 = vunpack.c.l.b16 %v7121
  %v7259 = vunpack.c.l.b16 %v7122
  %v7260 = vunpack.c.l.b16 %v7123
  %v7261 = vunpack.c.l.b16 %v7124
  %v7262 = vunpack.c.l.b16 %v7125
  %v7263 = vunpack.c.l.b16 %v7126
  %v7264 = vpack.c.b16 %v7201, %v7200
  %v7265 = vpack.c.b16 %v7203, %v7202
  %v7266 = vpack.c.b16 %v7205, %v7204
  %v7267 = vpack.c.b16 %v7207, %v7206
  %v7268 = vpack.c.b16 %v7209, %v7208
  %v7269 = vpack.c.b16 %v7211, %v7210
  %v7270 = vpack.c.b16 %v7213, %v7212
  %v7271 = vpack.c.b16 %v7215, %v7214
  %v7272 = vpack.c.b16 %v7217, %v7216
  %v7273 = vpack.c.b16 %v7219, %v7218
  %v7274 = vpack.c.b16 %v7221, %v7220
  %v7275 = vpack.c.b16 %v7223, %v7222
  %v7276 = vpack.c.b16 %v7225, %v7224
  %v7277 = vpack.c.b16 %v7227, %v7226
  %v7278 = vpack.c.b16 %v7229, %v7228
  %v7279 = vpack.c.b16 %v7231, %v7230
  %v7280 = vpack.c.b16 %v7233, %v7232
  %v7281 = vpack.c.b16 %v7235, %v7234
  %v7282 = vpack.c.b16 %v7237, %v7236
  %v7283 = vpack.c.b16 %v7239, %v7238
  %v7284 = vpack.c.b16 %v7241, %v7240
  %v7285 = vpack.c.b16 %v7243, %v7242
  %v7286 = vpack.c.b16 %v7245, %v7244
  %v7287 = vpack.c.b16 %v7247, %v7246
  %v7288 = vpack.c.b16 %v7249, %v7248
  %v7289 = vpack.c.b16 %v7251, %v7250
  %v7290 = vpack.c.b16 %v7253, %v7252
  %v7291 = vpack.c.b16 %v7255, %v7254
  %v7292 = vpack.c.b16 %v7257, %v7256
  %v7293 = vpack.c.b16 %v7259, %v7258
  %v7294 = vpack.c.b16 %v7261, %v7260
  %v7295 = vpack.c.b16 %v7263, %v7262
  %7328 = vmatprep.subr.bf16.mxu0 0
  %7329 = vmatpush1.bf16.msra.mxu0 %v7264
  %7330 = vmatprep.subr.bf16.mxu0 0
  %7331 = vmatpush1.bf16.msra.mxu0 %v7265
  %7332 = vmatprep.subr.bf16.mxu0 0
  %7333 = vmatpush1.bf16.msra.mxu0 %v7266
  %7334 = vmatprep.subr.bf16.mxu0 0
  %7335 = vmatpush1.bf16.msra.mxu0 %v7267
  %7336 = vmatprep.subr.bf16.mxu0 0
  %7337 = vmatpush1.bf16.msra.mxu0 %v7268
  %7338 = vmatprep.subr.bf16.mxu0 0
  %7339 = vmatpush1.bf16.msra.mxu0 %v7269
  %7340 = vmatprep.subr.bf16.mxu0 0
  %7341 = vmatpush1.bf16.msra.mxu0 %v7270
  %7342 = vmatprep.subr.bf16.mxu0 0
  %7343 = vmatpush1.bf16.msra.mxu0 %v7271
  %7344 = vmatprep.subr.bf16.mxu0 0
  %7345 = vmatpush1.bf16.msra.mxu0 %v7272
  %7346 = vmatprep.subr.bf16.mxu0 0
  %7347 = vmatpush1.bf16.msra.mxu0 %v7273
  %7348 = vmatprep.subr.bf16.mxu0 0
  %7349 = vmatpush1.bf16.msra.mxu0 %v7274
  %7350 = vmatprep.subr.bf16.mxu0 0
  %7351 = vmatpush1.bf16.msra.mxu0 %v7275
  %7352 = vmatprep.subr.bf16.mxu0 0
  %7353 = vmatpush1.bf16.msra.mxu0 %v7276
  %7354 = vmatprep.subr.bf16.mxu0 0
  %7355 = vmatpush1.bf16.msra.mxu0 %v7277
  %7356 = vmatprep.subr.bf16.mxu0 0
  %7357 = vmatpush1.bf16.msra.mxu0 %v7278
  %7358 = vmatprep.subr.bf16.mxu0 0
  %7359 = vmatpush1.bf16.msra.mxu0 %v7279
  %7360 = vmatprep.mubr.bf16.mxu0 %v7129
  %7361 = vmatmul.mubr.bf16.gmra.mrb[0].mxu0 %v7128
  %v7362 = vpop.f32.mrb[0].mxu0
  %v7363 = vadd.f32 0.0, %v7362
  %v7364 = vpop.f32.mrb[0].mxu0
  %v7365 = vpop.f32.mrb[0].mxu0
  %v7366 = vadd.f32 0.0, %v7365
  %v7367 = vpop.f32.mrb[0].mxu0
  %7368 = vmatprep.mubr.bf16.mxu0 %v7133
  %7369 = vmatmul.mubr.bf16.gmra.mrb[0].mxu0 %v7132
  %v7370 = vpop.f32.mrb[0].mxu0
  %v7371 = vadd.f32 0.0, %v7370
  %v7372 = vpop.f32.mrb[0].mxu0
  %v7373 = vpop.f32.mrb[0].mxu0
  %v7374 = vadd.f32 0.0, %v7373
  %v7375 = vpop.f32.mrb[0].mxu0
  %7376 = vdwg.mxu0
  %7377 = vmatprep.subr.bf16.mxu0 0
  %7378 = vmatpush1.bf16.msra.mxu0 %v7280
  %7379 = vmatprep.subr.bf16.mxu0 0
  %7380 = vmatpush1.bf16.msra.mxu0 %v7281
  %7381 = vmatprep.subr.bf16.mxu0 0
  %7382 = vmatpush1.bf16.msra.mxu0 %v7282
  %7383 = vmatprep.subr.bf16.mxu0 0
  %7384 = vmatpush1.bf16.msra.mxu0 %v7283
  %7385 = vmatprep.subr.bf16.mxu0 0
  %7386 = vmatpush1.bf16.msra.mxu0 %v7284
  %7387 = vmatprep.subr.bf16.mxu0 0
  %7388 = vmatpush1.bf16.msra.mxu0 %v7285
  %7389 = vmatprep.subr.bf16.mxu0 0
  %7390 = vmatpush1.bf16.msra.mxu0 %v7286
  %7391 = vmatprep.subr.bf16.mxu0 0
  %7392 = vmatpush1.bf16.msra.mxu0 %v7287
  %7393 = vmatprep.subr.bf16.mxu0 0
  %7394 = vmatpush1.bf16.msra.mxu0 %v7288
  %7395 = vmatprep.subr.bf16.mxu0 0
  %7396 = vmatpush1.bf16.msra.mxu0 %v7289
  %7397 = vmatprep.subr.bf16.mxu0 0
  %7398 = vmatpush1.bf16.msra.mxu0 %v7290
  %7399 = vmatprep.subr.bf16.mxu0 0
  %7400 = vmatpush1.bf16.msra.mxu0 %v7291
  %7401 = vmatprep.subr.bf16.mxu0 0
  %7402 = vmatpush1.bf16.msra.mxu0 %v7292
  %7403 = vmatprep.subr.bf16.mxu0 0
  %7404 = vmatpush1.bf16.msra.mxu0 %v7293
  %7405 = vmatprep.subr.bf16.mxu0 0
  %7406 = vmatpush1.bf16.msra.mxu0 %v7294
  %7407 = vmatprep.subr.bf16.mxu0 0
  %7408 = vmatpush1.bf16.msra.mxu0 %v7295
  %7409 = vmatprep.mubr.bf16.mxu0 %v7131
  %7410 = vmatmul.mubr.bf16.gmra.mrb[0].mxu0 %v7130
  %v7411 = vpop.f32.mrb[0].mxu0
  %v7412 = vadd.f32 %v7363, %v7411
  %v7413 = vpop.f32.mrb[0].mxu0
  %v7414 = vpop.f32.mrb[0].mxu0
  %v7415 = vadd.f32 %v7366, %v7414
  %v7416 = vpop.f32.mrb[0].mxu0
  %7417 = vmatprep.mubr.bf16.mxu0 %v7135
  %7418 = vmatmul.mubr.bf16.gmra.mrb[0].mxu0 %v7134
  %v7419 = vpop.f32.mrb[0].mxu0
  %v7420 = vadd.f32 %v7371, %v7419
  %v7421 = vpop.f32.mrb[0].mxu0
  %v7422 = vpop.f32.mrb[0].mxu0
  %v7423 = vadd.f32 %v7374, %v7422
  %v7424 = vpop.f32.mrb[0].mxu0
  %7425 = vdwg.mxu0
  %v7426 = vlaneseq
  %v7427 = vshrl.u32 %v7426, 7
  %v7428 = vsub.s32 0, %v7427
  %v7429 = vrot.slane %v7127, %v7428
  %v7430 = vadd.f32 %v7412, %v7429
  %v7431 = vadd.f32 %v7415, %v7429
  %v7432 = vadd.f32 %v7420, %v7429
  %v7433 = vadd.f32 %v7423, %v7429
  %v7434 = vld [vmem:[%s6 + $0xf] sm:$0x1]
  %v7435 = vlaneseq
  %v7436 = vshrl.u32 %v7435, 7
  %v7437 = vsub.s32 0, %v7436
  %v7438 = vrot.slane %v7434, %v7437
  %v7439 = vmul.f32 %v7438, %v7430
  %v7440 = vmul.f32 %v7438, %v7431
  %v7441 = vmul.f32 %v7438, %v7432
  %v7442 = vmul.f32 %v7438, %v7433
  %v7443 = vadd.f32 %v4375, %v7439
  %v7444 = vadd.f32 %v4376, %v7440
  %v7445 = vadd.f32 %v4377, %v7441
  %v7446 = vadd.f32 %v4378, %v7442
  %7447 = vst [vmem:[%s8] sm:$0xff] %v7443
  %7448 = vst [vmem:[%s8 + $0x8] sm:$0xff] %v7444
  %7449 = vst [vmem:[%s8 + $0x10] sm:$0xff] %v7445
  %7450 = vst [vmem:[%s8 + $0x18] sm:$0xff] %v7446
  // Predicated region
  $region34: #{moga_block.1} parent=0 // pred_check
    _
  $region35: #{moga_block.1} parent=0 // pred_check_branch
    %7452 = sbr.rel (0) target = $region37
  $region36: #{moga_block.1} parent=0 // pred_region
    _
  $region37: #{moga_block.1} parent=0 // pred_fallthru
    _
  // Predicated region
  $region38: #{moga_block.1} parent=0 // pred_check
    _
  $region39: #{moga_block.1} parent=0 // pred_check_branch
    %7454 = sbr.rel (0) target = $region41
  $region40: #{moga_block.1} parent=0 // pred_region
    _
  $region41: #{moga_block.1} parent=0 // pred_fallthru
    _

</llo_original>
